<compile_context>
chip_gen: v7x
topology: tpu7x:2x2x1
jax: 0.10.0
libtpu: 0.0.40
codegen_flags: <defaults>
</compile_context>

<pallas_src>
import math
import functools

import jax
import jax.numpy as jnp
from jax import lax
from jax.experimental import pallas as pl
from jax.experimental.pallas import tpu as pltpu


def aether_block_kernel(xslab_ref, lkw_ref, bias_ref, gamma_ref, beta_ref,
                        w1_ref, b1_ref, w2_ref, b2_ref, o_ref, *, row_chunk):
    # o_ref block: (1, tH, W, C); xslab_ref block: (1, 1, tH + 2*pad, Wp, C)
    _, tH, W, C = o_ref.shape
    RS = xslab_ref.shape[2]
    KL = lkw_ref.shape[0]
    HID = w2_ref.shape[0]
    pad = (RS - tH) // 2
    n_chunks = tH // row_chunk
    inv_sqrt2 = 1.0 / math.sqrt(2.0)

    # Hoist small per-channel vectors once per grid step.
    bias = bias_ref[0]      # (C,)   fused lk+sk bias
    gamma = gamma_ref[0]    # (C,)
    beta = beta_ref[0]      # (C,)
    b1 = b1_ref[0]          # (2*HID,)
    b2 = b2_ref[0]          # (C,)

    def process_chunk(cb, carry):
        r0 = pl.multiple_of(cb * row_chunk, row_chunk)

        # ---- fused depthwise 11x11 conv (3x3 already folded in, fp32) ----
        acc_a = jnp.zeros((row_chunk, W, C), jnp.float32)
        acc_b = jnp.zeros((row_chunk, W, C), jnp.float32)
        for ky in range(KL):
            rows = xslab_ref[0, 0, pl.ds(r0 + ky, row_chunk), :, :]   # (RB, Wp, C)
            wrow = lkw_ref[ky]                                        # (KL, C)
            part = rows[:, 0:W, :] * wrow[0]
            for kx in range(1, KL):
                part = part + rows[:, kx:kx + W, :] * wrow[kx]
            if ky % 2 == 0:
                acc_a = acc_a + part
            else:
                acc_b = acc_b + part
        y = acc_a + acc_b + bias                                      # (RB, W, C)

        # ---- LayerNorm over channels, eps=1e-6 (one-pass variance) ----
        mu = jnp.mean(y, axis=-1, keepdims=True)
        ms = jnp.mean(y * y, axis=-1, keepdims=True)
        var = ms - mu * mu
        yn = (y - mu) * lax.rsqrt(var + 1e-6)
        yn = yn * gamma + beta

        # ---- GatedFFN: fused fc1 (gate|main) in bf16, exact erf GELU, fc2 ----
        yf = yn.reshape(row_chunk * W, C).astype(jnp.bfloat16)
        h12 = jnp.dot(yf, w1_ref[...], preferred_element_type=jnp.float32) + b1
        gate = h12[:, :HID]
        main = h12[:, HID:]
        act = 0.5 * gate * (1.0 + lax.erf(gate * inv_sqrt2))          # torch GELU (erf)
        hid = (act * main).astype(jnp.bfloat16)
        out = jnp.dot(hid, w2_ref[...], preferred_element_type=jnp.float32) + b2

        # ---- residual: shortcut is the interior of the padded slab ----
        shortcut = xslab_ref[0, 0, pl.ds(r0 + pad, row_chunk), pad:pad + W, :]
        res = shortcut + out.reshape(row_chunk, W, C)
        o_ref[0, pl.ds(r0, row_chunk), :, :] = res.astype(o_ref.dtype)
        return carry

    lax.fori_loop(0, n_chunks, process_chunk, 0)


def aether_block_pallas(x_nchw, params, lk_kernel=11, sk_kernel=3, row_tile=None):
    """x_nchw: (N, C, H, W) float32, PyTorch layout. Returns NCHW output."""
    N, C, H, W = x_nchw.shape
    hidden = params["w2"].shape[0]
    pad = lk_kernel // 2

    # --- structural re-parameterization (wrapper-side, once) ---
    off = (lk_kernel - sk_kernel) // 2
    lkw_fused = params["lkw"] + jnp.pad(params["skw"], ((off, off), (off, off), (0, 0)))
    bias_fused = params["lkb"] + params["skb"]                        # (1, C)

    # --- fuse fc1_gate|fc1_main into one lane-dense matmul; bf16 FFN weights ---
    w1 = jnp.concatenate([params["wg"], params["wm"]], axis=1).astype(jnp.bfloat16)
    b1 = jnp.concatenate([params["bg"], params["bm"]], axis=1)        # (1, 2*hidden) f32
    w2 = params["w2"].astype(jnp.bfloat16)
    b2 = params["b2"]

    # --- spatial row tiling with halo (grid step works on row_tile output rows) ---
    if row_tile is None:
        row_tile = next(t for t in (32, 16, 8, 4, 2, 1) if t <= H and H % t == 0)
    assert H % row_tile == 0, "H must be divisible by row_tile"
    nH = H // row_tile
    row_chunk = max(c for c in (4, 2, 1) if row_tile % c == 0)

    # NCHW -> NHWC (C on the 128-wide lane axis), pad for the large kernel.
    x = jnp.transpose(x_nchw, (0, 2, 3, 1)).astype(jnp.float32)
    xpad = jnp.pad(x, ((0, 0), (pad, pad), (pad, pad), (0, 0)))
    Wp = W + 2 * pad
    RS = row_tile + 2 * pad
    # Halo'd row slabs: (N, nH, row_tile + 2*pad, Wp, C). The shortcut is read
    # from the slab interior, so no second activation input/DMA is needed.
    xslabs = jnp.stack(
        [xpad[:, h * row_tile: h * row_tile + RS] for h in range(nH)], axis=1)

    kernel = functools.partial(aether_block_kernel, row_chunk=row_chunk)

    out = pl.pallas_call(
        kernel,
        out_shape=jax.ShapeDtypeStruct((N, H, W, C), jnp.float32),
        grid_spec=pltpu.PrefetchScalarGridSpec(
            num_scalar_prefetch=0,
            grid=(N, nH),
            in_specs=[
                pl.BlockSpec((1, 1, RS, Wp, C), lambda n, h: (n, h, 0, 0, 0)),  # padded slab
                pl.BlockSpec((lk_kernel, lk_kernel, C), lambda n, h: (0, 0, 0)),  # fused dw kernel
                pl.BlockSpec((1, C), lambda n, h: (0, 0)),            # fused conv bias
                pl.BlockSpec((1, C), lambda n, h: (0, 0)),            # ln gamma
                pl.BlockSpec((1, C), lambda n, h: (0, 0)),            # ln beta
                pl.BlockSpec((C, 2 * hidden), lambda n, h: (0, 0)),   # fc1 gate|main W^T (bf16)
                pl.BlockSpec((1, 2 * hidden), lambda n, h: (0, 0)),   # fc1 gate|main bias (f32)
                pl.BlockSpec((hidden, C), lambda n, h: (0, 0)),       # fc2 W^T (bf16)
                pl.BlockSpec((1, C), lambda n, h: (0, 0)),            # fc2 bias (f32)
            ],
            out_specs=pl.BlockSpec((1, row_tile, W, C), lambda n, h: (n, h, 0, 0)),
        ),
        compiler_params=pltpu.CompilerParams(
            dimension_semantics=("parallel", "parallel"),
            # Explicit (instead of the scoped default); plenty for these tiles and
            # safe on v7x's 64 MiB VMEM. Re-derive when enlarging row_tile.
            vmem_limit_bytes=32 * 1024 * 1024,
        ),
    )(xslabs, lkw_fused, bias_fused,
      params["gamma"], params["beta"],
      w1, b1, w2, b2)

    # NHWC -> NCHW
    return jnp.transpose(out, (0, 3, 1, 2))


def aether_block_reference(x_nchw, params, lk_kernel=11, sk_kernel=3):
    """Pure-JAX fp32 reference (unfused convs, separate fc1s) for validation."""
    x = jnp.transpose(x_nchw, (0, 2, 3, 1)).astype(jnp.float32)  # NHWC

    def dwconv(inp, w_hwc):
        kh, kw, c = w_hwc.shape
        w = w_hwc.reshape(kh, kw, 1, c)
        return lax.conv_general_dilated(
            inp, w, window_strides=(1, 1), padding="SAME",
            dimension_numbers=("NHWC", "HWIO", "NHWC"),
            feature_group_count=c)

    lk = dwconv(x, params["lkw"])
    sk = dwconv(x, params["skw"])
    y = lk + params["lkb"][0] + sk + params["skb"][0]

    mu = jnp.mean(y, axis=-1, keepdims=True)
    var = jnp.mean((y - mu) ** 2, axis=-1, keepdims=True)
    yn = (y - mu) / jnp.sqrt(var + 1e-6)
    yn = yn * params["gamma"][0] + params["beta"][0]

    gate = yn @ params["wg"] + params["bg"][0]
    main = yn @ params["wm"] + params["bm"][0]
    act = 0.5 * gate * (1.0 + lax.erf(gate / math.sqrt(2.0)))
    out = (act * main) @ params["w2"] + params["b2"][0]

    res = x + out
    return jnp.transpose(res, (0, 3, 1, 2))


def init_params(key, dim, hidden, lk_kernel=11, sk_kernel=3):
    ks = jax.random.split(key, 12)
    return {
        # depthwise weights stored as (KH, KW, C)  (torch: (C, 1, KH, KW))
        "lkw": 0.02 * jax.random.normal(ks[0], (lk_kernel, lk_kernel, dim), jnp.float32),
        "skw": 0.02 * jax.random.normal(ks[1], (sk_kernel, sk_kernel, dim), jnp.float32),
        "lkb": 0.01 * jax.random.normal(ks[2], (1, dim), jnp.float32),
        "skb": 0.01 * jax.random.normal(ks[3], (1, dim), jnp.float32),
        # LayerNorm (perturbed so the test catches missing scale/shift)
        "gamma": 1.0 + 0.05 * jax.random.normal(ks[4], (1, dim), jnp.float32),
        "beta": 0.02 * jax.random.normal(ks[5], (1, dim), jnp.float32),
        # GatedFFN linears stored transposed (in_features, out_features)
        "wg": 0.02 * jax.random.normal(ks[6], (dim, hidden), jnp.float32),
        "bg": 0.01 * jax.random.normal(ks[7], (1, hidden), jnp.float32),
        "wm": 0.02 * jax.random.normal(ks[8], (dim, hidden), jnp.float32),
        "bm": 0.01 * jax.random.normal(ks[9], (1, hidden), jnp.float32),
        "w2": 0.02 * jax.random.normal(ks[10], (hidden, dim), jnp.float32),
        "b2": 0.01 * jax.random.normal(ks[11], (1, dim), jnp.float32),
    }


if __name__ == "__main__":
    # aether_medium block config: embed_dim=128, mlp_ratio=2.0 -> hidden=256, lk=11, sk=3
    N, C, H, W = 2, 128, 16, 16
    HID = int(C * 2.0)
    LK, SK = 11, 3

    key = jax.random.PRNGKey(0)
    kx, kp = jax.random.split(key)
    x = jax.random.normal(kx, (N, C, H, W), jnp.float32)
    params = init_params(kp, C, HID, LK, SK)

    out = jax.block_until_ready(aether_block_pallas(x, params, LK, SK))
    ref = jax.block_until_ready(aether_block_reference(x, params, LK, SK))

    assert out.shape == (N, C, H, W)
    # Kernel runs the FFN matmuls in bf16 (fp32 accumulation); reference is full fp32,
    # so tolerances are loosened accordingly.
    if not jnp.allclose(out, ref, atol=1e-2, rtol=1e-2):
        max_diff = float(jnp.max(jnp.abs(out - ref)))
        raise AssertionError(f"Pallas output mismatch vs reference, max diff {max_diff}")

    # NOTE: Dropout (drop=0) and DropPath (drop_path=0 / eval) are identities.
    print("KERNEL_OK")
</pallas_src>

<mosaic_0001>
module attributes {stable_mosaic.version = 11 : i64} {
  func.func @aether_block_kernel(%arg0: i32, %arg1: i32, %arg2: memref<1x1x26x26x128xf32, #tpu.memory_space<vmem>>, %arg3: memref<11x11x128xf32, #tpu.memory_space<vmem>>, %arg4: memref<1x128xf32, #tpu.memory_space<vmem>>, %arg5: memref<1x128xf32, #tpu.memory_space<vmem>>, %arg6: memref<1x128xf32, #tpu.memory_space<vmem>>, %arg7: memref<128x512xbf16, #tpu.memory_space<vmem>>, %arg8: memref<1x512xf32, #tpu.memory_space<vmem>>, %arg9: memref<256x128xbf16, #tpu.memory_space<vmem>>, %arg10: memref<1x128xf32, #tpu.memory_space<vmem>>, %arg11: memref<1x16x16x128xf32, #tpu.memory_space<vmem>>) attributes {dimension_semantics = [#tpu.dimension_semantics<parallel>, #tpu.dimension_semantics<parallel>], iteration_bounds = array<i64: 2, 1>, scalar_prefetch = 0 : i64, scratch_operands = 0 : i64, tpu.core_type = #tpu.core_type<tc>, window_params = [{transform_indices = @transform_0, window_bounds = array<i64: 1, 1, 26, 26, 128>}, {pipeline_mode = #tpu.pipeline_mode<synchronous>, transform_indices = @transform_1, window_bounds = array<i64: 11, 11, 128>}, {pipeline_mode = #tpu.pipeline_mode<synchronous>, transform_indices = @transform_2, window_bounds = array<i64: 1, 128>}, {pipeline_mode = #tpu.pipeline_mode<synchronous>, transform_indices = @transform_3, window_bounds = array<i64: 1, 128>}, {pipeline_mode = #tpu.pipeline_mode<synchronous>, transform_indices = @transform_4, window_bounds = array<i64: 1, 128>}, {pipeline_mode = #tpu.pipeline_mode<synchronous>, transform_indices = @transform_5, window_bounds = array<i64: 128, 512>}, {pipeline_mode = #tpu.pipeline_mode<synchronous>, transform_indices = @transform_6, window_bounds = array<i64: 1, 512>}, {pipeline_mode = #tpu.pipeline_mode<synchronous>, transform_indices = @transform_7, window_bounds = array<i64: 256, 128>}, {pipeline_mode = #tpu.pipeline_mode<synchronous>, transform_indices = @transform_8, window_bounds = array<i64: 1, 128>}, {transform_indices = @transform_9, window_bounds = array<i64: 1, 16, 16, 128>}]} {
    %c0 = arith.constant 0 : index
    %c0_0 = arith.constant 0 : index
    %0 = vector.load %arg4[%c0, %c0_0] : memref<1x128xf32, #tpu.memory_space<vmem>>, vector<1x128xf32>
    %1 = vector.shape_cast %0 : vector<1x128xf32> to vector<128xf32>
    %c0_1 = arith.constant 0 : index
    %c0_2 = arith.constant 0 : index
    %2 = vector.load %arg5[%c0_1, %c0_2] : memref<1x128xf32, #tpu.memory_space<vmem>>, vector<1x128xf32>
    %3 = vector.shape_cast %2 : vector<1x128xf32> to vector<128xf32>
    %c0_3 = arith.constant 0 : index
    %c0_4 = arith.constant 0 : index
    %4 = vector.load %arg6[%c0_3, %c0_4] : memref<1x128xf32, #tpu.memory_space<vmem>>, vector<1x128xf32>
    %5 = vector.shape_cast %4 : vector<1x128xf32> to vector<128xf32>
    %c0_5 = arith.constant 0 : index
    %c0_6 = arith.constant 0 : index
    %6 = vector.load %arg8[%c0_5, %c0_6] : memref<1x512xf32, #tpu.memory_space<vmem>>, vector<1x512xf32>
    %7 = vector.shape_cast %6 : vector<1x512xf32> to vector<512xf32>
    %c0_7 = arith.constant 0 : index
    %c0_8 = arith.constant 0 : index
    %8 = vector.load %arg10[%c0_7, %c0_8] : memref<1x128xf32, #tpu.memory_space<vmem>>, vector<1x128xf32>
    %9 = vector.shape_cast %8 : vector<1x128xf32> to vector<128xf32>
    %c0_i32 = arith.constant 0 : i32
    %c4_i32 = arith.constant 4 : i32
    %10 = arith.addi %c0_i32, %c4_i32 : i32
    %c1_i32 = arith.constant 1 : i32
    scf.for %arg12 = %c0_i32 to %10 step %c1_i32  : i32 {
      %c4_i32_10 = arith.constant 4 : i32
      %11 = arith.muli %arg12, %c4_i32_10 : i32
      %12 = tpu.assume_multiple %11, 4 : i32
      %cst = arith.constant 0.000000e+00 : f32
      %13 = vector.broadcast %cst : f32 to vector<4x16x128xf32>
      %cst_11 = arith.constant 0.000000e+00 : f32
      %14 = vector.broadcast %cst_11 : f32 to vector<4x16x128xf32>
      %c0_i32_12 = arith.constant 0 : i32
      %15 = arith.addi %12, %c0_i32_12 : i32
      %c0_13 = arith.constant 0 : index
      %c0_14 = arith.constant 0 : index
      %16 = arith.index_cast %15 : i32 to index
      %c0_15 = arith.constant 0 : index
      %c0_16 = arith.constant 0 : index
      %17 = vector.load %arg2[%c0_13, %c0_14, %16, %c0_15, %c0_16] : memref<1x1x26x26x128xf32, #tpu.memory_space<vmem>>, vector<1x1x4x26x128xf32>
      %18 = vector.shape_cast %17 : vector<1x1x4x26x128xf32> to vector<4x26x128xf32>
      %c0_17 = arith.constant 0 : index
      %c0_18 = arith.constant 0 : index
      %c0_19 = arith.constant 0 : index
      %19 = vector.load %arg3[%c0_17, %c0_18, %c0_19] : memref<11x11x128xf32, #tpu.memory_space<vmem>>, vector<1x11x128xf32>
      %20 = vector.shape_cast %19 : vector<1x11x128xf32> to vector<11x128xf32>
      %21 = vector.extract_strided_slice %18 {offsets = [0, 0, 0], sizes = [4, 16, 128], strides = [1, 1, 1]} : vector<4x26x128xf32> to vector<4x16x128xf32>
      %22 = vector.extract_strided_slice %20 {offsets = [0, 0], sizes = [1, 128], strides = [1, 1]} : vector<11x128xf32> to vector<1x128xf32>
      %23 = vector.shape_cast %22 : vector<1x128xf32> to vector<128xf32>
      %24 = vector.shape_cast %23 : vector<128xf32> to vector<1x1x128xf32>
      %25 = vector.broadcast %24 : vector<1x1x128xf32> to vector<4x16x128xf32>
      %26 = arith.mulf %21, %25 : vector<4x16x128xf32>
      %27 = vector.extract_strided_slice %18 {offsets = [0, 1, 0], sizes = [4, 16, 128], strides = [1, 1, 1]} : vector<4x26x128xf32> to vector<4x16x128xf32>
      %28 = vector.extract_strided_slice %20 {offsets = [1, 0], sizes = [1, 128], strides = [1, 1]} : vector<11x128xf32> to vector<1x128xf32>
      %29 = vector.shape_cast %28 : vector<1x128xf32> to vector<128xf32>
      %30 = vector.shape_cast %29 : vector<128xf32> to vector<1x1x128xf32>
      %31 = vector.broadcast %30 : vector<1x1x128xf32> to vector<4x16x128xf32>
      %32 = arith.mulf %27, %31 : vector<4x16x128xf32>
      %33 = arith.addf %26, %32 : vector<4x16x128xf32>
      %34 = vector.extract_strided_slice %18 {offsets = [0, 2, 0], sizes = [4, 16, 128], strides = [1, 1, 1]} : vector<4x26x128xf32> to vector<4x16x128xf32>
      %35 = vector.extract_strided_slice %20 {offsets = [2, 0], sizes = [1, 128], strides = [1, 1]} : vector<11x128xf32> to vector<1x128xf32>
      %36 = vector.shape_cast %35 : vector<1x128xf32> to vector<128xf32>
      %37 = vector.shape_cast %36 : vector<128xf32> to vector<1x1x128xf32>
      %38 = vector.broadcast %37 : vector<1x1x128xf32> to vector<4x16x128xf32>
      %39 = arith.mulf %34, %38 : vector<4x16x128xf32>
      %40 = arith.addf %33, %39 : vector<4x16x128xf32>
      %41 = vector.extract_strided_slice %18 {offsets = [0, 3, 0], sizes = [4, 16, 128], strides = [1, 1, 1]} : vector<4x26x128xf32> to vector<4x16x128xf32>
      %42 = vector.extract_strided_slice %20 {offsets = [3, 0], sizes = [1, 128], strides = [1, 1]} : vector<11x128xf32> to vector<1x128xf32>
      %43 = vector.shape_cast %42 : vector<1x128xf32> to vector<128xf32>
      %44 = vector.shape_cast %43 : vector<128xf32> to vector<1x1x128xf32>
      %45 = vector.broadcast %44 : vector<1x1x128xf32> to vector<4x16x128xf32>
      %46 = arith.mulf %41, %45 : vector<4x16x128xf32>
      %47 = arith.addf %40, %46 : vector<4x16x128xf32>
      %48 = vector.extract_strided_slice %18 {offsets = [0, 4, 0], sizes = [4, 16, 128], strides = [1, 1, 1]} : vector<4x26x128xf32> to vector<4x16x128xf32>
      %49 = vector.extract_strided_slice %20 {offsets = [4, 0], sizes = [1, 128], strides = [1, 1]} : vector<11x128xf32> to vector<1x128xf32>
      %50 = vector.shape_cast %49 : vector<1x128xf32> to vector<128xf32>
      %51 = vector.shape_cast %50 : vector<128xf32> to vector<1x1x128xf32>
      %52 = vector.broadcast %51 : vector<1x1x128xf32> to vector<4x16x128xf32>
      %53 = arith.mulf %48, %52 : vector<4x16x128xf32>
      %54 = arith.addf %47, %53 : vector<4x16x128xf32>
      %55 = vector.extract_strided_slice %18 {offsets = [0, 5, 0], sizes = [4, 16, 128], strides = [1, 1, 1]} : vector<4x26x128xf32> to vector<4x16x128xf32>
      %56 = vector.extract_strided_slice %20 {offsets = [5, 0], sizes = [1, 128], strides = [1, 1]} : vector<11x128xf32> to vector<1x128xf32>
      %57 = vector.shape_cast %56 : vector<1x128xf32> to vector<128xf32>
      %58 = vector.shape_cast %57 : vector<128xf32> to vector<1x1x128xf32>
      %59 = vector.broadcast %58 : vector<1x1x128xf32> to vector<4x16x128xf32>
      %60 = arith.mulf %55, %59 : vector<4x16x128xf32>
      %61 = arith.addf %54, %60 : vector<4x16x128xf32>
      %62 = vector.extract_strided_slice %18 {offsets = [0, 6, 0], sizes = [4, 16, 128], strides = [1, 1, 1]} : vector<4x26x128xf32> to vector<4x16x128xf32>
      %63 = vector.extract_strided_slice %20 {offsets = [6, 0], sizes = [1, 128], strides = [1, 1]} : vector<11x128xf32> to vector<1x128xf32>
      %64 = vector.shape_cast %63 : vector<1x128xf32> to vector<128xf32>
      %65 = vector.shape_cast %64 : vector<128xf32> to vector<1x1x128xf32>
      %66 = vector.broadcast %65 : vector<1x1x128xf32> to vector<4x16x128xf32>
      %67 = arith.mulf %62, %66 : vector<4x16x128xf32>
      %68 = arith.addf %61, %67 : vector<4x16x128xf32>
      %69 = vector.extract_strided_slice %18 {offsets = [0, 7, 0], sizes = [4, 16, 128], strides = [1, 1, 1]} : vector<4x26x128xf32> to vector<4x16x128xf32>
      %70 = vector.extract_strided_slice %20 {offsets = [7, 0], sizes = [1, 128], strides = [1, 1]} : vector<11x128xf32> to vector<1x128xf32>
      %71 = vector.shape_cast %70 : vector<1x128xf32> to vector<128xf32>
      %72 = vector.shape_cast %71 : vector<128xf32> to vector<1x1x128xf32>
      %73 = vector.broadcast %72 : vector<1x1x128xf32> to vector<4x16x128xf32>
      %74 = arith.mulf %69, %73 : vector<4x16x128xf32>
      %75 = arith.addf %68, %74 : vector<4x16x128xf32>
      %76 = vector.extract_strided_slice %18 {offsets = [0, 8, 0], sizes = [4, 16, 128], strides = [1, 1, 1]} : vector<4x26x128xf32> to vector<4x16x128xf32>
      %77 = vector.extract_strided_slice %20 {offsets = [8, 0], sizes = [1, 128], strides = [1, 1]} : vector<11x128xf32> to vector<1x128xf32>
      %78 = vector.shape_cast %77 : vector<1x128xf32> to vector<128xf32>
      %79 = vector.shape_cast %78 : vector<128xf32> to vector<1x1x128xf32>
      %80 = vector.broadcast %79 : vector<1x1x128xf32> to vector<4x16x128xf32>
      %81 = arith.mulf %76, %80 : vector<4x16x128xf32>
      %82 = arith.addf %75, %81 : vector<4x16x128xf32>
      %83 = vector.extract_strided_slice %18 {offsets = [0, 9, 0], sizes = [4, 16, 128], strides = [1, 1, 1]} : vector<4x26x128xf32> to vector<4x16x128xf32>
      %84 = vector.extract_strided_slice %20 {offsets = [9, 0], sizes = [1, 128], strides = [1, 1]} : vector<11x128xf32> to vector<1x128xf32>
      %85 = vector.shape_cast %84 : vector<1x128xf32> to vector<128xf32>
      %86 = vector.shape_cast %85 : vector<128xf32> to vector<1x1x128xf32>
      %87 = vector.broadcast %86 : vector<1x1x128xf32> to vector<4x16x128xf32>
      %88 = arith.mulf %83, %87 : vector<4x16x128xf32>
      %89 = arith.addf %82, %88 : vector<4x16x128xf32>
      %90 = vector.extract_strided_slice %18 {offsets = [0, 10, 0], sizes = [4, 16, 128], strides = [1, 1, 1]} : vector<4x26x128xf32> to vector<4x16x128xf32>
      %91 = vector.extract_strided_slice %20 {offsets = [10, 0], sizes = [1, 128], strides = [1, 1]} : vector<11x128xf32> to vector<1x128xf32>
      %92 = vector.shape_cast %91 : vector<1x128xf32> to vector<128xf32>
      %93 = vector.shape_cast %92 : vector<128xf32> to vector<1x1x128xf32>
      %94 = vector.broadcast %93 : vector<1x1x128xf32> to vector<4x16x128xf32>
      %95 = arith.mulf %90, %94 : vector<4x16x128xf32>
      %96 = arith.addf %89, %95 : vector<4x16x128xf32>
      %97 = arith.addf %13, %96 : vector<4x16x128xf32>
      %c1_i32_20 = arith.constant 1 : i32
      %98 = arith.addi %12, %c1_i32_20 : i32
      %c0_21 = arith.constant 0 : index
      %c0_22 = arith.constant 0 : index
      %99 = arith.index_cast %98 : i32 to index
      %c0_23 = arith.constant 0 : index
      %c0_24 = arith.constant 0 : index
      %100 = vector.load %arg2[%c0_21, %c0_22, %99, %c0_23, %c0_24] : memref<1x1x26x26x128xf32, #tpu.memory_space<vmem>>, vector<1x1x4x26x128xf32>
      %101 = vector.shape_cast %100 : vector<1x1x4x26x128xf32> to vector<4x26x128xf32>
      %c1 = arith.constant 1 : index
      %c0_25 = arith.constant 0 : index
      %c0_26 = arith.constant 0 : index
      %102 = vector.load %arg3[%c1, %c0_25, %c0_26] : memref<11x11x128xf32, #tpu.memory_space<vmem>>, vector<1x11x128xf32>
      %103 = vector.shape_cast %102 : vector<1x11x128xf32> to vector<11x128xf32>
      %104 = vector.extract_strided_slice %101 {offsets = [0, 0, 0], sizes = [4, 16, 128], strides = [1, 1, 1]} : vector<4x26x128xf32> to vector<4x16x128xf32>
      %105 = vector.extract_strided_slice %103 {offsets = [0, 0], sizes = [1, 128], strides = [1, 1]} : vector<11x128xf32> to vector<1x128xf32>
      %106 = vector.shape_cast %105 : vector<1x128xf32> to vector<128xf32>
      %107 = vector.shape_cast %106 : vector<128xf32> to vector<1x1x128xf32>
      %108 = vector.broadcast %107 : vector<1x1x128xf32> to vector<4x16x128xf32>
      %109 = arith.mulf %104, %108 : vector<4x16x128xf32>
      %110 = vector.extract_strided_slice %101 {offsets = [0, 1, 0], sizes = [4, 16, 128], strides = [1, 1, 1]} : vector<4x26x128xf32> to vector<4x16x128xf32>
      %111 = vector.extract_strided_slice %103 {offsets = [1, 0], sizes = [1, 128], strides = [1, 1]} : vector<11x128xf32> to vector<1x128xf32>
      %112 = vector.shape_cast %111 : vector<1x128xf32> to vector<128xf32>
      %113 = vector.shape_cast %112 : vector<128xf32> to vector<1x1x128xf32>
      %114 = vector.broadcast %113 : vector<1x1x128xf32> to vector<4x16x128xf32>
      %115 = arith.mulf %110, %114 : vector<4x16x128xf32>
      %116 = arith.addf %109, %115 : vector<4x16x128xf32>
      %117 = vector.extract_strided_slice %101 {offsets = [0, 2, 0], sizes = [4, 16, 128], strides = [1, 1, 1]} : vector<4x26x128xf32> to vector<4x16x128xf32>
      %118 = vector.extract_strided_slice %103 {offsets = [2, 0], sizes = [1, 128], strides = [1, 1]} : vector<11x128xf32> to vector<1x128xf32>
      %119 = vector.shape_cast %118 : vector<1x128xf32> to vector<128xf32>
      %120 = vector.shape_cast %119 : vector<128xf32> to vector<1x1x128xf32>
      %121 = vector.broadcast %120 : vector<1x1x128xf32> to vector<4x16x128xf32>
      %122 = arith.mulf %117, %121 : vector<4x16x128xf32>
      %123 = arith.addf %116, %122 : vector<4x16x128xf32>
      %124 = vector.extract_strided_slice %101 {offsets = [0, 3, 0], sizes = [4, 16, 128], strides = [1, 1, 1]} : vector<4x26x128xf32> to vector<4x16x128xf32>
      %125 = vector.extract_strided_slice %103 {offsets = [3, 0], sizes = [1, 128], strides = [1, 1]} : vector<11x128xf32> to vector<1x128xf32>
      %126 = vector.shape_cast %125 : vector<1x128xf32> to vector<128xf32>
      %127 = vector.shape_cast %126 : vector<128xf32> to vector<1x1x128xf32>
      %128 = vector.broadcast %127 : vector<1x1x128xf32> to vector<4x16x128xf32>
      %129 = arith.mulf %124, %128 : vector<4x16x128xf32>
      %130 = arith.addf %123, %129 : vector<4x16x128xf32>
      %131 = vector.extract_strided_slice %101 {offsets = [0, 4, 0], sizes = [4, 16, 128], strides = [1, 1, 1]} : vector<4x26x128xf32> to vector<4x16x128xf32>
      %132 = vector.extract_strided_slice %103 {offsets = [4, 0], sizes = [1, 128], strides = [1, 1]} : vector<11x128xf32> to vector<1x128xf32>
      %133 = vector.shape_cast %132 : vector<1x128xf32> to vector<128xf32>
      %134 = vector.shape_cast %133 : vector<128xf32> to vector<1x1x128xf32>
      %135 = vector.broadcast %134 : vector<1x1x128xf32> to vector<4x16x128xf32>
      %136 = arith.mulf %131, %135 : vector<4x16x128xf32>
      %137 = arith.addf %130, %136 : vector<4x16x128xf32>
      %138 = vector.extract_strided_slice %101 {offsets = [0, 5, 0], sizes = [4, 16, 128], strides = [1, 1, 1]} : vector<4x26x128xf32> to vector<4x16x128xf32>
      %139 = vector.extract_strided_slice %103 {offsets = [5, 0], sizes = [1, 128], strides = [1, 1]} : vector<11x128xf32> to vector<1x128xf32>
      %140 = vector.shape_cast %139 : vector<1x128xf32> to vector<128xf32>
      %141 = vector.shape_cast %140 : vector<128xf32> to vector<1x1x128xf32>
      %142 = vector.broadcast %141 : vector<1x1x128xf32> to vector<4x16x128xf32>
      %143 = arith.mulf %138, %142 : vector<4x16x128xf32>
      %144 = arith.addf %137, %143 : vector<4x16x128xf32>
      %145 = vector.extract_strided_slice %101 {offsets = [0, 6, 0], sizes = [4, 16, 128], strides = [1, 1, 1]} : vector<4x26x128xf32> to vector<4x16x128xf32>
      %146 = vector.extract_strided_slice %103 {offsets = [6, 0], sizes = [1, 128], strides = [1, 1]} : vector<11x128xf32> to vector<1x128xf32>
      %147 = vector.shape_cast %146 : vector<1x128xf32> to vector<128xf32>
      %148 = vector.shape_cast %147 : vector<128xf32> to vector<1x1x128xf32>
      %149 = vector.broadcast %148 : vector<1x1x128xf32> to vector<4x16x128xf32>
      %150 = arith.mulf %145, %149 : vector<4x16x128xf32>
      %151 = arith.addf %144, %150 : vector<4x16x128xf32>
      %152 = vector.extract_strided_slice %101 {offsets = [0, 7, 0], sizes = [4, 16, 128], strides = [1, 1, 1]} : vector<4x26x128xf32> to vector<4x16x128xf32>
      %153 = vector.extract_strided_slice %103 {offsets = [7, 0], sizes = [1, 128], strides = [1, 1]} : vector<11x128xf32> to vector<1x128xf32>
      %154 = vector.shape_cast %153 : vector<1x128xf32> to vector<128xf32>
      %155 = vector.shape_cast %154 : vector<128xf32> to vector<1x1x128xf32>
      %156 = vector.broadcast %155 : vector<1x1x128xf32> to vector<4x16x128xf32>
      %157 = arith.mulf %152, %156 : vector<4x16x128xf32>
      %158 = arith.addf %151, %157 : vector<4x16x128xf32>
      %159 = vector.extract_strided_slice %101 {offsets = [0, 8, 0], sizes = [4, 16, 128], strides = [1, 1, 1]} : vector<4x26x128xf32> to vector<4x16x128xf32>
      %160 = vector.extract_strided_slice %103 {offsets = [8, 0], sizes = [1, 128], strides = [1, 1]} : vector<11x128xf32> to vector<1x128xf32>
      %161 = vector.shape_cast %160 : vector<1x128xf32> to vector<128xf32>
      %162 = vector.shape_cast %161 : vector<128xf32> to vector<1x1x128xf32>
      %163 = vector.broadcast %162 : vector<1x1x128xf32> to vector<4x16x128xf32>
      %164 = arith.mulf %159, %163 : vector<4x16x128xf32>
      %165 = arith.addf %158, %164 : vector<4x16x128xf32>
      %166 = vector.extract_strided_slice %101 {offsets = [0, 9, 0], sizes = [4, 16, 128], strides = [1, 1, 1]} : vector<4x26x128xf32> to vector<4x16x128xf32>
      %167 = vector.extract_strided_slice %103 {offsets = [9, 0], sizes = [1, 128], strides = [1, 1]} : vector<11x128xf32> to vector<1x128xf32>
      %168 = vector.shape_cast %167 : vector<1x128xf32> to vector<128xf32>
      %169 = vector.shape_cast %168 : vector<128xf32> to vector<1x1x128xf32>
      %170 = vector.broadcast %169 : vector<1x1x128xf32> to vector<4x16x128xf32>
      %171 = arith.mulf %166, %170 : vector<4x16x128xf32>
      %172 = arith.addf %165, %171 : vector<4x16x128xf32>
      %173 = vector.extract_strided_slice %101 {offsets = [0, 10, 0], sizes = [4, 16, 128], strides = [1, 1, 1]} : vector<4x26x128xf32> to vector<4x16x128xf32>
      %174 = vector.extract_strided_slice %103 {offsets = [10, 0], sizes = [1, 128], strides = [1, 1]} : vector<11x128xf32> to vector<1x128xf32>
      %175 = vector.shape_cast %174 : vector<1x128xf32> to vector<128xf32>
      %176 = vector.shape_cast %175 : vector<128xf32> to vector<1x1x128xf32>
      %177 = vector.broadcast %176 : vector<1x1x128xf32> to vector<4x16x128xf32>
      %178 = arith.mulf %173, %177 : vector<4x16x128xf32>
      %179 = arith.addf %172, %178 : vector<4x16x128xf32>
      %180 = arith.addf %14, %179 : vector<4x16x128xf32>
      %c2_i32 = arith.constant 2 : i32
      %181 = arith.addi %12, %c2_i32 : i32
      %c0_27 = arith.constant 0 : index
      %c0_28 = arith.constant 0 : index
      %182 = arith.index_cast %181 : i32 to index
      %c0_29 = arith.constant 0 : index
      %c0_30 = arith.constant 0 : index
      %183 = vector.load %arg2[%c0_27, %c0_28, %182, %c0_29, %c0_30] : memref<1x1x26x26x128xf32, #tpu.memory_space<vmem>>, vector<1x1x4x26x128xf32>
      %184 = vector.shape_cast %183 : vector<1x1x4x26x128xf32> to vector<4x26x128xf32>
      %c2 = arith.constant 2 : index
      %c0_31 = arith.constant 0 : index
      %c0_32 = arith.constant 0 : index
      %185 = vector.load %arg3[%c2, %c0_31, %c0_32] : memref<11x11x128xf32, #tpu.memory_space<vmem>>, vector<1x11x128xf32>
      %186 = vector.shape_cast %185 : vector<1x11x128xf32> to vector<11x128xf32>
      %187 = vector.extract_strided_slice %184 {offsets = [0, 0, 0], sizes = [4, 16, 128], strides = [1, 1, 1]} : vector<4x26x128xf32> to vector<4x16x128xf32>
      %188 = vector.extract_strided_slice %186 {offsets = [0, 0], sizes = [1, 128], strides = [1, 1]} : vector<11x128xf32> to vector<1x128xf32>
      %189 = vector.shape_cast %188 : vector<1x128xf32> to vector<128xf32>
      %190 = vector.shape_cast %189 : vector<128xf32> to vector<1x1x128xf32>
      %191 = vector.broadcast %190 : vector<1x1x128xf32> to vector<4x16x128xf32>
      %192 = arith.mulf %187, %191 : vector<4x16x128xf32>
      %193 = vector.extract_strided_slice %184 {offsets = [0, 1, 0], sizes = [4, 16, 128], strides = [1, 1, 1]} : vector<4x26x128xf32> to vector<4x16x128xf32>
      %194 = vector.extract_strided_slice %186 {offsets = [1, 0], sizes = [1, 128], strides = [1, 1]} : vector<11x128xf32> to vector<1x128xf32>
      %195 = vector.shape_cast %194 : vector<1x128xf32> to vector<128xf32>
      %196 = vector.shape_cast %195 : vector<128xf32> to vector<1x1x128xf32>
      %197 = vector.broadcast %196 : vector<1x1x128xf32> to vector<4x16x128xf32>
      %198 = arith.mulf %193, %197 : vector<4x16x128xf32>
      %199 = arith.addf %192, %198 : vector<4x16x128xf32>
      %200 = vector.extract_strided_slice %184 {offsets = [0, 2, 0], sizes = [4, 16, 128], strides = [1, 1, 1]} : vector<4x26x128xf32> to vector<4x16x128xf32>
      %201 = vector.extract_strided_slice %186 {offsets = [2, 0], sizes = [1, 128], strides = [1, 1]} : vector<11x128xf32> to vector<1x128xf32>
      %202 = vector.shape_cast %201 : vector<1x128xf32> to vector<128xf32>
      %203 = vector.shape_cast %202 : vector<128xf32> to vector<1x1x128xf32>
      %204 = vector.broadcast %203 : vector<1x1x128xf32> to vector<4x16x128xf32>
      %205 = arith.mulf %200, %204 : vector<4x16x128xf32>
      %206 = arith.addf %199, %205 : vector<4x16x128xf32>
      %207 = vector.extract_strided_slice %184 {offsets = [0, 3, 0], sizes = [4, 16, 128], strides = [1, 1, 1]} : vector<4x26x128xf32> to vector<4x16x128xf32>
      %208 = vector.extract_strided_slice %186 {offsets = [3, 0], sizes = [1, 128], strides = [1, 1]} : vector<11x128xf32> to vector<1x128xf32>
      %209 = vector.shape_cast %208 : vector<1x128xf32> to vector<128xf32>
      %210 = vector.shape_cast %209 : vector<128xf32> to vector<1x1x128xf32>
      %211 = vector.broadcast %210 : vector<1x1x128xf32> to vector<4x16x128xf32>
      %212 = arith.mulf %207, %211 : vector<4x16x128xf32>
      %213 = arith.addf %206, %212 : vector<4x16x128xf32>
      %214 = vector.extract_strided_slice %184 {offsets = [0, 4, 0], sizes = [4, 16, 128], strides = [1, 1, 1]} : vector<4x26x128xf32> to vector<4x16x128xf32>
      %215 = vector.extract_strided_slice %186 {offsets = [4, 0], sizes = [1, 128], strides = [1, 1]} : vector<11x128xf32> to vector<1x128xf32>
      %216 = vector.shape_cast %215 : vector<1x128xf32> to vector<128xf32>
      %217 = vector.shape_cast %216 : vector<128xf32> to vector<1x1x128xf32>
      %218 = vector.broadcast %217 : vector<1x1x128xf32> to vector<4x16x128xf32>
      %219 = arith.mulf %214, %218 : vector<4x16x128xf32>
      %220 = arith.addf %213, %219 : vector<4x16x128xf32>
      %221 = vector.extract_strided_slice %184 {offsets = [0, 5, 0], sizes = [4, 16, 128], strides = [1, 1, 1]} : vector<4x26x128xf32> to vector<4x16x128xf32>
      %222 = vector.extract_strided_slice %186 {offsets = [5, 0], sizes = [1, 128], strides = [1, 1]} : vector<11x128xf32> to vector<1x128xf32>
      %223 = vector.shape_cast %222 : vector<1x128xf32> to vector<128xf32>
      %224 = vector.shape_cast %223 : vector<128xf32> to vector<1x1x128xf32>
      %225 = vector.broadcast %224 : vector<1x1x128xf32> to vector<4x16x128xf32>
      %226 = arith.mulf %221, %225 : vector<4x16x128xf32>
      %227 = arith.addf %220, %226 : vector<4x16x128xf32>
      %228 = vector.extract_strided_slice %184 {offsets = [0, 6, 0], sizes = [4, 16, 128], strides = [1, 1, 1]} : vector<4x26x128xf32> to vector<4x16x128xf32>
      %229 = vector.extract_strided_slice %186 {offsets = [6, 0], sizes = [1, 128], strides = [1, 1]} : vector<11x128xf32> to vector<1x128xf32>
      %230 = vector.shape_cast %229 : vector<1x128xf32> to vector<128xf32>
      %231 = vector.shape_cast %230 : vector<128xf32> to vector<1x1x128xf32>
      %232 = vector.broadcast %231 : vector<1x1x128xf32> to vector<4x16x128xf32>
      %233 = arith.mulf %228, %232 : vector<4x16x128xf32>
      %234 = arith.addf %227, %233 : vector<4x16x128xf32>
      %235 = vector.extract_strided_slice %184 {offsets = [0, 7, 0], sizes = [4, 16, 128], strides = [1, 1, 1]} : vector<4x26x128xf32> to vector<4x16x128xf32>
      %236 = vector.extract_strided_slice %186 {offsets = [7, 0], sizes = [1, 128], strides = [1, 1]} : vector<11x128xf32> to vector<1x128xf32>
      %237 = vector.shape_cast %236 : vector<1x128xf32> to vector<128xf32>
      %238 = vector.shape_cast %237 : vector<128xf32> to vector<1x1x128xf32>
      %239 = vector.broadcast %238 : vector<1x1x128xf32> to vector<4x16x128xf32>
      %240 = arith.mulf %235, %239 : vector<4x16x128xf32>
      %241 = arith.addf %234, %240 : vector<4x16x128xf32>
      %242 = vector.extract_strided_slice %184 {offsets = [0, 8, 0], sizes = [4, 16, 128], strides = [1, 1, 1]} : vector<4x26x128xf32> to vector<4x16x128xf32>
      %243 = vector.extract_strided_slice %186 {offsets = [8, 0], sizes = [1, 128], strides = [1, 1]} : vector<11x128xf32> to vector<1x128xf32>
      %244 = vector.shape_cast %243 : vector<1x128xf32> to vector<128xf32>
      %245 = vector.shape_cast %244 : vector<128xf32> to vector<1x1x128xf32>
      %246 = vector.broadcast %245 : vector<1x1x128xf32> to vector<4x16x128xf32>
      %247 = arith.mulf %242, %246 : vector<4x16x128xf32>
      %248 = arith.addf %241, %247 : vector<4x16x128xf32>
      %249 = vector.extract_strided_slice %184 {offsets = [0, 9, 0], sizes = [4, 16, 128], strides = [1, 1, 1]} : vector<4x26x128xf32> to vector<4x16x128xf32>
      %250 = vector.extract_strided_slice %186 {offsets = [9, 0], sizes = [1, 128], strides = [1, 1]} : vector<11x128xf32> to vector<1x128xf32>
      %251 = vector.shape_cast %250 : vector<1x128xf32> to vector<128xf32>
      %252 = vector.shape_cast %251 : vector<128xf32> to vector<1x1x128xf32>
      %253 = vector.broadcast %252 : vector<1x1x128xf32> to vector<4x16x128xf32>
      %254 = arith.mulf %249, %253 : vector<4x16x128xf32>
      %255 = arith.addf %248, %254 : vector<4x16x128xf32>
      %256 = vector.extract_strided_slice %184 {offsets = [0, 10, 0], sizes = [4, 16, 128], strides = [1, 1, 1]} : vector<4x26x128xf32> to vector<4x16x128xf32>
      %257 = vector.extract_strided_slice %186 {offsets = [10, 0], sizes = [1, 128], strides = [1, 1]} : vector<11x128xf32> to vector<1x128xf32>
      %258 = vector.shape_cast %257 : vector<1x128xf32> to vector<128xf32>
      %259 = vector.shape_cast %258 : vector<128xf32> to vector<1x1x128xf32>
      %260 = vector.broadcast %259 : vector<1x1x128xf32> to vector<4x16x128xf32>
      %261 = arith.mulf %256, %260 : vector<4x16x128xf32>
      %262 = arith.addf %255, %261 : vector<4x16x128xf32>
      %263 = arith.addf %97, %262 : vector<4x16x128xf32>
      %c3_i32 = arith.constant 3 : i32
      %264 = arith.addi %12, %c3_i32 : i32
      %c0_33 = arith.constant 0 : index
      %c0_34 = arith.constant 0 : index
      %265 = arith.index_cast %264 : i32 to index
      %c0_35 = arith.constant 0 : index
      %c0_36 = arith.constant 0 : index
      %266 = vector.load %arg2[%c0_33, %c0_34, %265, %c0_35, %c0_36] : memref<1x1x26x26x128xf32, #tpu.memory_space<vmem>>, vector<1x1x4x26x128xf32>
      %267 = vector.shape_cast %266 : vector<1x1x4x26x128xf32> to vector<4x26x128xf32>
      %c3 = arith.constant 3 : index
      %c0_37 = arith.constant 0 : index
      %c0_38 = arith.constant 0 : index
      %268 = vector.load %arg3[%c3, %c0_37, %c0_38] : memref<11x11x128xf32, #tpu.memory_space<vmem>>, vector<1x11x128xf32>
      %269 = vector.shape_cast %268 : vector<1x11x128xf32> to vector<11x128xf32>
      %270 = vector.extract_strided_slice %267 {offsets = [0, 0, 0], sizes = [4, 16, 128], strides = [1, 1, 1]} : vector<4x26x128xf32> to vector<4x16x128xf32>
      %271 = vector.extract_strided_slice %269 {offsets = [0, 0], sizes = [1, 128], strides = [1, 1]} : vector<11x128xf32> to vector<1x128xf32>
      %272 = vector.shape_cast %271 : vector<1x128xf32> to vector<128xf32>
      %273 = vector.shape_cast %272 : vector<128xf32> to vector<1x1x128xf32>
      %274 = vector.broadcast %273 : vector<1x1x128xf32> to vector<4x16x128xf32>
      %275 = arith.mulf %270, %274 : vector<4x16x128xf32>
      %276 = vector.extract_strided_slice %267 {offsets = [0, 1, 0], sizes = [4, 16, 128], strides = [1, 1, 1]} : vector<4x26x128xf32> to vector<4x16x128xf32>
      %277 = vector.extract_strided_slice %269 {offsets = [1, 0], sizes = [1, 128], strides = [1, 1]} : vector<11x128xf32> to vector<1x128xf32>
      %278 = vector.shape_cast %277 : vector<1x128xf32> to vector<128xf32>
      %279 = vector.shape_cast %278 : vector<128xf32> to vector<1x1x128xf32>
      %280 = vector.broadcast %279 : vector<1x1x128xf32> to vector<4x16x128xf32>
      %281 = arith.mulf %276, %280 : vector<4x16x128xf32>
      %282 = arith.addf %275, %281 : vector<4x16x128xf32>
      %283 = vector.extract_strided_slice %267 {offsets = [0, 2, 0], sizes = [4, 16, 128], strides = [1, 1, 1]} : vector<4x26x128xf32> to vector<4x16x128xf32>
      %284 = vector.extract_strided_slice %269 {offsets = [2, 0], sizes = [1, 128], strides = [1, 1]} : vector<11x128xf32> to vector<1x128xf32>
      %285 = vector.shape_cast %284 : vector<1x128xf32> to vector<128xf32>
      %286 = vector.shape_cast %285 : vector<128xf32> to vector<1x1x128xf32>
      %287 = vector.broadcast %286 : vector<1x1x128xf32> to vector<4x16x128xf32>
      %288 = arith.mulf %283, %287 : vector<4x16x128xf32>
      %289 = arith.addf %282, %288 : vector<4x16x128xf32>
      %290 = vector.extract_strided_slice %267 {offsets = [0, 3, 0], sizes = [4, 16, 128], strides = [1, 1, 1]} : vector<4x26x128xf32> to vector<4x16x128xf32>
      %291 = vector.extract_strided_slice %269 {offsets = [3, 0], sizes = [1, 128], strides = [1, 1]} : vector<11x128xf32> to vector<1x128xf32>
      %292 = vector.shape_cast %291 : vector<1x128xf32> to vector<128xf32>
      %293 = vector.shape_cast %292 : vector<128xf32> to vector<1x1x128xf32>
      %294 = vector.broadcast %293 : vector<1x1x128xf32> to vector<4x16x128xf32>
      %295 = arith.mulf %290, %294 : vector<4x16x128xf32>
      %296 = arith.addf %289, %295 : vector<4x16x128xf32>
      %297 = vector.extract_strided_slice %267 {offsets = [0, 4, 0], sizes = [4, 16, 128], strides = [1, 1, 1]} : vector<4x26x128xf32> to vector<4x16x128xf32>
      %298 = vector.extract_strided_slice %269 {offsets = [4, 0], sizes = [1, 128], strides = [1, 1]} : vector<11x128xf32> to vector<1x128xf32>
      %299 = vector.shape_cast %298 : vector<1x128xf32> to vector<128xf32>
      %300 = vector.shape_cast %299 : vector<128xf32> to vector<1x1x128xf32>
      %301 = vector.broadcast %300 : vector<1x1x128xf32> to vector<4x16x128xf32>
      %302 = arith.mulf %297, %301 : vector<4x16x128xf32>
      %303 = arith.addf %296, %302 : vector<4x16x128xf32>
      %304 = vector.extract_strided_slice %267 {offsets = [0, 5, 0], sizes = [4, 16, 128], strides = [1, 1, 1]} : vector<4x26x128xf32> to vector<4x16x128xf32>
      %305 = vector.extract_strided_slice %269 {offsets = [5, 0], sizes = [1, 128], strides = [1, 1]} : vector<11x128xf32> to vector<1x128xf32>
      %306 = vector.shape_cast %305 : vector<1x128xf32> to vector<128xf32>
      %307 = vector.shape_cast %306 : vector<128xf32> to vector<1x1x128xf32>
      %308 = vector.broadcast %307 : vector<1x1x128xf32> to vector<4x16x128xf32>
      %309 = arith.mulf %304, %308 : vector<4x16x128xf32>
      %310 = arith.addf %303, %309 : vector<4x16x128xf32>
      %311 = vector.extract_strided_slice %267 {offsets = [0, 6, 0], sizes = [4, 16, 128], strides = [1, 1, 1]} : vector<4x26x128xf32> to vector<4x16x128xf32>
      %312 = vector.extract_strided_slice %269 {offsets = [6, 0], sizes = [1, 128], strides = [1, 1]} : vector<11x128xf32> to vector<1x128xf32>
      %313 = vector.shape_cast %312 : vector<1x128xf32> to vector<128xf32>
      %314 = vector.shape_cast %313 : vector<128xf32> to vector<1x1x128xf32>
      %315 = vector.broadcast %314 : vector<1x1x128xf32> to vector<4x16x128xf32>
      %316 = arith.mulf %311, %315 : vector<4x16x128xf32>
      %317 = arith.addf %310, %316 : vector<4x16x128xf32>
      %318 = vector.extract_strided_slice %267 {offsets = [0, 7, 0], sizes = [4, 16, 128], strides = [1, 1, 1]} : vector<4x26x128xf32> to vector<4x16x128xf32>
      %319 = vector.extract_strided_slice %269 {offsets = [7, 0], sizes = [1, 128], strides = [1, 1]} : vector<11x128xf32> to vector<1x128xf32>
      %320 = vector.shape_cast %319 : vector<1x128xf32> to vector<128xf32>
      %321 = vector.shape_cast %320 : vector<128xf32> to vector<1x1x128xf32>
      %322 = vector.broadcast %321 : vector<1x1x128xf32> to vector<4x16x128xf32>
      %323 = arith.mulf %318, %322 : vector<4x16x128xf32>
      %324 = arith.addf %317, %323 : vector<4x16x128xf32>
      %325 = vector.extract_strided_slice %267 {offsets = [0, 8, 0], sizes = [4, 16, 128], strides = [1, 1, 1]} : vector<4x26x128xf32> to vector<4x16x128xf32>
      %326 = vector.extract_strided_slice %269 {offsets = [8, 0], sizes = [1, 128], strides = [1, 1]} : vector<11x128xf32> to vector<1x128xf32>
      %327 = vector.shape_cast %326 : vector<1x128xf32> to vector<128xf32>
      %328 = vector.shape_cast %327 : vector<128xf32> to vector<1x1x128xf32>
      %329 = vector.broadcast %328 : vector<1x1x128xf32> to vector<4x16x128xf32>
      %330 = arith.mulf %325, %329 : vector<4x16x128xf32>
      %331 = arith.addf %324, %330 : vector<4x16x128xf32>
      %332 = vector.extract_strided_slice %267 {offsets = [0, 9, 0], sizes = [4, 16, 128], strides = [1, 1, 1]} : vector<4x26x128xf32> to vector<4x16x128xf32>
      %333 = vector.extract_strided_slice %269 {offsets = [9, 0], sizes = [1, 128], strides = [1, 1]} : vector<11x128xf32> to vector<1x128xf32>
      %334 = vector.shape_cast %333 : vector<1x128xf32> to vector<128xf32>
      %335 = vector.shape_cast %334 : vector<128xf32> to vector<1x1x128xf32>
      %336 = vector.broadcast %335 : vector<1x1x128xf32> to vector<4x16x128xf32>
      %337 = arith.mulf %332, %336 : vector<4x16x128xf32>
      %338 = arith.addf %331, %337 : vector<4x16x128xf32>
      %339 = vector.extract_strided_slice %267 {offsets = [0, 10, 0], sizes = [4, 16, 128], strides = [1, 1, 1]} : vector<4x26x128xf32> to vector<4x16x128xf32>
      %340 = vector.extract_strided_slice %269 {offsets = [10, 0], sizes = [1, 128], strides = [1, 1]} : vector<11x128xf32> to vector<1x128xf32>
      %341 = vector.shape_cast %340 : vector<1x128xf32> to vector<128xf32>
      %342 = vector.shape_cast %341 : vector<128xf32> to vector<1x1x128xf32>
      %343 = vector.broadcast %342 : vector<1x1x128xf32> to vector<4x16x128xf32>
      %344 = arith.mulf %339, %343 : vector<4x16x128xf32>
      %345 = arith.addf %338, %344 : vector<4x16x128xf32>
      %346 = arith.addf %180, %345 : vector<4x16x128xf32>
      %c4_i32_39 = arith.constant 4 : i32
      %347 = arith.addi %12, %c4_i32_39 : i32
      %c0_40 = arith.constant 0 : index
      %c0_41 = arith.constant 0 : index
      %348 = arith.index_cast %347 : i32 to index
      %c0_42 = arith.constant 0 : index
      %c0_43 = arith.constant 0 : index
      %349 = vector.load %arg2[%c0_40, %c0_41, %348, %c0_42, %c0_43] : memref<1x1x26x26x128xf32, #tpu.memory_space<vmem>>, vector<1x1x4x26x128xf32>
      %350 = vector.shape_cast %349 : vector<1x1x4x26x128xf32> to vector<4x26x128xf32>
      %c4 = arith.constant 4 : index
      %c0_44 = arith.constant 0 : index
      %c0_45 = arith.constant 0 : index
      %351 = vector.load %arg3[%c4, %c0_44, %c0_45] : memref<11x11x128xf32, #tpu.memory_space<vmem>>, vector<1x11x128xf32>
      %352 = vector.shape_cast %351 : vector<1x11x128xf32> to vector<11x128xf32>
      %353 = vector.extract_strided_slice %350 {offsets = [0, 0, 0], sizes = [4, 16, 128], strides = [1, 1, 1]} : vector<4x26x128xf32> to vector<4x16x128xf32>
      %354 = vector.extract_strided_slice %352 {offsets = [0, 0], sizes = [1, 128], strides = [1, 1]} : vector<11x128xf32> to vector<1x128xf32>
      %355 = vector.shape_cast %354 : vector<1x128xf32> to vector<128xf32>
      %356 = vector.shape_cast %355 : vector<128xf32> to vector<1x1x128xf32>
      %357 = vector.broadcast %356 : vector<1x1x128xf32> to vector<4x16x128xf32>
      %358 = arith.mulf %353, %357 : vector<4x16x128xf32>
      %359 = vector.extract_strided_slice %350 {offsets = [0, 1, 0], sizes = [4, 16, 128], strides = [1, 1, 1]} : vector<4x26x128xf32> to vector<4x16x128xf32>
      %360 = vector.extract_strided_slice %352 {offsets = [1, 0], sizes = [1, 128], strides = [1, 1]} : vector<11x128xf32> to vector<1x128xf32>
      %361 = vector.shape_cast %360 : vector<1x128xf32> to vector<128xf32>
      %362 = vector.shape_cast %361 : vector<128xf32> to vector<1x1x128xf32>
      %363 = vector.broadcast %362 : vector<1x1x128xf32> to vector<4x16x128xf32>
      %364 = arith.mulf %359, %363 : vector<4x16x128xf32>
      %365 = arith.addf %358, %364 : vector<4x16x128xf32>
      %366 = vector.extract_strided_slice %350 {offsets = [0, 2, 0], sizes = [4, 16, 128], strides = [1, 1, 1]} : vector<4x26x128xf32> to vector<4x16x128xf32>
      %367 = vector.extract_strided_slice %352 {offsets = [2, 0], sizes = [1, 128], strides = [1, 1]} : vector<11x128xf32> to vector<1x128xf32>
      %368 = vector.shape_cast %367 : vector<1x128xf32> to vector<128xf32>
      %369 = vector.shape_cast %368 : vector<128xf32> to vector<1x1x128xf32>
      %370 = vector.broadcast %369 : vector<1x1x128xf32> to vector<4x16x128xf32>
      %371 = arith.mulf %366, %370 : vector<4x16x128xf32>
      %372 = arith.addf %365, %371 : vector<4x16x128xf32>
      %373 = vector.extract_strided_slice %350 {offsets = [0, 3, 0], sizes = [4, 16, 128], strides = [1, 1, 1]} : vector<4x26x128xf32> to vector<4x16x128xf32>
      %374 = vector.extract_strided_slice %352 {offsets = [3, 0], sizes = [1, 128], strides = [1, 1]} : vector<11x128xf32> to vector<1x128xf32>
      %375 = vector.shape_cast %374 : vector<1x128xf32> to vector<128xf32>
      %376 = vector.shape_cast %375 : vector<128xf32> to vector<1x1x128xf32>
      %377 = vector.broadcast %376 : vector<1x1x128xf32> to vector<4x16x128xf32>
      %378 = arith.mulf %373, %377 : vector<4x16x128xf32>
      %379 = arith.addf %372, %378 : vector<4x16x128xf32>
      %380 = vector.extract_strided_slice %350 {offsets = [0, 4, 0], sizes = [4, 16, 128], strides = [1, 1, 1]} : vector<4x26x128xf32> to vector<4x16x128xf32>
      %381 = vector.extract_strided_slice %352 {offsets = [4, 0], sizes = [1, 128], strides = [1, 1]} : vector<11x128xf32> to vector<1x128xf32>
      %382 = vector.shape_cast %381 : vector<1x128xf32> to vector<128xf32>
      %383 = vector.shape_cast %382 : vector<128xf32> to vector<1x1x128xf32>
      %384 = vector.broadcast %383 : vector<1x1x128xf32> to vector<4x16x128xf32>
      %385 = arith.mulf %380, %384 : vector<4x16x128xf32>
      %386 = arith.addf %379, %385 : vector<4x16x128xf32>
      %387 = vector.extract_strided_slice %350 {offsets = [0, 5, 0], sizes = [4, 16, 128], strides = [1, 1, 1]} : vector<4x26x128xf32> to vector<4x16x128xf32>
      %388 = vector.extract_strided_slice %352 {offsets = [5, 0], sizes = [1, 128], strides = [1, 1]} : vector<11x128xf32> to vector<1x128xf32>
      %389 = vector.shape_cast %388 : vector<1x128xf32> to vector<128xf32>
      %390 = vector.shape_cast %389 : vector<128xf32> to vector<1x1x128xf32>
      %391 = vector.broadcast %390 : vector<1x1x128xf32> to vector<4x16x128xf32>
      %392 = arith.mulf %387, %391 : vector<4x16x128xf32>
      %393 = arith.addf %386, %392 : vector<4x16x128xf32>
      %394 = vector.extract_strided_slice %350 {offsets = [0, 6, 0], sizes = [4, 16, 128], strides = [1, 1, 1]} : vector<4x26x128xf32> to vector<4x16x128xf32>
      %395 = vector.extract_strided_slice %352 {offsets = [6, 0], sizes = [1, 128], strides = [1, 1]} : vector<11x128xf32> to vector<1x128xf32>
      %396 = vector.shape_cast %395 : vector<1x128xf32> to vector<128xf32>
      %397 = vector.shape_cast %396 : vector<128xf32> to vector<1x1x128xf32>
      %398 = vector.broadcast %397 : vector<1x1x128xf32> to vector<4x16x128xf32>
      %399 = arith.mulf %394, %398 : vector<4x16x128xf32>
      %400 = arith.addf %393, %399 : vector<4x16x128xf32>
      %401 = vector.extract_strided_slice %350 {offsets = [0, 7, 0], sizes = [4, 16, 128], strides = [1, 1, 1]} : vector<4x26x128xf32> to vector<4x16x128xf32>
      %402 = vector.extract_strided_slice %352 {offsets = [7, 0], sizes = [1, 128], strides = [1, 1]} : vector<11x128xf32> to vector<1x128xf32>
      %403 = vector.shape_cast %402 : vector<1x128xf32> to vector<128xf32>
      %404 = vector.shape_cast %403 : vector<128xf32> to vector<1x1x128xf32>
      %405 = vector.broadcast %404 : vector<1x1x128xf32> to vector<4x16x128xf32>
      %406 = arith.mulf %401, %405 : vector<4x16x128xf32>
      %407 = arith.addf %400, %406 : vector<4x16x128xf32>
      %408 = vector.extract_strided_slice %350 {offsets = [0, 8, 0], sizes = [4, 16, 128], strides = [1, 1, 1]} : vector<4x26x128xf32> to vector<4x16x128xf32>
      %409 = vector.extract_strided_slice %352 {offsets = [8, 0], sizes = [1, 128], strides = [1, 1]} : vector<11x128xf32> to vector<1x128xf32>
      %410 = vector.shape_cast %409 : vector<1x128xf32> to vector<128xf32>
      %411 = vector.shape_cast %410 : vector<128xf32> to vector<1x1x128xf32>
      %412 = vector.broadcast %411 : vector<1x1x128xf32> to vector<4x16x128xf32>
      %413 = arith.mulf %408, %412 : vector<4x16x128xf32>
      %414 = arith.addf %407, %413 : vector<4x16x128xf32>
      %415 = vector.extract_strided_slice %350 {offsets = [0, 9, 0], sizes = [4, 16, 128], strides = [1, 1, 1]} : vector<4x26x128xf32> to vector<4x16x128xf32>
      %416 = vector.extract_strided_slice %352 {offsets = [9, 0], sizes = [1, 128], strides = [1, 1]} : vector<11x128xf32> to vector<1x128xf32>
      %417 = vector.shape_cast %416 : vector<1x128xf32> to vector<128xf32>
      %418 = vector.shape_cast %417 : vector<128xf32> to vector<1x1x128xf32>
      %419 = vector.broadcast %418 : vector<1x1x128xf32> to vector<4x16x128xf32>
      %420 = arith.mulf %415, %419 : vector<4x16x128xf32>
      %421 = arith.addf %414, %420 : vector<4x16x128xf32>
      %422 = vector.extract_strided_slice %350 {offsets = [0, 10, 0], sizes = [4, 16, 128], strides = [1, 1, 1]} : vector<4x26x128xf32> to vector<4x16x128xf32>
      %423 = vector.extract_strided_slice %352 {offsets = [10, 0], sizes = [1, 128], strides = [1, 1]} : vector<11x128xf32> to vector<1x128xf32>
      %424 = vector.shape_cast %423 : vector<1x128xf32> to vector<128xf32>
      %425 = vector.shape_cast %424 : vector<128xf32> to vector<1x1x128xf32>
      %426 = vector.broadcast %425 : vector<1x1x128xf32> to vector<4x16x128xf32>
      %427 = arith.mulf %422, %426 : vector<4x16x128xf32>
      %428 = arith.addf %421, %427 : vector<4x16x128xf32>
      %429 = arith.addf %263, %428 : vector<4x16x128xf32>
      %c5_i32 = arith.constant 5 : i32
      %430 = arith.addi %12, %c5_i32 : i32
      %c0_46 = arith.constant 0 : index
      %c0_47 = arith.constant 0 : index
      %431 = arith.index_cast %430 : i32 to index
      %c0_48 = arith.constant 0 : index
      %c0_49 = arith.constant 0 : index
      %432 = vector.load %arg2[%c0_46, %c0_47, %431, %c0_48, %c0_49] : memref<1x1x26x26x128xf32, #tpu.memory_space<vmem>>, vector<1x1x4x26x128xf32>
      %433 = vector.shape_cast %432 : vector<1x1x4x26x128xf32> to vector<4x26x128xf32>
      %c5 = arith.constant 5 : index
      %c0_50 = arith.constant 0 : index
      %c0_51 = arith.constant 0 : index
      %434 = vector.load %arg3[%c5, %c0_50, %c0_51] : memref<11x11x128xf32, #tpu.memory_space<vmem>>, vector<1x11x128xf32>
      %435 = vector.shape_cast %434 : vector<1x11x128xf32> to vector<11x128xf32>
      %436 = vector.extract_strided_slice %433 {offsets = [0, 0, 0], sizes = [4, 16, 128], strides = [1, 1, 1]} : vector<4x26x128xf32> to vector<4x16x128xf32>
      %437 = vector.extract_strided_slice %435 {offsets = [0, 0], sizes = [1, 128], strides = [1, 1]} : vector<11x128xf32> to vector<1x128xf32>
      %438 = vector.shape_cast %437 : vector<1x128xf32> to vector<128xf32>
      %439 = vector.shape_cast %438 : vector<128xf32> to vector<1x1x128xf32>
      %440 = vector.broadcast %439 : vector<1x1x128xf32> to vector<4x16x128xf32>
      %441 = arith.mulf %436, %440 : vector<4x16x128xf32>
      %442 = vector.extract_strided_slice %433 {offsets = [0, 1, 0], sizes = [4, 16, 128], strides = [1, 1, 1]} : vector<4x26x128xf32> to vector<4x16x128xf32>
      %443 = vector.extract_strided_slice %435 {offsets = [1, 0], sizes = [1, 128], strides = [1, 1]} : vector<11x128xf32> to vector<1x128xf32>
      %444 = vector.shape_cast %443 : vector<1x128xf32> to vector<128xf32>
      %445 = vector.shape_cast %444 : vector<128xf32> to vector<1x1x128xf32>
      %446 = vector.broadcast %445 : vector<1x1x128xf32> to vector<4x16x128xf32>
      %447 = arith.mulf %442, %446 : vector<4x16x128xf32>
      %448 = arith.addf %441, %447 : vector<4x16x128xf32>
      %449 = vector.extract_strided_slice %433 {offsets = [0, 2, 0], sizes = [4, 16, 128], strides = [1, 1, 1]} : vector<4x26x128xf32> to vector<4x16x128xf32>
      %450 = vector.extract_strided_slice %435 {offsets = [2, 0], sizes = [1, 128], strides = [1, 1]} : vector<11x128xf32> to vector<1x128xf32>
      %451 = vector.shape_cast %450 : vector<1x128xf32> to vector<128xf32>
      %452 = vector.shape_cast %451 : vector<128xf32> to vector<1x1x128xf32>
      %453 = vector.broadcast %452 : vector<1x1x128xf32> to vector<4x16x128xf32>
      %454 = arith.mulf %449, %453 : vector<4x16x128xf32>
      %455 = arith.addf %448, %454 : vector<4x16x128xf32>
      %456 = vector.extract_strided_slice %433 {offsets = [0, 3, 0], sizes = [4, 16, 128], strides = [1, 1, 1]} : vector<4x26x128xf32> to vector<4x16x128xf32>
      %457 = vector.extract_strided_slice %435 {offsets = [3, 0], sizes = [1, 128], strides = [1, 1]} : vector<11x128xf32> to vector<1x128xf32>
      %458 = vector.shape_cast %457 : vector<1x128xf32> to vector<128xf32>
      %459 = vector.shape_cast %458 : vector<128xf32> to vector<1x1x128xf32>
      %460 = vector.broadcast %459 : vector<1x1x128xf32> to vector<4x16x128xf32>
      %461 = arith.mulf %456, %460 : vector<4x16x128xf32>
      %462 = arith.addf %455, %461 : vector<4x16x128xf32>
      %463 = vector.extract_strided_slice %433 {offsets = [0, 4, 0], sizes = [4, 16, 128], strides = [1, 1, 1]} : vector<4x26x128xf32> to vector<4x16x128xf32>
      %464 = vector.extract_strided_slice %435 {offsets = [4, 0], sizes = [1, 128], strides = [1, 1]} : vector<11x128xf32> to vector<1x128xf32>
      %465 = vector.shape_cast %464 : vector<1x128xf32> to vector<128xf32>
      %466 = vector.shape_cast %465 : vector<128xf32> to vector<1x1x128xf32>
      %467 = vector.broadcast %466 : vector<1x1x128xf32> to vector<4x16x128xf32>
      %468 = arith.mulf %463, %467 : vector<4x16x128xf32>
      %469 = arith.addf %462, %468 : vector<4x16x128xf32>
      %470 = vector.extract_strided_slice %433 {offsets = [0, 5, 0], sizes = [4, 16, 128], strides = [1, 1, 1]} : vector<4x26x128xf32> to vector<4x16x128xf32>
      %471 = vector.extract_strided_slice %435 {offsets = [5, 0], sizes = [1, 128], strides = [1, 1]} : vector<11x128xf32> to vector<1x128xf32>
      %472 = vector.shape_cast %471 : vector<1x128xf32> to vector<128xf32>
      %473 = vector.shape_cast %472 : vector<128xf32> to vector<1x1x128xf32>
      %474 = vector.broadcast %473 : vector<1x1x128xf32> to vector<4x16x128xf32>
      %475 = arith.mulf %470, %474 : vector<4x16x128xf32>
      %476 = arith.addf %469, %475 : vector<4x16x128xf32>
      %477 = vector.extract_strided_slice %433 {offsets = [0, 6, 0], sizes = [4, 16, 128], strides = [1, 1, 1]} : vector<4x26x128xf32> to vector<4x16x128xf32>
      %478 = vector.extract_strided_slice %435 {offsets = [6, 0], sizes = [1, 128], strides = [1, 1]} : vector<11x128xf32> to vector<1x128xf32>
      %479 = vector.shape_cast %478 : vector<1x128xf32> to vector<128xf32>
      %480 = vector.shape_cast %479 : vector<128xf32> to vector<1x1x128xf32>
      %481 = vector.broadcast %480 : vector<1x1x128xf32> to vector<4x16x128xf32>
      %482 = arith.mulf %477, %481 : vector<4x16x128xf32>
      %483 = arith.addf %476, %482 : vector<4x16x128xf32>
      %484 = vector.extract_strided_slice %433 {offsets = [0, 7, 0], sizes = [4, 16, 128], strides = [1, 1, 1]} : vector<4x26x128xf32> to vector<4x16x128xf32>
      %485 = vector.extract_strided_slice %435 {offsets = [7, 0], sizes = [1, 128], strides = [1, 1]} : vector<11x128xf32> to vector<1x128xf32>
      %486 = vector.shape_cast %485 : vector<1x128xf32> to vector<128xf32>
      %487 = vector.shape_cast %486 : vector<128xf32> to vector<1x1x128xf32>
      %488 = vector.broadcast %487 : vector<1x1x128xf32> to vector<4x16x128xf32>
      %489 = arith.mulf %484, %488 : vector<4x16x128xf32>
      %490 = arith.addf %483, %489 : vector<4x16x128xf32>
      %491 = vector.extract_strided_slice %433 {offsets = [0, 8, 0], sizes = [4, 16, 128], strides = [1, 1, 1]} : vector<4x26x128xf32> to vector<4x16x128xf32>
      %492 = vector.extract_strided_slice %435 {offsets = [8, 0], sizes = [1, 128], strides = [1, 1]} : vector<11x128xf32> to vector<1x128xf32>
      %493 = vector.shape_cast %492 : vector<1x128xf32> to vector<128xf32>
      %494 = vector.shape_cast %493 : vector<128xf32> to vector<1x1x128xf32>
      %495 = vector.broadcast %494 : vector<1x1x128xf32> to vector<4x16x128xf32>
      %496 = arith.mulf %491, %495 : vector<4x16x128xf32>
      %497 = arith.addf %490, %496 : vector<4x16x128xf32>
      %498 = vector.extract_strided_slice %433 {offsets = [0, 9, 0], sizes = [4, 16, 128], strides = [1, 1, 1]} : vector<4x26x128xf32> to vector<4x16x128xf32>
      %499 = vector.extract_strided_slice %435 {offsets = [9, 0], sizes = [1, 128], strides = [1, 1]} : vector<11x128xf32> to vector<1x128xf32>
      %500 = vector.shape_cast %499 : vector<1x128xf32> to vector<128xf32>
      %501 = vector.shape_cast %500 : vector<128xf32> to vector<1x1x128xf32>
      %502 = vector.broadcast %501 : vector<1x1x128xf32> to vector<4x16x128xf32>
      %503 = arith.mulf %498, %502 : vector<4x16x128xf32>
      %504 = arith.addf %497, %503 : vector<4x16x128xf32>
      %505 = vector.extract_strided_slice %433 {offsets = [0, 10, 0], sizes = [4, 16, 128], strides = [1, 1, 1]} : vector<4x26x128xf32> to vector<4x16x128xf32>
      %506 = vector.extract_strided_slice %435 {offsets = [10, 0], sizes = [1, 128], strides = [1, 1]} : vector<11x128xf32> to vector<1x128xf32>
      %507 = vector.shape_cast %506 : vector<1x128xf32> to vector<128xf32>
      %508 = vector.shape_cast %507 : vector<128xf32> to vector<1x1x128xf32>
      %509 = vector.broadcast %508 : vector<1x1x128xf32> to vector<4x16x128xf32>
      %510 = arith.mulf %505, %509 : vector<4x16x128xf32>
      %511 = arith.addf %504, %510 : vector<4x16x128xf32>
      %512 = arith.addf %346, %511 : vector<4x16x128xf32>
      %c6_i32 = arith.constant 6 : i32
      %513 = arith.addi %12, %c6_i32 : i32
      %c0_52 = arith.constant 0 : index
      %c0_53 = arith.constant 0 : index
      %514 = arith.index_cast %513 : i32 to index
      %c0_54 = arith.constant 0 : index
      %c0_55 = arith.constant 0 : index
      %515 = vector.load %arg2[%c0_52, %c0_53, %514, %c0_54, %c0_55] : memref<1x1x26x26x128xf32, #tpu.memory_space<vmem>>, vector<1x1x4x26x128xf32>
      %516 = vector.shape_cast %515 : vector<1x1x4x26x128xf32> to vector<4x26x128xf32>
      %c6 = arith.constant 6 : index
      %c0_56 = arith.constant 0 : index
      %c0_57 = arith.constant 0 : index
      %517 = vector.load %arg3[%c6, %c0_56, %c0_57] : memref<11x11x128xf32, #tpu.memory_space<vmem>>, vector<1x11x128xf32>
      %518 = vector.shape_cast %517 : vector<1x11x128xf32> to vector<11x128xf32>
      %519 = vector.extract_strided_slice %516 {offsets = [0, 0, 0], sizes = [4, 16, 128], strides = [1, 1, 1]} : vector<4x26x128xf32> to vector<4x16x128xf32>
      %520 = vector.extract_strided_slice %518 {offsets = [0, 0], sizes = [1, 128], strides = [1, 1]} : vector<11x128xf32> to vector<1x128xf32>
      %521 = vector.shape_cast %520 : vector<1x128xf32> to vector<128xf32>
      %522 = vector.shape_cast %521 : vector<128xf32> to vector<1x1x128xf32>
      %523 = vector.broadcast %522 : vector<1x1x128xf32> to vector<4x16x128xf32>
      %524 = arith.mulf %519, %523 : vector<4x16x128xf32>
      %525 = vector.extract_strided_slice %516 {offsets = [0, 1, 0], sizes = [4, 16, 128], strides = [1, 1, 1]} : vector<4x26x128xf32> to vector<4x16x128xf32>
      %526 = vector.extract_strided_slice %518 {offsets = [1, 0], sizes = [1, 128], strides = [1, 1]} : vector<11x128xf32> to vector<1x128xf32>
      %527 = vector.shape_cast %526 : vector<1x128xf32> to vector<128xf32>
      %528 = vector.shape_cast %527 : vector<128xf32> to vector<1x1x128xf32>
      %529 = vector.broadcast %528 : vector<1x1x128xf32> to vector<4x16x128xf32>
      %530 = arith.mulf %525, %529 : vector<4x16x128xf32>
      %531 = arith.addf %524, %530 : vector<4x16x128xf32>
      %532 = vector.extract_strided_slice %516 {offsets = [0, 2, 0], sizes = [4, 16, 128], strides = [1, 1, 1]} : vector<4x26x128xf32> to vector<4x16x128xf32>
      %533 = vector.extract_strided_slice %518 {offsets = [2, 0], sizes = [1, 128], strides = [1, 1]} : vector<11x128xf32> to vector<1x128xf32>
      %534 = vector.shape_cast %533 : vector<1x128xf32> to vector<128xf32>
      %535 = vector.shape_cast %534 : vector<128xf32> to vector<1x1x128xf32>
      %536 = vector.broadcast %535 : vector<1x1x128xf32> to vector<4x16x128xf32>
      %537 = arith.mulf %532, %536 : vector<4x16x128xf32>
      %538 = arith.addf %531, %537 : vector<4x16x128xf32>
      %539 = vector.extract_strided_slice %516 {offsets = [0, 3, 0], sizes = [4, 16, 128], strides = [1, 1, 1]} : vector<4x26x128xf32> to vector<4x16x128xf32>
      %540 = vector.extract_strided_slice %518 {offsets = [3, 0], sizes = [1, 128], strides = [1, 1]} : vector<11x128xf32> to vector<1x128xf32>
      %541 = vector.shape_cast %540 : vector<1x128xf32> to vector<128xf32>
      %542 = vector.shape_cast %541 : vector<128xf32> to vector<1x1x128xf32>
      %543 = vector.broadcast %542 : vector<1x1x128xf32> to vector<4x16x128xf32>
      %544 = arith.mulf %539, %543 : vector<4x16x128xf32>
      %545 = arith.addf %538, %544 : vector<4x16x128xf32>
      %546 = vector.extract_strided_slice %516 {offsets = [0, 4, 0], sizes = [4, 16, 128], strides = [1, 1, 1]} : vector<4x26x128xf32> to vector<4x16x128xf32>
      %547 = vector.extract_strided_slice %518 {offsets = [4, 0], sizes = [1, 128], strides = [1, 1]} : vector<11x128xf32> to vector<1x128xf32>
      %548 = vector.shape_cast %547 : vector<1x128xf32> to vector<128xf32>
      %549 = vector.shape_cast %548 : vector<128xf32> to vector<1x1x128xf32>
      %550 = vector.broadcast %549 : vector<1x1x128xf32> to vector<4x16x128xf32>
      %551 = arith.mulf %546, %550 : vector<4x16x128xf32>
      %552 = arith.addf %545, %551 : vector<4x16x128xf32>
      %553 = vector.extract_strided_slice %516 {offsets = [0, 5, 0], sizes = [4, 16, 128], strides = [1, 1, 1]} : vector<4x26x128xf32> to vector<4x16x128xf32>
      %554 = vector.extract_strided_slice %518 {offsets = [5, 0], sizes = [1, 128], strides = [1, 1]} : vector<11x128xf32> to vector<1x128xf32>
      %555 = vector.shape_cast %554 : vector<1x128xf32> to vector<128xf32>
      %556 = vector.shape_cast %555 : vector<128xf32> to vector<1x1x128xf32>
      %557 = vector.broadcast %556 : vector<1x1x128xf32> to vector<4x16x128xf32>
      %558 = arith.mulf %553, %557 : vector<4x16x128xf32>
      %559 = arith.addf %552, %558 : vector<4x16x128xf32>
      %560 = vector.extract_strided_slice %516 {offsets = [0, 6, 0], sizes = [4, 16, 128], strides = [1, 1, 1]} : vector<4x26x128xf32> to vector<4x16x128xf32>
      %561 = vector.extract_strided_slice %518 {offsets = [6, 0], sizes = [1, 128], strides = [1, 1]} : vector<11x128xf32> to vector<1x128xf32>
      %562 = vector.shape_cast %561 : vector<1x128xf32> to vector<128xf32>
      %563 = vector.shape_cast %562 : vector<128xf32> to vector<1x1x128xf32>
      %564 = vector.broadcast %563 : vector<1x1x128xf32> to vector<4x16x128xf32>
      %565 = arith.mulf %560, %564 : vector<4x16x128xf32>
      %566 = arith.addf %559, %565 : vector<4x16x128xf32>
      %567 = vector.extract_strided_slice %516 {offsets = [0, 7, 0], sizes = [4, 16, 128], strides = [1, 1, 1]} : vector<4x26x128xf32> to vector<4x16x128xf32>
      %568 = vector.extract_strided_slice %518 {offsets = [7, 0], sizes = [1, 128], strides = [1, 1]} : vector<11x128xf32> to vector<1x128xf32>
      %569 = vector.shape_cast %568 : vector<1x128xf32> to vector<128xf32>
      %570 = vector.shape_cast %569 : vector<128xf32> to vector<1x1x128xf32>
      %571 = vector.broadcast %570 : vector<1x1x128xf32> to vector<4x16x128xf32>
      %572 = arith.mulf %567, %571 : vector<4x16x128xf32>
      %573 = arith.addf %566, %572 : vector<4x16x128xf32>
      %574 = vector.extract_strided_slice %516 {offsets = [0, 8, 0], sizes = [4, 16, 128], strides = [1, 1, 1]} : vector<4x26x128xf32> to vector<4x16x128xf32>
      %575 = vector.extract_strided_slice %518 {offsets = [8, 0], sizes = [1, 128], strides = [1, 1]} : vector<11x128xf32> to vector<1x128xf32>
      %576 = vector.shape_cast %575 : vector<1x128xf32> to vector<128xf32>
      %577 = vector.shape_cast %576 : vector<128xf32> to vector<1x1x128xf32>
      %578 = vector.broadcast %577 : vector<1x1x128xf32> to vector<4x16x128xf32>
      %579 = arith.mulf %574, %578 : vector<4x16x128xf32>
      %580 = arith.addf %573, %579 : vector<4x16x128xf32>
      %581 = vector.extract_strided_slice %516 {offsets = [0, 9, 0], sizes = [4, 16, 128], strides = [1, 1, 1]} : vector<4x26x128xf32> to vector<4x16x128xf32>
      %582 = vector.extract_strided_slice %518 {offsets = [9, 0], sizes = [1, 128], strides = [1, 1]} : vector<11x128xf32> to vector<1x128xf32>
      %583 = vector.shape_cast %582 : vector<1x128xf32> to vector<128xf32>
      %584 = vector.shape_cast %583 : vector<128xf32> to vector<1x1x128xf32>
      %585 = vector.broadcast %584 : vector<1x1x128xf32> to vector<4x16x128xf32>
      %586 = arith.mulf %581, %585 : vector<4x16x128xf32>
      %587 = arith.addf %580, %586 : vector<4x16x128xf32>
      %588 = vector.extract_strided_slice %516 {offsets = [0, 10, 0], sizes = [4, 16, 128], strides = [1, 1, 1]} : vector<4x26x128xf32> to vector<4x16x128xf32>
      %589 = vector.extract_strided_slice %518 {offsets = [10, 0], sizes = [1, 128], strides = [1, 1]} : vector<11x128xf32> to vector<1x128xf32>
      %590 = vector.shape_cast %589 : vector<1x128xf32> to vector<128xf32>
      %591 = vector.shape_cast %590 : vector<128xf32> to vector<1x1x128xf32>
      %592 = vector.broadcast %591 : vector<1x1x128xf32> to vector<4x16x128xf32>
      %593 = arith.mulf %588, %592 : vector<4x16x128xf32>
      %594 = arith.addf %587, %593 : vector<4x16x128xf32>
      %595 = arith.addf %429, %594 : vector<4x16x128xf32>
      %c7_i32 = arith.constant 7 : i32
      %596 = arith.addi %12, %c7_i32 : i32
      %c0_58 = arith.constant 0 : index
      %c0_59 = arith.constant 0 : index
      %597 = arith.index_cast %596 : i32 to index
      %c0_60 = arith.constant 0 : index
      %c0_61 = arith.constant 0 : index
      %598 = vector.load %arg2[%c0_58, %c0_59, %597, %c0_60, %c0_61] : memref<1x1x26x26x128xf32, #tpu.memory_space<vmem>>, vector<1x1x4x26x128xf32>
      %599 = vector.shape_cast %598 : vector<1x1x4x26x128xf32> to vector<4x26x128xf32>
      %c7 = arith.constant 7 : index
      %c0_62 = arith.constant 0 : index
      %c0_63 = arith.constant 0 : index
      %600 = vector.load %arg3[%c7, %c0_62, %c0_63] : memref<11x11x128xf32, #tpu.memory_space<vmem>>, vector<1x11x128xf32>
      %601 = vector.shape_cast %600 : vector<1x11x128xf32> to vector<11x128xf32>
      %602 = vector.extract_strided_slice %599 {offsets = [0, 0, 0], sizes = [4, 16, 128], strides = [1, 1, 1]} : vector<4x26x128xf32> to vector<4x16x128xf32>
      %603 = vector.extract_strided_slice %601 {offsets = [0, 0], sizes = [1, 128], strides = [1, 1]} : vector<11x128xf32> to vector<1x128xf32>
      %604 = vector.shape_cast %603 : vector<1x128xf32> to vector<128xf32>
      %605 = vector.shape_cast %604 : vector<128xf32> to vector<1x1x128xf32>
      %606 = vector.broadcast %605 : vector<1x1x128xf32> to vector<4x16x128xf32>
      %607 = arith.mulf %602, %606 : vector<4x16x128xf32>
      %608 = vector.extract_strided_slice %599 {offsets = [0, 1, 0], sizes = [4, 16, 128], strides = [1, 1, 1]} : vector<4x26x128xf32> to vector<4x16x128xf32>
      %609 = vector.extract_strided_slice %601 {offsets = [1, 0], sizes = [1, 128], strides = [1, 1]} : vector<11x128xf32> to vector<1x128xf32>
      %610 = vector.shape_cast %609 : vector<1x128xf32> to vector<128xf32>
      %611 = vector.shape_cast %610 : vector<128xf32> to vector<1x1x128xf32>
      %612 = vector.broadcast %611 : vector<1x1x128xf32> to vector<4x16x128xf32>
      %613 = arith.mulf %608, %612 : vector<4x16x128xf32>
      %614 = arith.addf %607, %613 : vector<4x16x128xf32>
      %615 = vector.extract_strided_slice %599 {offsets = [0, 2, 0], sizes = [4, 16, 128], strides = [1, 1, 1]} : vector<4x26x128xf32> to vector<4x16x128xf32>
      %616 = vector.extract_strided_slice %601 {offsets = [2, 0], sizes = [1, 128], strides = [1, 1]} : vector<11x128xf32> to vector<1x128xf32>
      %617 = vector.shape_cast %616 : vector<1x128xf32> to vector<128xf32>
      %618 = vector.shape_cast %617 : vector<128xf32> to vector<1x1x128xf32>
      %619 = vector.broadcast %618 : vector<1x1x128xf32> to vector<4x16x128xf32>
      %620 = arith.mulf %615, %619 : vector<4x16x128xf32>
      %621 = arith.addf %614, %620 : vector<4x16x128xf32>
      %622 = vector.extract_strided_slice %599 {offsets = [0, 3, 0], sizes = [4, 16, 128], strides = [1, 1, 1]} : vector<4x26x128xf32> to vector<4x16x128xf32>
      %623 = vector.extract_strided_slice %601 {offsets = [3, 0], sizes = [1, 128], strides = [1, 1]} : vector<11x128xf32> to vector<1x128xf32>
      %624 = vector.shape_cast %623 : vector<1x128xf32> to vector<128xf32>
      %625 = vector.shape_cast %624 : vector<128xf32> to vector<1x1x128xf32>
      %626 = vector.broadcast %625 : vector<1x1x128xf32> to vector<4x16x128xf32>
      %627 = arith.mulf %622, %626 : vector<4x16x128xf32>
      %628 = arith.addf %621, %627 : vector<4x16x128xf32>
      %629 = vector.extract_strided_slice %599 {offsets = [0, 4, 0], sizes = [4, 16, 128], strides = [1, 1, 1]} : vector<4x26x128xf32> to vector<4x16x128xf32>
      %630 = vector.extract_strided_slice %601 {offsets = [4, 0], sizes = [1, 128], strides = [1, 1]} : vector<11x128xf32> to vector<1x128xf32>
      %631 = vector.shape_cast %630 : vector<1x128xf32> to vector<128xf32>
      %632 = vector.shape_cast %631 : vector<128xf32> to vector<1x1x128xf32>
      %633 = vector.broadcast %632 : vector<1x1x128xf32> to vector<4x16x128xf32>
      %634 = arith.mulf %629, %633 : vector<4x16x128xf32>
      %635 = arith.addf %628, %634 : vector<4x16x128xf32>
      %636 = vector.extract_strided_slice %599 {offsets = [0, 5, 0], sizes = [4, 16, 128], strides = [1, 1, 1]} : vector<4x26x128xf32> to vector<4x16x128xf32>
      %637 = vector.extract_strided_slice %601 {offsets = [5, 0], sizes = [1, 128], strides = [1, 1]} : vector<11x128xf32> to vector<1x128xf32>
      %638 = vector.shape_cast %637 : vector<1x128xf32> to vector<128xf32>
      %639 = vector.shape_cast %638 : vector<128xf32> to vector<1x1x128xf32>
      %640 = vector.broadcast %639 : vector<1x1x128xf32> to vector<4x16x128xf32>
      %641 = arith.mulf %636, %640 : vector<4x16x128xf32>
      %642 = arith.addf %635, %641 : vector<4x16x128xf32>
      %643 = vector.extract_strided_slice %599 {offsets = [0, 6, 0], sizes = [4, 16, 128], strides = [1, 1, 1]} : vector<4x26x128xf32> to vector<4x16x128xf32>
      %644 = vector.extract_strided_slice %601 {offsets = [6, 0], sizes = [1, 128], strides = [1, 1]} : vector<11x128xf32> to vector<1x128xf32>
      %645 = vector.shape_cast %644 : vector<1x128xf32> to vector<128xf32>
      %646 = vector.shape_cast %645 : vector<128xf32> to vector<1x1x128xf32>
      %647 = vector.broadcast %646 : vector<1x1x128xf32> to vector<4x16x128xf32>
      %648 = arith.mulf %643, %647 : vector<4x16x128xf32>
      %649 = arith.addf %642, %648 : vector<4x16x128xf32>
      %650 = vector.extract_strided_slice %599 {offsets = [0, 7, 0], sizes = [4, 16, 128], strides = [1, 1, 1]} : vector<4x26x128xf32> to vector<4x16x128xf32>
      %651 = vector.extract_strided_slice %601 {offsets = [7, 0], sizes = [1, 128], strides = [1, 1]} : vector<11x128xf32> to vector<1x128xf32>
      %652 = vector.shape_cast %651 : vector<1x128xf32> to vector<128xf32>
      %653 = vector.shape_cast %652 : vector<128xf32> to vector<1x1x128xf32>
      %654 = vector.broadcast %653 : vector<1x1x128xf32> to vector<4x16x128xf32>
      %655 = arith.mulf %650, %654 : vector<4x16x128xf32>
      %656 = arith.addf %649, %655 : vector<4x16x128xf32>
      %657 = vector.extract_strided_slice %599 {offsets = [0, 8, 0], sizes = [4, 16, 128], strides = [1, 1, 1]} : vector<4x26x128xf32> to vector<4x16x128xf32>
      %658 = vector.extract_strided_slice %601 {offsets = [8, 0], sizes = [1, 128], strides = [1, 1]} : vector<11x128xf32> to vector<1x128xf32>
      %659 = vector.shape_cast %658 : vector<1x128xf32> to vector<128xf32>
      %660 = vector.shape_cast %659 : vector<128xf32> to vector<1x1x128xf32>
      %661 = vector.broadcast %660 : vector<1x1x128xf32> to vector<4x16x128xf32>
      %662 = arith.mulf %657, %661 : vector<4x16x128xf32>
      %663 = arith.addf %656, %662 : vector<4x16x128xf32>
      %664 = vector.extract_strided_slice %599 {offsets = [0, 9, 0], sizes = [4, 16, 128], strides = [1, 1, 1]} : vector<4x26x128xf32> to vector<4x16x128xf32>
      %665 = vector.extract_strided_slice %601 {offsets = [9, 0], sizes = [1, 128], strides = [1, 1]} : vector<11x128xf32> to vector<1x128xf32>
      %666 = vector.shape_cast %665 : vector<1x128xf32> to vector<128xf32>
      %667 = vector.shape_cast %666 : vector<128xf32> to vector<1x1x128xf32>
      %668 = vector.broadcast %667 : vector<1x1x128xf32> to vector<4x16x128xf32>
      %669 = arith.mulf %664, %668 : vector<4x16x128xf32>
      %670 = arith.addf %663, %669 : vector<4x16x128xf32>
      %671 = vector.extract_strided_slice %599 {offsets = [0, 10, 0], sizes = [4, 16, 128], strides = [1, 1, 1]} : vector<4x26x128xf32> to vector<4x16x128xf32>
      %672 = vector.extract_strided_slice %601 {offsets = [10, 0], sizes = [1, 128], strides = [1, 1]} : vector<11x128xf32> to vector<1x128xf32>
      %673 = vector.shape_cast %672 : vector<1x128xf32> to vector<128xf32>
      %674 = vector.shape_cast %673 : vector<128xf32> to vector<1x1x128xf32>
      %675 = vector.broadcast %674 : vector<1x1x128xf32> to vector<4x16x128xf32>
      %676 = arith.mulf %671, %675 : vector<4x16x128xf32>
      %677 = arith.addf %670, %676 : vector<4x16x128xf32>
      %678 = arith.addf %512, %677 : vector<4x16x128xf32>
      %c8_i32 = arith.constant 8 : i32
      %679 = arith.addi %12, %c8_i32 : i32
      %c0_64 = arith.constant 0 : index
      %c0_65 = arith.constant 0 : index
      %680 = arith.index_cast %679 : i32 to index
      %c0_66 = arith.constant 0 : index
      %c0_67 = arith.constant 0 : index
      %681 = vector.load %arg2[%c0_64, %c0_65, %680, %c0_66, %c0_67] : memref<1x1x26x26x128xf32, #tpu.memory_space<vmem>>, vector<1x1x4x26x128xf32>
      %682 = vector.shape_cast %681 : vector<1x1x4x26x128xf32> to vector<4x26x128xf32>
      %c8 = arith.constant 8 : index
      %c0_68 = arith.constant 0 : index
      %c0_69 = arith.constant 0 : index
      %683 = vector.load %arg3[%c8, %c0_68, %c0_69] : memref<11x11x128xf32, #tpu.memory_space<vmem>>, vector<1x11x128xf32>
      %684 = vector.shape_cast %683 : vector<1x11x128xf32> to vector<11x128xf32>
      %685 = vector.extract_strided_slice %682 {offsets = [0, 0, 0], sizes = [4, 16, 128], strides = [1, 1, 1]} : vector<4x26x128xf32> to vector<4x16x128xf32>
      %686 = vector.extract_strided_slice %684 {offsets = [0, 0], sizes = [1, 128], strides = [1, 1]} : vector<11x128xf32> to vector<1x128xf32>
      %687 = vector.shape_cast %686 : vector<1x128xf32> to vector<128xf32>
      %688 = vector.shape_cast %687 : vector<128xf32> to vector<1x1x128xf32>
      %689 = vector.broadcast %688 : vector<1x1x128xf32> to vector<4x16x128xf32>
      %690 = arith.mulf %685, %689 : vector<4x16x128xf32>
      %691 = vector.extract_strided_slice %682 {offsets = [0, 1, 0], sizes = [4, 16, 128], strides = [1, 1, 1]} : vector<4x26x128xf32> to vector<4x16x128xf32>
      %692 = vector.extract_strided_slice %684 {offsets = [1, 0], sizes = [1, 128], strides = [1, 1]} : vector<11x128xf32> to vector<1x128xf32>
      %693 = vector.shape_cast %692 : vector<1x128xf32> to vector<128xf32>
      %694 = vector.shape_cast %693 : vector<128xf32> to vector<1x1x128xf32>
      %695 = vector.broadcast %694 : vector<1x1x128xf32> to vector<4x16x128xf32>
      %696 = arith.mulf %691, %695 : vector<4x16x128xf32>
      %697 = arith.addf %690, %696 : vector<4x16x128xf32>
      %698 = vector.extract_strided_slice %682 {offsets = [0, 2, 0], sizes = [4, 16, 128], strides = [1, 1, 1]} : vector<4x26x128xf32> to vector<4x16x128xf32>
      %699 = vector.extract_strided_slice %684 {offsets = [2, 0], sizes = [1, 128], strides = [1, 1]} : vector<11x128xf32> to vector<1x128xf32>
      %700 = vector.shape_cast %699 : vector<1x128xf32> to vector<128xf32>
      %701 = vector.shape_cast %700 : vector<128xf32> to vector<1x1x128xf32>
      %702 = vector.broadcast %701 : vector<1x1x128xf32> to vector<4x16x128xf32>
      %703 = arith.mulf %698, %702 : vector<4x16x128xf32>
      %704 = arith.addf %697, %703 : vector<4x16x128xf32>
      %705 = vector.extract_strided_slice %682 {offsets = [0, 3, 0], sizes = [4, 16, 128], strides = [1, 1, 1]} : vector<4x26x128xf32> to vector<4x16x128xf32>
      %706 = vector.extract_strided_slice %684 {offsets = [3, 0], sizes = [1, 128], strides = [1, 1]} : vector<11x128xf32> to vector<1x128xf32>
      %707 = vector.shape_cast %706 : vector<1x128xf32> to vector<128xf32>
      %708 = vector.shape_cast %707 : vector<128xf32> to vector<1x1x128xf32>
      %709 = vector.broadcast %708 : vector<1x1x128xf32> to vector<4x16x128xf32>
      %710 = arith.mulf %705, %709 : vector<4x16x128xf32>
      %711 = arith.addf %704, %710 : vector<4x16x128xf32>
      %712 = vector.extract_strided_slice %682 {offsets = [0, 4, 0], sizes = [4, 16, 128], strides = [1, 1, 1]} : vector<4x26x128xf32> to vector<4x16x128xf32>
      %713 = vector.extract_strided_slice %684 {offsets = [4, 0], sizes = [1, 128], strides = [1, 1]} : vector<11x128xf32> to vector<1x128xf32>
      %714 = vector.shape_cast %713 : vector<1x128xf32> to vector<128xf32>
      %715 = vector.shape_cast %714 : vector<128xf32> to vector<1x1x128xf32>
      %716 = vector.broadcast %715 : vector<1x1x128xf32> to vector<4x16x128xf32>
      %717 = arith.mulf %712, %716 : vector<4x16x128xf32>
      %718 = arith.addf %711, %717 : vector<4x16x128xf32>
      %719 = vector.extract_strided_slice %682 {offsets = [0, 5, 0], sizes = [4, 16, 128], strides = [1, 1, 1]} : vector<4x26x128xf32> to vector<4x16x128xf32>
      %720 = vector.extract_strided_slice %684 {offsets = [5, 0], sizes = [1, 128], strides = [1, 1]} : vector<11x128xf32> to vector<1x128xf32>
      %721 = vector.shape_cast %720 : vector<1x128xf32> to vector<128xf32>
      %722 = vector.shape_cast %721 : vector<128xf32> to vector<1x1x128xf32>
      %723 = vector.broadcast %722 : vector<1x1x128xf32> to vector<4x16x128xf32>
      %724 = arith.mulf %719, %723 : vector<4x16x128xf32>
      %725 = arith.addf %718, %724 : vector<4x16x128xf32>
      %726 = vector.extract_strided_slice %682 {offsets = [0, 6, 0], sizes = [4, 16, 128], strides = [1, 1, 1]} : vector<4x26x128xf32> to vector<4x16x128xf32>
      %727 = vector.extract_strided_slice %684 {offsets = [6, 0], sizes = [1, 128], strides = [1, 1]} : vector<11x128xf32> to vector<1x128xf32>
      %728 = vector.shape_cast %727 : vector<1x128xf32> to vector<128xf32>
      %729 = vector.shape_cast %728 : vector<128xf32> to vector<1x1x128xf32>
      %730 = vector.broadcast %729 : vector<1x1x128xf32> to vector<4x16x128xf32>
      %731 = arith.mulf %726, %730 : vector<4x16x128xf32>
      %732 = arith.addf %725, %731 : vector<4x16x128xf32>
      %733 = vector.extract_strided_slice %682 {offsets = [0, 7, 0], sizes = [4, 16, 128], strides = [1, 1, 1]} : vector<4x26x128xf32> to vector<4x16x128xf32>
      %734 = vector.extract_strided_slice %684 {offsets = [7, 0], sizes = [1, 128], strides = [1, 1]} : vector<11x128xf32> to vector<1x128xf32>
      %735 = vector.shape_cast %734 : vector<1x128xf32> to vector<128xf32>
      %736 = vector.shape_cast %735 : vector<128xf32> to vector<1x1x128xf32>
      %737 = vector.broadcast %736 : vector<1x1x128xf32> to vector<4x16x128xf32>
      %738 = arith.mulf %733, %737 : vector<4x16x128xf32>
      %739 = arith.addf %732, %738 : vector<4x16x128xf32>
      %740 = vector.extract_strided_slice %682 {offsets = [0, 8, 0], sizes = [4, 16, 128], strides = [1, 1, 1]} : vector<4x26x128xf32> to vector<4x16x128xf32>
      %741 = vector.extract_strided_slice %684 {offsets = [8, 0], sizes = [1, 128], strides = [1, 1]} : vector<11x128xf32> to vector<1x128xf32>
      %742 = vector.shape_cast %741 : vector<1x128xf32> to vector<128xf32>
      %743 = vector.shape_cast %742 : vector<128xf32> to vector<1x1x128xf32>
      %744 = vector.broadcast %743 : vector<1x1x128xf32> to vector<4x16x128xf32>
      %745 = arith.mulf %740, %744 : vector<4x16x128xf32>
      %746 = arith.addf %739, %745 : vector<4x16x128xf32>
      %747 = vector.extract_strided_slice %682 {offsets = [0, 9, 0], sizes = [4, 16, 128], strides = [1, 1, 1]} : vector<4x26x128xf32> to vector<4x16x128xf32>
      %748 = vector.extract_strided_slice %684 {offsets = [9, 0], sizes = [1, 128], strides = [1, 1]} : vector<11x128xf32> to vector<1x128xf32>
      %749 = vector.shape_cast %748 : vector<1x128xf32> to vector<128xf32>
      %750 = vector.shape_cast %749 : vector<128xf32> to vector<1x1x128xf32>
      %751 = vector.broadcast %750 : vector<1x1x128xf32> to vector<4x16x128xf32>
      %752 = arith.mulf %747, %751 : vector<4x16x128xf32>
      %753 = arith.addf %746, %752 : vector<4x16x128xf32>
      %754 = vector.extract_strided_slice %682 {offsets = [0, 10, 0], sizes = [4, 16, 128], strides = [1, 1, 1]} : vector<4x26x128xf32> to vector<4x16x128xf32>
      %755 = vector.extract_strided_slice %684 {offsets = [10, 0], sizes = [1, 128], strides = [1, 1]} : vector<11x128xf32> to vector<1x128xf32>
      %756 = vector.shape_cast %755 : vector<1x128xf32> to vector<128xf32>
      %757 = vector.shape_cast %756 : vector<128xf32> to vector<1x1x128xf32>
      %758 = vector.broadcast %757 : vector<1x1x128xf32> to vector<4x16x128xf32>
      %759 = arith.mulf %754, %758 : vector<4x16x128xf32>
      %760 = arith.addf %753, %759 : vector<4x16x128xf32>
      %761 = arith.addf %595, %760 : vector<4x16x128xf32>
      %c9_i32 = arith.constant 9 : i32
      %762 = arith.addi %12, %c9_i32 : i32
      %c0_70 = arith.constant 0 : index
      %c0_71 = arith.constant 0 : index
      %763 = arith.index_cast %762 : i32 to index
      %c0_72 = arith.constant 0 : index
      %c0_73 = arith.constant 0 : index
      %764 = vector.load %arg2[%c0_70, %c0_71, %763, %c0_72, %c0_73] : memref<1x1x26x26x128xf32, #tpu.memory_space<vmem>>, vector<1x1x4x26x128xf32>
      %765 = vector.shape_cast %764 : vector<1x1x4x26x128xf32> to vector<4x26x128xf32>
      %c9 = arith.constant 9 : index
      %c0_74 = arith.constant 0 : index
      %c0_75 = arith.constant 0 : index
      %766 = vector.load %arg3[%c9, %c0_74, %c0_75] : memref<11x11x128xf32, #tpu.memory_space<vmem>>, vector<1x11x128xf32>
      %767 = vector.shape_cast %766 : vector<1x11x128xf32> to vector<11x128xf32>
      %768 = vector.extract_strided_slice %765 {offsets = [0, 0, 0], sizes = [4, 16, 128], strides = [1, 1, 1]} : vector<4x26x128xf32> to vector<4x16x128xf32>
      %769 = vector.extract_strided_slice %767 {offsets = [0, 0], sizes = [1, 128], strides = [1, 1]} : vector<11x128xf32> to vector<1x128xf32>
      %770 = vector.shape_cast %769 : vector<1x128xf32> to vector<128xf32>
      %771 = vector.shape_cast %770 : vector<128xf32> to vector<1x1x128xf32>
      %772 = vector.broadcast %771 : vector<1x1x128xf32> to vector<4x16x128xf32>
      %773 = arith.mulf %768, %772 : vector<4x16x128xf32>
      %774 = vector.extract_strided_slice %765 {offsets = [0, 1, 0], sizes = [4, 16, 128], strides = [1, 1, 1]} : vector<4x26x128xf32> to vector<4x16x128xf32>
      %775 = vector.extract_strided_slice %767 {offsets = [1, 0], sizes = [1, 128], strides = [1, 1]} : vector<11x128xf32> to vector<1x128xf32>
      %776 = vector.shape_cast %775 : vector<1x128xf32> to vector<128xf32>
      %777 = vector.shape_cast %776 : vector<128xf32> to vector<1x1x128xf32>
      %778 = vector.broadcast %777 : vector<1x1x128xf32> to vector<4x16x128xf32>
      %779 = arith.mulf %774, %778 : vector<4x16x128xf32>
      %780 = arith.addf %773, %779 : vector<4x16x128xf32>
      %781 = vector.extract_strided_slice %765 {offsets = [0, 2, 0], sizes = [4, 16, 128], strides = [1, 1, 1]} : vector<4x26x128xf32> to vector<4x16x128xf32>
      %782 = vector.extract_strided_slice %767 {offsets = [2, 0], sizes = [1, 128], strides = [1, 1]} : vector<11x128xf32> to vector<1x128xf32>
      %783 = vector.shape_cast %782 : vector<1x128xf32> to vector<128xf32>
      %784 = vector.shape_cast %783 : vector<128xf32> to vector<1x1x128xf32>
      %785 = vector.broadcast %784 : vector<1x1x128xf32> to vector<4x16x128xf32>
      %786 = arith.mulf %781, %785 : vector<4x16x128xf32>
      %787 = arith.addf %780, %786 : vector<4x16x128xf32>
      %788 = vector.extract_strided_slice %765 {offsets = [0, 3, 0], sizes = [4, 16, 128], strides = [1, 1, 1]} : vector<4x26x128xf32> to vector<4x16x128xf32>
      %789 = vector.extract_strided_slice %767 {offsets = [3, 0], sizes = [1, 128], strides = [1, 1]} : vector<11x128xf32> to vector<1x128xf32>
      %790 = vector.shape_cast %789 : vector<1x128xf32> to vector<128xf32>
      %791 = vector.shape_cast %790 : vector<128xf32> to vector<1x1x128xf32>
      %792 = vector.broadcast %791 : vector<1x1x128xf32> to vector<4x16x128xf32>
      %793 = arith.mulf %788, %792 : vector<4x16x128xf32>
      %794 = arith.addf %787, %793 : vector<4x16x128xf32>
      %795 = vector.extract_strided_slice %765 {offsets = [0, 4, 0], sizes = [4, 16, 128], strides = [1, 1, 1]} : vector<4x26x128xf32> to vector<4x16x128xf32>
      %796 = vector.extract_strided_slice %767 {offsets = [4, 0], sizes = [1, 128], strides = [1, 1]} : vector<11x128xf32> to vector<1x128xf32>
      %797 = vector.shape_cast %796 : vector<1x128xf32> to vector<128xf32>
      %798 = vector.shape_cast %797 : vector<128xf32> to vector<1x1x128xf32>
      %799 = vector.broadcast %798 : vector<1x1x128xf32> to vector<4x16x128xf32>
      %800 = arith.mulf %795, %799 : vector<4x16x128xf32>
      %801 = arith.addf %794, %800 : vector<4x16x128xf32>
      %802 = vector.extract_strided_slice %765 {offsets = [0, 5, 0], sizes = [4, 16, 128], strides = [1, 1, 1]} : vector<4x26x128xf32> to vector<4x16x128xf32>
      %803 = vector.extract_strided_slice %767 {offsets = [5, 0], sizes = [1, 128], strides = [1, 1]} : vector<11x128xf32> to vector<1x128xf32>
      %804 = vector.shape_cast %803 : vector<1x128xf32> to vector<128xf32>
      %805 = vector.shape_cast %804 : vector<128xf32> to vector<1x1x128xf32>
      %806 = vector.broadcast %805 : vector<1x1x128xf32> to vector<4x16x128xf32>
      %807 = arith.mulf %802, %806 : vector<4x16x128xf32>
      %808 = arith.addf %801, %807 : vector<4x16x128xf32>
      %809 = vector.extract_strided_slice %765 {offsets = [0, 6, 0], sizes = [4, 16, 128], strides = [1, 1, 1]} : vector<4x26x128xf32> to vector<4x16x128xf32>
      %810 = vector.extract_strided_slice %767 {offsets = [6, 0], sizes = [1, 128], strides = [1, 1]} : vector<11x128xf32> to vector<1x128xf32>
      %811 = vector.shape_cast %810 : vector<1x128xf32> to vector<128xf32>
      %812 = vector.shape_cast %811 : vector<128xf32> to vector<1x1x128xf32>
      %813 = vector.broadcast %812 : vector<1x1x128xf32> to vector<4x16x128xf32>
      %814 = arith.mulf %809, %813 : vector<4x16x128xf32>
      %815 = arith.addf %808, %814 : vector<4x16x128xf32>
      %816 = vector.extract_strided_slice %765 {offsets = [0, 7, 0], sizes = [4, 16, 128], strides = [1, 1, 1]} : vector<4x26x128xf32> to vector<4x16x128xf32>
      %817 = vector.extract_strided_slice %767 {offsets = [7, 0], sizes = [1, 128], strides = [1, 1]} : vector<11x128xf32> to vector<1x128xf32>
      %818 = vector.shape_cast %817 : vector<1x128xf32> to vector<128xf32>
      %819 = vector.shape_cast %818 : vector<128xf32> to vector<1x1x128xf32>
      %820 = vector.broadcast %819 : vector<1x1x128xf32> to vector<4x16x128xf32>
      %821 = arith.mulf %816, %820 : vector<4x16x128xf32>
      %822 = arith.addf %815, %821 : vector<4x16x128xf32>
      %823 = vector.extract_strided_slice %765 {offsets = [0, 8, 0], sizes = [4, 16, 128], strides = [1, 1, 1]} : vector<4x26x128xf32> to vector<4x16x128xf32>
      %824 = vector.extract_strided_slice %767 {offsets = [8, 0], sizes = [1, 128], strides = [1, 1]} : vector<11x128xf32> to vector<1x128xf32>
      %825 = vector.shape_cast %824 : vector<1x128xf32> to vector<128xf32>
      %826 = vector.shape_cast %825 : vector<128xf32> to vector<1x1x128xf32>
      %827 = vector.broadcast %826 : vector<1x1x128xf32> to vector<4x16x128xf32>
      %828 = arith.mulf %823, %827 : vector<4x16x128xf32>
      %829 = arith.addf %822, %828 : vector<4x16x128xf32>
      %830 = vector.extract_strided_slice %765 {offsets = [0, 9, 0], sizes = [4, 16, 128], strides = [1, 1, 1]} : vector<4x26x128xf32> to vector<4x16x128xf32>
      %831 = vector.extract_strided_slice %767 {offsets = [9, 0], sizes = [1, 128], strides = [1, 1]} : vector<11x128xf32> to vector<1x128xf32>
      %832 = vector.shape_cast %831 : vector<1x128xf32> to vector<128xf32>
      %833 = vector.shape_cast %832 : vector<128xf32> to vector<1x1x128xf32>
      %834 = vector.broadcast %833 : vector<1x1x128xf32> to vector<4x16x128xf32>
      %835 = arith.mulf %830, %834 : vector<4x16x128xf32>
      %836 = arith.addf %829, %835 : vector<4x16x128xf32>
      %837 = vector.extract_strided_slice %765 {offsets = [0, 10, 0], sizes = [4, 16, 128], strides = [1, 1, 1]} : vector<4x26x128xf32> to vector<4x16x128xf32>
      %838 = vector.extract_strided_slice %767 {offsets = [10, 0], sizes = [1, 128], strides = [1, 1]} : vector<11x128xf32> to vector<1x128xf32>
      %839 = vector.shape_cast %838 : vector<1x128xf32> to vector<128xf32>
      %840 = vector.shape_cast %839 : vector<128xf32> to vector<1x1x128xf32>
      %841 = vector.broadcast %840 : vector<1x1x128xf32> to vector<4x16x128xf32>
      %842 = arith.mulf %837, %841 : vector<4x16x128xf32>
      %843 = arith.addf %836, %842 : vector<4x16x128xf32>
      %844 = arith.addf %678, %843 : vector<4x16x128xf32>
      %c10_i32 = arith.constant 10 : i32
      %845 = arith.addi %12, %c10_i32 : i32
      %c0_76 = arith.constant 0 : index
      %c0_77 = arith.constant 0 : index
      %846 = arith.index_cast %845 : i32 to index
      %c0_78 = arith.constant 0 : index
      %c0_79 = arith.constant 0 : index
      %847 = vector.load %arg2[%c0_76, %c0_77, %846, %c0_78, %c0_79] : memref<1x1x26x26x128xf32, #tpu.memory_space<vmem>>, vector<1x1x4x26x128xf32>
      %848 = vector.shape_cast %847 : vector<1x1x4x26x128xf32> to vector<4x26x128xf32>
      %c10 = arith.constant 10 : index
      %c0_80 = arith.constant 0 : index
      %c0_81 = arith.constant 0 : index
      %849 = vector.load %arg3[%c10, %c0_80, %c0_81] : memref<11x11x128xf32, #tpu.memory_space<vmem>>, vector<1x11x128xf32>
      %850 = vector.shape_cast %849 : vector<1x11x128xf32> to vector<11x128xf32>
      %851 = vector.extract_strided_slice %848 {offsets = [0, 0, 0], sizes = [4, 16, 128], strides = [1, 1, 1]} : vector<4x26x128xf32> to vector<4x16x128xf32>
      %852 = vector.extract_strided_slice %850 {offsets = [0, 0], sizes = [1, 128], strides = [1, 1]} : vector<11x128xf32> to vector<1x128xf32>
      %853 = vector.shape_cast %852 : vector<1x128xf32> to vector<128xf32>
      %854 = vector.shape_cast %853 : vector<128xf32> to vector<1x1x128xf32>
      %855 = vector.broadcast %854 : vector<1x1x128xf32> to vector<4x16x128xf32>
      %856 = arith.mulf %851, %855 : vector<4x16x128xf32>
      %857 = vector.extract_strided_slice %848 {offsets = [0, 1, 0], sizes = [4, 16, 128], strides = [1, 1, 1]} : vector<4x26x128xf32> to vector<4x16x128xf32>
      %858 = vector.extract_strided_slice %850 {offsets = [1, 0], sizes = [1, 128], strides = [1, 1]} : vector<11x128xf32> to vector<1x128xf32>
      %859 = vector.shape_cast %858 : vector<1x128xf32> to vector<128xf32>
      %860 = vector.shape_cast %859 : vector<128xf32> to vector<1x1x128xf32>
      %861 = vector.broadcast %860 : vector<1x1x128xf32> to vector<4x16x128xf32>
      %862 = arith.mulf %857, %861 : vector<4x16x128xf32>
      %863 = arith.addf %856, %862 : vector<4x16x128xf32>
      %864 = vector.extract_strided_slice %848 {offsets = [0, 2, 0], sizes = [4, 16, 128], strides = [1, 1, 1]} : vector<4x26x128xf32> to vector<4x16x128xf32>
      %865 = vector.extract_strided_slice %850 {offsets = [2, 0], sizes = [1, 128], strides = [1, 1]} : vector<11x128xf32> to vector<1x128xf32>
      %866 = vector.shape_cast %865 : vector<1x128xf32> to vector<128xf32>
      %867 = vector.shape_cast %866 : vector<128xf32> to vector<1x1x128xf32>
      %868 = vector.broadcast %867 : vector<1x1x128xf32> to vector<4x16x128xf32>
      %869 = arith.mulf %864, %868 : vector<4x16x128xf32>
      %870 = arith.addf %863, %869 : vector<4x16x128xf32>
      %871 = vector.extract_strided_slice %848 {offsets = [0, 3, 0], sizes = [4, 16, 128], strides = [1, 1, 1]} : vector<4x26x128xf32> to vector<4x16x128xf32>
      %872 = vector.extract_strided_slice %850 {offsets = [3, 0], sizes = [1, 128], strides = [1, 1]} : vector<11x128xf32> to vector<1x128xf32>
      %873 = vector.shape_cast %872 : vector<1x128xf32> to vector<128xf32>
      %874 = vector.shape_cast %873 : vector<128xf32> to vector<1x1x128xf32>
      %875 = vector.broadcast %874 : vector<1x1x128xf32> to vector<4x16x128xf32>
      %876 = arith.mulf %871, %875 : vector<4x16x128xf32>
      %877 = arith.addf %870, %876 : vector<4x16x128xf32>
      %878 = vector.extract_strided_slice %848 {offsets = [0, 4, 0], sizes = [4, 16, 128], strides = [1, 1, 1]} : vector<4x26x128xf32> to vector<4x16x128xf32>
      %879 = vector.extract_strided_slice %850 {offsets = [4, 0], sizes = [1, 128], strides = [1, 1]} : vector<11x128xf32> to vector<1x128xf32>
      %880 = vector.shape_cast %879 : vector<1x128xf32> to vector<128xf32>
      %881 = vector.shape_cast %880 : vector<128xf32> to vector<1x1x128xf32>
      %882 = vector.broadcast %881 : vector<1x1x128xf32> to vector<4x16x128xf32>
      %883 = arith.mulf %878, %882 : vector<4x16x128xf32>
      %884 = arith.addf %877, %883 : vector<4x16x128xf32>
      %885 = vector.extract_strided_slice %848 {offsets = [0, 5, 0], sizes = [4, 16, 128], strides = [1, 1, 1]} : vector<4x26x128xf32> to vector<4x16x128xf32>
      %886 = vector.extract_strided_slice %850 {offsets = [5, 0], sizes = [1, 128], strides = [1, 1]} : vector<11x128xf32> to vector<1x128xf32>
      %887 = vector.shape_cast %886 : vector<1x128xf32> to vector<128xf32>
      %888 = vector.shape_cast %887 : vector<128xf32> to vector<1x1x128xf32>
      %889 = vector.broadcast %888 : vector<1x1x128xf32> to vector<4x16x128xf32>
      %890 = arith.mulf %885, %889 : vector<4x16x128xf32>
      %891 = arith.addf %884, %890 : vector<4x16x128xf32>
      %892 = vector.extract_strided_slice %848 {offsets = [0, 6, 0], sizes = [4, 16, 128], strides = [1, 1, 1]} : vector<4x26x128xf32> to vector<4x16x128xf32>
      %893 = vector.extract_strided_slice %850 {offsets = [6, 0], sizes = [1, 128], strides = [1, 1]} : vector<11x128xf32> to vector<1x128xf32>
      %894 = vector.shape_cast %893 : vector<1x128xf32> to vector<128xf32>
      %895 = vector.shape_cast %894 : vector<128xf32> to vector<1x1x128xf32>
      %896 = vector.broadcast %895 : vector<1x1x128xf32> to vector<4x16x128xf32>
      %897 = arith.mulf %892, %896 : vector<4x16x128xf32>
      %898 = arith.addf %891, %897 : vector<4x16x128xf32>
      %899 = vector.extract_strided_slice %848 {offsets = [0, 7, 0], sizes = [4, 16, 128], strides = [1, 1, 1]} : vector<4x26x128xf32> to vector<4x16x128xf32>
      %900 = vector.extract_strided_slice %850 {offsets = [7, 0], sizes = [1, 128], strides = [1, 1]} : vector<11x128xf32> to vector<1x128xf32>
      %901 = vector.shape_cast %900 : vector<1x128xf32> to vector<128xf32>
      %902 = vector.shape_cast %901 : vector<128xf32> to vector<1x1x128xf32>
      %903 = vector.broadcast %902 : vector<1x1x128xf32> to vector<4x16x128xf32>
      %904 = arith.mulf %899, %903 : vector<4x16x128xf32>
      %905 = arith.addf %898, %904 : vector<4x16x128xf32>
      %906 = vector.extract_strided_slice %848 {offsets = [0, 8, 0], sizes = [4, 16, 128], strides = [1, 1, 1]} : vector<4x26x128xf32> to vector<4x16x128xf32>
      %907 = vector.extract_strided_slice %850 {offsets = [8, 0], sizes = [1, 128], strides = [1, 1]} : vector<11x128xf32> to vector<1x128xf32>
      %908 = vector.shape_cast %907 : vector<1x128xf32> to vector<128xf32>
      %909 = vector.shape_cast %908 : vector<128xf32> to vector<1x1x128xf32>
      %910 = vector.broadcast %909 : vector<1x1x128xf32> to vector<4x16x128xf32>
      %911 = arith.mulf %906, %910 : vector<4x16x128xf32>
      %912 = arith.addf %905, %911 : vector<4x16x128xf32>
      %913 = vector.extract_strided_slice %848 {offsets = [0, 9, 0], sizes = [4, 16, 128], strides = [1, 1, 1]} : vector<4x26x128xf32> to vector<4x16x128xf32>
      %914 = vector.extract_strided_slice %850 {offsets = [9, 0], sizes = [1, 128], strides = [1, 1]} : vector<11x128xf32> to vector<1x128xf32>
      %915 = vector.shape_cast %914 : vector<1x128xf32> to vector<128xf32>
      %916 = vector.shape_cast %915 : vector<128xf32> to vector<1x1x128xf32>
      %917 = vector.broadcast %916 : vector<1x1x128xf32> to vector<4x16x128xf32>
      %918 = arith.mulf %913, %917 : vector<4x16x128xf32>
      %919 = arith.addf %912, %918 : vector<4x16x128xf32>
      %920 = vector.extract_strided_slice %848 {offsets = [0, 10, 0], sizes = [4, 16, 128], strides = [1, 1, 1]} : vector<4x26x128xf32> to vector<4x16x128xf32>
      %921 = vector.extract_strided_slice %850 {offsets = [10, 0], sizes = [1, 128], strides = [1, 1]} : vector<11x128xf32> to vector<1x128xf32>
      %922 = vector.shape_cast %921 : vector<1x128xf32> to vector<128xf32>
      %923 = vector.shape_cast %922 : vector<128xf32> to vector<1x1x128xf32>
      %924 = vector.broadcast %923 : vector<1x1x128xf32> to vector<4x16x128xf32>
      %925 = arith.mulf %920, %924 : vector<4x16x128xf32>
      %926 = arith.addf %919, %925 : vector<4x16x128xf32>
      %927 = arith.addf %761, %926 : vector<4x16x128xf32>
      %928 = arith.addf %927, %844 : vector<4x16x128xf32>
      %929 = vector.shape_cast %1 : vector<128xf32> to vector<1x1x128xf32>
      %930 = vector.broadcast %929 : vector<1x1x128xf32> to vector<4x16x128xf32>
      %931 = arith.addf %928, %930 : vector<4x16x128xf32>
      %cst_82 = arith.constant dense<0.000000e+00> : vector<4x16xf32>
      %932 = vector.multi_reduction <add>, %931, %cst_82 [2] : vector<4x16x128xf32> to vector<4x16xf32>
      %933 = vector.shape_cast %932 : vector<4x16xf32> to vector<4x16x1xf32>
      %cst_83 = arith.constant 1.280000e+02 : f32
      %934 = vector.broadcast %cst_83 : f32 to vector<4x16x1xf32>
      %935 = arith.divf %933, %934 : vector<4x16x1xf32>
      %936 = arith.mulf %931, %931 : vector<4x16x128xf32>
      %cst_84 = arith.constant dense<0.000000e+00> : vector<4x16xf32>
      %937 = vector.multi_reduction <add>, %936, %cst_84 [2] : vector<4x16x128xf32> to vector<4x16xf32>
      %938 = vector.shape_cast %937 : vector<4x16xf32> to vector<4x16x1xf32>
      %cst_85 = arith.constant 1.280000e+02 : f32
      %939 = vector.broadcast %cst_85 : f32 to vector<4x16x1xf32>
      %940 = arith.divf %938, %939 : vector<4x16x1xf32>
      %941 = arith.mulf %935, %935 : vector<4x16x1xf32>
      %942 = arith.subf %940, %941 : vector<4x16x1xf32>
      %943 = vector.broadcast %935 : vector<4x16x1xf32> to vector<4x16x128xf32>
      %944 = arith.subf %931, %943 : vector<4x16x128xf32>
      %cst_86 = arith.constant 9.99999997E-7 : f32
      %945 = vector.broadcast %cst_86 : f32 to vector<4x16x1xf32>
      %946 = arith.addf %942, %945 : vector<4x16x1xf32>
      %947 = math.rsqrt %946 : vector<4x16x1xf32>
      %948 = vector.broadcast %947 : vector<4x16x1xf32> to vector<4x16x128xf32>
      %949 = arith.mulf %944, %948 : vector<4x16x128xf32>
      %950 = vector.shape_cast %3 : vector<128xf32> to vector<1x1x128xf32>
      %951 = vector.broadcast %950 : vector<1x1x128xf32> to vector<4x16x128xf32>
      %952 = arith.mulf %949, %951 : vector<4x16x128xf32>
      %953 = vector.shape_cast %5 : vector<128xf32> to vector<1x1x128xf32>
      %954 = vector.broadcast %953 : vector<1x1x128xf32> to vector<4x16x128xf32>
      %955 = arith.addf %952, %954 : vector<4x16x128xf32>
      %956 = vector.shape_cast %955 : vector<4x16x128xf32> to vector<64x128xf32>
      %957 = arith.truncf %956 : vector<64x128xf32> to vector<64x128xbf16>
      %c0_87 = arith.constant 0 : index
      %c0_88 = arith.constant 0 : index
      %958 = vector.load %arg7[%c0_87, %c0_88] : memref<128x512xbf16, #tpu.memory_space<vmem>>, vector<128x512xbf16>
      %cst_89 = arith.constant dense<0.000000e+00> : vector<64x512xf32>
      %959 = tpu.matmul %957, %958, %cst_89 {dimension_numbers = #tpu.dot_dimension_numbers<[1], [0], [0], [1], [0, 0, 1, 1], [], []>} : vector<64x128xbf16>, vector<128x512xbf16>, vector<64x512xf32> -> vector<64x512xf32>
      %960 = vector.shape_cast %7 : vector<512xf32> to vector<1x512xf32>
      %961 = vector.broadcast %960 : vector<1x512xf32> to vector<64x512xf32>
      %962 = arith.addf %959, %961 : vector<64x512xf32>
      %963 = vector.extract_strided_slice %962 {offsets = [0, 0], sizes = [64, 256], strides = [1, 1]} : vector<64x512xf32> to vector<64x256xf32>
      %964 = vector.extract_strided_slice %962 {offsets = [0, 256], sizes = [64, 256], strides = [1, 1]} : vector<64x512xf32> to vector<64x256xf32>
      %cst_90 = arith.constant 5.000000e-01 : f32
      %965 = vector.broadcast %cst_90 : f32 to vector<64x256xf32>
      %966 = arith.mulf %965, %963 : vector<64x256xf32>
      %cst_91 = arith.constant 0.707106769 : f32
      %967 = vector.broadcast %cst_91 : f32 to vector<64x256xf32>
      %968 = arith.mulf %963, %967 : vector<64x256xf32>
      %969 = math.erf %968 : vector<64x256xf32>
      %cst_92 = arith.constant 1.000000e+00 : f32
      %970 = vector.broadcast %cst_92 : f32 to vector<64x256xf32>
      %971 = arith.addf %970, %969 : vector<64x256xf32>
      %972 = arith.mulf %966, %971 : vector<64x256xf32>
      %973 = arith.mulf %972, %964 : vector<64x256xf32>
      %974 = arith.truncf %973 : vector<64x256xf32> to vector<64x256xbf16>
      %c0_93 = arith.constant 0 : index
      %c0_94 = arith.constant 0 : index
      %975 = vector.load %arg9[%c0_93, %c0_94] : memref<256x128xbf16, #tpu.memory_space<vmem>>, vector<256x128xbf16>
      %cst_95 = arith.constant dense<0.000000e+00> : vector<64x128xf32>
      %976 = tpu.matmul %974, %975, %cst_95 {dimension_numbers = #tpu.dot_dimension_numbers<[1], [0], [0], [1], [0, 0, 1, 1], [], []>} : vector<64x256xbf16>, vector<256x128xbf16>, vector<64x128xf32> -> vector<64x128xf32>
      %977 = vector.shape_cast %9 : vector<128xf32> to vector<1x128xf32>
      %978 = vector.broadcast %977 : vector<1x128xf32> to vector<64x128xf32>
      %979 = arith.addf %976, %978 : vector<64x128xf32>
      %c5_i32_96 = arith.constant 5 : i32
      %980 = arith.addi %12, %c5_i32_96 : i32
      %c0_97 = arith.constant 0 : index
      %c0_98 = arith.constant 0 : index
      %981 = arith.index_cast %980 : i32 to index
      %c5_99 = arith.constant 5 : index
      %c0_100 = arith.constant 0 : index
      %982 = vector.load %arg2[%c0_97, %c0_98, %981, %c5_99, %c0_100] : memref<1x1x26x26x128xf32, #tpu.memory_space<vmem>>, vector<1x1x4x16x128xf32>
      %983 = vector.shape_cast %982 : vector<1x1x4x16x128xf32> to vector<4x16x128xf32>
      %984 = vector.shape_cast %979 : vector<64x128xf32> to vector<4x16x128xf32>
      %985 = arith.addf %983, %984 : vector<4x16x128xf32>
      %c0_101 = arith.constant 0 : index
      %986 = arith.index_cast %12 : i32 to index
      %c0_102 = arith.constant 0 : index
      %c0_103 = arith.constant 0 : index
      %987 = vector.load %arg11[%c0_101, %986, %c0_102, %c0_103] : memref<1x16x16x128xf32, #tpu.memory_space<vmem>>, vector<1x4x16x128xf32>
      %988 = vector.shape_cast %987 : vector<1x4x16x128xf32> to vector<4x16x128xf32>
      %989 = vector.shape_cast %985 : vector<4x16x128xf32> to vector<1x4x16x128xf32>
      tpu.vector_store %arg11[%c0_101, %986, %c0_102, %c0_103], %989 {strides = array<i32>} : memref<1x16x16x128xf32, #tpu.memory_space<vmem>>, vector<1x4x16x128xf32>,
    }
    %c4_i32_9 = arith.constant 4 : i32
    return
  }
  func.func @transform_0(%arg0: i32, %arg1: i32) -> (i32, i32, i32, i32, i32) {
    %c0_i32 = arith.constant 0 : i32
    %c0_i32_0 = arith.constant 0 : i32
    %c0_i32_1 = arith.constant 0 : i32
    %c0_i32_2 = arith.constant 0 : i32
    return %arg0, %arg1, %c0_i32, %c0_i32_0, %c0_i32_1 : i32, i32, i32, i32, i32
  }
  func.func @transform_1(%arg0: i32, %arg1: i32) -> (i32, i32, i32) {
    %c0_i32 = arith.constant 0 : i32
    %c0_i32_0 = arith.constant 0 : i32
    %c0_i32_1 = arith.constant 0 : i32
    %c0_i32_2 = arith.constant 0 : i32
    return %c0_i32, %c0_i32_0, %c0_i32_1 : i32, i32, i32
  }
  func.func @transform_2(%arg0: i32, %arg1: i32) -> (i32, i32) {
    %c0_i32 = arith.constant 0 : i32
    %c0_i32_0 = arith.constant 0 : i32
    %c0_i32_1 = arith.constant 0 : i32
    return %c0_i32, %c0_i32_0 : i32, i32
  }
  func.func @transform_3(%arg0: i32, %arg1: i32) -> (i32, i32) {
    %c0_i32 = arith.constant 0 : i32
    %c0_i32_0 = arith.constant 0 : i32
    %c0_i32_1 = arith.constant 0 : i32
    return %c0_i32, %c0_i32_0 : i32, i32
  }
  func.func @transform_4(%arg0: i32, %arg1: i32) -> (i32, i32) {
    %c0_i32 = arith.constant 0 : i32
    %c0_i32_0 = arith.constant 0 : i32
    %c0_i32_1 = arith.constant 0 : i32
    return %c0_i32, %c0_i32_0 : i32, i32
  }
  func.func @transform_5(%arg0: i32, %arg1: i32) -> (i32, i32) {
    %c0_i32 = arith.constant 0 : i32
    %c0_i32_0 = arith.constant 0 : i32
    %c0_i32_1 = arith.constant 0 : i32
    return %c0_i32, %c0_i32_0 : i32, i32
  }
  func.func @transform_6(%arg0: i32, %arg1: i32) -> (i32, i32) {
    %c0_i32 = arith.constant 0 : i32
    %c0_i32_0 = arith.constant 0 : i32
    %c0_i32_1 = arith.constant 0 : i32
    return %c0_i32, %c0_i32_0 : i32, i32
  }
  func.func @transform_7(%arg0: i32, %arg1: i32) -> (i32, i32) {
    %c0_i32 = arith.constant 0 : i32
    %c0_i32_0 = arith.constant 0 : i32
    %c0_i32_1 = arith.constant 0 : i32
    return %c0_i32, %c0_i32_0 : i32, i32
  }
  func.func @transform_8(%arg0: i32, %arg1: i32) -> (i32, i32) {
    %c0_i32 = arith.constant 0 : i32
    %c0_i32_0 = arith.constant 0 : i32
    %c0_i32_1 = arith.constant 0 : i32
    return %c0_i32, %c0_i32_0 : i32, i32
  }
  func.func @transform_9(%arg0: i32, %arg1: i32) -> (i32, i32, i32, i32) {
    %c0_i32 = arith.constant 0 : i32
    %c0_i32_0 = arith.constant 0 : i32
    %c0_i32_1 = arith.constant 0 : i32
    return %arg0, %arg1, %c0_i32, %c0_i32_0 : i32, i32, i32, i32
  }
}

</mosaic_0001>

<llo_original>
// kernel: tpu_custom_call.1
$region0: #{tpu_custom_call.1}
  #allocation0 [shape = 'u32[]', space=smem, size = 0x4, offset = 0x4, fixed_abs, tag = 'smem constant byte address 0x4 - core index']
  #allocation1 [shape = 'u32[144,128]{1,0:T(1,128)}', space=vmem, size = 0x12000, scoped, tag = 'internal scratch']
  %s0 = inlined_call_operand.vmem [shape: f32[2,1,26,26,128], index: 0, kind: input, shape index: {}]
  %s1 = inlined_call_operand.vmem [shape: f32[11,11,128], index: 1, kind: input, shape index: {}]
  %s2 = inlined_call_operand.vmem [shape: f32[1,128], index: 2, kind: input, shape index: {}]
  %s3 = inlined_call_operand.vmem [shape: f32[1,128], index: 3, kind: input, shape index: {}]
  %s4 = inlined_call_operand.vmem [shape: f32[1,128], index: 4, kind: input, shape index: {}]
  %s5 = inlined_call_operand.vmem [shape: bf16[128,512], index: 5, kind: input, shape index: {}]
  %s6 = inlined_call_operand.vmem [shape: f32[1,512], index: 6, kind: input, shape index: {}]
  %s7 = inlined_call_operand.vmem [shape: bf16[256,128], index: 7, kind: input, shape index: {}]
  %s8 = inlined_call_operand.vmem [shape: f32[1,128], index: 8, kind: input, shape index: {}]
  %s9 = inlined_call_operand.hbm [shape: f32[2,16,16,128], index: 9, kind: output, shape index: {}]
  %s10 = sld [smem:[#allocation0]]
  $region76: #{tpu_custom_call.1} parent=0
    _
  %s12 = ssub.s32 1, %s10
  %s13 = scalar_select 0, %s12, %s10
  $region1: #{tpu_custom_call.1} parent=0
    #allocation2 [shape = 'u8[262144]{0}', space=vmem, size = 0x40000, scoped, tag = 'output window, operand 0']
    #allocation3 [shape = 's32[2]{0}', space=sflag, size = 0x8, scoped, tag = 'scoped memory for tpu_custom_call.1']
    %14 = vsyncpa [#allocation3], 0
    %s15 = scalar_lea.sflag [#allocation3], 1
    %16 = vsyncpa %s15, 0
    loop: start=0, step=1, limit=4
    $region2: #{tpu_custom_call.1} parent=1 // loop_pre_header
      _
    $region3: #{tpu_custom_call.1} parent=1 // loop_header
      %s18 = sphi 0, %s22
      %p19 = scmp.ge.s32.totalorder %s18, 4
      %s25 = sphi 0, %s37
      %s26 = sphi 0, %s33
      %s27 = sphi 0, %s25
      %s28 = sphi 0, %s26
      %s29 = sphi 0, %s27
      %s30 = sphi 0, %s28
      %s42 = sphi 0, %s44
      %s45 = sphi 0, %s42
      %s46 = sphi 0, %s45
      %s62 = sphi 0, %s46
      %s66 = sphi 0, %s66
      %s68 = sphi 0, %s66
      %s69 = sphi 0, %s68
      %s83 = sphi 0, %s69
      %s87 = sphi 0, %s87
      %s89 = sphi 0, %s87
      %s90 = sphi 0, %s89
      %s104 = sphi 0, %s90
      %s108 = sphi 0, %s108
      %s110 = sphi 0, %s108
      %s111 = sphi 0, %s110
      %s125 = sphi 0, %s111
      %s129 = sphi 0, %s129
      %s131 = sphi 0, %s129
      %s132 = sphi 0, %s131
      %s146 = sphi 0, %s132
      %s150 = sphi 0, %s150
      %s152 = sphi 0, %s150
      %s153 = sphi 0, %s152
      %s167 = sphi 0, %s153
      %s171 = sphi 0, %s171
      %s173 = sphi 0, %s171
      %s174 = sphi 0, %s173
      %s188 = sphi 0, %s174
      %s192 = sphi 0, %s192
      %s194 = sphi 0, %s192
      %s195 = sphi 0, %s194
      %s209 = sphi 0, %s195
      %s213 = sphi 0, %s213
      %s215 = sphi 0, %s213
      %s216 = sphi 0, %s215
      %s230 = sphi 0, %s216
      %s238 = sphi 0, %s240
      %s241 = sphi 0, %s238
      %s242 = sphi 0, %s241
      %s258 = sphi 0, %s242
    $region4: #{tpu_custom_call.1} parent=1 // loop_header_branch
      %21 = sbr.rel (%p19) target = $region8
    $region5: #{tpu_custom_call.1} parent=1 // loop_body
      %s23 = ssub.s32 %s18, 1
      %s24 = ssub.s32 %s18, 2
      %s31 = sadd.s32 1, %s26
      %p32 = scmp.ge.s32.totalorder %s31, 1
      %s33 = scalar_select %p32, 0, %s31
      %s34 = sadd.s32 1, %s25
      %s35 = scalar_select %p32, %s34, %s25
      %p36 = scmp.ge.s32.totalorder %s35, 2
      %s37 = scalar_select %p36, 0, %s35
      %s38 = ssub.s32 %s25, %s37
      %s39 = ssub.s32 %s26, %s33
      %s40 = sor.u32 %s38, %s39
      %p41 = scmp.eq.s32.totalorder %s40, 0
      %s43 = sadd.s32 %s42, 1
      %s44 = scalar_select %p41, %s42, %s43
      %p47 = pneg %p41
      %p48 = scmp.eq.s32.totalorder %s18, 1
      %p49 = por %p47, %p48
      %p50 = scmp.ne.s32.totalorder %s42, %s45
      %p51 = scmp.eq.s32.totalorder %s18, 0
      %p52 = por %p50, %p51
      %p53 = scmp.ne.s32.totalorder %s42, %s45
      %p54 = scmp.eq.s32.totalorder %s23, 1
      %p55 = por %p53, %p54
      %p56 = scmp.ne.s32.totalorder %s45, %s46
      %p57 = scmp.eq.s32.totalorder %s23, 0
      %p58 = por %p56, %p57
      %p59 = scmp.ne.s32.totalorder %s45, %s46
      %p60 = scmp.eq.s32.totalorder %s24, 1
      %p61 = por %p59, %p60
      %p63 = scmp.ne.s32.totalorder %s46, %s62
      %p64 = scmp.eq.s32.totalorder %s24, 0
      %p65 = por %p63, %p64
      %s67 = sadd.s32 %s66, 1
      %p70 = scmp.eq.s32.totalorder %s18, 1
      %p71 = scmp.ne.s32.totalorder %s66, %s68
      %p72 = scmp.eq.s32.totalorder %s18, 0
      %p73 = por %p71, %p72
      %p74 = scmp.ne.s32.totalorder %s66, %s68
      %p75 = scmp.eq.s32.totalorder %s23, 1
      %p76 = por %p74, %p75
      %p77 = scmp.ne.s32.totalorder %s68, %s69
      %p78 = scmp.eq.s32.totalorder %s23, 0
      %p79 = por %p77, %p78
      %p80 = scmp.ne.s32.totalorder %s68, %s69
      %p81 = scmp.eq.s32.totalorder %s24, 1
      %p82 = por %p80, %p81
      %p84 = scmp.ne.s32.totalorder %s69, %s83
      %p85 = scmp.eq.s32.totalorder %s24, 0
      %p86 = por %p84, %p85
      %s88 = sadd.s32 %s87, 1
      %p91 = scmp.eq.s32.totalorder %s18, 1
      %p92 = scmp.ne.s32.totalorder %s87, %s89
      %p93 = scmp.eq.s32.totalorder %s18, 0
      %p94 = por %p92, %p93
      %p95 = scmp.ne.s32.totalorder %s87, %s89
      %p96 = scmp.eq.s32.totalorder %s23, 1
      %p97 = por %p95, %p96
      %p98 = scmp.ne.s32.totalorder %s89, %s90
      %p99 = scmp.eq.s32.totalorder %s23, 0
      %p100 = por %p98, %p99
      %p101 = scmp.ne.s32.totalorder %s89, %s90
      %p102 = scmp.eq.s32.totalorder %s24, 1
      %p103 = por %p101, %p102
      %p105 = scmp.ne.s32.totalorder %s90, %s104
      %p106 = scmp.eq.s32.totalorder %s24, 0
      %p107 = por %p105, %p106
      %s109 = sadd.s32 %s108, 1
      %p112 = scmp.eq.s32.totalorder %s18, 1
      %p113 = scmp.ne.s32.totalorder %s108, %s110
      %p114 = scmp.eq.s32.totalorder %s18, 0
      %p115 = por %p113, %p114
      %p116 = scmp.ne.s32.totalorder %s108, %s110
      %p117 = scmp.eq.s32.totalorder %s23, 1
      %p118 = por %p116, %p117
      %p119 = scmp.ne.s32.totalorder %s110, %s111
      %p120 = scmp.eq.s32.totalorder %s23, 0
      %p121 = por %p119, %p120
      %p122 = scmp.ne.s32.totalorder %s110, %s111
      %p123 = scmp.eq.s32.totalorder %s24, 1
      %p124 = por %p122, %p123
      %p126 = scmp.ne.s32.totalorder %s111, %s125
      %p127 = scmp.eq.s32.totalorder %s24, 0
      %p128 = por %p126, %p127
      %s130 = sadd.s32 %s129, 1
      %p133 = scmp.eq.s32.totalorder %s18, 1
      %p134 = scmp.ne.s32.totalorder %s129, %s131
      %p135 = scmp.eq.s32.totalorder %s18, 0
      %p136 = por %p134, %p135
      %p137 = scmp.ne.s32.totalorder %s129, %s131
      %p138 = scmp.eq.s32.totalorder %s23, 1
      %p139 = por %p137, %p138
      %p140 = scmp.ne.s32.totalorder %s131, %s132
      %p141 = scmp.eq.s32.totalorder %s23, 0
      %p142 = por %p140, %p141
      %p143 = scmp.ne.s32.totalorder %s131, %s132
      %p144 = scmp.eq.s32.totalorder %s24, 1
      %p145 = por %p143, %p144
      %p147 = scmp.ne.s32.totalorder %s132, %s146
      %p148 = scmp.eq.s32.totalorder %s24, 0
      %p149 = por %p147, %p148
      %s151 = sadd.s32 %s150, 1
      %p154 = scmp.eq.s32.totalorder %s18, 1
      %p155 = scmp.ne.s32.totalorder %s150, %s152
      %p156 = scmp.eq.s32.totalorder %s18, 0
      %p157 = por %p155, %p156
      %p158 = scmp.ne.s32.totalorder %s150, %s152
      %p159 = scmp.eq.s32.totalorder %s23, 1
      %p160 = por %p158, %p159
      %p161 = scmp.ne.s32.totalorder %s152, %s153
      %p162 = scmp.eq.s32.totalorder %s23, 0
      %p163 = por %p161, %p162
      %p164 = scmp.ne.s32.totalorder %s152, %s153
      %p165 = scmp.eq.s32.totalorder %s24, 1
      %p166 = por %p164, %p165
      %p168 = scmp.ne.s32.totalorder %s153, %s167
      %p169 = scmp.eq.s32.totalorder %s24, 0
      %p170 = por %p168, %p169
      %s172 = sadd.s32 %s171, 1
      %p175 = scmp.eq.s32.totalorder %s18, 1
      %p176 = scmp.ne.s32.totalorder %s171, %s173
      %p177 = scmp.eq.s32.totalorder %s18, 0
      %p178 = por %p176, %p177
      %p179 = scmp.ne.s32.totalorder %s171, %s173
      %p180 = scmp.eq.s32.totalorder %s23, 1
      %p181 = por %p179, %p180
      %p182 = scmp.ne.s32.totalorder %s173, %s174
      %p183 = scmp.eq.s32.totalorder %s23, 0
      %p184 = por %p182, %p183
      %p185 = scmp.ne.s32.totalorder %s173, %s174
      %p186 = scmp.eq.s32.totalorder %s24, 1
      %p187 = por %p185, %p186
      %p189 = scmp.ne.s32.totalorder %s174, %s188
      %p190 = scmp.eq.s32.totalorder %s24, 0
      %p191 = por %p189, %p190
      %s193 = sadd.s32 %s192, 1
      %p196 = scmp.eq.s32.totalorder %s18, 1
      %p197 = scmp.ne.s32.totalorder %s192, %s194
      %p198 = scmp.eq.s32.totalorder %s18, 0
      %p199 = por %p197, %p198
      %p200 = scmp.ne.s32.totalorder %s192, %s194
      %p201 = scmp.eq.s32.totalorder %s23, 1
      %p202 = por %p200, %p201
      %p203 = scmp.ne.s32.totalorder %s194, %s195
      %p204 = scmp.eq.s32.totalorder %s23, 0
      %p205 = por %p203, %p204
      %p206 = scmp.ne.s32.totalorder %s194, %s195
      %p207 = scmp.eq.s32.totalorder %s24, 1
      %p208 = por %p206, %p207
      %p210 = scmp.ne.s32.totalorder %s195, %s209
      %p211 = scmp.eq.s32.totalorder %s24, 0
      %p212 = por %p210, %p211
      %s214 = sadd.s32 %s213, 1
      %p217 = scmp.eq.s32.totalorder %s18, 1
      %p218 = scmp.ne.s32.totalorder %s213, %s215
      %p219 = scmp.eq.s32.totalorder %s18, 0
      %p220 = por %p218, %p219
      %p221 = scmp.ne.s32.totalorder %s213, %s215
      %p222 = scmp.eq.s32.totalorder %s23, 1
      %p223 = por %p221, %p222
      %p224 = scmp.ne.s32.totalorder %s215, %s216
      %p225 = scmp.eq.s32.totalorder %s23, 0
      %p226 = por %p224, %p225
      %p227 = scmp.ne.s32.totalorder %s215, %s216
      %p228 = scmp.eq.s32.totalorder %s24, 1
      %p229 = por %p227, %p228
      %p231 = scmp.ne.s32.totalorder %s216, %s230
      %p232 = scmp.eq.s32.totalorder %s24, 0
      %p233 = por %p231, %p232
      %s234 = ssub.s32 %s25, %s37
      %s235 = ssub.s32 %s26, %s33
      %s236 = sor.u32 %s234, %s235
      %p237 = scmp.eq.s32.totalorder %s236, 0
      %s239 = sadd.s32 %s238, 1
      %s240 = scalar_select %p237, %s238, %s239
      %p243 = pneg %p237
      %p244 = scmp.eq.s32.totalorder %s18, 1
      %p245 = por %p243, %p244
      %p246 = scmp.ne.s32.totalorder %s238, %s241
      %p247 = scmp.eq.s32.totalorder %s18, 0
      %p248 = por %p246, %p247
      %p249 = scmp.ne.s32.totalorder %s238, %s241
      %p250 = scmp.eq.s32.totalorder %s23, 1
      %p251 = por %p249, %p250
      %p252 = scmp.ne.s32.totalorder %s241, %s242
      %p253 = scmp.eq.s32.totalorder %s23, 0
      %p254 = por %p252, %p253
      %p255 = scmp.ne.s32.totalorder %s241, %s242
      %p256 = scmp.eq.s32.totalorder %s24, 1
      %p257 = por %p255, %p256
      %p259 = scmp.ne.s32.totalorder %s242, %s258
      %p260 = scmp.eq.s32.totalorder %s24, 0
      %p261 = por %p259, %p260
      %p262 = scmp.le.s32.totalorder 1, %s18
      %p263 = scmp.lt.s32.totalorder %s18, 3
      %p264 = pnand %p262, %p263
      %p265 = pneg %p264
      // Predicated region
      $region9: #{tpu_custom_call.1} parent=5 // pred_check
        _
      $region10: #{tpu_custom_call.1} parent=5 // pred_check_branch
        %267 = sbr.rel (%p264) target = $region12
      $region11: #{tpu_custom_call.1} parent=5 // pred_region
        %s268 = ssub.s32 %s18, 1
        // Predicated region
        $region13: #{tpu_custom_call.1} parent=11 // pred_check
          %p269 = pneg %p79
        $region14: #{tpu_custom_call.1} parent=11 // pred_check_branch
          %271 = sbr.rel (%p269) target = $region16
        $region15: #{tpu_custom_call.1} parent=11 // pred_region
          _
        $region16: #{tpu_custom_call.1} parent=11 // pred_fallthru
          _
        // Predicated region
        $region17: #{tpu_custom_call.1} parent=11 // pred_check
          %p272 = pneg %p100
        $region18: #{tpu_custom_call.1} parent=11 // pred_check_branch
          %274 = sbr.rel (%p272) target = $region20
        $region19: #{tpu_custom_call.1} parent=11 // pred_region
          _
        $region20: #{tpu_custom_call.1} parent=11 // pred_fallthru
          _
        // Predicated region
        $region21: #{tpu_custom_call.1} parent=11 // pred_check
          %p275 = pneg %p121
        $region22: #{tpu_custom_call.1} parent=11 // pred_check_branch
          %277 = sbr.rel (%p275) target = $region24
        $region23: #{tpu_custom_call.1} parent=11 // pred_region
          _
        $region24: #{tpu_custom_call.1} parent=11 // pred_fallthru
          _
        // Predicated region
        $region25: #{tpu_custom_call.1} parent=11 // pred_check
          %p278 = pneg %p142
        $region26: #{tpu_custom_call.1} parent=11 // pred_check_branch
          %280 = sbr.rel (%p278) target = $region28
        $region27: #{tpu_custom_call.1} parent=11 // pred_region
          _
        $region28: #{tpu_custom_call.1} parent=11 // pred_fallthru
          _
        // Predicated region
        $region29: #{tpu_custom_call.1} parent=11 // pred_check
          %p281 = pneg %p163
        $region30: #{tpu_custom_call.1} parent=11 // pred_check_branch
          %283 = sbr.rel (%p281) target = $region32
        $region31: #{tpu_custom_call.1} parent=11 // pred_region
          _
        $region32: #{tpu_custom_call.1} parent=11 // pred_fallthru
          _
        // Predicated region
        $region33: #{tpu_custom_call.1} parent=11 // pred_check
          %p284 = pneg %p184
        $region34: #{tpu_custom_call.1} parent=11 // pred_check_branch
          %286 = sbr.rel (%p284) target = $region36
        $region35: #{tpu_custom_call.1} parent=11 // pred_region
          _
        $region36: #{tpu_custom_call.1} parent=11 // pred_fallthru
          _
        // Predicated region
        $region37: #{tpu_custom_call.1} parent=11 // pred_check
          %p287 = pneg %p205
        $region38: #{tpu_custom_call.1} parent=11 // pred_check_branch
          %289 = sbr.rel (%p287) target = $region40
        $region39: #{tpu_custom_call.1} parent=11 // pred_region
          _
        $region40: #{tpu_custom_call.1} parent=11 // pred_fallthru
          _
        // Predicated region
        $region41: #{tpu_custom_call.1} parent=11 // pred_check
          %p290 = pneg %p226
        $region42: #{tpu_custom_call.1} parent=11 // pred_check_branch
          %292 = sbr.rel (%p290) target = $region44
        $region43: #{tpu_custom_call.1} parent=11 // pred_region
          _
        $region44: #{tpu_custom_call.1} parent=11 // pred_fallthru
          _
      $region12: #{tpu_custom_call.1} parent=5 // pred_fallthru
        _
      %p293 = scmp.lt.s32.totalorder %s18, 2
      // Predicated region
      $region45: #{tpu_custom_call.1} parent=5 // pred_check
        %p294 = pneg %p293
      $region46: #{tpu_custom_call.1} parent=5 // pred_check_branch
        %296 = sbr.rel (%p294) target = $region48
      $region47: #{tpu_custom_call.1} parent=5 // pred_region
        // Predicated region
        $region49: #{tpu_custom_call.1} parent=47 // pred_check
          %p297 = pneg %p52
        $region50: #{tpu_custom_call.1} parent=47 // pred_check_branch
          %299 = sbr.rel (%p297) target = $region52
        $region51: #{tpu_custom_call.1} parent=47 // pred_region
          %p300 = scmp.lt.s32.totalorder %s25, 1
          %s301 = scalar_select %p300, %s25, 1
          %p302 = scmp.lt.s32.totalorder %s26, 0
          %s303 = scalar_select %p302, %s26, 0
          %s304 = smul.addr %s303, 104
          %s305 = smul.addr %s301, 104
          %s306 = sadd.s32 %s304, %s305
          %s307 = smul.addr %s306, 8
          %s308 = scalar_lea.vmem %s0, %s307
        $region52: #{tpu_custom_call.1} parent=47 // pred_fallthru
          _
      $region48: #{tpu_custom_call.1} parent=5 // pred_fallthru
        _
      %p309 = scmp.le.s32.totalorder 1, %s18
      %p310 = scmp.lt.s32.totalorder %s18, 3
      %p311 = pnand %p309, %p310
      %p312 = pneg %p311
      // Predicated region
      $region53: #{tpu_custom_call.1} parent=5 // pred_check
        _
      $region54: #{tpu_custom_call.1} parent=5 // pred_check_branch
        %314 = sbr.rel (%p311) target = $region56
      $region55: #{tpu_custom_call.1} parent=5 // pred_region
        %s315 = ssub.s32 %s18, 1
        %p316 = scmp.lt.s32.totalorder %s27, 1
        %s317 = scalar_select %p316, %s27, 1
        %p318 = scmp.lt.s32.totalorder %s28, 0
        %s319 = scalar_select %p318, %s28, 0
        %s320 = smul.addr %s319, 104
        %s321 = smul.addr %s317, 104
        %s322 = sadd.s32 %s320, %s321
        %s323 = smul.addr %s322, 8
        %s324 = scalar_lea.vmem %s0, %s323
        %p325 = pneg %p58
        %p326 = pneg %p55
        %p327 = pneg %p79
        %p328 = pneg %p76
        %p329 = pneg %p100
        %p330 = pneg %p97
        %p331 = pneg %p121
        %p332 = pneg %p118
        %p333 = pneg %p142
        %p334 = pneg %p139
        %p335 = pneg %p163
        %p336 = pneg %p160
        %p337 = pneg %p184
        %p338 = pneg %p181
        %p339 = pneg %p205
        %p340 = pneg %p202
        %p341 = pneg %p226
        %p342 = pneg %p223
        %p343 = pneg %p254
        %p344 = pneg %p251
        %s345 = sand.u32 %s241, 1
        %s346 = scalar_lea.sflag [#allocation3], %s345
        %s347 = sand.u32 %s241, 1
        %s348 = smul.addr %s347, 256
        %s349 = scalar_lea.vmem [#allocation2], %s348
        %p350 = scmp.lt.s32.totalorder %s27, 1
        %s351 = scalar_select %p350, %s27, 1
        %p352 = scmp.lt.s32.totalorder %s28, 0
        %s353 = scalar_select %p352, %s28, 0
        %s354 = smul.addr %s353, 104
        %s355 = smul.addr %s351, 104
        %s356 = sadd.s32 %s354, %s355
        %s357 = smul.addr %s356, 8
        %s358 = scalar_lea.vmem %s0, %s357
        %s359 = smul.u32 16, %s28
        %v361 = vld [vmem:[%s2] sm:$0x1]
        %v362 = vld [vmem:[%s3] sm:$0x1]
        %v363 = vld [vmem:[%s4] sm:$0x1]
        %v364 = vld [vmem:[%s6] sm:$0xf]
        %v365 = vld [vmem:[%s8] sm:$0x1]
        loop: start=0, step=1, limit=4
        $region57: #{tpu_custom_call.1} parent=55 // loop_pre_header
          _
        $region58: #{tpu_custom_call.1} parent=55 // loop_header
          %s367 = sphi 0, %s371
          %p368 = scmp.ge.s32.totalorder %s367, 4
        $region59: #{tpu_custom_call.1} parent=55 // loop_header_branch
          %370 = sbr.rel (%p368) target = $region63
        $region60: #{tpu_custom_call.1} parent=55 // loop_body
          %s372 = smul.u32 %s367, 4
          %s373 = smul.u32 %s372, 32
          %s374 = scalar_lea.vmem %s358, %s373
          %v375 = vld [vmem:[%s374] sm:$0xff]
          %v376 = vld [vmem:[%s374 + $0x8] sm:$0xff]
          %v377 = vld [vmem:[%s374 + $0x10] sm:$0xff]
          %v378 = vld [vmem:[%s374 + $0x18] sm:$0x3]
          %v379 = vld [vmem:[%s374 + $0x20] sm:$0xff]
          %v380 = vld [vmem:[%s374 + $0x28] sm:$0xff]
          %v381 = vld [vmem:[%s374 + $0x30] sm:$0xff]
          %v382 = vld [vmem:[%s374 + $0x38] sm:$0x3]
          %v383 = vld [vmem:[%s374 + $0x40] sm:$0xff]
          %v384 = vld [vmem:[%s374 + $0x48] sm:$0xff]
          %v385 = vld [vmem:[%s374 + $0x50] sm:$0xff]
          %v386 = vld [vmem:[%s374 + $0x58] sm:$0x3]
          %v387 = vld [vmem:[%s374 + $0x60] sm:$0xff]
          %v388 = vld [vmem:[%s374 + $0x68] sm:$0xff]
          %v389 = vld [vmem:[%s374 + $0x70] sm:$0xff]
          %v390 = vld [vmem:[%s374 + $0x78] sm:$0x3]
          %v391 = vld [vmem:[%s1] sm:$0xff]
          %v392 = vld [vmem:[%s1 + $0x8] sm:$0x7]
          %v393 = vlaneseq
          %v394 = vshrl.u32 %v393, 7
          %v395 = vsub.s32 0, %v394
          %v396 = vrot.slane %v391, %v395
          %v397 = vmul.f32 %v375, %v396
          %v398 = vmul.f32 %v376, %v396
          %v399 = vmul.f32 %v379, %v396
          %v400 = vmul.f32 %v380, %v396
          %v401 = vmul.f32 %v383, %v396
          %v402 = vmul.f32 %v384, %v396
          %v403 = vmul.f32 %v387, %v396
          %v404 = vmul.f32 %v388, %v396
          %v405 = vlaneseq
          %v406 = vshrl.u32 %v405, 7
          %v407 = vsub.s32 1, %v406
          %v408 = vrot.slane %v391, %v407
          %v409 = vmul.f32 %v375, %v408
          %v410 = vmul.f32 %v376, %v408
          %v411 = vmul.f32 %v377, %v408
          %v412 = vmul.f32 %v379, %v408
          %v413 = vmul.f32 %v380, %v408
          %v414 = vmul.f32 %v381, %v408
          %v415 = vmul.f32 %v383, %v408
          %v416 = vmul.f32 %v384, %v408
          %v417 = vmul.f32 %v385, %v408
          %v418 = vmul.f32 %v387, %v408
          %v419 = vmul.f32 %v388, %v408
          %v420 = vmul.f32 %v389, %v408
          %vm433 = vcmask 1046528
          %v434 = vrot.slane %v409, 1
          %v435 = vrot.slane %v410, 1
          %v436 = vsel %vm433, %v434, %v435
          %v437 = vrot.slane %v411, 1
          %v438 = vsel %vm433, %v435, %v437
          %v439 = vrot.slane %v412, 1
          %v440 = vrot.slane %v413, 1
          %v441 = vsel %vm433, %v439, %v440
          %v442 = vrot.slane %v414, 1
          %v443 = vsel %vm433, %v440, %v442
          %v444 = vrot.slane %v415, 1
          %v445 = vrot.slane %v416, 1
          %v446 = vsel %vm433, %v444, %v445
          %v447 = vrot.slane %v417, 1
          %v448 = vsel %vm433, %v445, %v447
          %v449 = vrot.slane %v418, 1
          %v450 = vrot.slane %v419, 1
          %v451 = vsel %vm433, %v449, %v450
          %v452 = vrot.slane %v420, 1
          %v453 = vsel %vm433, %v450, %v452
          %v462 = vadd.f32 %v397, %v436
          %v463 = vadd.f32 %v398, %v438
          %v464 = vadd.f32 %v399, %v441
          %v465 = vadd.f32 %v400, %v443
          %v466 = vadd.f32 %v401, %v446
          %v467 = vadd.f32 %v402, %v448
          %v468 = vadd.f32 %v403, %v451
          %v469 = vadd.f32 %v404, %v453
          %v470 = vlaneseq
          %v471 = vshrl.u32 %v470, 7
          %v472 = vsub.s32 2, %v471
          %v473 = vrot.slane %v391, %v472
          %v474 = vmul.f32 %v375, %v473
          %v475 = vmul.f32 %v376, %v473
          %v476 = vmul.f32 %v377, %v473
          %v477 = vmul.f32 %v379, %v473
          %v478 = vmul.f32 %v380, %v473
          %v479 = vmul.f32 %v381, %v473
          %v480 = vmul.f32 %v383, %v473
          %v481 = vmul.f32 %v384, %v473
          %v482 = vmul.f32 %v385, %v473
          %v483 = vmul.f32 %v387, %v473
          %v484 = vmul.f32 %v388, %v473
          %v485 = vmul.f32 %v389, %v473
          %vm498 = vcmask 1045504
          %v499 = vrot.slane %v474, 2
          %v500 = vrot.slane %v475, 2
          %v501 = vsel %vm498, %v499, %v500
          %v502 = vrot.slane %v476, 2
          %v503 = vsel %vm498, %v500, %v502
          %v504 = vrot.slane %v477, 2
          %v505 = vrot.slane %v478, 2
          %v506 = vsel %vm498, %v504, %v505
          %v507 = vrot.slane %v479, 2
          %v508 = vsel %vm498, %v505, %v507
          %v509 = vrot.slane %v480, 2
          %v510 = vrot.slane %v481, 2
          %v511 = vsel %vm498, %v509, %v510
          %v512 = vrot.slane %v482, 2
          %v513 = vsel %vm498, %v510, %v512
          %v514 = vrot.slane %v483, 2
          %v515 = vrot.slane %v484, 2
          %v516 = vsel %vm498, %v514, %v515
          %v517 = vrot.slane %v485, 2
          %v518 = vsel %vm498, %v515, %v517
          %v527 = vadd.f32 %v462, %v501
          %v528 = vadd.f32 %v463, %v503
          %v529 = vadd.f32 %v464, %v506
          %v530 = vadd.f32 %v465, %v508
          %v531 = vadd.f32 %v466, %v511
          %v532 = vadd.f32 %v467, %v513
          %v533 = vadd.f32 %v468, %v516
          %v534 = vadd.f32 %v469, %v518
          %v535 = vlaneseq
          %v536 = vshrl.u32 %v535, 7
          %v537 = vsub.s32 3, %v536
          %v538 = vrot.slane %v391, %v537
          %v539 = vmul.f32 %v375, %v538
          %v540 = vmul.f32 %v376, %v538
          %v541 = vmul.f32 %v377, %v538
          %v542 = vmul.f32 %v379, %v538
          %v543 = vmul.f32 %v380, %v538
          %v544 = vmul.f32 %v381, %v538
          %v545 = vmul.f32 %v383, %v538
          %v546 = vmul.f32 %v384, %v538
          %v547 = vmul.f32 %v385, %v538
          %v548 = vmul.f32 %v387, %v538
          %v549 = vmul.f32 %v388, %v538
          %v550 = vmul.f32 %v389, %v538
          %vm563 = vcmask 1044480
          %v564 = vrot.slane %v539, 3
          %v565 = vrot.slane %v540, 3
          %v566 = vsel %vm563, %v564, %v565
          %v567 = vrot.slane %v541, 3
          %v568 = vsel %vm563, %v565, %v567
          %v569 = vrot.slane %v542, 3
          %v570 = vrot.slane %v543, 3
          %v571 = vsel %vm563, %v569, %v570
          %v572 = vrot.slane %v544, 3
          %v573 = vsel %vm563, %v570, %v572
          %v574 = vrot.slane %v545, 3
          %v575 = vrot.slane %v546, 3
          %v576 = vsel %vm563, %v574, %v575
          %v577 = vrot.slane %v547, 3
          %v578 = vsel %vm563, %v575, %v577
          %v579 = vrot.slane %v548, 3
          %v580 = vrot.slane %v549, 3
          %v581 = vsel %vm563, %v579, %v580
          %v582 = vrot.slane %v550, 3
          %v583 = vsel %vm563, %v580, %v582
          %v592 = vadd.f32 %v527, %v566
          %v593 = vadd.f32 %v528, %v568
          %v594 = vadd.f32 %v529, %v571
          %v595 = vadd.f32 %v530, %v573
          %v596 = vadd.f32 %v531, %v576
          %v597 = vadd.f32 %v532, %v578
          %v598 = vadd.f32 %v533, %v581
          %v599 = vadd.f32 %v534, %v583
          %v600 = vlaneseq
          %v601 = vshrl.u32 %v600, 7
          %v602 = vsub.s32 4, %v601
          %v603 = vrot.slane %v391, %v602
          %v604 = vmul.f32 %v375, %v603
          %v605 = vmul.f32 %v376, %v603
          %v606 = vmul.f32 %v377, %v603
          %v607 = vmul.f32 %v379, %v603
          %v608 = vmul.f32 %v380, %v603
          %v609 = vmul.f32 %v381, %v603
          %v610 = vmul.f32 %v383, %v603
          %v611 = vmul.f32 %v384, %v603
          %v612 = vmul.f32 %v385, %v603
          %v613 = vmul.f32 %v387, %v603
          %v614 = vmul.f32 %v388, %v603
          %v615 = vmul.f32 %v389, %v603
          %vm628 = vcmask 1043456
          %v629 = vrot.slane %v604, 4
          %v630 = vrot.slane %v605, 4
          %v631 = vsel %vm628, %v629, %v630
          %v632 = vrot.slane %v606, 4
          %v633 = vsel %vm628, %v630, %v632
          %v634 = vrot.slane %v607, 4
          %v635 = vrot.slane %v608, 4
          %v636 = vsel %vm628, %v634, %v635
          %v637 = vrot.slane %v609, 4
          %v638 = vsel %vm628, %v635, %v637
          %v639 = vrot.slane %v610, 4
          %v640 = vrot.slane %v611, 4
          %v641 = vsel %vm628, %v639, %v640
          %v642 = vrot.slane %v612, 4
          %v643 = vsel %vm628, %v640, %v642
          %v644 = vrot.slane %v613, 4
          %v645 = vrot.slane %v614, 4
          %v646 = vsel %vm628, %v644, %v645
          %v647 = vrot.slane %v615, 4
          %v648 = vsel %vm628, %v645, %v647
          %v657 = vadd.f32 %v592, %v631
          %v658 = vadd.f32 %v593, %v633
          %v659 = vadd.f32 %v594, %v636
          %v660 = vadd.f32 %v595, %v638
          %v661 = vadd.f32 %v596, %v641
          %v662 = vadd.f32 %v597, %v643
          %v663 = vadd.f32 %v598, %v646
          %v664 = vadd.f32 %v599, %v648
          %v665 = vlaneseq
          %v666 = vshrl.u32 %v665, 7
          %v667 = vsub.s32 5, %v666
          %v668 = vrot.slane %v391, %v667
          %v669 = vmul.f32 %v375, %v668
          %v670 = vmul.f32 %v376, %v668
          %v671 = vmul.f32 %v377, %v668
          %v672 = vmul.f32 %v379, %v668
          %v673 = vmul.f32 %v380, %v668
          %v674 = vmul.f32 %v381, %v668
          %v675 = vmul.f32 %v383, %v668
          %v676 = vmul.f32 %v384, %v668
          %v677 = vmul.f32 %v385, %v668
          %v678 = vmul.f32 %v387, %v668
          %v679 = vmul.f32 %v388, %v668
          %v680 = vmul.f32 %v389, %v668
          %vm693 = vcmask 1042432
          %v694 = vrot.slane %v669, 5
          %v695 = vrot.slane %v670, 5
          %v696 = vsel %vm693, %v694, %v695
          %v697 = vrot.slane %v671, 5
          %v698 = vsel %vm693, %v695, %v697
          %v699 = vrot.slane %v672, 5
          %v700 = vrot.slane %v673, 5
          %v701 = vsel %vm693, %v699, %v700
          %v702 = vrot.slane %v674, 5
          %v703 = vsel %vm693, %v700, %v702
          %v704 = vrot.slane %v675, 5
          %v705 = vrot.slane %v676, 5
          %v706 = vsel %vm693, %v704, %v705
          %v707 = vrot.slane %v677, 5
          %v708 = vsel %vm693, %v705, %v707
          %v709 = vrot.slane %v678, 5
          %v710 = vrot.slane %v679, 5
          %v711 = vsel %vm693, %v709, %v710
          %v712 = vrot.slane %v680, 5
          %v713 = vsel %vm693, %v710, %v712
          %v722 = vadd.f32 %v657, %v696
          %v723 = vadd.f32 %v658, %v698
          %v724 = vadd.f32 %v659, %v701
          %v725 = vadd.f32 %v660, %v703
          %v726 = vadd.f32 %v661, %v706
          %v727 = vadd.f32 %v662, %v708
          %v728 = vadd.f32 %v663, %v711
          %v729 = vadd.f32 %v664, %v713
          %v730 = vlaneseq
          %v731 = vshrl.u32 %v730, 7
          %v732 = vsub.s32 6, %v731
          %v733 = vrot.slane %v391, %v732
          %v734 = vmul.f32 %v375, %v733
          %v735 = vmul.f32 %v376, %v733
          %v736 = vmul.f32 %v377, %v733
          %v737 = vmul.f32 %v379, %v733
          %v738 = vmul.f32 %v380, %v733
          %v739 = vmul.f32 %v381, %v733
          %v740 = vmul.f32 %v383, %v733
          %v741 = vmul.f32 %v384, %v733
          %v742 = vmul.f32 %v385, %v733
          %v743 = vmul.f32 %v387, %v733
          %v744 = vmul.f32 %v388, %v733
          %v745 = vmul.f32 %v389, %v733
          %vm758 = vcmask 1041408
          %v759 = vrot.slane %v734, 6
          %v760 = vrot.slane %v735, 6
          %v761 = vsel %vm758, %v759, %v760
          %v762 = vrot.slane %v736, 6
          %v763 = vsel %vm758, %v760, %v762
          %v764 = vrot.slane %v737, 6
          %v765 = vrot.slane %v738, 6
          %v766 = vsel %vm758, %v764, %v765
          %v767 = vrot.slane %v739, 6
          %v768 = vsel %vm758, %v765, %v767
          %v769 = vrot.slane %v740, 6
          %v770 = vrot.slane %v741, 6
          %v771 = vsel %vm758, %v769, %v770
          %v772 = vrot.slane %v742, 6
          %v773 = vsel %vm758, %v770, %v772
          %v774 = vrot.slane %v743, 6
          %v775 = vrot.slane %v744, 6
          %v776 = vsel %vm758, %v774, %v775
          %v777 = vrot.slane %v745, 6
          %v778 = vsel %vm758, %v775, %v777
          %v787 = vadd.f32 %v722, %v761
          %v788 = vadd.f32 %v723, %v763
          %v789 = vadd.f32 %v724, %v766
          %v790 = vadd.f32 %v725, %v768
          %v791 = vadd.f32 %v726, %v771
          %v792 = vadd.f32 %v727, %v773
          %v793 = vadd.f32 %v728, %v776
          %v794 = vadd.f32 %v729, %v778
          %v795 = vlaneseq
          %v796 = vshrl.u32 %v795, 7
          %v797 = vsub.s32 7, %v796
          %v798 = vrot.slane %v391, %v797
          %v799 = vmul.f32 %v375, %v798
          %v800 = vmul.f32 %v376, %v798
          %v801 = vmul.f32 %v377, %v798
          %v802 = vmul.f32 %v379, %v798
          %v803 = vmul.f32 %v380, %v798
          %v804 = vmul.f32 %v381, %v798
          %v805 = vmul.f32 %v383, %v798
          %v806 = vmul.f32 %v384, %v798
          %v807 = vmul.f32 %v385, %v798
          %v808 = vmul.f32 %v387, %v798
          %v809 = vmul.f32 %v388, %v798
          %v810 = vmul.f32 %v389, %v798
          %vm823 = vcmask 1040384
          %v824 = vrot.slane %v799, 7
          %v825 = vrot.slane %v800, 7
          %v826 = vsel %vm823, %v824, %v825
          %v827 = vrot.slane %v801, 7
          %v828 = vsel %vm823, %v825, %v827
          %v829 = vrot.slane %v802, 7
          %v830 = vrot.slane %v803, 7
          %v831 = vsel %vm823, %v829, %v830
          %v832 = vrot.slane %v804, 7
          %v833 = vsel %vm823, %v830, %v832
          %v834 = vrot.slane %v805, 7
          %v835 = vrot.slane %v806, 7
          %v836 = vsel %vm823, %v834, %v835
          %v837 = vrot.slane %v807, 7
          %v838 = vsel %vm823, %v835, %v837
          %v839 = vrot.slane %v808, 7
          %v840 = vrot.slane %v809, 7
          %v841 = vsel %vm823, %v839, %v840
          %v842 = vrot.slane %v810, 7
          %v843 = vsel %vm823, %v840, %v842
          %v852 = vadd.f32 %v787, %v826
          %v853 = vadd.f32 %v788, %v828
          %v854 = vadd.f32 %v789, %v831
          %v855 = vadd.f32 %v790, %v833
          %v856 = vadd.f32 %v791, %v836
          %v857 = vadd.f32 %v792, %v838
          %v858 = vadd.f32 %v793, %v841
          %v859 = vadd.f32 %v794, %v843
          %v860 = vlaneseq
          %v861 = vshrl.u32 %v860, 7
          %v862 = vsub.s32 0, %v861
          %v863 = vrot.slane %v392, %v862
          %v864 = vmul.f32 %v376, %v863
          %v865 = vmul.f32 %v377, %v863
          %v866 = vmul.f32 %v380, %v863
          %v867 = vmul.f32 %v381, %v863
          %v868 = vmul.f32 %v384, %v863
          %v869 = vmul.f32 %v385, %v863
          %v870 = vmul.f32 %v388, %v863
          %v871 = vmul.f32 %v389, %v863
          %v872 = vadd.f32 %v852, %v864
          %v873 = vadd.f32 %v853, %v865
          %v874 = vadd.f32 %v854, %v866
          %v875 = vadd.f32 %v855, %v867
          %v876 = vadd.f32 %v856, %v868
          %v877 = vadd.f32 %v857, %v869
          %v878 = vadd.f32 %v858, %v870
          %v879 = vadd.f32 %v859, %v871
          %v880 = vlaneseq
          %v881 = vshrl.u32 %v880, 7
          %v882 = vsub.s32 1, %v881
          %v883 = vrot.slane %v392, %v882
          %v884 = vmul.f32 %v376, %v883
          %v885 = vmul.f32 %v377, %v883
          %v886 = vmul.f32 %v378, %v883
          %v887 = vmul.f32 %v380, %v883
          %v888 = vmul.f32 %v381, %v883
          %v889 = vmul.f32 %v382, %v883
          %v890 = vmul.f32 %v384, %v883
          %v891 = vmul.f32 %v385, %v883
          %v892 = vmul.f32 %v386, %v883
          %v893 = vmul.f32 %v388, %v883
          %v894 = vmul.f32 %v389, %v883
          %v895 = vmul.f32 %v390, %v883
          %v908 = vrot.slane %v884, 1
          %v909 = vrot.slane %v885, 1
          %v910 = vsel %vm433, %v908, %v909
          %v911 = vrot.slane %v886, 1
          %v912 = vsel %vm433, %v909, %v911
          %v913 = vrot.slane %v887, 1
          %v914 = vrot.slane %v888, 1
          %v915 = vsel %vm433, %v913, %v914
          %v916 = vrot.slane %v889, 1
          %v917 = vsel %vm433, %v914, %v916
          %v918 = vrot.slane %v890, 1
          %v919 = vrot.slane %v891, 1
          %v920 = vsel %vm433, %v918, %v919
          %v921 = vrot.slane %v892, 1
          %v922 = vsel %vm433, %v919, %v921
          %v923 = vrot.slane %v893, 1
          %v924 = vrot.slane %v894, 1
          %v925 = vsel %vm433, %v923, %v924
          %v926 = vrot.slane %v895, 1
          %v927 = vsel %vm433, %v924, %v926
          %v936 = vadd.f32 %v872, %v910
          %v937 = vadd.f32 %v873, %v912
          %v938 = vadd.f32 %v874, %v915
          %v939 = vadd.f32 %v875, %v917
          %v940 = vadd.f32 %v876, %v920
          %v941 = vadd.f32 %v877, %v922
          %v942 = vadd.f32 %v878, %v925
          %v943 = vadd.f32 %v879, %v927
          %v944 = vlaneseq
          %v945 = vshrl.u32 %v944, 7
          %v946 = vsub.s32 2, %v945
          %v947 = vrot.slane %v392, %v946
          %v948 = vmul.f32 %v376, %v947
          %v949 = vmul.f32 %v377, %v947
          %v950 = vmul.f32 %v378, %v947
          %v951 = vmul.f32 %v380, %v947
          %v952 = vmul.f32 %v381, %v947
          %v953 = vmul.f32 %v382, %v947
          %v954 = vmul.f32 %v384, %v947
          %v955 = vmul.f32 %v385, %v947
          %v956 = vmul.f32 %v386, %v947
          %v957 = vmul.f32 %v388, %v947
          %v958 = vmul.f32 %v389, %v947
          %v959 = vmul.f32 %v390, %v947
          %v972 = vrot.slane %v948, 2
          %v973 = vrot.slane %v949, 2
          %v974 = vsel %vm498, %v972, %v973
          %v975 = vrot.slane %v950, 2
          %v976 = vsel %vm498, %v973, %v975
          %v977 = vrot.slane %v951, 2
          %v978 = vrot.slane %v952, 2
          %v979 = vsel %vm498, %v977, %v978
          %v980 = vrot.slane %v953, 2
          %v981 = vsel %vm498, %v978, %v980
          %v982 = vrot.slane %v954, 2
          %v983 = vrot.slane %v955, 2
          %v984 = vsel %vm498, %v982, %v983
          %v985 = vrot.slane %v956, 2
          %v986 = vsel %vm498, %v983, %v985
          %v987 = vrot.slane %v957, 2
          %v988 = vrot.slane %v958, 2
          %v989 = vsel %vm498, %v987, %v988
          %v990 = vrot.slane %v959, 2
          %v991 = vsel %vm498, %v988, %v990
          %v1000 = vadd.f32 %v936, %v974
          %v1001 = vadd.f32 %v937, %v976
          %v1002 = vadd.f32 %v938, %v979
          %v1003 = vadd.f32 %v939, %v981
          %v1004 = vadd.f32 %v940, %v984
          %v1005 = vadd.f32 %v941, %v986
          %v1006 = vadd.f32 %v942, %v989
          %v1007 = vadd.f32 %v943, %v991
          %v1008 = vadd.f32 %v1000, 0.0
          %v1009 = vadd.f32 %v1001, 0.0
          %v1010 = vadd.f32 %v1002, 0.0
          %v1011 = vadd.f32 %v1003, 0.0
          %v1012 = vadd.f32 %v1004, 0.0
          %v1013 = vadd.f32 %v1005, 0.0
          %v1014 = vadd.f32 %v1006, 0.0
          %v1015 = vadd.f32 %v1007, 0.0
          %s1016 = sadd.s32 %s372, 1
          %s1017 = smul.u32 %s1016, 32
          %s1018 = scalar_lea.vmem %s358, %s1017
          %v1019 = vld [vmem:[%s1018] sm:$0xff]
          %v1020 = vld [vmem:[%s1018 + $0x8] sm:$0xff]
          %v1021 = vld [vmem:[%s1018 + $0x10] sm:$0xff]
          %v1022 = vld [vmem:[%s1018 + $0x18] sm:$0x3]
          %v1023 = vld [vmem:[%s1018 + $0x20] sm:$0xff]
          %v1024 = vld [vmem:[%s1018 + $0x28] sm:$0xff]
          %v1025 = vld [vmem:[%s1018 + $0x30] sm:$0xff]
          %v1026 = vld [vmem:[%s1018 + $0x38] sm:$0x3]
          %v1027 = vld [vmem:[%s1018 + $0x40] sm:$0xff]
          %v1028 = vld [vmem:[%s1018 + $0x48] sm:$0xff]
          %v1029 = vld [vmem:[%s1018 + $0x50] sm:$0xff]
          %v1030 = vld [vmem:[%s1018 + $0x58] sm:$0x3]
          %v1031 = vld [vmem:[%s1018 + $0x60] sm:$0xff]
          %v1032 = vld [vmem:[%s1018 + $0x68] sm:$0xff]
          %v1033 = vld [vmem:[%s1018 + $0x70] sm:$0xff]
          %v1034 = vld [vmem:[%s1018 + $0x78] sm:$0x3]
          %s1035 = scalar_lea.vmem %s1, 16
          %v1036 = vld [vmem:[%s1035] sm:$0xff]
          %v1037 = vld [vmem:[%s1035 + $0x8] sm:$0x7]
          %v1038 = vlaneseq
          %v1039 = vshrl.u32 %v1038, 7
          %v1040 = vsub.s32 0, %v1039
          %v1041 = vrot.slane %v1036, %v1040
          %v1042 = vmul.f32 %v1019, %v1041
          %v1043 = vmul.f32 %v1020, %v1041
          %v1044 = vmul.f32 %v1023, %v1041
          %v1045 = vmul.f32 %v1024, %v1041
          %v1046 = vmul.f32 %v1027, %v1041
          %v1047 = vmul.f32 %v1028, %v1041
          %v1048 = vmul.f32 %v1031, %v1041
          %v1049 = vmul.f32 %v1032, %v1041
          %v1050 = vlaneseq
          %v1051 = vshrl.u32 %v1050, 7
          %v1052 = vsub.s32 1, %v1051
          %v1053 = vrot.slane %v1036, %v1052
          %v1054 = vmul.f32 %v1019, %v1053
          %v1055 = vmul.f32 %v1020, %v1053
          %v1056 = vmul.f32 %v1021, %v1053
          %v1057 = vmul.f32 %v1023, %v1053
          %v1058 = vmul.f32 %v1024, %v1053
          %v1059 = vmul.f32 %v1025, %v1053
          %v1060 = vmul.f32 %v1027, %v1053
          %v1061 = vmul.f32 %v1028, %v1053
          %v1062 = vmul.f32 %v1029, %v1053
          %v1063 = vmul.f32 %v1031, %v1053
          %v1064 = vmul.f32 %v1032, %v1053
          %v1065 = vmul.f32 %v1033, %v1053
          %v1078 = vrot.slane %v1054, 1
          %v1079 = vrot.slane %v1055, 1
          %v1080 = vsel %vm433, %v1078, %v1079
          %v1081 = vrot.slane %v1056, 1
          %v1082 = vsel %vm433, %v1079, %v1081
          %v1083 = vrot.slane %v1057, 1
          %v1084 = vrot.slane %v1058, 1
          %v1085 = vsel %vm433, %v1083, %v1084
          %v1086 = vrot.slane %v1059, 1
          %v1087 = vsel %vm433, %v1084, %v1086
          %v1088 = vrot.slane %v1060, 1
          %v1089 = vrot.slane %v1061, 1
          %v1090 = vsel %vm433, %v1088, %v1089
          %v1091 = vrot.slane %v1062, 1
          %v1092 = vsel %vm433, %v1089, %v1091
          %v1093 = vrot.slane %v1063, 1
          %v1094 = vrot.slane %v1064, 1
          %v1095 = vsel %vm433, %v1093, %v1094
          %v1096 = vrot.slane %v1065, 1
          %v1097 = vsel %vm433, %v1094, %v1096
          %v1106 = vadd.f32 %v1042, %v1080
          %v1107 = vadd.f32 %v1043, %v1082
          %v1108 = vadd.f32 %v1044, %v1085
          %v1109 = vadd.f32 %v1045, %v1087
          %v1110 = vadd.f32 %v1046, %v1090
          %v1111 = vadd.f32 %v1047, %v1092
          %v1112 = vadd.f32 %v1048, %v1095
          %v1113 = vadd.f32 %v1049, %v1097
          %v1114 = vlaneseq
          %v1115 = vshrl.u32 %v1114, 7
          %v1116 = vsub.s32 2, %v1115
          %v1117 = vrot.slane %v1036, %v1116
          %v1118 = vmul.f32 %v1019, %v1117
          %v1119 = vmul.f32 %v1020, %v1117
          %v1120 = vmul.f32 %v1021, %v1117
          %v1121 = vmul.f32 %v1023, %v1117
          %v1122 = vmul.f32 %v1024, %v1117
          %v1123 = vmul.f32 %v1025, %v1117
          %v1124 = vmul.f32 %v1027, %v1117
          %v1125 = vmul.f32 %v1028, %v1117
          %v1126 = vmul.f32 %v1029, %v1117
          %v1127 = vmul.f32 %v1031, %v1117
          %v1128 = vmul.f32 %v1032, %v1117
          %v1129 = vmul.f32 %v1033, %v1117
          %v1142 = vrot.slane %v1118, 2
          %v1143 = vrot.slane %v1119, 2
          %v1144 = vsel %vm498, %v1142, %v1143
          %v1145 = vrot.slane %v1120, 2
          %v1146 = vsel %vm498, %v1143, %v1145
          %v1147 = vrot.slane %v1121, 2
          %v1148 = vrot.slane %v1122, 2
          %v1149 = vsel %vm498, %v1147, %v1148
          %v1150 = vrot.slane %v1123, 2
          %v1151 = vsel %vm498, %v1148, %v1150
          %v1152 = vrot.slane %v1124, 2
          %v1153 = vrot.slane %v1125, 2
          %v1154 = vsel %vm498, %v1152, %v1153
          %v1155 = vrot.slane %v1126, 2
          %v1156 = vsel %vm498, %v1153, %v1155
          %v1157 = vrot.slane %v1127, 2
          %v1158 = vrot.slane %v1128, 2
          %v1159 = vsel %vm498, %v1157, %v1158
          %v1160 = vrot.slane %v1129, 2
          %v1161 = vsel %vm498, %v1158, %v1160
          %v1170 = vadd.f32 %v1106, %v1144
          %v1171 = vadd.f32 %v1107, %v1146
          %v1172 = vadd.f32 %v1108, %v1149
          %v1173 = vadd.f32 %v1109, %v1151
          %v1174 = vadd.f32 %v1110, %v1154
          %v1175 = vadd.f32 %v1111, %v1156
          %v1176 = vadd.f32 %v1112, %v1159
          %v1177 = vadd.f32 %v1113, %v1161
          %v1178 = vlaneseq
          %v1179 = vshrl.u32 %v1178, 7
          %v1180 = vsub.s32 3, %v1179
          %v1181 = vrot.slane %v1036, %v1180
          %v1182 = vmul.f32 %v1019, %v1181
          %v1183 = vmul.f32 %v1020, %v1181
          %v1184 = vmul.f32 %v1021, %v1181
          %v1185 = vmul.f32 %v1023, %v1181
          %v1186 = vmul.f32 %v1024, %v1181
          %v1187 = vmul.f32 %v1025, %v1181
          %v1188 = vmul.f32 %v1027, %v1181
          %v1189 = vmul.f32 %v1028, %v1181
          %v1190 = vmul.f32 %v1029, %v1181
          %v1191 = vmul.f32 %v1031, %v1181
          %v1192 = vmul.f32 %v1032, %v1181
          %v1193 = vmul.f32 %v1033, %v1181
          %v1206 = vrot.slane %v1182, 3
          %v1207 = vrot.slane %v1183, 3
          %v1208 = vsel %vm563, %v1206, %v1207
          %v1209 = vrot.slane %v1184, 3
          %v1210 = vsel %vm563, %v1207, %v1209
          %v1211 = vrot.slane %v1185, 3
          %v1212 = vrot.slane %v1186, 3
          %v1213 = vsel %vm563, %v1211, %v1212
          %v1214 = vrot.slane %v1187, 3
          %v1215 = vsel %vm563, %v1212, %v1214
          %v1216 = vrot.slane %v1188, 3
          %v1217 = vrot.slane %v1189, 3
          %v1218 = vsel %vm563, %v1216, %v1217
          %v1219 = vrot.slane %v1190, 3
          %v1220 = vsel %vm563, %v1217, %v1219
          %v1221 = vrot.slane %v1191, 3
          %v1222 = vrot.slane %v1192, 3
          %v1223 = vsel %vm563, %v1221, %v1222
          %v1224 = vrot.slane %v1193, 3
          %v1225 = vsel %vm563, %v1222, %v1224
          %v1234 = vadd.f32 %v1170, %v1208
          %v1235 = vadd.f32 %v1171, %v1210
          %v1236 = vadd.f32 %v1172, %v1213
          %v1237 = vadd.f32 %v1173, %v1215
          %v1238 = vadd.f32 %v1174, %v1218
          %v1239 = vadd.f32 %v1175, %v1220
          %v1240 = vadd.f32 %v1176, %v1223
          %v1241 = vadd.f32 %v1177, %v1225
          %v1242 = vlaneseq
          %v1243 = vshrl.u32 %v1242, 7
          %v1244 = vsub.s32 4, %v1243
          %v1245 = vrot.slane %v1036, %v1244
          %v1246 = vmul.f32 %v1019, %v1245
          %v1247 = vmul.f32 %v1020, %v1245
          %v1248 = vmul.f32 %v1021, %v1245
          %v1249 = vmul.f32 %v1023, %v1245
          %v1250 = vmul.f32 %v1024, %v1245
          %v1251 = vmul.f32 %v1025, %v1245
          %v1252 = vmul.f32 %v1027, %v1245
          %v1253 = vmul.f32 %v1028, %v1245
          %v1254 = vmul.f32 %v1029, %v1245
          %v1255 = vmul.f32 %v1031, %v1245
          %v1256 = vmul.f32 %v1032, %v1245
          %v1257 = vmul.f32 %v1033, %v1245
          %v1270 = vrot.slane %v1246, 4
          %v1271 = vrot.slane %v1247, 4
          %v1272 = vsel %vm628, %v1270, %v1271
          %v1273 = vrot.slane %v1248, 4
          %v1274 = vsel %vm628, %v1271, %v1273
          %v1275 = vrot.slane %v1249, 4
          %v1276 = vrot.slane %v1250, 4
          %v1277 = vsel %vm628, %v1275, %v1276
          %v1278 = vrot.slane %v1251, 4
          %v1279 = vsel %vm628, %v1276, %v1278
          %v1280 = vrot.slane %v1252, 4
          %v1281 = vrot.slane %v1253, 4
          %v1282 = vsel %vm628, %v1280, %v1281
          %v1283 = vrot.slane %v1254, 4
          %v1284 = vsel %vm628, %v1281, %v1283
          %v1285 = vrot.slane %v1255, 4
          %v1286 = vrot.slane %v1256, 4
          %v1287 = vsel %vm628, %v1285, %v1286
          %v1288 = vrot.slane %v1257, 4
          %v1289 = vsel %vm628, %v1286, %v1288
          %v1298 = vadd.f32 %v1234, %v1272
          %v1299 = vadd.f32 %v1235, %v1274
          %v1300 = vadd.f32 %v1236, %v1277
          %v1301 = vadd.f32 %v1237, %v1279
          %v1302 = vadd.f32 %v1238, %v1282
          %v1303 = vadd.f32 %v1239, %v1284
          %v1304 = vadd.f32 %v1240, %v1287
          %v1305 = vadd.f32 %v1241, %v1289
          %v1306 = vlaneseq
          %v1307 = vshrl.u32 %v1306, 7
          %v1308 = vsub.s32 5, %v1307
          %v1309 = vrot.slane %v1036, %v1308
          %v1310 = vmul.f32 %v1019, %v1309
          %v1311 = vmul.f32 %v1020, %v1309
          %v1312 = vmul.f32 %v1021, %v1309
          %v1313 = vmul.f32 %v1023, %v1309
          %v1314 = vmul.f32 %v1024, %v1309
          %v1315 = vmul.f32 %v1025, %v1309
          %v1316 = vmul.f32 %v1027, %v1309
          %v1317 = vmul.f32 %v1028, %v1309
          %v1318 = vmul.f32 %v1029, %v1309
          %v1319 = vmul.f32 %v1031, %v1309
          %v1320 = vmul.f32 %v1032, %v1309
          %v1321 = vmul.f32 %v1033, %v1309
          %v1334 = vrot.slane %v1310, 5
          %v1335 = vrot.slane %v1311, 5
          %v1336 = vsel %vm693, %v1334, %v1335
          %v1337 = vrot.slane %v1312, 5
          %v1338 = vsel %vm693, %v1335, %v1337
          %v1339 = vrot.slane %v1313, 5
          %v1340 = vrot.slane %v1314, 5
          %v1341 = vsel %vm693, %v1339, %v1340
          %v1342 = vrot.slane %v1315, 5
          %v1343 = vsel %vm693, %v1340, %v1342
          %v1344 = vrot.slane %v1316, 5
          %v1345 = vrot.slane %v1317, 5
          %v1346 = vsel %vm693, %v1344, %v1345
          %v1347 = vrot.slane %v1318, 5
          %v1348 = vsel %vm693, %v1345, %v1347
          %v1349 = vrot.slane %v1319, 5
          %v1350 = vrot.slane %v1320, 5
          %v1351 = vsel %vm693, %v1349, %v1350
          %v1352 = vrot.slane %v1321, 5
          %v1353 = vsel %vm693, %v1350, %v1352
          %v1362 = vadd.f32 %v1298, %v1336
          %v1363 = vadd.f32 %v1299, %v1338
          %v1364 = vadd.f32 %v1300, %v1341
          %v1365 = vadd.f32 %v1301, %v1343
          %v1366 = vadd.f32 %v1302, %v1346
          %v1367 = vadd.f32 %v1303, %v1348
          %v1368 = vadd.f32 %v1304, %v1351
          %v1369 = vadd.f32 %v1305, %v1353
          %v1370 = vlaneseq
          %v1371 = vshrl.u32 %v1370, 7
          %v1372 = vsub.s32 6, %v1371
          %v1373 = vrot.slane %v1036, %v1372
          %v1374 = vmul.f32 %v1019, %v1373
          %v1375 = vmul.f32 %v1020, %v1373
          %v1376 = vmul.f32 %v1021, %v1373
          %v1377 = vmul.f32 %v1023, %v1373
          %v1378 = vmul.f32 %v1024, %v1373
          %v1379 = vmul.f32 %v1025, %v1373
          %v1380 = vmul.f32 %v1027, %v1373
          %v1381 = vmul.f32 %v1028, %v1373
          %v1382 = vmul.f32 %v1029, %v1373
          %v1383 = vmul.f32 %v1031, %v1373
          %v1384 = vmul.f32 %v1032, %v1373
          %v1385 = vmul.f32 %v1033, %v1373
          %v1398 = vrot.slane %v1374, 6
          %v1399 = vrot.slane %v1375, 6
          %v1400 = vsel %vm758, %v1398, %v1399
          %v1401 = vrot.slane %v1376, 6
          %v1402 = vsel %vm758, %v1399, %v1401
          %v1403 = vrot.slane %v1377, 6
          %v1404 = vrot.slane %v1378, 6
          %v1405 = vsel %vm758, %v1403, %v1404
          %v1406 = vrot.slane %v1379, 6
          %v1407 = vsel %vm758, %v1404, %v1406
          %v1408 = vrot.slane %v1380, 6
          %v1409 = vrot.slane %v1381, 6
          %v1410 = vsel %vm758, %v1408, %v1409
          %v1411 = vrot.slane %v1382, 6
          %v1412 = vsel %vm758, %v1409, %v1411
          %v1413 = vrot.slane %v1383, 6
          %v1414 = vrot.slane %v1384, 6
          %v1415 = vsel %vm758, %v1413, %v1414
          %v1416 = vrot.slane %v1385, 6
          %v1417 = vsel %vm758, %v1414, %v1416
          %v1426 = vadd.f32 %v1362, %v1400
          %v1427 = vadd.f32 %v1363, %v1402
          %v1428 = vadd.f32 %v1364, %v1405
          %v1429 = vadd.f32 %v1365, %v1407
          %v1430 = vadd.f32 %v1366, %v1410
          %v1431 = vadd.f32 %v1367, %v1412
          %v1432 = vadd.f32 %v1368, %v1415
          %v1433 = vadd.f32 %v1369, %v1417
          %v1434 = vlaneseq
          %v1435 = vshrl.u32 %v1434, 7
          %v1436 = vsub.s32 7, %v1435
          %v1437 = vrot.slane %v1036, %v1436
          %v1438 = vmul.f32 %v1019, %v1437
          %v1439 = vmul.f32 %v1020, %v1437
          %v1440 = vmul.f32 %v1021, %v1437
          %v1441 = vmul.f32 %v1023, %v1437
          %v1442 = vmul.f32 %v1024, %v1437
          %v1443 = vmul.f32 %v1025, %v1437
          %v1444 = vmul.f32 %v1027, %v1437
          %v1445 = vmul.f32 %v1028, %v1437
          %v1446 = vmul.f32 %v1029, %v1437
          %v1447 = vmul.f32 %v1031, %v1437
          %v1448 = vmul.f32 %v1032, %v1437
          %v1449 = vmul.f32 %v1033, %v1437
          %v1462 = vrot.slane %v1438, 7
          %v1463 = vrot.slane %v1439, 7
          %v1464 = vsel %vm823, %v1462, %v1463
          %v1465 = vrot.slane %v1440, 7
          %v1466 = vsel %vm823, %v1463, %v1465
          %v1467 = vrot.slane %v1441, 7
          %v1468 = vrot.slane %v1442, 7
          %v1469 = vsel %vm823, %v1467, %v1468
          %v1470 = vrot.slane %v1443, 7
          %v1471 = vsel %vm823, %v1468, %v1470
          %v1472 = vrot.slane %v1444, 7
          %v1473 = vrot.slane %v1445, 7
          %v1474 = vsel %vm823, %v1472, %v1473
          %v1475 = vrot.slane %v1446, 7
          %v1476 = vsel %vm823, %v1473, %v1475
          %v1477 = vrot.slane %v1447, 7
          %v1478 = vrot.slane %v1448, 7
          %v1479 = vsel %vm823, %v1477, %v1478
          %v1480 = vrot.slane %v1449, 7
          %v1481 = vsel %vm823, %v1478, %v1480
          %v1490 = vadd.f32 %v1426, %v1464
          %v1491 = vadd.f32 %v1427, %v1466
          %v1492 = vadd.f32 %v1428, %v1469
          %v1493 = vadd.f32 %v1429, %v1471
          %v1494 = vadd.f32 %v1430, %v1474
          %v1495 = vadd.f32 %v1431, %v1476
          %v1496 = vadd.f32 %v1432, %v1479
          %v1497 = vadd.f32 %v1433, %v1481
          %v1498 = vlaneseq
          %v1499 = vshrl.u32 %v1498, 7
          %v1500 = vsub.s32 0, %v1499
          %v1501 = vrot.slane %v1037, %v1500
          %v1502 = vmul.f32 %v1020, %v1501
          %v1503 = vmul.f32 %v1021, %v1501
          %v1504 = vmul.f32 %v1024, %v1501
          %v1505 = vmul.f32 %v1025, %v1501
          %v1506 = vmul.f32 %v1028, %v1501
          %v1507 = vmul.f32 %v1029, %v1501
          %v1508 = vmul.f32 %v1032, %v1501
          %v1509 = vmul.f32 %v1033, %v1501
          %v1510 = vadd.f32 %v1490, %v1502
          %v1511 = vadd.f32 %v1491, %v1503
          %v1512 = vadd.f32 %v1492, %v1504
          %v1513 = vadd.f32 %v1493, %v1505
          %v1514 = vadd.f32 %v1494, %v1506
          %v1515 = vadd.f32 %v1495, %v1507
          %v1516 = vadd.f32 %v1496, %v1508
          %v1517 = vadd.f32 %v1497, %v1509
          %v1518 = vlaneseq
          %v1519 = vshrl.u32 %v1518, 7
          %v1520 = vsub.s32 1, %v1519
          %v1521 = vrot.slane %v1037, %v1520
          %v1522 = vmul.f32 %v1020, %v1521
          %v1523 = vmul.f32 %v1021, %v1521
          %v1524 = vmul.f32 %v1022, %v1521
          %v1525 = vmul.f32 %v1024, %v1521
          %v1526 = vmul.f32 %v1025, %v1521
          %v1527 = vmul.f32 %v1026, %v1521
          %v1528 = vmul.f32 %v1028, %v1521
          %v1529 = vmul.f32 %v1029, %v1521
          %v1530 = vmul.f32 %v1030, %v1521
          %v1531 = vmul.f32 %v1032, %v1521
          %v1532 = vmul.f32 %v1033, %v1521
          %v1533 = vmul.f32 %v1034, %v1521
          %v1546 = vrot.slane %v1522, 1
          %v1547 = vrot.slane %v1523, 1
          %v1548 = vsel %vm433, %v1546, %v1547
          %v1549 = vrot.slane %v1524, 1
          %v1550 = vsel %vm433, %v1547, %v1549
          %v1551 = vrot.slane %v1525, 1
          %v1552 = vrot.slane %v1526, 1
          %v1553 = vsel %vm433, %v1551, %v1552
          %v1554 = vrot.slane %v1527, 1
          %v1555 = vsel %vm433, %v1552, %v1554
          %v1556 = vrot.slane %v1528, 1
          %v1557 = vrot.slane %v1529, 1
          %v1558 = vsel %vm433, %v1556, %v1557
          %v1559 = vrot.slane %v1530, 1
          %v1560 = vsel %vm433, %v1557, %v1559
          %v1561 = vrot.slane %v1531, 1
          %v1562 = vrot.slane %v1532, 1
          %v1563 = vsel %vm433, %v1561, %v1562
          %v1564 = vrot.slane %v1533, 1
          %v1565 = vsel %vm433, %v1562, %v1564
          %v1574 = vadd.f32 %v1510, %v1548
          %v1575 = vadd.f32 %v1511, %v1550
          %v1576 = vadd.f32 %v1512, %v1553
          %v1577 = vadd.f32 %v1513, %v1555
          %v1578 = vadd.f32 %v1514, %v1558
          %v1579 = vadd.f32 %v1515, %v1560
          %v1580 = vadd.f32 %v1516, %v1563
          %v1581 = vadd.f32 %v1517, %v1565
          %v1582 = vlaneseq
          %v1583 = vshrl.u32 %v1582, 7
          %v1584 = vsub.s32 2, %v1583
          %v1585 = vrot.slane %v1037, %v1584
          %v1586 = vmul.f32 %v1020, %v1585
          %v1587 = vmul.f32 %v1021, %v1585
          %v1588 = vmul.f32 %v1022, %v1585
          %v1589 = vmul.f32 %v1024, %v1585
          %v1590 = vmul.f32 %v1025, %v1585
          %v1591 = vmul.f32 %v1026, %v1585
          %v1592 = vmul.f32 %v1028, %v1585
          %v1593 = vmul.f32 %v1029, %v1585
          %v1594 = vmul.f32 %v1030, %v1585
          %v1595 = vmul.f32 %v1032, %v1585
          %v1596 = vmul.f32 %v1033, %v1585
          %v1597 = vmul.f32 %v1034, %v1585
          %v1610 = vrot.slane %v1586, 2
          %v1611 = vrot.slane %v1587, 2
          %v1612 = vsel %vm498, %v1610, %v1611
          %v1613 = vrot.slane %v1588, 2
          %v1614 = vsel %vm498, %v1611, %v1613
          %v1615 = vrot.slane %v1589, 2
          %v1616 = vrot.slane %v1590, 2
          %v1617 = vsel %vm498, %v1615, %v1616
          %v1618 = vrot.slane %v1591, 2
          %v1619 = vsel %vm498, %v1616, %v1618
          %v1620 = vrot.slane %v1592, 2
          %v1621 = vrot.slane %v1593, 2
          %v1622 = vsel %vm498, %v1620, %v1621
          %v1623 = vrot.slane %v1594, 2
          %v1624 = vsel %vm498, %v1621, %v1623
          %v1625 = vrot.slane %v1595, 2
          %v1626 = vrot.slane %v1596, 2
          %v1627 = vsel %vm498, %v1625, %v1626
          %v1628 = vrot.slane %v1597, 2
          %v1629 = vsel %vm498, %v1626, %v1628
          %v1638 = vadd.f32 %v1574, %v1612
          %v1639 = vadd.f32 %v1575, %v1614
          %v1640 = vadd.f32 %v1576, %v1617
          %v1641 = vadd.f32 %v1577, %v1619
          %v1642 = vadd.f32 %v1578, %v1622
          %v1643 = vadd.f32 %v1579, %v1624
          %v1644 = vadd.f32 %v1580, %v1627
          %v1645 = vadd.f32 %v1581, %v1629
          %v1646 = vadd.f32 %v1638, 0.0
          %v1647 = vadd.f32 %v1639, 0.0
          %v1648 = vadd.f32 %v1640, 0.0
          %v1649 = vadd.f32 %v1641, 0.0
          %v1650 = vadd.f32 %v1642, 0.0
          %v1651 = vadd.f32 %v1643, 0.0
          %v1652 = vadd.f32 %v1644, 0.0
          %v1653 = vadd.f32 %v1645, 0.0
          %s1654 = sadd.s32 %s372, 2
          %s1655 = smul.u32 %s1654, 32
          %s1656 = scalar_lea.vmem %s358, %s1655
          %v1657 = vld [vmem:[%s1656] sm:$0xff]
          %v1658 = vld [vmem:[%s1656 + $0x8] sm:$0xff]
          %v1659 = vld [vmem:[%s1656 + $0x10] sm:$0xff]
          %v1660 = vld [vmem:[%s1656 + $0x18] sm:$0x3]
          %v1661 = vld [vmem:[%s1656 + $0x20] sm:$0xff]
          %v1662 = vld [vmem:[%s1656 + $0x28] sm:$0xff]
          %v1663 = vld [vmem:[%s1656 + $0x30] sm:$0xff]
          %v1664 = vld [vmem:[%s1656 + $0x38] sm:$0x3]
          %v1665 = vld [vmem:[%s1656 + $0x40] sm:$0xff]
          %v1666 = vld [vmem:[%s1656 + $0x48] sm:$0xff]
          %v1667 = vld [vmem:[%s1656 + $0x50] sm:$0xff]
          %v1668 = vld [vmem:[%s1656 + $0x58] sm:$0x3]
          %v1669 = vld [vmem:[%s1656 + $0x60] sm:$0xff]
          %v1670 = vld [vmem:[%s1656 + $0x68] sm:$0xff]
          %v1671 = vld [vmem:[%s1656 + $0x70] sm:$0xff]
          %v1672 = vld [vmem:[%s1656 + $0x78] sm:$0x3]
          %s1673 = scalar_lea.vmem %s1, 32
          %v1674 = vld [vmem:[%s1673] sm:$0xff]
          %v1675 = vld [vmem:[%s1673 + $0x8] sm:$0x7]
          %v1676 = vlaneseq
          %v1677 = vshrl.u32 %v1676, 7
          %v1678 = vsub.s32 0, %v1677
          %v1679 = vrot.slane %v1674, %v1678
          %v1680 = vmul.f32 %v1657, %v1679
          %v1681 = vmul.f32 %v1658, %v1679
          %v1682 = vmul.f32 %v1661, %v1679
          %v1683 = vmul.f32 %v1662, %v1679
          %v1684 = vmul.f32 %v1665, %v1679
          %v1685 = vmul.f32 %v1666, %v1679
          %v1686 = vmul.f32 %v1669, %v1679
          %v1687 = vmul.f32 %v1670, %v1679
          %v1688 = vlaneseq
          %v1689 = vshrl.u32 %v1688, 7
          %v1690 = vsub.s32 1, %v1689
          %v1691 = vrot.slane %v1674, %v1690
          %v1692 = vmul.f32 %v1657, %v1691
          %v1693 = vmul.f32 %v1658, %v1691
          %v1694 = vmul.f32 %v1659, %v1691
          %v1695 = vmul.f32 %v1661, %v1691
          %v1696 = vmul.f32 %v1662, %v1691
          %v1697 = vmul.f32 %v1663, %v1691
          %v1698 = vmul.f32 %v1665, %v1691
          %v1699 = vmul.f32 %v1666, %v1691
          %v1700 = vmul.f32 %v1667, %v1691
          %v1701 = vmul.f32 %v1669, %v1691
          %v1702 = vmul.f32 %v1670, %v1691
          %v1703 = vmul.f32 %v1671, %v1691
          %v1716 = vrot.slane %v1692, 1
          %v1717 = vrot.slane %v1693, 1
          %v1718 = vsel %vm433, %v1716, %v1717
          %v1719 = vrot.slane %v1694, 1
          %v1720 = vsel %vm433, %v1717, %v1719
          %v1721 = vrot.slane %v1695, 1
          %v1722 = vrot.slane %v1696, 1
          %v1723 = vsel %vm433, %v1721, %v1722
          %v1724 = vrot.slane %v1697, 1
          %v1725 = vsel %vm433, %v1722, %v1724
          %v1726 = vrot.slane %v1698, 1
          %v1727 = vrot.slane %v1699, 1
          %v1728 = vsel %vm433, %v1726, %v1727
          %v1729 = vrot.slane %v1700, 1
          %v1730 = vsel %vm433, %v1727, %v1729
          %v1731 = vrot.slane %v1701, 1
          %v1732 = vrot.slane %v1702, 1
          %v1733 = vsel %vm433, %v1731, %v1732
          %v1734 = vrot.slane %v1703, 1
          %v1735 = vsel %vm433, %v1732, %v1734
          %v1744 = vadd.f32 %v1680, %v1718
          %v1745 = vadd.f32 %v1681, %v1720
          %v1746 = vadd.f32 %v1682, %v1723
          %v1747 = vadd.f32 %v1683, %v1725
          %v1748 = vadd.f32 %v1684, %v1728
          %v1749 = vadd.f32 %v1685, %v1730
          %v1750 = vadd.f32 %v1686, %v1733
          %v1751 = vadd.f32 %v1687, %v1735
          %v1752 = vlaneseq
          %v1753 = vshrl.u32 %v1752, 7
          %v1754 = vsub.s32 2, %v1753
          %v1755 = vrot.slane %v1674, %v1754
          %v1756 = vmul.f32 %v1657, %v1755
          %v1757 = vmul.f32 %v1658, %v1755
          %v1758 = vmul.f32 %v1659, %v1755
          %v1759 = vmul.f32 %v1661, %v1755
          %v1760 = vmul.f32 %v1662, %v1755
          %v1761 = vmul.f32 %v1663, %v1755
          %v1762 = vmul.f32 %v1665, %v1755
          %v1763 = vmul.f32 %v1666, %v1755
          %v1764 = vmul.f32 %v1667, %v1755
          %v1765 = vmul.f32 %v1669, %v1755
          %v1766 = vmul.f32 %v1670, %v1755
          %v1767 = vmul.f32 %v1671, %v1755
          %v1780 = vrot.slane %v1756, 2
          %v1781 = vrot.slane %v1757, 2
          %v1782 = vsel %vm498, %v1780, %v1781
          %v1783 = vrot.slane %v1758, 2
          %v1784 = vsel %vm498, %v1781, %v1783
          %v1785 = vrot.slane %v1759, 2
          %v1786 = vrot.slane %v1760, 2
          %v1787 = vsel %vm498, %v1785, %v1786
          %v1788 = vrot.slane %v1761, 2
          %v1789 = vsel %vm498, %v1786, %v1788
          %v1790 = vrot.slane %v1762, 2
          %v1791 = vrot.slane %v1763, 2
          %v1792 = vsel %vm498, %v1790, %v1791
          %v1793 = vrot.slane %v1764, 2
          %v1794 = vsel %vm498, %v1791, %v1793
          %v1795 = vrot.slane %v1765, 2
          %v1796 = vrot.slane %v1766, 2
          %v1797 = vsel %vm498, %v1795, %v1796
          %v1798 = vrot.slane %v1767, 2
          %v1799 = vsel %vm498, %v1796, %v1798
          %v1808 = vadd.f32 %v1744, %v1782
          %v1809 = vadd.f32 %v1745, %v1784
          %v1810 = vadd.f32 %v1746, %v1787
          %v1811 = vadd.f32 %v1747, %v1789
          %v1812 = vadd.f32 %v1748, %v1792
          %v1813 = vadd.f32 %v1749, %v1794
          %v1814 = vadd.f32 %v1750, %v1797
          %v1815 = vadd.f32 %v1751, %v1799
          %v1816 = vlaneseq
          %v1817 = vshrl.u32 %v1816, 7
          %v1818 = vsub.s32 3, %v1817
          %v1819 = vrot.slane %v1674, %v1818
          %v1820 = vmul.f32 %v1657, %v1819
          %v1821 = vmul.f32 %v1658, %v1819
          %v1822 = vmul.f32 %v1659, %v1819
          %v1823 = vmul.f32 %v1661, %v1819
          %v1824 = vmul.f32 %v1662, %v1819
          %v1825 = vmul.f32 %v1663, %v1819
          %v1826 = vmul.f32 %v1665, %v1819
          %v1827 = vmul.f32 %v1666, %v1819
          %v1828 = vmul.f32 %v1667, %v1819
          %v1829 = vmul.f32 %v1669, %v1819
          %v1830 = vmul.f32 %v1670, %v1819
          %v1831 = vmul.f32 %v1671, %v1819
          %v1844 = vrot.slane %v1820, 3
          %v1845 = vrot.slane %v1821, 3
          %v1846 = vsel %vm563, %v1844, %v1845
          %v1847 = vrot.slane %v1822, 3
          %v1848 = vsel %vm563, %v1845, %v1847
          %v1849 = vrot.slane %v1823, 3
          %v1850 = vrot.slane %v1824, 3
          %v1851 = vsel %vm563, %v1849, %v1850
          %v1852 = vrot.slane %v1825, 3
          %v1853 = vsel %vm563, %v1850, %v1852
          %v1854 = vrot.slane %v1826, 3
          %v1855 = vrot.slane %v1827, 3
          %v1856 = vsel %vm563, %v1854, %v1855
          %v1857 = vrot.slane %v1828, 3
          %v1858 = vsel %vm563, %v1855, %v1857
          %v1859 = vrot.slane %v1829, 3
          %v1860 = vrot.slane %v1830, 3
          %v1861 = vsel %vm563, %v1859, %v1860
          %v1862 = vrot.slane %v1831, 3
          %v1863 = vsel %vm563, %v1860, %v1862
          %v1872 = vadd.f32 %v1808, %v1846
          %v1873 = vadd.f32 %v1809, %v1848
          %v1874 = vadd.f32 %v1810, %v1851
          %v1875 = vadd.f32 %v1811, %v1853
          %v1876 = vadd.f32 %v1812, %v1856
          %v1877 = vadd.f32 %v1813, %v1858
          %v1878 = vadd.f32 %v1814, %v1861
          %v1879 = vadd.f32 %v1815, %v1863
          %v1880 = vlaneseq
          %v1881 = vshrl.u32 %v1880, 7
          %v1882 = vsub.s32 4, %v1881
          %v1883 = vrot.slane %v1674, %v1882
          %v1884 = vmul.f32 %v1657, %v1883
          %v1885 = vmul.f32 %v1658, %v1883
          %v1886 = vmul.f32 %v1659, %v1883
          %v1887 = vmul.f32 %v1661, %v1883
          %v1888 = vmul.f32 %v1662, %v1883
          %v1889 = vmul.f32 %v1663, %v1883
          %v1890 = vmul.f32 %v1665, %v1883
          %v1891 = vmul.f32 %v1666, %v1883
          %v1892 = vmul.f32 %v1667, %v1883
          %v1893 = vmul.f32 %v1669, %v1883
          %v1894 = vmul.f32 %v1670, %v1883
          %v1895 = vmul.f32 %v1671, %v1883
          %v1908 = vrot.slane %v1884, 4
          %v1909 = vrot.slane %v1885, 4
          %v1910 = vsel %vm628, %v1908, %v1909
          %v1911 = vrot.slane %v1886, 4
          %v1912 = vsel %vm628, %v1909, %v1911
          %v1913 = vrot.slane %v1887, 4
          %v1914 = vrot.slane %v1888, 4
          %v1915 = vsel %vm628, %v1913, %v1914
          %v1916 = vrot.slane %v1889, 4
          %v1917 = vsel %vm628, %v1914, %v1916
          %v1918 = vrot.slane %v1890, 4
          %v1919 = vrot.slane %v1891, 4
          %v1920 = vsel %vm628, %v1918, %v1919
          %v1921 = vrot.slane %v1892, 4
          %v1922 = vsel %vm628, %v1919, %v1921
          %v1923 = vrot.slane %v1893, 4
          %v1924 = vrot.slane %v1894, 4
          %v1925 = vsel %vm628, %v1923, %v1924
          %v1926 = vrot.slane %v1895, 4
          %v1927 = vsel %vm628, %v1924, %v1926
          %v1936 = vadd.f32 %v1872, %v1910
          %v1937 = vadd.f32 %v1873, %v1912
          %v1938 = vadd.f32 %v1874, %v1915
          %v1939 = vadd.f32 %v1875, %v1917
          %v1940 = vadd.f32 %v1876, %v1920
          %v1941 = vadd.f32 %v1877, %v1922
          %v1942 = vadd.f32 %v1878, %v1925
          %v1943 = vadd.f32 %v1879, %v1927
          %v1944 = vlaneseq
          %v1945 = vshrl.u32 %v1944, 7
          %v1946 = vsub.s32 5, %v1945
          %v1947 = vrot.slane %v1674, %v1946
          %v1948 = vmul.f32 %v1657, %v1947
          %v1949 = vmul.f32 %v1658, %v1947
          %v1950 = vmul.f32 %v1659, %v1947
          %v1951 = vmul.f32 %v1661, %v1947
          %v1952 = vmul.f32 %v1662, %v1947
          %v1953 = vmul.f32 %v1663, %v1947
          %v1954 = vmul.f32 %v1665, %v1947
          %v1955 = vmul.f32 %v1666, %v1947
          %v1956 = vmul.f32 %v1667, %v1947
          %v1957 = vmul.f32 %v1669, %v1947
          %v1958 = vmul.f32 %v1670, %v1947
          %v1959 = vmul.f32 %v1671, %v1947
          %v1972 = vrot.slane %v1948, 5
          %v1973 = vrot.slane %v1949, 5
          %v1974 = vsel %vm693, %v1972, %v1973
          %v1975 = vrot.slane %v1950, 5
          %v1976 = vsel %vm693, %v1973, %v1975
          %v1977 = vrot.slane %v1951, 5
          %v1978 = vrot.slane %v1952, 5
          %v1979 = vsel %vm693, %v1977, %v1978
          %v1980 = vrot.slane %v1953, 5
          %v1981 = vsel %vm693, %v1978, %v1980
          %v1982 = vrot.slane %v1954, 5
          %v1983 = vrot.slane %v1955, 5
          %v1984 = vsel %vm693, %v1982, %v1983
          %v1985 = vrot.slane %v1956, 5
          %v1986 = vsel %vm693, %v1983, %v1985
          %v1987 = vrot.slane %v1957, 5
          %v1988 = vrot.slane %v1958, 5
          %v1989 = vsel %vm693, %v1987, %v1988
          %v1990 = vrot.slane %v1959, 5
          %v1991 = vsel %vm693, %v1988, %v1990
          %v2000 = vadd.f32 %v1936, %v1974
          %v2001 = vadd.f32 %v1937, %v1976
          %v2002 = vadd.f32 %v1938, %v1979
          %v2003 = vadd.f32 %v1939, %v1981
          %v2004 = vadd.f32 %v1940, %v1984
          %v2005 = vadd.f32 %v1941, %v1986
          %v2006 = vadd.f32 %v1942, %v1989
          %v2007 = vadd.f32 %v1943, %v1991
          %v2008 = vlaneseq
          %v2009 = vshrl.u32 %v2008, 7
          %v2010 = vsub.s32 6, %v2009
          %v2011 = vrot.slane %v1674, %v2010
          %v2012 = vmul.f32 %v1657, %v2011
          %v2013 = vmul.f32 %v1658, %v2011
          %v2014 = vmul.f32 %v1659, %v2011
          %v2015 = vmul.f32 %v1661, %v2011
          %v2016 = vmul.f32 %v1662, %v2011
          %v2017 = vmul.f32 %v1663, %v2011
          %v2018 = vmul.f32 %v1665, %v2011
          %v2019 = vmul.f32 %v1666, %v2011
          %v2020 = vmul.f32 %v1667, %v2011
          %v2021 = vmul.f32 %v1669, %v2011
          %v2022 = vmul.f32 %v1670, %v2011
          %v2023 = vmul.f32 %v1671, %v2011
          %v2036 = vrot.slane %v2012, 6
          %v2037 = vrot.slane %v2013, 6
          %v2038 = vsel %vm758, %v2036, %v2037
          %v2039 = vrot.slane %v2014, 6
          %v2040 = vsel %vm758, %v2037, %v2039
          %v2041 = vrot.slane %v2015, 6
          %v2042 = vrot.slane %v2016, 6
          %v2043 = vsel %vm758, %v2041, %v2042
          %v2044 = vrot.slane %v2017, 6
          %v2045 = vsel %vm758, %v2042, %v2044
          %v2046 = vrot.slane %v2018, 6
          %v2047 = vrot.slane %v2019, 6
          %v2048 = vsel %vm758, %v2046, %v2047
          %v2049 = vrot.slane %v2020, 6
          %v2050 = vsel %vm758, %v2047, %v2049
          %v2051 = vrot.slane %v2021, 6
          %v2052 = vrot.slane %v2022, 6
          %v2053 = vsel %vm758, %v2051, %v2052
          %v2054 = vrot.slane %v2023, 6
          %v2055 = vsel %vm758, %v2052, %v2054
          %v2064 = vadd.f32 %v2000, %v2038
          %v2065 = vadd.f32 %v2001, %v2040
          %v2066 = vadd.f32 %v2002, %v2043
          %v2067 = vadd.f32 %v2003, %v2045
          %v2068 = vadd.f32 %v2004, %v2048
          %v2069 = vadd.f32 %v2005, %v2050
          %v2070 = vadd.f32 %v2006, %v2053
          %v2071 = vadd.f32 %v2007, %v2055
          %v2072 = vlaneseq
          %v2073 = vshrl.u32 %v2072, 7
          %v2074 = vsub.s32 7, %v2073
          %v2075 = vrot.slane %v1674, %v2074
          %v2076 = vmul.f32 %v1657, %v2075
          %v2077 = vmul.f32 %v1658, %v2075
          %v2078 = vmul.f32 %v1659, %v2075
          %v2079 = vmul.f32 %v1661, %v2075
          %v2080 = vmul.f32 %v1662, %v2075
          %v2081 = vmul.f32 %v1663, %v2075
          %v2082 = vmul.f32 %v1665, %v2075
          %v2083 = vmul.f32 %v1666, %v2075
          %v2084 = vmul.f32 %v1667, %v2075
          %v2085 = vmul.f32 %v1669, %v2075
          %v2086 = vmul.f32 %v1670, %v2075
          %v2087 = vmul.f32 %v1671, %v2075
          %v2100 = vrot.slane %v2076, 7
          %v2101 = vrot.slane %v2077, 7
          %v2102 = vsel %vm823, %v2100, %v2101
          %v2103 = vrot.slane %v2078, 7
          %v2104 = vsel %vm823, %v2101, %v2103
          %v2105 = vrot.slane %v2079, 7
          %v2106 = vrot.slane %v2080, 7
          %v2107 = vsel %vm823, %v2105, %v2106
          %v2108 = vrot.slane %v2081, 7
          %v2109 = vsel %vm823, %v2106, %v2108
          %v2110 = vrot.slane %v2082, 7
          %v2111 = vrot.slane %v2083, 7
          %v2112 = vsel %vm823, %v2110, %v2111
          %v2113 = vrot.slane %v2084, 7
          %v2114 = vsel %vm823, %v2111, %v2113
          %v2115 = vrot.slane %v2085, 7
          %v2116 = vrot.slane %v2086, 7
          %v2117 = vsel %vm823, %v2115, %v2116
          %v2118 = vrot.slane %v2087, 7
          %v2119 = vsel %vm823, %v2116, %v2118
          %v2128 = vadd.f32 %v2064, %v2102
          %v2129 = vadd.f32 %v2065, %v2104
          %v2130 = vadd.f32 %v2066, %v2107
          %v2131 = vadd.f32 %v2067, %v2109
          %v2132 = vadd.f32 %v2068, %v2112
          %v2133 = vadd.f32 %v2069, %v2114
          %v2134 = vadd.f32 %v2070, %v2117
          %v2135 = vadd.f32 %v2071, %v2119
          %v2136 = vlaneseq
          %v2137 = vshrl.u32 %v2136, 7
          %v2138 = vsub.s32 0, %v2137
          %v2139 = vrot.slane %v1675, %v2138
          %v2140 = vmul.f32 %v1658, %v2139
          %v2141 = vmul.f32 %v1659, %v2139
          %v2142 = vmul.f32 %v1662, %v2139
          %v2143 = vmul.f32 %v1663, %v2139
          %v2144 = vmul.f32 %v1666, %v2139
          %v2145 = vmul.f32 %v1667, %v2139
          %v2146 = vmul.f32 %v1670, %v2139
          %v2147 = vmul.f32 %v1671, %v2139
          %v2148 = vadd.f32 %v2128, %v2140
          %v2149 = vadd.f32 %v2129, %v2141
          %v2150 = vadd.f32 %v2130, %v2142
          %v2151 = vadd.f32 %v2131, %v2143
          %v2152 = vadd.f32 %v2132, %v2144
          %v2153 = vadd.f32 %v2133, %v2145
          %v2154 = vadd.f32 %v2134, %v2146
          %v2155 = vadd.f32 %v2135, %v2147
          %v2156 = vlaneseq
          %v2157 = vshrl.u32 %v2156, 7
          %v2158 = vsub.s32 1, %v2157
          %v2159 = vrot.slane %v1675, %v2158
          %v2160 = vmul.f32 %v1658, %v2159
          %v2161 = vmul.f32 %v1659, %v2159
          %v2162 = vmul.f32 %v1660, %v2159
          %v2163 = vmul.f32 %v1662, %v2159
          %v2164 = vmul.f32 %v1663, %v2159
          %v2165 = vmul.f32 %v1664, %v2159
          %v2166 = vmul.f32 %v1666, %v2159
          %v2167 = vmul.f32 %v1667, %v2159
          %v2168 = vmul.f32 %v1668, %v2159
          %v2169 = vmul.f32 %v1670, %v2159
          %v2170 = vmul.f32 %v1671, %v2159
          %v2171 = vmul.f32 %v1672, %v2159
          %v2184 = vrot.slane %v2160, 1
          %v2185 = vrot.slane %v2161, 1
          %v2186 = vsel %vm433, %v2184, %v2185
          %v2187 = vrot.slane %v2162, 1
          %v2188 = vsel %vm433, %v2185, %v2187
          %v2189 = vrot.slane %v2163, 1
          %v2190 = vrot.slane %v2164, 1
          %v2191 = vsel %vm433, %v2189, %v2190
          %v2192 = vrot.slane %v2165, 1
          %v2193 = vsel %vm433, %v2190, %v2192
          %v2194 = vrot.slane %v2166, 1
          %v2195 = vrot.slane %v2167, 1
          %v2196 = vsel %vm433, %v2194, %v2195
          %v2197 = vrot.slane %v2168, 1
          %v2198 = vsel %vm433, %v2195, %v2197
          %v2199 = vrot.slane %v2169, 1
          %v2200 = vrot.slane %v2170, 1
          %v2201 = vsel %vm433, %v2199, %v2200
          %v2202 = vrot.slane %v2171, 1
          %v2203 = vsel %vm433, %v2200, %v2202
          %v2212 = vadd.f32 %v2148, %v2186
          %v2213 = vadd.f32 %v2149, %v2188
          %v2214 = vadd.f32 %v2150, %v2191
          %v2215 = vadd.f32 %v2151, %v2193
          %v2216 = vadd.f32 %v2152, %v2196
          %v2217 = vadd.f32 %v2153, %v2198
          %v2218 = vadd.f32 %v2154, %v2201
          %v2219 = vadd.f32 %v2155, %v2203
          %v2220 = vlaneseq
          %v2221 = vshrl.u32 %v2220, 7
          %v2222 = vsub.s32 2, %v2221
          %v2223 = vrot.slane %v1675, %v2222
          %v2224 = vmul.f32 %v1658, %v2223
          %v2225 = vmul.f32 %v1659, %v2223
          %v2226 = vmul.f32 %v1660, %v2223
          %v2227 = vmul.f32 %v1662, %v2223
          %v2228 = vmul.f32 %v1663, %v2223
          %v2229 = vmul.f32 %v1664, %v2223
          %v2230 = vmul.f32 %v1666, %v2223
          %v2231 = vmul.f32 %v1667, %v2223
          %v2232 = vmul.f32 %v1668, %v2223
          %v2233 = vmul.f32 %v1670, %v2223
          %v2234 = vmul.f32 %v1671, %v2223
          %v2235 = vmul.f32 %v1672, %v2223
          %v2248 = vrot.slane %v2224, 2
          %v2249 = vrot.slane %v2225, 2
          %v2250 = vsel %vm498, %v2248, %v2249
          %v2251 = vrot.slane %v2226, 2
          %v2252 = vsel %vm498, %v2249, %v2251
          %v2253 = vrot.slane %v2227, 2
          %v2254 = vrot.slane %v2228, 2
          %v2255 = vsel %vm498, %v2253, %v2254
          %v2256 = vrot.slane %v2229, 2
          %v2257 = vsel %vm498, %v2254, %v2256
          %v2258 = vrot.slane %v2230, 2
          %v2259 = vrot.slane %v2231, 2
          %v2260 = vsel %vm498, %v2258, %v2259
          %v2261 = vrot.slane %v2232, 2
          %v2262 = vsel %vm498, %v2259, %v2261
          %v2263 = vrot.slane %v2233, 2
          %v2264 = vrot.slane %v2234, 2
          %v2265 = vsel %vm498, %v2263, %v2264
          %v2266 = vrot.slane %v2235, 2
          %v2267 = vsel %vm498, %v2264, %v2266
          %v2276 = vadd.f32 %v2212, %v2250
          %v2277 = vadd.f32 %v2213, %v2252
          %v2278 = vadd.f32 %v2214, %v2255
          %v2279 = vadd.f32 %v2215, %v2257
          %v2280 = vadd.f32 %v2216, %v2260
          %v2281 = vadd.f32 %v2217, %v2262
          %v2282 = vadd.f32 %v2218, %v2265
          %v2283 = vadd.f32 %v2219, %v2267
          %v2284 = vadd.f32 %v1008, %v2276
          %v2285 = vadd.f32 %v1009, %v2277
          %v2286 = vadd.f32 %v1010, %v2278
          %v2287 = vadd.f32 %v1011, %v2279
          %v2288 = vadd.f32 %v1012, %v2280
          %v2289 = vadd.f32 %v1013, %v2281
          %v2290 = vadd.f32 %v1014, %v2282
          %v2291 = vadd.f32 %v1015, %v2283
          %s2292 = sadd.s32 %s372, 3
          %s2293 = smul.u32 %s2292, 32
          %s2294 = scalar_lea.vmem %s358, %s2293
          %v2295 = vld [vmem:[%s2294] sm:$0xff]
          %v2296 = vld [vmem:[%s2294 + $0x8] sm:$0xff]
          %v2297 = vld [vmem:[%s2294 + $0x10] sm:$0xff]
          %v2298 = vld [vmem:[%s2294 + $0x18] sm:$0x3]
          %v2299 = vld [vmem:[%s2294 + $0x20] sm:$0xff]
          %v2300 = vld [vmem:[%s2294 + $0x28] sm:$0xff]
          %v2301 = vld [vmem:[%s2294 + $0x30] sm:$0xff]
          %v2302 = vld [vmem:[%s2294 + $0x38] sm:$0x3]
          %v2303 = vld [vmem:[%s2294 + $0x40] sm:$0xff]
          %v2304 = vld [vmem:[%s2294 + $0x48] sm:$0xff]
          %v2305 = vld [vmem:[%s2294 + $0x50] sm:$0xff]
          %v2306 = vld [vmem:[%s2294 + $0x58] sm:$0x3]
          %v2307 = vld [vmem:[%s2294 + $0x60] sm:$0xff]
          %v2308 = vld [vmem:[%s2294 + $0x68] sm:$0xff]
          %v2309 = vld [vmem:[%s2294 + $0x70] sm:$0xff]
          %v2310 = vld [vmem:[%s2294 + $0x78] sm:$0x3]
          %s2311 = scalar_lea.vmem %s1, 48
          %v2312 = vld [vmem:[%s2311] sm:$0xff]
          %v2313 = vld [vmem:[%s2311 + $0x8] sm:$0x7]
          %v2314 = vlaneseq
          %v2315 = vshrl.u32 %v2314, 7
          %v2316 = vsub.s32 0, %v2315
          %v2317 = vrot.slane %v2312, %v2316
          %v2318 = vmul.f32 %v2295, %v2317
          %v2319 = vmul.f32 %v2296, %v2317
          %v2320 = vmul.f32 %v2299, %v2317
          %v2321 = vmul.f32 %v2300, %v2317
          %v2322 = vmul.f32 %v2303, %v2317
          %v2323 = vmul.f32 %v2304, %v2317
          %v2324 = vmul.f32 %v2307, %v2317
          %v2325 = vmul.f32 %v2308, %v2317
          %v2326 = vlaneseq
          %v2327 = vshrl.u32 %v2326, 7
          %v2328 = vsub.s32 1, %v2327
          %v2329 = vrot.slane %v2312, %v2328
          %v2330 = vmul.f32 %v2295, %v2329
          %v2331 = vmul.f32 %v2296, %v2329
          %v2332 = vmul.f32 %v2297, %v2329
          %v2333 = vmul.f32 %v2299, %v2329
          %v2334 = vmul.f32 %v2300, %v2329
          %v2335 = vmul.f32 %v2301, %v2329
          %v2336 = vmul.f32 %v2303, %v2329
          %v2337 = vmul.f32 %v2304, %v2329
          %v2338 = vmul.f32 %v2305, %v2329
          %v2339 = vmul.f32 %v2307, %v2329
          %v2340 = vmul.f32 %v2308, %v2329
          %v2341 = vmul.f32 %v2309, %v2329
          %v2354 = vrot.slane %v2330, 1
          %v2355 = vrot.slane %v2331, 1
          %v2356 = vsel %vm433, %v2354, %v2355
          %v2357 = vrot.slane %v2332, 1
          %v2358 = vsel %vm433, %v2355, %v2357
          %v2359 = vrot.slane %v2333, 1
          %v2360 = vrot.slane %v2334, 1
          %v2361 = vsel %vm433, %v2359, %v2360
          %v2362 = vrot.slane %v2335, 1
          %v2363 = vsel %vm433, %v2360, %v2362
          %v2364 = vrot.slane %v2336, 1
          %v2365 = vrot.slane %v2337, 1
          %v2366 = vsel %vm433, %v2364, %v2365
          %v2367 = vrot.slane %v2338, 1
          %v2368 = vsel %vm433, %v2365, %v2367
          %v2369 = vrot.slane %v2339, 1
          %v2370 = vrot.slane %v2340, 1
          %v2371 = vsel %vm433, %v2369, %v2370
          %v2372 = vrot.slane %v2341, 1
          %v2373 = vsel %vm433, %v2370, %v2372
          %v2382 = vadd.f32 %v2318, %v2356
          %v2383 = vadd.f32 %v2319, %v2358
          %v2384 = vadd.f32 %v2320, %v2361
          %v2385 = vadd.f32 %v2321, %v2363
          %v2386 = vadd.f32 %v2322, %v2366
          %v2387 = vadd.f32 %v2323, %v2368
          %v2388 = vadd.f32 %v2324, %v2371
          %v2389 = vadd.f32 %v2325, %v2373
          %v2390 = vlaneseq
          %v2391 = vshrl.u32 %v2390, 7
          %v2392 = vsub.s32 2, %v2391
          %v2393 = vrot.slane %v2312, %v2392
          %v2394 = vmul.f32 %v2295, %v2393
          %v2395 = vmul.f32 %v2296, %v2393
          %v2396 = vmul.f32 %v2297, %v2393
          %v2397 = vmul.f32 %v2299, %v2393
          %v2398 = vmul.f32 %v2300, %v2393
          %v2399 = vmul.f32 %v2301, %v2393
          %v2400 = vmul.f32 %v2303, %v2393
          %v2401 = vmul.f32 %v2304, %v2393
          %v2402 = vmul.f32 %v2305, %v2393
          %v2403 = vmul.f32 %v2307, %v2393
          %v2404 = vmul.f32 %v2308, %v2393
          %v2405 = vmul.f32 %v2309, %v2393
          %v2418 = vrot.slane %v2394, 2
          %v2419 = vrot.slane %v2395, 2
          %v2420 = vsel %vm498, %v2418, %v2419
          %v2421 = vrot.slane %v2396, 2
          %v2422 = vsel %vm498, %v2419, %v2421
          %v2423 = vrot.slane %v2397, 2
          %v2424 = vrot.slane %v2398, 2
          %v2425 = vsel %vm498, %v2423, %v2424
          %v2426 = vrot.slane %v2399, 2
          %v2427 = vsel %vm498, %v2424, %v2426
          %v2428 = vrot.slane %v2400, 2
          %v2429 = vrot.slane %v2401, 2
          %v2430 = vsel %vm498, %v2428, %v2429
          %v2431 = vrot.slane %v2402, 2
          %v2432 = vsel %vm498, %v2429, %v2431
          %v2433 = vrot.slane %v2403, 2
          %v2434 = vrot.slane %v2404, 2
          %v2435 = vsel %vm498, %v2433, %v2434
          %v2436 = vrot.slane %v2405, 2
          %v2437 = vsel %vm498, %v2434, %v2436
          %v2446 = vadd.f32 %v2382, %v2420
          %v2447 = vadd.f32 %v2383, %v2422
          %v2448 = vadd.f32 %v2384, %v2425
          %v2449 = vadd.f32 %v2385, %v2427
          %v2450 = vadd.f32 %v2386, %v2430
          %v2451 = vadd.f32 %v2387, %v2432
          %v2452 = vadd.f32 %v2388, %v2435
          %v2453 = vadd.f32 %v2389, %v2437
          %v2454 = vlaneseq
          %v2455 = vshrl.u32 %v2454, 7
          %v2456 = vsub.s32 3, %v2455
          %v2457 = vrot.slane %v2312, %v2456
          %v2458 = vmul.f32 %v2295, %v2457
          %v2459 = vmul.f32 %v2296, %v2457
          %v2460 = vmul.f32 %v2297, %v2457
          %v2461 = vmul.f32 %v2299, %v2457
          %v2462 = vmul.f32 %v2300, %v2457
          %v2463 = vmul.f32 %v2301, %v2457
          %v2464 = vmul.f32 %v2303, %v2457
          %v2465 = vmul.f32 %v2304, %v2457
          %v2466 = vmul.f32 %v2305, %v2457
          %v2467 = vmul.f32 %v2307, %v2457
          %v2468 = vmul.f32 %v2308, %v2457
          %v2469 = vmul.f32 %v2309, %v2457
          %v2482 = vrot.slane %v2458, 3
          %v2483 = vrot.slane %v2459, 3
          %v2484 = vsel %vm563, %v2482, %v2483
          %v2485 = vrot.slane %v2460, 3
          %v2486 = vsel %vm563, %v2483, %v2485
          %v2487 = vrot.slane %v2461, 3
          %v2488 = vrot.slane %v2462, 3
          %v2489 = vsel %vm563, %v2487, %v2488
          %v2490 = vrot.slane %v2463, 3
          %v2491 = vsel %vm563, %v2488, %v2490
          %v2492 = vrot.slane %v2464, 3
          %v2493 = vrot.slane %v2465, 3
          %v2494 = vsel %vm563, %v2492, %v2493
          %v2495 = vrot.slane %v2466, 3
          %v2496 = vsel %vm563, %v2493, %v2495
          %v2497 = vrot.slane %v2467, 3
          %v2498 = vrot.slane %v2468, 3
          %v2499 = vsel %vm563, %v2497, %v2498
          %v2500 = vrot.slane %v2469, 3
          %v2501 = vsel %vm563, %v2498, %v2500
          %v2510 = vadd.f32 %v2446, %v2484
          %v2511 = vadd.f32 %v2447, %v2486
          %v2512 = vadd.f32 %v2448, %v2489
          %v2513 = vadd.f32 %v2449, %v2491
          %v2514 = vadd.f32 %v2450, %v2494
          %v2515 = vadd.f32 %v2451, %v2496
          %v2516 = vadd.f32 %v2452, %v2499
          %v2517 = vadd.f32 %v2453, %v2501
          %v2518 = vlaneseq
          %v2519 = vshrl.u32 %v2518, 7
          %v2520 = vsub.s32 4, %v2519
          %v2521 = vrot.slane %v2312, %v2520
          %v2522 = vmul.f32 %v2295, %v2521
          %v2523 = vmul.f32 %v2296, %v2521
          %v2524 = vmul.f32 %v2297, %v2521
          %v2525 = vmul.f32 %v2299, %v2521
          %v2526 = vmul.f32 %v2300, %v2521
          %v2527 = vmul.f32 %v2301, %v2521
          %v2528 = vmul.f32 %v2303, %v2521
          %v2529 = vmul.f32 %v2304, %v2521
          %v2530 = vmul.f32 %v2305, %v2521
          %v2531 = vmul.f32 %v2307, %v2521
          %v2532 = vmul.f32 %v2308, %v2521
          %v2533 = vmul.f32 %v2309, %v2521
          %v2546 = vrot.slane %v2522, 4
          %v2547 = vrot.slane %v2523, 4
          %v2548 = vsel %vm628, %v2546, %v2547
          %v2549 = vrot.slane %v2524, 4
          %v2550 = vsel %vm628, %v2547, %v2549
          %v2551 = vrot.slane %v2525, 4
          %v2552 = vrot.slane %v2526, 4
          %v2553 = vsel %vm628, %v2551, %v2552
          %v2554 = vrot.slane %v2527, 4
          %v2555 = vsel %vm628, %v2552, %v2554
          %v2556 = vrot.slane %v2528, 4
          %v2557 = vrot.slane %v2529, 4
          %v2558 = vsel %vm628, %v2556, %v2557
          %v2559 = vrot.slane %v2530, 4
          %v2560 = vsel %vm628, %v2557, %v2559
          %v2561 = vrot.slane %v2531, 4
          %v2562 = vrot.slane %v2532, 4
          %v2563 = vsel %vm628, %v2561, %v2562
          %v2564 = vrot.slane %v2533, 4
          %v2565 = vsel %vm628, %v2562, %v2564
          %v2574 = vadd.f32 %v2510, %v2548
          %v2575 = vadd.f32 %v2511, %v2550
          %v2576 = vadd.f32 %v2512, %v2553
          %v2577 = vadd.f32 %v2513, %v2555
          %v2578 = vadd.f32 %v2514, %v2558
          %v2579 = vadd.f32 %v2515, %v2560
          %v2580 = vadd.f32 %v2516, %v2563
          %v2581 = vadd.f32 %v2517, %v2565
          %v2582 = vlaneseq
          %v2583 = vshrl.u32 %v2582, 7
          %v2584 = vsub.s32 5, %v2583
          %v2585 = vrot.slane %v2312, %v2584
          %v2586 = vmul.f32 %v2295, %v2585
          %v2587 = vmul.f32 %v2296, %v2585
          %v2588 = vmul.f32 %v2297, %v2585
          %v2589 = vmul.f32 %v2299, %v2585
          %v2590 = vmul.f32 %v2300, %v2585
          %v2591 = vmul.f32 %v2301, %v2585
          %v2592 = vmul.f32 %v2303, %v2585
          %v2593 = vmul.f32 %v2304, %v2585
          %v2594 = vmul.f32 %v2305, %v2585
          %v2595 = vmul.f32 %v2307, %v2585
          %v2596 = vmul.f32 %v2308, %v2585
          %v2597 = vmul.f32 %v2309, %v2585
          %v2610 = vrot.slane %v2586, 5
          %v2611 = vrot.slane %v2587, 5
          %v2612 = vsel %vm693, %v2610, %v2611
          %v2613 = vrot.slane %v2588, 5
          %v2614 = vsel %vm693, %v2611, %v2613
          %v2615 = vrot.slane %v2589, 5
          %v2616 = vrot.slane %v2590, 5
          %v2617 = vsel %vm693, %v2615, %v2616
          %v2618 = vrot.slane %v2591, 5
          %v2619 = vsel %vm693, %v2616, %v2618
          %v2620 = vrot.slane %v2592, 5
          %v2621 = vrot.slane %v2593, 5
          %v2622 = vsel %vm693, %v2620, %v2621
          %v2623 = vrot.slane %v2594, 5
          %v2624 = vsel %vm693, %v2621, %v2623
          %v2625 = vrot.slane %v2595, 5
          %v2626 = vrot.slane %v2596, 5
          %v2627 = vsel %vm693, %v2625, %v2626
          %v2628 = vrot.slane %v2597, 5
          %v2629 = vsel %vm693, %v2626, %v2628
          %v2638 = vadd.f32 %v2574, %v2612
          %v2639 = vadd.f32 %v2575, %v2614
          %v2640 = vadd.f32 %v2576, %v2617
          %v2641 = vadd.f32 %v2577, %v2619
          %v2642 = vadd.f32 %v2578, %v2622
          %v2643 = vadd.f32 %v2579, %v2624
          %v2644 = vadd.f32 %v2580, %v2627
          %v2645 = vadd.f32 %v2581, %v2629
          %v2646 = vlaneseq
          %v2647 = vshrl.u32 %v2646, 7
          %v2648 = vsub.s32 6, %v2647
          %v2649 = vrot.slane %v2312, %v2648
          %v2650 = vmul.f32 %v2295, %v2649
          %v2651 = vmul.f32 %v2296, %v2649
          %v2652 = vmul.f32 %v2297, %v2649
          %v2653 = vmul.f32 %v2299, %v2649
          %v2654 = vmul.f32 %v2300, %v2649
          %v2655 = vmul.f32 %v2301, %v2649
          %v2656 = vmul.f32 %v2303, %v2649
          %v2657 = vmul.f32 %v2304, %v2649
          %v2658 = vmul.f32 %v2305, %v2649
          %v2659 = vmul.f32 %v2307, %v2649
          %v2660 = vmul.f32 %v2308, %v2649
          %v2661 = vmul.f32 %v2309, %v2649
          %v2674 = vrot.slane %v2650, 6
          %v2675 = vrot.slane %v2651, 6
          %v2676 = vsel %vm758, %v2674, %v2675
          %v2677 = vrot.slane %v2652, 6
          %v2678 = vsel %vm758, %v2675, %v2677
          %v2679 = vrot.slane %v2653, 6
          %v2680 = vrot.slane %v2654, 6
          %v2681 = vsel %vm758, %v2679, %v2680
          %v2682 = vrot.slane %v2655, 6
          %v2683 = vsel %vm758, %v2680, %v2682
          %v2684 = vrot.slane %v2656, 6
          %v2685 = vrot.slane %v2657, 6
          %v2686 = vsel %vm758, %v2684, %v2685
          %v2687 = vrot.slane %v2658, 6
          %v2688 = vsel %vm758, %v2685, %v2687
          %v2689 = vrot.slane %v2659, 6
          %v2690 = vrot.slane %v2660, 6
          %v2691 = vsel %vm758, %v2689, %v2690
          %v2692 = vrot.slane %v2661, 6
          %v2693 = vsel %vm758, %v2690, %v2692
          %v2702 = vadd.f32 %v2638, %v2676
          %v2703 = vadd.f32 %v2639, %v2678
          %v2704 = vadd.f32 %v2640, %v2681
          %v2705 = vadd.f32 %v2641, %v2683
          %v2706 = vadd.f32 %v2642, %v2686
          %v2707 = vadd.f32 %v2643, %v2688
          %v2708 = vadd.f32 %v2644, %v2691
          %v2709 = vadd.f32 %v2645, %v2693
          %v2710 = vlaneseq
          %v2711 = vshrl.u32 %v2710, 7
          %v2712 = vsub.s32 7, %v2711
          %v2713 = vrot.slane %v2312, %v2712
          %v2714 = vmul.f32 %v2295, %v2713
          %v2715 = vmul.f32 %v2296, %v2713
          %v2716 = vmul.f32 %v2297, %v2713
          %v2717 = vmul.f32 %v2299, %v2713
          %v2718 = vmul.f32 %v2300, %v2713
          %v2719 = vmul.f32 %v2301, %v2713
          %v2720 = vmul.f32 %v2303, %v2713
          %v2721 = vmul.f32 %v2304, %v2713
          %v2722 = vmul.f32 %v2305, %v2713
          %v2723 = vmul.f32 %v2307, %v2713
          %v2724 = vmul.f32 %v2308, %v2713
          %v2725 = vmul.f32 %v2309, %v2713
          %v2738 = vrot.slane %v2714, 7
          %v2739 = vrot.slane %v2715, 7
          %v2740 = vsel %vm823, %v2738, %v2739
          %v2741 = vrot.slane %v2716, 7
          %v2742 = vsel %vm823, %v2739, %v2741
          %v2743 = vrot.slane %v2717, 7
          %v2744 = vrot.slane %v2718, 7
          %v2745 = vsel %vm823, %v2743, %v2744
          %v2746 = vrot.slane %v2719, 7
          %v2747 = vsel %vm823, %v2744, %v2746
          %v2748 = vrot.slane %v2720, 7
          %v2749 = vrot.slane %v2721, 7
          %v2750 = vsel %vm823, %v2748, %v2749
          %v2751 = vrot.slane %v2722, 7
          %v2752 = vsel %vm823, %v2749, %v2751
          %v2753 = vrot.slane %v2723, 7
          %v2754 = vrot.slane %v2724, 7
          %v2755 = vsel %vm823, %v2753, %v2754
          %v2756 = vrot.slane %v2725, 7
          %v2757 = vsel %vm823, %v2754, %v2756
          %v2766 = vadd.f32 %v2702, %v2740
          %v2767 = vadd.f32 %v2703, %v2742
          %v2768 = vadd.f32 %v2704, %v2745
          %v2769 = vadd.f32 %v2705, %v2747
          %v2770 = vadd.f32 %v2706, %v2750
          %v2771 = vadd.f32 %v2707, %v2752
          %v2772 = vadd.f32 %v2708, %v2755
          %v2773 = vadd.f32 %v2709, %v2757
          %v2774 = vlaneseq
          %v2775 = vshrl.u32 %v2774, 7
          %v2776 = vsub.s32 0, %v2775
          %v2777 = vrot.slane %v2313, %v2776
          %v2778 = vmul.f32 %v2296, %v2777
          %v2779 = vmul.f32 %v2297, %v2777
          %v2780 = vmul.f32 %v2300, %v2777
          %v2781 = vmul.f32 %v2301, %v2777
          %v2782 = vmul.f32 %v2304, %v2777
          %v2783 = vmul.f32 %v2305, %v2777
          %v2784 = vmul.f32 %v2308, %v2777
          %v2785 = vmul.f32 %v2309, %v2777
          %v2786 = vadd.f32 %v2766, %v2778
          %v2787 = vadd.f32 %v2767, %v2779
          %v2788 = vadd.f32 %v2768, %v2780
          %v2789 = vadd.f32 %v2769, %v2781
          %v2790 = vadd.f32 %v2770, %v2782
          %v2791 = vadd.f32 %v2771, %v2783
          %v2792 = vadd.f32 %v2772, %v2784
          %v2793 = vadd.f32 %v2773, %v2785
          %v2794 = vlaneseq
          %v2795 = vshrl.u32 %v2794, 7
          %v2796 = vsub.s32 1, %v2795
          %v2797 = vrot.slane %v2313, %v2796
          %v2798 = vmul.f32 %v2296, %v2797
          %v2799 = vmul.f32 %v2297, %v2797
          %v2800 = vmul.f32 %v2298, %v2797
          %v2801 = vmul.f32 %v2300, %v2797
          %v2802 = vmul.f32 %v2301, %v2797
          %v2803 = vmul.f32 %v2302, %v2797
          %v2804 = vmul.f32 %v2304, %v2797
          %v2805 = vmul.f32 %v2305, %v2797
          %v2806 = vmul.f32 %v2306, %v2797
          %v2807 = vmul.f32 %v2308, %v2797
          %v2808 = vmul.f32 %v2309, %v2797
          %v2809 = vmul.f32 %v2310, %v2797
          %v2822 = vrot.slane %v2798, 1
          %v2823 = vrot.slane %v2799, 1
          %v2824 = vsel %vm433, %v2822, %v2823
          %v2825 = vrot.slane %v2800, 1
          %v2826 = vsel %vm433, %v2823, %v2825
          %v2827 = vrot.slane %v2801, 1
          %v2828 = vrot.slane %v2802, 1
          %v2829 = vsel %vm433, %v2827, %v2828
          %v2830 = vrot.slane %v2803, 1
          %v2831 = vsel %vm433, %v2828, %v2830
          %v2832 = vrot.slane %v2804, 1
          %v2833 = vrot.slane %v2805, 1
          %v2834 = vsel %vm433, %v2832, %v2833
          %v2835 = vrot.slane %v2806, 1
          %v2836 = vsel %vm433, %v2833, %v2835
          %v2837 = vrot.slane %v2807, 1
          %v2838 = vrot.slane %v2808, 1
          %v2839 = vsel %vm433, %v2837, %v2838
          %v2840 = vrot.slane %v2809, 1
          %v2841 = vsel %vm433, %v2838, %v2840
          %v2850 = vadd.f32 %v2786, %v2824
          %v2851 = vadd.f32 %v2787, %v2826
          %v2852 = vadd.f32 %v2788, %v2829
          %v2853 = vadd.f32 %v2789, %v2831
          %v2854 = vadd.f32 %v2790, %v2834
          %v2855 = vadd.f32 %v2791, %v2836
          %v2856 = vadd.f32 %v2792, %v2839
          %v2857 = vadd.f32 %v2793, %v2841
          %v2858 = vlaneseq
          %v2859 = vshrl.u32 %v2858, 7
          %v2860 = vsub.s32 2, %v2859
          %v2861 = vrot.slane %v2313, %v2860
          %v2862 = vmul.f32 %v2296, %v2861
          %v2863 = vmul.f32 %v2297, %v2861
          %v2864 = vmul.f32 %v2298, %v2861
          %v2865 = vmul.f32 %v2300, %v2861
          %v2866 = vmul.f32 %v2301, %v2861
          %v2867 = vmul.f32 %v2302, %v2861
          %v2868 = vmul.f32 %v2304, %v2861
          %v2869 = vmul.f32 %v2305, %v2861
          %v2870 = vmul.f32 %v2306, %v2861
          %v2871 = vmul.f32 %v2308, %v2861
          %v2872 = vmul.f32 %v2309, %v2861
          %v2873 = vmul.f32 %v2310, %v2861
          %v2886 = vrot.slane %v2862, 2
          %v2887 = vrot.slane %v2863, 2
          %v2888 = vsel %vm498, %v2886, %v2887
          %v2889 = vrot.slane %v2864, 2
          %v2890 = vsel %vm498, %v2887, %v2889
          %v2891 = vrot.slane %v2865, 2
          %v2892 = vrot.slane %v2866, 2
          %v2893 = vsel %vm498, %v2891, %v2892
          %v2894 = vrot.slane %v2867, 2
          %v2895 = vsel %vm498, %v2892, %v2894
          %v2896 = vrot.slane %v2868, 2
          %v2897 = vrot.slane %v2869, 2
          %v2898 = vsel %vm498, %v2896, %v2897
          %v2899 = vrot.slane %v2870, 2
          %v2900 = vsel %vm498, %v2897, %v2899
          %v2901 = vrot.slane %v2871, 2
          %v2902 = vrot.slane %v2872, 2
          %v2903 = vsel %vm498, %v2901, %v2902
          %v2904 = vrot.slane %v2873, 2
          %v2905 = vsel %vm498, %v2902, %v2904
          %v2914 = vadd.f32 %v2850, %v2888
          %v2915 = vadd.f32 %v2851, %v2890
          %v2916 = vadd.f32 %v2852, %v2893
          %v2917 = vadd.f32 %v2853, %v2895
          %v2918 = vadd.f32 %v2854, %v2898
          %v2919 = vadd.f32 %v2855, %v2900
          %v2920 = vadd.f32 %v2856, %v2903
          %v2921 = vadd.f32 %v2857, %v2905
          %v2922 = vadd.f32 %v1646, %v2914
          %v2923 = vadd.f32 %v1647, %v2915
          %v2924 = vadd.f32 %v1648, %v2916
          %v2925 = vadd.f32 %v1649, %v2917
          %v2926 = vadd.f32 %v1650, %v2918
          %v2927 = vadd.f32 %v1651, %v2919
          %v2928 = vadd.f32 %v1652, %v2920
          %v2929 = vadd.f32 %v1653, %v2921
          %s2930 = sadd.s32 %s372, 4
          %s2931 = smul.u32 %s2930, 32
          %s2932 = scalar_lea.vmem %s358, %s2931
          %v2933 = vld [vmem:[%s2932] sm:$0xff]
          %v2934 = vld [vmem:[%s2932 + $0x8] sm:$0xff]
          %v2935 = vld [vmem:[%s2932 + $0x10] sm:$0xff]
          %v2936 = vld [vmem:[%s2932 + $0x18] sm:$0x3]
          %v2937 = vld [vmem:[%s2932 + $0x20] sm:$0xff]
          %v2938 = vld [vmem:[%s2932 + $0x28] sm:$0xff]
          %v2939 = vld [vmem:[%s2932 + $0x30] sm:$0xff]
          %v2940 = vld [vmem:[%s2932 + $0x38] sm:$0x3]
          %v2941 = vld [vmem:[%s2932 + $0x40] sm:$0xff]
          %v2942 = vld [vmem:[%s2932 + $0x48] sm:$0xff]
          %v2943 = vld [vmem:[%s2932 + $0x50] sm:$0xff]
          %v2944 = vld [vmem:[%s2932 + $0x58] sm:$0x3]
          %v2945 = vld [vmem:[%s2932 + $0x60] sm:$0xff]
          %v2946 = vld [vmem:[%s2932 + $0x68] sm:$0xff]
          %v2947 = vld [vmem:[%s2932 + $0x70] sm:$0xff]
          %v2948 = vld [vmem:[%s2932 + $0x78] sm:$0x3]
          %s2949 = scalar_lea.vmem %s1, 64
          %v2950 = vld [vmem:[%s2949] sm:$0xff]
          %v2951 = vld [vmem:[%s2949 + $0x8] sm:$0x7]
          %v2952 = vlaneseq
          %v2953 = vshrl.u32 %v2952, 7
          %v2954 = vsub.s32 0, %v2953
          %v2955 = vrot.slane %v2950, %v2954
          %v2956 = vmul.f32 %v2933, %v2955
          %v2957 = vmul.f32 %v2934, %v2955
          %v2958 = vmul.f32 %v2937, %v2955
          %v2959 = vmul.f32 %v2938, %v2955
          %v2960 = vmul.f32 %v2941, %v2955
          %v2961 = vmul.f32 %v2942, %v2955
          %v2962 = vmul.f32 %v2945, %v2955
          %v2963 = vmul.f32 %v2946, %v2955
          %v2964 = vlaneseq
          %v2965 = vshrl.u32 %v2964, 7
          %v2966 = vsub.s32 1, %v2965
          %v2967 = vrot.slane %v2950, %v2966
          %v2968 = vmul.f32 %v2933, %v2967
          %v2969 = vmul.f32 %v2934, %v2967
          %v2970 = vmul.f32 %v2935, %v2967
          %v2971 = vmul.f32 %v2937, %v2967
          %v2972 = vmul.f32 %v2938, %v2967
          %v2973 = vmul.f32 %v2939, %v2967
          %v2974 = vmul.f32 %v2941, %v2967
          %v2975 = vmul.f32 %v2942, %v2967
          %v2976 = vmul.f32 %v2943, %v2967
          %v2977 = vmul.f32 %v2945, %v2967
          %v2978 = vmul.f32 %v2946, %v2967
          %v2979 = vmul.f32 %v2947, %v2967
          %v2992 = vrot.slane %v2968, 1
          %v2993 = vrot.slane %v2969, 1
          %v2994 = vsel %vm433, %v2992, %v2993
          %v2995 = vrot.slane %v2970, 1
          %v2996 = vsel %vm433, %v2993, %v2995
          %v2997 = vrot.slane %v2971, 1
          %v2998 = vrot.slane %v2972, 1
          %v2999 = vsel %vm433, %v2997, %v2998
          %v3000 = vrot.slane %v2973, 1
          %v3001 = vsel %vm433, %v2998, %v3000
          %v3002 = vrot.slane %v2974, 1
          %v3003 = vrot.slane %v2975, 1
          %v3004 = vsel %vm433, %v3002, %v3003
          %v3005 = vrot.slane %v2976, 1
          %v3006 = vsel %vm433, %v3003, %v3005
          %v3007 = vrot.slane %v2977, 1
          %v3008 = vrot.slane %v2978, 1
          %v3009 = vsel %vm433, %v3007, %v3008
          %v3010 = vrot.slane %v2979, 1
          %v3011 = vsel %vm433, %v3008, %v3010
          %v3020 = vadd.f32 %v2956, %v2994
          %v3021 = vadd.f32 %v2957, %v2996
          %v3022 = vadd.f32 %v2958, %v2999
          %v3023 = vadd.f32 %v2959, %v3001
          %v3024 = vadd.f32 %v2960, %v3004
          %v3025 = vadd.f32 %v2961, %v3006
          %v3026 = vadd.f32 %v2962, %v3009
          %v3027 = vadd.f32 %v2963, %v3011
          %v3028 = vlaneseq
          %v3029 = vshrl.u32 %v3028, 7
          %v3030 = vsub.s32 2, %v3029
          %v3031 = vrot.slane %v2950, %v3030
          %v3032 = vmul.f32 %v2933, %v3031
          %v3033 = vmul.f32 %v2934, %v3031
          %v3034 = vmul.f32 %v2935, %v3031
          %v3035 = vmul.f32 %v2937, %v3031
          %v3036 = vmul.f32 %v2938, %v3031
          %v3037 = vmul.f32 %v2939, %v3031
          %v3038 = vmul.f32 %v2941, %v3031
          %v3039 = vmul.f32 %v2942, %v3031
          %v3040 = vmul.f32 %v2943, %v3031
          %v3041 = vmul.f32 %v2945, %v3031
          %v3042 = vmul.f32 %v2946, %v3031
          %v3043 = vmul.f32 %v2947, %v3031
          %v3056 = vrot.slane %v3032, 2
          %v3057 = vrot.slane %v3033, 2
          %v3058 = vsel %vm498, %v3056, %v3057
          %v3059 = vrot.slane %v3034, 2
          %v3060 = vsel %vm498, %v3057, %v3059
          %v3061 = vrot.slane %v3035, 2
          %v3062 = vrot.slane %v3036, 2
          %v3063 = vsel %vm498, %v3061, %v3062
          %v3064 = vrot.slane %v3037, 2
          %v3065 = vsel %vm498, %v3062, %v3064
          %v3066 = vrot.slane %v3038, 2
          %v3067 = vrot.slane %v3039, 2
          %v3068 = vsel %vm498, %v3066, %v3067
          %v3069 = vrot.slane %v3040, 2
          %v3070 = vsel %vm498, %v3067, %v3069
          %v3071 = vrot.slane %v3041, 2
          %v3072 = vrot.slane %v3042, 2
          %v3073 = vsel %vm498, %v3071, %v3072
          %v3074 = vrot.slane %v3043, 2
          %v3075 = vsel %vm498, %v3072, %v3074
          %v3084 = vadd.f32 %v3020, %v3058
          %v3085 = vadd.f32 %v3021, %v3060
          %v3086 = vadd.f32 %v3022, %v3063
          %v3087 = vadd.f32 %v3023, %v3065
          %v3088 = vadd.f32 %v3024, %v3068
          %v3089 = vadd.f32 %v3025, %v3070
          %v3090 = vadd.f32 %v3026, %v3073
          %v3091 = vadd.f32 %v3027, %v3075
          %v3092 = vlaneseq
          %v3093 = vshrl.u32 %v3092, 7
          %v3094 = vsub.s32 3, %v3093
          %v3095 = vrot.slane %v2950, %v3094
          %v3096 = vmul.f32 %v2933, %v3095
          %v3097 = vmul.f32 %v2934, %v3095
          %v3098 = vmul.f32 %v2935, %v3095
          %v3099 = vmul.f32 %v2937, %v3095
          %v3100 = vmul.f32 %v2938, %v3095
          %v3101 = vmul.f32 %v2939, %v3095
          %v3102 = vmul.f32 %v2941, %v3095
          %v3103 = vmul.f32 %v2942, %v3095
          %v3104 = vmul.f32 %v2943, %v3095
          %v3105 = vmul.f32 %v2945, %v3095
          %v3106 = vmul.f32 %v2946, %v3095
          %v3107 = vmul.f32 %v2947, %v3095
          %v3120 = vrot.slane %v3096, 3
          %v3121 = vrot.slane %v3097, 3
          %v3122 = vsel %vm563, %v3120, %v3121
          %v3123 = vrot.slane %v3098, 3
          %v3124 = vsel %vm563, %v3121, %v3123
          %v3125 = vrot.slane %v3099, 3
          %v3126 = vrot.slane %v3100, 3
          %v3127 = vsel %vm563, %v3125, %v3126
          %v3128 = vrot.slane %v3101, 3
          %v3129 = vsel %vm563, %v3126, %v3128
          %v3130 = vrot.slane %v3102, 3
          %v3131 = vrot.slane %v3103, 3
          %v3132 = vsel %vm563, %v3130, %v3131
          %v3133 = vrot.slane %v3104, 3
          %v3134 = vsel %vm563, %v3131, %v3133
          %v3135 = vrot.slane %v3105, 3
          %v3136 = vrot.slane %v3106, 3
          %v3137 = vsel %vm563, %v3135, %v3136
          %v3138 = vrot.slane %v3107, 3
          %v3139 = vsel %vm563, %v3136, %v3138
          %v3148 = vadd.f32 %v3084, %v3122
          %v3149 = vadd.f32 %v3085, %v3124
          %v3150 = vadd.f32 %v3086, %v3127
          %v3151 = vadd.f32 %v3087, %v3129
          %v3152 = vadd.f32 %v3088, %v3132
          %v3153 = vadd.f32 %v3089, %v3134
          %v3154 = vadd.f32 %v3090, %v3137
          %v3155 = vadd.f32 %v3091, %v3139
          %v3156 = vlaneseq
          %v3157 = vshrl.u32 %v3156, 7
          %v3158 = vsub.s32 4, %v3157
          %v3159 = vrot.slane %v2950, %v3158
          %v3160 = vmul.f32 %v2933, %v3159
          %v3161 = vmul.f32 %v2934, %v3159
          %v3162 = vmul.f32 %v2935, %v3159
          %v3163 = vmul.f32 %v2937, %v3159
          %v3164 = vmul.f32 %v2938, %v3159
          %v3165 = vmul.f32 %v2939, %v3159
          %v3166 = vmul.f32 %v2941, %v3159
          %v3167 = vmul.f32 %v2942, %v3159
          %v3168 = vmul.f32 %v2943, %v3159
          %v3169 = vmul.f32 %v2945, %v3159
          %v3170 = vmul.f32 %v2946, %v3159
          %v3171 = vmul.f32 %v2947, %v3159
          %v3184 = vrot.slane %v3160, 4
          %v3185 = vrot.slane %v3161, 4
          %v3186 = vsel %vm628, %v3184, %v3185
          %v3187 = vrot.slane %v3162, 4
          %v3188 = vsel %vm628, %v3185, %v3187
          %v3189 = vrot.slane %v3163, 4
          %v3190 = vrot.slane %v3164, 4
          %v3191 = vsel %vm628, %v3189, %v3190
          %v3192 = vrot.slane %v3165, 4
          %v3193 = vsel %vm628, %v3190, %v3192
          %v3194 = vrot.slane %v3166, 4
          %v3195 = vrot.slane %v3167, 4
          %v3196 = vsel %vm628, %v3194, %v3195
          %v3197 = vrot.slane %v3168, 4
          %v3198 = vsel %vm628, %v3195, %v3197
          %v3199 = vrot.slane %v3169, 4
          %v3200 = vrot.slane %v3170, 4
          %v3201 = vsel %vm628, %v3199, %v3200
          %v3202 = vrot.slane %v3171, 4
          %v3203 = vsel %vm628, %v3200, %v3202
          %v3212 = vadd.f32 %v3148, %v3186
          %v3213 = vadd.f32 %v3149, %v3188
          %v3214 = vadd.f32 %v3150, %v3191
          %v3215 = vadd.f32 %v3151, %v3193
          %v3216 = vadd.f32 %v3152, %v3196
          %v3217 = vadd.f32 %v3153, %v3198
          %v3218 = vadd.f32 %v3154, %v3201
          %v3219 = vadd.f32 %v3155, %v3203
          %v3220 = vlaneseq
          %v3221 = vshrl.u32 %v3220, 7
          %v3222 = vsub.s32 5, %v3221
          %v3223 = vrot.slane %v2950, %v3222
          %v3224 = vmul.f32 %v2933, %v3223
          %v3225 = vmul.f32 %v2934, %v3223
          %v3226 = vmul.f32 %v2935, %v3223
          %v3227 = vmul.f32 %v2937, %v3223
          %v3228 = vmul.f32 %v2938, %v3223
          %v3229 = vmul.f32 %v2939, %v3223
          %v3230 = vmul.f32 %v2941, %v3223
          %v3231 = vmul.f32 %v2942, %v3223
          %v3232 = vmul.f32 %v2943, %v3223
          %v3233 = vmul.f32 %v2945, %v3223
          %v3234 = vmul.f32 %v2946, %v3223
          %v3235 = vmul.f32 %v2947, %v3223
          %v3248 = vrot.slane %v3224, 5
          %v3249 = vrot.slane %v3225, 5
          %v3250 = vsel %vm693, %v3248, %v3249
          %v3251 = vrot.slane %v3226, 5
          %v3252 = vsel %vm693, %v3249, %v3251
          %v3253 = vrot.slane %v3227, 5
          %v3254 = vrot.slane %v3228, 5
          %v3255 = vsel %vm693, %v3253, %v3254
          %v3256 = vrot.slane %v3229, 5
          %v3257 = vsel %vm693, %v3254, %v3256
          %v3258 = vrot.slane %v3230, 5
          %v3259 = vrot.slane %v3231, 5
          %v3260 = vsel %vm693, %v3258, %v3259
          %v3261 = vrot.slane %v3232, 5
          %v3262 = vsel %vm693, %v3259, %v3261
          %v3263 = vrot.slane %v3233, 5
          %v3264 = vrot.slane %v3234, 5
          %v3265 = vsel %vm693, %v3263, %v3264
          %v3266 = vrot.slane %v3235, 5
          %v3267 = vsel %vm693, %v3264, %v3266
          %v3276 = vadd.f32 %v3212, %v3250
          %v3277 = vadd.f32 %v3213, %v3252
          %v3278 = vadd.f32 %v3214, %v3255
          %v3279 = vadd.f32 %v3215, %v3257
          %v3280 = vadd.f32 %v3216, %v3260
          %v3281 = vadd.f32 %v3217, %v3262
          %v3282 = vadd.f32 %v3218, %v3265
          %v3283 = vadd.f32 %v3219, %v3267
          %v3284 = vlaneseq
          %v3285 = vshrl.u32 %v3284, 7
          %v3286 = vsub.s32 6, %v3285
          %v3287 = vrot.slane %v2950, %v3286
          %v3288 = vmul.f32 %v2933, %v3287
          %v3289 = vmul.f32 %v2934, %v3287
          %v3290 = vmul.f32 %v2935, %v3287
          %v3291 = vmul.f32 %v2937, %v3287
          %v3292 = vmul.f32 %v2938, %v3287
          %v3293 = vmul.f32 %v2939, %v3287
          %v3294 = vmul.f32 %v2941, %v3287
          %v3295 = vmul.f32 %v2942, %v3287
          %v3296 = vmul.f32 %v2943, %v3287
          %v3297 = vmul.f32 %v2945, %v3287
          %v3298 = vmul.f32 %v2946, %v3287
          %v3299 = vmul.f32 %v2947, %v3287
          %v3312 = vrot.slane %v3288, 6
          %v3313 = vrot.slane %v3289, 6
          %v3314 = vsel %vm758, %v3312, %v3313
          %v3315 = vrot.slane %v3290, 6
          %v3316 = vsel %vm758, %v3313, %v3315
          %v3317 = vrot.slane %v3291, 6
          %v3318 = vrot.slane %v3292, 6
          %v3319 = vsel %vm758, %v3317, %v3318
          %v3320 = vrot.slane %v3293, 6
          %v3321 = vsel %vm758, %v3318, %v3320
          %v3322 = vrot.slane %v3294, 6
          %v3323 = vrot.slane %v3295, 6
          %v3324 = vsel %vm758, %v3322, %v3323
          %v3325 = vrot.slane %v3296, 6
          %v3326 = vsel %vm758, %v3323, %v3325
          %v3327 = vrot.slane %v3297, 6
          %v3328 = vrot.slane %v3298, 6
          %v3329 = vsel %vm758, %v3327, %v3328
          %v3330 = vrot.slane %v3299, 6
          %v3331 = vsel %vm758, %v3328, %v3330
          %v3340 = vadd.f32 %v3276, %v3314
          %v3341 = vadd.f32 %v3277, %v3316
          %v3342 = vadd.f32 %v3278, %v3319
          %v3343 = vadd.f32 %v3279, %v3321
          %v3344 = vadd.f32 %v3280, %v3324
          %v3345 = vadd.f32 %v3281, %v3326
          %v3346 = vadd.f32 %v3282, %v3329
          %v3347 = vadd.f32 %v3283, %v3331
          %v3348 = vlaneseq
          %v3349 = vshrl.u32 %v3348, 7
          %v3350 = vsub.s32 7, %v3349
          %v3351 = vrot.slane %v2950, %v3350
          %v3352 = vmul.f32 %v2933, %v3351
          %v3353 = vmul.f32 %v2934, %v3351
          %v3354 = vmul.f32 %v2935, %v3351
          %v3355 = vmul.f32 %v2937, %v3351
          %v3356 = vmul.f32 %v2938, %v3351
          %v3357 = vmul.f32 %v2939, %v3351
          %v3358 = vmul.f32 %v2941, %v3351
          %v3359 = vmul.f32 %v2942, %v3351
          %v3360 = vmul.f32 %v2943, %v3351
          %v3361 = vmul.f32 %v2945, %v3351
          %v3362 = vmul.f32 %v2946, %v3351
          %v3363 = vmul.f32 %v2947, %v3351
          %v3376 = vrot.slane %v3352, 7
          %v3377 = vrot.slane %v3353, 7
          %v3378 = vsel %vm823, %v3376, %v3377
          %v3379 = vrot.slane %v3354, 7
          %v3380 = vsel %vm823, %v3377, %v3379
          %v3381 = vrot.slane %v3355, 7
          %v3382 = vrot.slane %v3356, 7
          %v3383 = vsel %vm823, %v3381, %v3382
          %v3384 = vrot.slane %v3357, 7
          %v3385 = vsel %vm823, %v3382, %v3384
          %v3386 = vrot.slane %v3358, 7
          %v3387 = vrot.slane %v3359, 7
          %v3388 = vsel %vm823, %v3386, %v3387
          %v3389 = vrot.slane %v3360, 7
          %v3390 = vsel %vm823, %v3387, %v3389
          %v3391 = vrot.slane %v3361, 7
          %v3392 = vrot.slane %v3362, 7
          %v3393 = vsel %vm823, %v3391, %v3392
          %v3394 = vrot.slane %v3363, 7
          %v3395 = vsel %vm823, %v3392, %v3394
          %v3404 = vadd.f32 %v3340, %v3378
          %v3405 = vadd.f32 %v3341, %v3380
          %v3406 = vadd.f32 %v3342, %v3383
          %v3407 = vadd.f32 %v3343, %v3385
          %v3408 = vadd.f32 %v3344, %v3388
          %v3409 = vadd.f32 %v3345, %v3390
          %v3410 = vadd.f32 %v3346, %v3393
          %v3411 = vadd.f32 %v3347, %v3395
          %v3412 = vlaneseq
          %v3413 = vshrl.u32 %v3412, 7
          %v3414 = vsub.s32 0, %v3413
          %v3415 = vrot.slane %v2951, %v3414
          %v3416 = vmul.f32 %v2934, %v3415
          %v3417 = vmul.f32 %v2935, %v3415
          %v3418 = vmul.f32 %v2938, %v3415
          %v3419 = vmul.f32 %v2939, %v3415
          %v3420 = vmul.f32 %v2942, %v3415
          %v3421 = vmul.f32 %v2943, %v3415
          %v3422 = vmul.f32 %v2946, %v3415
          %v3423 = vmul.f32 %v2947, %v3415
          %v3424 = vadd.f32 %v3404, %v3416
          %v3425 = vadd.f32 %v3405, %v3417
          %v3426 = vadd.f32 %v3406, %v3418
          %v3427 = vadd.f32 %v3407, %v3419
          %v3428 = vadd.f32 %v3408, %v3420
          %v3429 = vadd.f32 %v3409, %v3421
          %v3430 = vadd.f32 %v3410, %v3422
          %v3431 = vadd.f32 %v3411, %v3423
          %v3432 = vlaneseq
          %v3433 = vshrl.u32 %v3432, 7
          %v3434 = vsub.s32 1, %v3433
          %v3435 = vrot.slane %v2951, %v3434
          %v3436 = vmul.f32 %v2934, %v3435
          %v3437 = vmul.f32 %v2935, %v3435
          %v3438 = vmul.f32 %v2936, %v3435
          %v3439 = vmul.f32 %v2938, %v3435
          %v3440 = vmul.f32 %v2939, %v3435
          %v3441 = vmul.f32 %v2940, %v3435
          %v3442 = vmul.f32 %v2942, %v3435
          %v3443 = vmul.f32 %v2943, %v3435
          %v3444 = vmul.f32 %v2944, %v3435
          %v3445 = vmul.f32 %v2946, %v3435
          %v3446 = vmul.f32 %v2947, %v3435
          %v3447 = vmul.f32 %v2948, %v3435
          %v3460 = vrot.slane %v3436, 1
          %v3461 = vrot.slane %v3437, 1
          %v3462 = vsel %vm433, %v3460, %v3461
          %v3463 = vrot.slane %v3438, 1
          %v3464 = vsel %vm433, %v3461, %v3463
          %v3465 = vrot.slane %v3439, 1
          %v3466 = vrot.slane %v3440, 1
          %v3467 = vsel %vm433, %v3465, %v3466
          %v3468 = vrot.slane %v3441, 1
          %v3469 = vsel %vm433, %v3466, %v3468
          %v3470 = vrot.slane %v3442, 1
          %v3471 = vrot.slane %v3443, 1
          %v3472 = vsel %vm433, %v3470, %v3471
          %v3473 = vrot.slane %v3444, 1
          %v3474 = vsel %vm433, %v3471, %v3473
          %v3475 = vrot.slane %v3445, 1
          %v3476 = vrot.slane %v3446, 1
          %v3477 = vsel %vm433, %v3475, %v3476
          %v3478 = vrot.slane %v3447, 1
          %v3479 = vsel %vm433, %v3476, %v3478
          %v3488 = vadd.f32 %v3424, %v3462
          %v3489 = vadd.f32 %v3425, %v3464
          %v3490 = vadd.f32 %v3426, %v3467
          %v3491 = vadd.f32 %v3427, %v3469
          %v3492 = vadd.f32 %v3428, %v3472
          %v3493 = vadd.f32 %v3429, %v3474
          %v3494 = vadd.f32 %v3430, %v3477
          %v3495 = vadd.f32 %v3431, %v3479
          %v3496 = vlaneseq
          %v3497 = vshrl.u32 %v3496, 7
          %v3498 = vsub.s32 2, %v3497
          %v3499 = vrot.slane %v2951, %v3498
          %v3500 = vmul.f32 %v2934, %v3499
          %v3501 = vmul.f32 %v2935, %v3499
          %v3502 = vmul.f32 %v2936, %v3499
          %v3503 = vmul.f32 %v2938, %v3499
          %v3504 = vmul.f32 %v2939, %v3499
          %v3505 = vmul.f32 %v2940, %v3499
          %v3506 = vmul.f32 %v2942, %v3499
          %v3507 = vmul.f32 %v2943, %v3499
          %v3508 = vmul.f32 %v2944, %v3499
          %v3509 = vmul.f32 %v2946, %v3499
          %v3510 = vmul.f32 %v2947, %v3499
          %v3511 = vmul.f32 %v2948, %v3499
          %v3524 = vrot.slane %v3500, 2
          %v3525 = vrot.slane %v3501, 2
          %v3526 = vsel %vm498, %v3524, %v3525
          %v3527 = vrot.slane %v3502, 2
          %v3528 = vsel %vm498, %v3525, %v3527
          %v3529 = vrot.slane %v3503, 2
          %v3530 = vrot.slane %v3504, 2
          %v3531 = vsel %vm498, %v3529, %v3530
          %v3532 = vrot.slane %v3505, 2
          %v3533 = vsel %vm498, %v3530, %v3532
          %v3534 = vrot.slane %v3506, 2
          %v3535 = vrot.slane %v3507, 2
          %v3536 = vsel %vm498, %v3534, %v3535
          %v3537 = vrot.slane %v3508, 2
          %v3538 = vsel %vm498, %v3535, %v3537
          %v3539 = vrot.slane %v3509, 2
          %v3540 = vrot.slane %v3510, 2
          %v3541 = vsel %vm498, %v3539, %v3540
          %v3542 = vrot.slane %v3511, 2
          %v3543 = vsel %vm498, %v3540, %v3542
          %v3552 = vadd.f32 %v3488, %v3526
          %v3553 = vadd.f32 %v3489, %v3528
          %v3554 = vadd.f32 %v3490, %v3531
          %v3555 = vadd.f32 %v3491, %v3533
          %v3556 = vadd.f32 %v3492, %v3536
          %v3557 = vadd.f32 %v3493, %v3538
          %v3558 = vadd.f32 %v3494, %v3541
          %v3559 = vadd.f32 %v3495, %v3543
          %v3560 = vadd.f32 %v2284, %v3552
          %v3561 = vadd.f32 %v2285, %v3553
          %v3562 = vadd.f32 %v2286, %v3554
          %v3563 = vadd.f32 %v2287, %v3555
          %v3564 = vadd.f32 %v2288, %v3556
          %v3565 = vadd.f32 %v2289, %v3557
          %v3566 = vadd.f32 %v2290, %v3558
          %v3567 = vadd.f32 %v2291, %v3559
          %s3568 = sadd.s32 %s372, 5
          %s3569 = smul.u32 %s3568, 32
          %s3570 = scalar_lea.vmem %s358, %s3569
          %v3571 = vld [vmem:[%s3570] sm:$0xff]
          %v3572 = vld [vmem:[%s3570 + $0x8] sm:$0xff]
          %v3573 = vld [vmem:[%s3570 + $0x10] sm:$0xff]
          %v3574 = vld [vmem:[%s3570 + $0x18] sm:$0x3]
          %v3575 = vld [vmem:[%s3570 + $0x20] sm:$0xff]
          %v3576 = vld [vmem:[%s3570 + $0x28] sm:$0xff]
          %v3577 = vld [vmem:[%s3570 + $0x30] sm:$0xff]
          %v3578 = vld [vmem:[%s3570 + $0x38] sm:$0x3]
          %v3579 = vld [vmem:[%s3570 + $0x40] sm:$0xff]
          %v3580 = vld [vmem:[%s3570 + $0x48] sm:$0xff]
          %v3581 = vld [vmem:[%s3570 + $0x50] sm:$0xff]
          %v3582 = vld [vmem:[%s3570 + $0x58] sm:$0x3]
          %v3583 = vld [vmem:[%s3570 + $0x60] sm:$0xff]
          %v3584 = vld [vmem:[%s3570 + $0x68] sm:$0xff]
          %v3585 = vld [vmem:[%s3570 + $0x70] sm:$0xff]
          %v3586 = vld [vmem:[%s3570 + $0x78] sm:$0x3]
          %s3587 = scalar_lea.vmem %s1, 80
          %v3588 = vld [vmem:[%s3587] sm:$0xff]
          %v3589 = vld [vmem:[%s3587 + $0x8] sm:$0x7]
          %v3590 = vlaneseq
          %v3591 = vshrl.u32 %v3590, 7
          %v3592 = vsub.s32 0, %v3591
          %v3593 = vrot.slane %v3588, %v3592
          %v3594 = vmul.f32 %v3571, %v3593
          %v3595 = vmul.f32 %v3572, %v3593
          %v3596 = vmul.f32 %v3575, %v3593
          %v3597 = vmul.f32 %v3576, %v3593
          %v3598 = vmul.f32 %v3579, %v3593
          %v3599 = vmul.f32 %v3580, %v3593
          %v3600 = vmul.f32 %v3583, %v3593
          %v3601 = vmul.f32 %v3584, %v3593
          %v3602 = vlaneseq
          %v3603 = vshrl.u32 %v3602, 7
          %v3604 = vsub.s32 1, %v3603
          %v3605 = vrot.slane %v3588, %v3604
          %v3606 = vmul.f32 %v3571, %v3605
          %v3607 = vmul.f32 %v3572, %v3605
          %v3608 = vmul.f32 %v3573, %v3605
          %v3609 = vmul.f32 %v3575, %v3605
          %v3610 = vmul.f32 %v3576, %v3605
          %v3611 = vmul.f32 %v3577, %v3605
          %v3612 = vmul.f32 %v3579, %v3605
          %v3613 = vmul.f32 %v3580, %v3605
          %v3614 = vmul.f32 %v3581, %v3605
          %v3615 = vmul.f32 %v3583, %v3605
          %v3616 = vmul.f32 %v3584, %v3605
          %v3617 = vmul.f32 %v3585, %v3605
          %v3630 = vrot.slane %v3606, 1
          %v3631 = vrot.slane %v3607, 1
          %v3632 = vsel %vm433, %v3630, %v3631
          %v3633 = vrot.slane %v3608, 1
          %v3634 = vsel %vm433, %v3631, %v3633
          %v3635 = vrot.slane %v3609, 1
          %v3636 = vrot.slane %v3610, 1
          %v3637 = vsel %vm433, %v3635, %v3636
          %v3638 = vrot.slane %v3611, 1
          %v3639 = vsel %vm433, %v3636, %v3638
          %v3640 = vrot.slane %v3612, 1
          %v3641 = vrot.slane %v3613, 1
          %v3642 = vsel %vm433, %v3640, %v3641
          %v3643 = vrot.slane %v3614, 1
          %v3644 = vsel %vm433, %v3641, %v3643
          %v3645 = vrot.slane %v3615, 1
          %v3646 = vrot.slane %v3616, 1
          %v3647 = vsel %vm433, %v3645, %v3646
          %v3648 = vrot.slane %v3617, 1
          %v3649 = vsel %vm433, %v3646, %v3648
          %v3658 = vadd.f32 %v3594, %v3632
          %v3659 = vadd.f32 %v3595, %v3634
          %v3660 = vadd.f32 %v3596, %v3637
          %v3661 = vadd.f32 %v3597, %v3639
          %v3662 = vadd.f32 %v3598, %v3642
          %v3663 = vadd.f32 %v3599, %v3644
          %v3664 = vadd.f32 %v3600, %v3647
          %v3665 = vadd.f32 %v3601, %v3649
          %v3666 = vlaneseq
          %v3667 = vshrl.u32 %v3666, 7
          %v3668 = vsub.s32 2, %v3667
          %v3669 = vrot.slane %v3588, %v3668
          %v3670 = vmul.f32 %v3571, %v3669
          %v3671 = vmul.f32 %v3572, %v3669
          %v3672 = vmul.f32 %v3573, %v3669
          %v3673 = vmul.f32 %v3575, %v3669
          %v3674 = vmul.f32 %v3576, %v3669
          %v3675 = vmul.f32 %v3577, %v3669
          %v3676 = vmul.f32 %v3579, %v3669
          %v3677 = vmul.f32 %v3580, %v3669
          %v3678 = vmul.f32 %v3581, %v3669
          %v3679 = vmul.f32 %v3583, %v3669
          %v3680 = vmul.f32 %v3584, %v3669
          %v3681 = vmul.f32 %v3585, %v3669
          %v3694 = vrot.slane %v3670, 2
          %v3695 = vrot.slane %v3671, 2
          %v3696 = vsel %vm498, %v3694, %v3695
          %v3697 = vrot.slane %v3672, 2
          %v3698 = vsel %vm498, %v3695, %v3697
          %v3699 = vrot.slane %v3673, 2
          %v3700 = vrot.slane %v3674, 2
          %v3701 = vsel %vm498, %v3699, %v3700
          %v3702 = vrot.slane %v3675, 2
          %v3703 = vsel %vm498, %v3700, %v3702
          %v3704 = vrot.slane %v3676, 2
          %v3705 = vrot.slane %v3677, 2
          %v3706 = vsel %vm498, %v3704, %v3705
          %v3707 = vrot.slane %v3678, 2
          %v3708 = vsel %vm498, %v3705, %v3707
          %v3709 = vrot.slane %v3679, 2
          %v3710 = vrot.slane %v3680, 2
          %v3711 = vsel %vm498, %v3709, %v3710
          %v3712 = vrot.slane %v3681, 2
          %v3713 = vsel %vm498, %v3710, %v3712
          %v3722 = vadd.f32 %v3658, %v3696
          %v3723 = vadd.f32 %v3659, %v3698
          %v3724 = vadd.f32 %v3660, %v3701
          %v3725 = vadd.f32 %v3661, %v3703
          %v3726 = vadd.f32 %v3662, %v3706
          %v3727 = vadd.f32 %v3663, %v3708
          %v3728 = vadd.f32 %v3664, %v3711
          %v3729 = vadd.f32 %v3665, %v3713
          %v3730 = vlaneseq
          %v3731 = vshrl.u32 %v3730, 7
          %v3732 = vsub.s32 3, %v3731
          %v3733 = vrot.slane %v3588, %v3732
          %v3734 = vmul.f32 %v3571, %v3733
          %v3735 = vmul.f32 %v3572, %v3733
          %v3736 = vmul.f32 %v3573, %v3733
          %v3737 = vmul.f32 %v3575, %v3733
          %v3738 = vmul.f32 %v3576, %v3733
          %v3739 = vmul.f32 %v3577, %v3733
          %v3740 = vmul.f32 %v3579, %v3733
          %v3741 = vmul.f32 %v3580, %v3733
          %v3742 = vmul.f32 %v3581, %v3733
          %v3743 = vmul.f32 %v3583, %v3733
          %v3744 = vmul.f32 %v3584, %v3733
          %v3745 = vmul.f32 %v3585, %v3733
          %v3758 = vrot.slane %v3734, 3
          %v3759 = vrot.slane %v3735, 3
          %v3760 = vsel %vm563, %v3758, %v3759
          %v3761 = vrot.slane %v3736, 3
          %v3762 = vsel %vm563, %v3759, %v3761
          %v3763 = vrot.slane %v3737, 3
          %v3764 = vrot.slane %v3738, 3
          %v3765 = vsel %vm563, %v3763, %v3764
          %v3766 = vrot.slane %v3739, 3
          %v3767 = vsel %vm563, %v3764, %v3766
          %v3768 = vrot.slane %v3740, 3
          %v3769 = vrot.slane %v3741, 3
          %v3770 = vsel %vm563, %v3768, %v3769
          %v3771 = vrot.slane %v3742, 3
          %v3772 = vsel %vm563, %v3769, %v3771
          %v3773 = vrot.slane %v3743, 3
          %v3774 = vrot.slane %v3744, 3
          %v3775 = vsel %vm563, %v3773, %v3774
          %v3776 = vrot.slane %v3745, 3
          %v3777 = vsel %vm563, %v3774, %v3776
          %v3786 = vadd.f32 %v3722, %v3760
          %v3787 = vadd.f32 %v3723, %v3762
          %v3788 = vadd.f32 %v3724, %v3765
          %v3789 = vadd.f32 %v3725, %v3767
          %v3790 = vadd.f32 %v3726, %v3770
          %v3791 = vadd.f32 %v3727, %v3772
          %v3792 = vadd.f32 %v3728, %v3775
          %v3793 = vadd.f32 %v3729, %v3777
          %v3794 = vlaneseq
          %v3795 = vshrl.u32 %v3794, 7
          %v3796 = vsub.s32 4, %v3795
          %v3797 = vrot.slane %v3588, %v3796
          %v3798 = vmul.f32 %v3571, %v3797
          %v3799 = vmul.f32 %v3572, %v3797
          %v3800 = vmul.f32 %v3573, %v3797
          %v3801 = vmul.f32 %v3575, %v3797
          %v3802 = vmul.f32 %v3576, %v3797
          %v3803 = vmul.f32 %v3577, %v3797
          %v3804 = vmul.f32 %v3579, %v3797
          %v3805 = vmul.f32 %v3580, %v3797
          %v3806 = vmul.f32 %v3581, %v3797
          %v3807 = vmul.f32 %v3583, %v3797
          %v3808 = vmul.f32 %v3584, %v3797
          %v3809 = vmul.f32 %v3585, %v3797
          %v3822 = vrot.slane %v3798, 4
          %v3823 = vrot.slane %v3799, 4
          %v3824 = vsel %vm628, %v3822, %v3823
          %v3825 = vrot.slane %v3800, 4
          %v3826 = vsel %vm628, %v3823, %v3825
          %v3827 = vrot.slane %v3801, 4
          %v3828 = vrot.slane %v3802, 4
          %v3829 = vsel %vm628, %v3827, %v3828
          %v3830 = vrot.slane %v3803, 4
          %v3831 = vsel %vm628, %v3828, %v3830
          %v3832 = vrot.slane %v3804, 4
          %v3833 = vrot.slane %v3805, 4
          %v3834 = vsel %vm628, %v3832, %v3833
          %v3835 = vrot.slane %v3806, 4
          %v3836 = vsel %vm628, %v3833, %v3835
          %v3837 = vrot.slane %v3807, 4
          %v3838 = vrot.slane %v3808, 4
          %v3839 = vsel %vm628, %v3837, %v3838
          %v3840 = vrot.slane %v3809, 4
          %v3841 = vsel %vm628, %v3838, %v3840
          %v3850 = vadd.f32 %v3786, %v3824
          %v3851 = vadd.f32 %v3787, %v3826
          %v3852 = vadd.f32 %v3788, %v3829
          %v3853 = vadd.f32 %v3789, %v3831
          %v3854 = vadd.f32 %v3790, %v3834
          %v3855 = vadd.f32 %v3791, %v3836
          %v3856 = vadd.f32 %v3792, %v3839
          %v3857 = vadd.f32 %v3793, %v3841
          %v3858 = vlaneseq
          %v3859 = vshrl.u32 %v3858, 7
          %v3860 = vsub.s32 5, %v3859
          %v3861 = vrot.slane %v3588, %v3860
          %v3862 = vmul.f32 %v3571, %v3861
          %v3863 = vmul.f32 %v3572, %v3861
          %v3864 = vmul.f32 %v3573, %v3861
          %v3865 = vmul.f32 %v3575, %v3861
          %v3866 = vmul.f32 %v3576, %v3861
          %v3867 = vmul.f32 %v3577, %v3861
          %v3868 = vmul.f32 %v3579, %v3861
          %v3869 = vmul.f32 %v3580, %v3861
          %v3870 = vmul.f32 %v3581, %v3861
          %v3871 = vmul.f32 %v3583, %v3861
          %v3872 = vmul.f32 %v3584, %v3861
          %v3873 = vmul.f32 %v3585, %v3861
          %v3886 = vrot.slane %v3862, 5
          %v3887 = vrot.slane %v3863, 5
          %v3888 = vsel %vm693, %v3886, %v3887
          %v3889 = vrot.slane %v3864, 5
          %v3890 = vsel %vm693, %v3887, %v3889
          %v3891 = vrot.slane %v3865, 5
          %v3892 = vrot.slane %v3866, 5
          %v3893 = vsel %vm693, %v3891, %v3892
          %v3894 = vrot.slane %v3867, 5
          %v3895 = vsel %vm693, %v3892, %v3894
          %v3896 = vrot.slane %v3868, 5
          %v3897 = vrot.slane %v3869, 5
          %v3898 = vsel %vm693, %v3896, %v3897
          %v3899 = vrot.slane %v3870, 5
          %v3900 = vsel %vm693, %v3897, %v3899
          %v3901 = vrot.slane %v3871, 5
          %v3902 = vrot.slane %v3872, 5
          %v3903 = vsel %vm693, %v3901, %v3902
          %v3904 = vrot.slane %v3873, 5
          %v3905 = vsel %vm693, %v3902, %v3904
          %v3914 = vadd.f32 %v3850, %v3888
          %v3915 = vadd.f32 %v3851, %v3890
          %v3916 = vadd.f32 %v3852, %v3893
          %v3917 = vadd.f32 %v3853, %v3895
          %v3918 = vadd.f32 %v3854, %v3898
          %v3919 = vadd.f32 %v3855, %v3900
          %v3920 = vadd.f32 %v3856, %v3903
          %v3921 = vadd.f32 %v3857, %v3905
          %v3922 = vlaneseq
          %v3923 = vshrl.u32 %v3922, 7
          %v3924 = vsub.s32 6, %v3923
          %v3925 = vrot.slane %v3588, %v3924
          %v3926 = vmul.f32 %v3571, %v3925
          %v3927 = vmul.f32 %v3572, %v3925
          %v3928 = vmul.f32 %v3573, %v3925
          %v3929 = vmul.f32 %v3575, %v3925
          %v3930 = vmul.f32 %v3576, %v3925
          %v3931 = vmul.f32 %v3577, %v3925
          %v3932 = vmul.f32 %v3579, %v3925
          %v3933 = vmul.f32 %v3580, %v3925
          %v3934 = vmul.f32 %v3581, %v3925
          %v3935 = vmul.f32 %v3583, %v3925
          %v3936 = vmul.f32 %v3584, %v3925
          %v3937 = vmul.f32 %v3585, %v3925
          %v3950 = vrot.slane %v3926, 6
          %v3951 = vrot.slane %v3927, 6
          %v3952 = vsel %vm758, %v3950, %v3951
          %v3953 = vrot.slane %v3928, 6
          %v3954 = vsel %vm758, %v3951, %v3953
          %v3955 = vrot.slane %v3929, 6
          %v3956 = vrot.slane %v3930, 6
          %v3957 = vsel %vm758, %v3955, %v3956
          %v3958 = vrot.slane %v3931, 6
          %v3959 = vsel %vm758, %v3956, %v3958
          %v3960 = vrot.slane %v3932, 6
          %v3961 = vrot.slane %v3933, 6
          %v3962 = vsel %vm758, %v3960, %v3961
          %v3963 = vrot.slane %v3934, 6
          %v3964 = vsel %vm758, %v3961, %v3963
          %v3965 = vrot.slane %v3935, 6
          %v3966 = vrot.slane %v3936, 6
          %v3967 = vsel %vm758, %v3965, %v3966
          %v3968 = vrot.slane %v3937, 6
          %v3969 = vsel %vm758, %v3966, %v3968
          %v3978 = vadd.f32 %v3914, %v3952
          %v3979 = vadd.f32 %v3915, %v3954
          %v3980 = vadd.f32 %v3916, %v3957
          %v3981 = vadd.f32 %v3917, %v3959
          %v3982 = vadd.f32 %v3918, %v3962
          %v3983 = vadd.f32 %v3919, %v3964
          %v3984 = vadd.f32 %v3920, %v3967
          %v3985 = vadd.f32 %v3921, %v3969
          %v3986 = vlaneseq
          %v3987 = vshrl.u32 %v3986, 7
          %v3988 = vsub.s32 7, %v3987
          %v3989 = vrot.slane %v3588, %v3988
          %v3990 = vmul.f32 %v3571, %v3989
          %v3991 = vmul.f32 %v3572, %v3989
          %v3992 = vmul.f32 %v3573, %v3989
          %v3993 = vmul.f32 %v3575, %v3989
          %v3994 = vmul.f32 %v3576, %v3989
          %v3995 = vmul.f32 %v3577, %v3989
          %v3996 = vmul.f32 %v3579, %v3989
          %v3997 = vmul.f32 %v3580, %v3989
          %v3998 = vmul.f32 %v3581, %v3989
          %v3999 = vmul.f32 %v3583, %v3989
          %v4000 = vmul.f32 %v3584, %v3989
          %v4001 = vmul.f32 %v3585, %v3989
          %v4014 = vrot.slane %v3990, 7
          %v4015 = vrot.slane %v3991, 7
          %v4016 = vsel %vm823, %v4014, %v4015
          %v4017 = vrot.slane %v3992, 7
          %v4018 = vsel %vm823, %v4015, %v4017
          %v4019 = vrot.slane %v3993, 7
          %v4020 = vrot.slane %v3994, 7
          %v4021 = vsel %vm823, %v4019, %v4020
          %v4022 = vrot.slane %v3995, 7
          %v4023 = vsel %vm823, %v4020, %v4022
          %v4024 = vrot.slane %v3996, 7
          %v4025 = vrot.slane %v3997, 7
          %v4026 = vsel %vm823, %v4024, %v4025
          %v4027 = vrot.slane %v3998, 7
          %v4028 = vsel %vm823, %v4025, %v4027
          %v4029 = vrot.slane %v3999, 7
          %v4030 = vrot.slane %v4000, 7
          %v4031 = vsel %vm823, %v4029, %v4030
          %v4032 = vrot.slane %v4001, 7
          %v4033 = vsel %vm823, %v4030, %v4032
          %v4042 = vadd.f32 %v3978, %v4016
          %v4043 = vadd.f32 %v3979, %v4018
          %v4044 = vadd.f32 %v3980, %v4021
          %v4045 = vadd.f32 %v3981, %v4023
          %v4046 = vadd.f32 %v3982, %v4026
          %v4047 = vadd.f32 %v3983, %v4028
          %v4048 = vadd.f32 %v3984, %v4031
          %v4049 = vadd.f32 %v3985, %v4033
          %v4050 = vlaneseq
          %v4051 = vshrl.u32 %v4050, 7
          %v4052 = vsub.s32 0, %v4051
          %v4053 = vrot.slane %v3589, %v4052
          %v4054 = vmul.f32 %v3572, %v4053
          %v4055 = vmul.f32 %v3573, %v4053
          %v4056 = vmul.f32 %v3576, %v4053
          %v4057 = vmul.f32 %v3577, %v4053
          %v4058 = vmul.f32 %v3580, %v4053
          %v4059 = vmul.f32 %v3581, %v4053
          %v4060 = vmul.f32 %v3584, %v4053
          %v4061 = vmul.f32 %v3585, %v4053
          %v4062 = vadd.f32 %v4042, %v4054
          %v4063 = vadd.f32 %v4043, %v4055
          %v4064 = vadd.f32 %v4044, %v4056
          %v4065 = vadd.f32 %v4045, %v4057
          %v4066 = vadd.f32 %v4046, %v4058
          %v4067 = vadd.f32 %v4047, %v4059
          %v4068 = vadd.f32 %v4048, %v4060
          %v4069 = vadd.f32 %v4049, %v4061
          %v4070 = vlaneseq
          %v4071 = vshrl.u32 %v4070, 7
          %v4072 = vsub.s32 1, %v4071
          %v4073 = vrot.slane %v3589, %v4072
          %v4074 = vmul.f32 %v3572, %v4073
          %v4075 = vmul.f32 %v3573, %v4073
          %v4076 = vmul.f32 %v3574, %v4073
          %v4077 = vmul.f32 %v3576, %v4073
          %v4078 = vmul.f32 %v3577, %v4073
          %v4079 = vmul.f32 %v3578, %v4073
          %v4080 = vmul.f32 %v3580, %v4073
          %v4081 = vmul.f32 %v3581, %v4073
          %v4082 = vmul.f32 %v3582, %v4073
          %v4083 = vmul.f32 %v3584, %v4073
          %v4084 = vmul.f32 %v3585, %v4073
          %v4085 = vmul.f32 %v3586, %v4073
          %v4098 = vrot.slane %v4074, 1
          %v4099 = vrot.slane %v4075, 1
          %v4100 = vsel %vm433, %v4098, %v4099
          %v4101 = vrot.slane %v4076, 1
          %v4102 = vsel %vm433, %v4099, %v4101
          %v4103 = vrot.slane %v4077, 1
          %v4104 = vrot.slane %v4078, 1
          %v4105 = vsel %vm433, %v4103, %v4104
          %v4106 = vrot.slane %v4079, 1
          %v4107 = vsel %vm433, %v4104, %v4106
          %v4108 = vrot.slane %v4080, 1
          %v4109 = vrot.slane %v4081, 1
          %v4110 = vsel %vm433, %v4108, %v4109
          %v4111 = vrot.slane %v4082, 1
          %v4112 = vsel %vm433, %v4109, %v4111
          %v4113 = vrot.slane %v4083, 1
          %v4114 = vrot.slane %v4084, 1
          %v4115 = vsel %vm433, %v4113, %v4114
          %v4116 = vrot.slane %v4085, 1
          %v4117 = vsel %vm433, %v4114, %v4116
          %v4126 = vadd.f32 %v4062, %v4100
          %v4127 = vadd.f32 %v4063, %v4102
          %v4128 = vadd.f32 %v4064, %v4105
          %v4129 = vadd.f32 %v4065, %v4107
          %v4130 = vadd.f32 %v4066, %v4110
          %v4131 = vadd.f32 %v4067, %v4112
          %v4132 = vadd.f32 %v4068, %v4115
          %v4133 = vadd.f32 %v4069, %v4117
          %v4134 = vlaneseq
          %v4135 = vshrl.u32 %v4134, 7
          %v4136 = vsub.s32 2, %v4135
          %v4137 = vrot.slane %v3589, %v4136
          %v4138 = vmul.f32 %v3572, %v4137
          %v4139 = vmul.f32 %v3573, %v4137
          %v4140 = vmul.f32 %v3574, %v4137
          %v4141 = vmul.f32 %v3576, %v4137
          %v4142 = vmul.f32 %v3577, %v4137
          %v4143 = vmul.f32 %v3578, %v4137
          %v4144 = vmul.f32 %v3580, %v4137
          %v4145 = vmul.f32 %v3581, %v4137
          %v4146 = vmul.f32 %v3582, %v4137
          %v4147 = vmul.f32 %v3584, %v4137
          %v4148 = vmul.f32 %v3585, %v4137
          %v4149 = vmul.f32 %v3586, %v4137
          %v4162 = vrot.slane %v4138, 2
          %v4163 = vrot.slane %v4139, 2
          %v4164 = vsel %vm498, %v4162, %v4163
          %v4165 = vrot.slane %v4140, 2
          %v4166 = vsel %vm498, %v4163, %v4165
          %v4167 = vrot.slane %v4141, 2
          %v4168 = vrot.slane %v4142, 2
          %v4169 = vsel %vm498, %v4167, %v4168
          %v4170 = vrot.slane %v4143, 2
          %v4171 = vsel %vm498, %v4168, %v4170
          %v4172 = vrot.slane %v4144, 2
          %v4173 = vrot.slane %v4145, 2
          %v4174 = vsel %vm498, %v4172, %v4173
          %v4175 = vrot.slane %v4146, 2
          %v4176 = vsel %vm498, %v4173, %v4175
          %v4177 = vrot.slane %v4147, 2
          %v4178 = vrot.slane %v4148, 2
          %v4179 = vsel %vm498, %v4177, %v4178
          %v4180 = vrot.slane %v4149, 2
          %v4181 = vsel %vm498, %v4178, %v4180
          %v4190 = vadd.f32 %v4126, %v4164
          %v4191 = vadd.f32 %v4127, %v4166
          %v4192 = vadd.f32 %v4128, %v4169
          %v4193 = vadd.f32 %v4129, %v4171
          %v4194 = vadd.f32 %v4130, %v4174
          %v4195 = vadd.f32 %v4131, %v4176
          %v4196 = vadd.f32 %v4132, %v4179
          %v4197 = vadd.f32 %v4133, %v4181
          %v4198 = vadd.f32 %v2922, %v4190
          %v4199 = vadd.f32 %v2923, %v4191
          %v4200 = vadd.f32 %v2924, %v4192
          %v4201 = vadd.f32 %v2925, %v4193
          %v4202 = vadd.f32 %v2926, %v4194
          %v4203 = vadd.f32 %v2927, %v4195
          %v4204 = vadd.f32 %v2928, %v4196
          %v4205 = vadd.f32 %v2929, %v4197
          %s4206 = sadd.s32 %s372, 6
          %s4207 = smul.u32 %s4206, 32
          %s4208 = scalar_lea.vmem %s358, %s4207
          %v4209 = vld [vmem:[%s4208] sm:$0xff]
          %v4210 = vld [vmem:[%s4208 + $0x8] sm:$0xff]
          %v4211 = vld [vmem:[%s4208 + $0x10] sm:$0xff]
          %v4212 = vld [vmem:[%s4208 + $0x18] sm:$0x3]
          %v4213 = vld [vmem:[%s4208 + $0x20] sm:$0xff]
          %v4214 = vld [vmem:[%s4208 + $0x28] sm:$0xff]
          %v4215 = vld [vmem:[%s4208 + $0x30] sm:$0xff]
          %v4216 = vld [vmem:[%s4208 + $0x38] sm:$0x3]
          %v4217 = vld [vmem:[%s4208 + $0x40] sm:$0xff]
          %v4218 = vld [vmem:[%s4208 + $0x48] sm:$0xff]
          %v4219 = vld [vmem:[%s4208 + $0x50] sm:$0xff]
          %v4220 = vld [vmem:[%s4208 + $0x58] sm:$0x3]
          %v4221 = vld [vmem:[%s4208 + $0x60] sm:$0xff]
          %v4222 = vld [vmem:[%s4208 + $0x68] sm:$0xff]
          %v4223 = vld [vmem:[%s4208 + $0x70] sm:$0xff]
          %v4224 = vld [vmem:[%s4208 + $0x78] sm:$0x3]
          %s4225 = scalar_lea.vmem %s1, 96
          %v4226 = vld [vmem:[%s4225] sm:$0xff]
          %v4227 = vld [vmem:[%s4225 + $0x8] sm:$0x7]
          %v4228 = vlaneseq
          %v4229 = vshrl.u32 %v4228, 7
          %v4230 = vsub.s32 0, %v4229
          %v4231 = vrot.slane %v4226, %v4230
          %v4232 = vmul.f32 %v4209, %v4231
          %v4233 = vmul.f32 %v4210, %v4231
          %v4234 = vmul.f32 %v4213, %v4231
          %v4235 = vmul.f32 %v4214, %v4231
          %v4236 = vmul.f32 %v4217, %v4231
          %v4237 = vmul.f32 %v4218, %v4231
          %v4238 = vmul.f32 %v4221, %v4231
          %v4239 = vmul.f32 %v4222, %v4231
          %v4240 = vlaneseq
          %v4241 = vshrl.u32 %v4240, 7
          %v4242 = vsub.s32 1, %v4241
          %v4243 = vrot.slane %v4226, %v4242
          %v4244 = vmul.f32 %v4209, %v4243
          %v4245 = vmul.f32 %v4210, %v4243
          %v4246 = vmul.f32 %v4211, %v4243
          %v4247 = vmul.f32 %v4213, %v4243
          %v4248 = vmul.f32 %v4214, %v4243
          %v4249 = vmul.f32 %v4215, %v4243
          %v4250 = vmul.f32 %v4217, %v4243
          %v4251 = vmul.f32 %v4218, %v4243
          %v4252 = vmul.f32 %v4219, %v4243
          %v4253 = vmul.f32 %v4221, %v4243
          %v4254 = vmul.f32 %v4222, %v4243
          %v4255 = vmul.f32 %v4223, %v4243
          %v4268 = vrot.slane %v4244, 1
          %v4269 = vrot.slane %v4245, 1
          %v4270 = vsel %vm433, %v4268, %v4269
          %v4271 = vrot.slane %v4246, 1
          %v4272 = vsel %vm433, %v4269, %v4271
          %v4273 = vrot.slane %v4247, 1
          %v4274 = vrot.slane %v4248, 1
          %v4275 = vsel %vm433, %v4273, %v4274
          %v4276 = vrot.slane %v4249, 1
          %v4277 = vsel %vm433, %v4274, %v4276
          %v4278 = vrot.slane %v4250, 1
          %v4279 = vrot.slane %v4251, 1
          %v4280 = vsel %vm433, %v4278, %v4279
          %v4281 = vrot.slane %v4252, 1
          %v4282 = vsel %vm433, %v4279, %v4281
          %v4283 = vrot.slane %v4253, 1
          %v4284 = vrot.slane %v4254, 1
          %v4285 = vsel %vm433, %v4283, %v4284
          %v4286 = vrot.slane %v4255, 1
          %v4287 = vsel %vm433, %v4284, %v4286
          %v4296 = vadd.f32 %v4232, %v4270
          %v4297 = vadd.f32 %v4233, %v4272
          %v4298 = vadd.f32 %v4234, %v4275
          %v4299 = vadd.f32 %v4235, %v4277
          %v4300 = vadd.f32 %v4236, %v4280
          %v4301 = vadd.f32 %v4237, %v4282
          %v4302 = vadd.f32 %v4238, %v4285
          %v4303 = vadd.f32 %v4239, %v4287
          %v4304 = vlaneseq
          %v4305 = vshrl.u32 %v4304, 7
          %v4306 = vsub.s32 2, %v4305
          %v4307 = vrot.slane %v4226, %v4306
          %v4308 = vmul.f32 %v4209, %v4307
          %v4309 = vmul.f32 %v4210, %v4307
          %v4310 = vmul.f32 %v4211, %v4307
          %v4311 = vmul.f32 %v4213, %v4307
          %v4312 = vmul.f32 %v4214, %v4307
          %v4313 = vmul.f32 %v4215, %v4307
          %v4314 = vmul.f32 %v4217, %v4307
          %v4315 = vmul.f32 %v4218, %v4307
          %v4316 = vmul.f32 %v4219, %v4307
          %v4317 = vmul.f32 %v4221, %v4307
          %v4318 = vmul.f32 %v4222, %v4307
          %v4319 = vmul.f32 %v4223, %v4307
          %v4332 = vrot.slane %v4308, 2
          %v4333 = vrot.slane %v4309, 2
          %v4334 = vsel %vm498, %v4332, %v4333
          %v4335 = vrot.slane %v4310, 2
          %v4336 = vsel %vm498, %v4333, %v4335
          %v4337 = vrot.slane %v4311, 2
          %v4338 = vrot.slane %v4312, 2
          %v4339 = vsel %vm498, %v4337, %v4338
          %v4340 = vrot.slane %v4313, 2
          %v4341 = vsel %vm498, %v4338, %v4340
          %v4342 = vrot.slane %v4314, 2
          %v4343 = vrot.slane %v4315, 2
          %v4344 = vsel %vm498, %v4342, %v4343
          %v4345 = vrot.slane %v4316, 2
          %v4346 = vsel %vm498, %v4343, %v4345
          %v4347 = vrot.slane %v4317, 2
          %v4348 = vrot.slane %v4318, 2
          %v4349 = vsel %vm498, %v4347, %v4348
          %v4350 = vrot.slane %v4319, 2
          %v4351 = vsel %vm498, %v4348, %v4350
          %v4360 = vadd.f32 %v4296, %v4334
          %v4361 = vadd.f32 %v4297, %v4336
          %v4362 = vadd.f32 %v4298, %v4339
          %v4363 = vadd.f32 %v4299, %v4341
          %v4364 = vadd.f32 %v4300, %v4344
          %v4365 = vadd.f32 %v4301, %v4346
          %v4366 = vadd.f32 %v4302, %v4349
          %v4367 = vadd.f32 %v4303, %v4351
          %v4368 = vlaneseq
          %v4369 = vshrl.u32 %v4368, 7
          %v4370 = vsub.s32 3, %v4369
          %v4371 = vrot.slane %v4226, %v4370
          %v4372 = vmul.f32 %v4209, %v4371
          %v4373 = vmul.f32 %v4210, %v4371
          %v4374 = vmul.f32 %v4211, %v4371
          %v4375 = vmul.f32 %v4213, %v4371
          %v4376 = vmul.f32 %v4214, %v4371
          %v4377 = vmul.f32 %v4215, %v4371
          %v4378 = vmul.f32 %v4217, %v4371
          %v4379 = vmul.f32 %v4218, %v4371
          %v4380 = vmul.f32 %v4219, %v4371
          %v4381 = vmul.f32 %v4221, %v4371
          %v4382 = vmul.f32 %v4222, %v4371
          %v4383 = vmul.f32 %v4223, %v4371
          %v4396 = vrot.slane %v4372, 3
          %v4397 = vrot.slane %v4373, 3
          %v4398 = vsel %vm563, %v4396, %v4397
          %v4399 = vrot.slane %v4374, 3
          %v4400 = vsel %vm563, %v4397, %v4399
          %v4401 = vrot.slane %v4375, 3
          %v4402 = vrot.slane %v4376, 3
          %v4403 = vsel %vm563, %v4401, %v4402
          %v4404 = vrot.slane %v4377, 3
          %v4405 = vsel %vm563, %v4402, %v4404
          %v4406 = vrot.slane %v4378, 3
          %v4407 = vrot.slane %v4379, 3
          %v4408 = vsel %vm563, %v4406, %v4407
          %v4409 = vrot.slane %v4380, 3
          %v4410 = vsel %vm563, %v4407, %v4409
          %v4411 = vrot.slane %v4381, 3
          %v4412 = vrot.slane %v4382, 3
          %v4413 = vsel %vm563, %v4411, %v4412
          %v4414 = vrot.slane %v4383, 3
          %v4415 = vsel %vm563, %v4412, %v4414
          %v4424 = vadd.f32 %v4360, %v4398
          %v4425 = vadd.f32 %v4361, %v4400
          %v4426 = vadd.f32 %v4362, %v4403
          %v4427 = vadd.f32 %v4363, %v4405
          %v4428 = vadd.f32 %v4364, %v4408
          %v4429 = vadd.f32 %v4365, %v4410
          %v4430 = vadd.f32 %v4366, %v4413
          %v4431 = vadd.f32 %v4367, %v4415
          %v4432 = vlaneseq
          %v4433 = vshrl.u32 %v4432, 7
          %v4434 = vsub.s32 4, %v4433
          %v4435 = vrot.slane %v4226, %v4434
          %v4436 = vmul.f32 %v4209, %v4435
          %v4437 = vmul.f32 %v4210, %v4435
          %v4438 = vmul.f32 %v4211, %v4435
          %v4439 = vmul.f32 %v4213, %v4435
          %v4440 = vmul.f32 %v4214, %v4435
          %v4441 = vmul.f32 %v4215, %v4435
          %v4442 = vmul.f32 %v4217, %v4435
          %v4443 = vmul.f32 %v4218, %v4435
          %v4444 = vmul.f32 %v4219, %v4435
          %v4445 = vmul.f32 %v4221, %v4435
          %v4446 = vmul.f32 %v4222, %v4435
          %v4447 = vmul.f32 %v4223, %v4435
          %v4460 = vrot.slane %v4436, 4
          %v4461 = vrot.slane %v4437, 4
          %v4462 = vsel %vm628, %v4460, %v4461
          %v4463 = vrot.slane %v4438, 4
          %v4464 = vsel %vm628, %v4461, %v4463
          %v4465 = vrot.slane %v4439, 4
          %v4466 = vrot.slane %v4440, 4
          %v4467 = vsel %vm628, %v4465, %v4466
          %v4468 = vrot.slane %v4441, 4
          %v4469 = vsel %vm628, %v4466, %v4468
          %v4470 = vrot.slane %v4442, 4
          %v4471 = vrot.slane %v4443, 4
          %v4472 = vsel %vm628, %v4470, %v4471
          %v4473 = vrot.slane %v4444, 4
          %v4474 = vsel %vm628, %v4471, %v4473
          %v4475 = vrot.slane %v4445, 4
          %v4476 = vrot.slane %v4446, 4
          %v4477 = vsel %vm628, %v4475, %v4476
          %v4478 = vrot.slane %v4447, 4
          %v4479 = vsel %vm628, %v4476, %v4478
          %v4488 = vadd.f32 %v4424, %v4462
          %v4489 = vadd.f32 %v4425, %v4464
          %v4490 = vadd.f32 %v4426, %v4467
          %v4491 = vadd.f32 %v4427, %v4469
          %v4492 = vadd.f32 %v4428, %v4472
          %v4493 = vadd.f32 %v4429, %v4474
          %v4494 = vadd.f32 %v4430, %v4477
          %v4495 = vadd.f32 %v4431, %v4479
          %v4496 = vlaneseq
          %v4497 = vshrl.u32 %v4496, 7
          %v4498 = vsub.s32 5, %v4497
          %v4499 = vrot.slane %v4226, %v4498
          %v4500 = vmul.f32 %v4209, %v4499
          %v4501 = vmul.f32 %v4210, %v4499
          %v4502 = vmul.f32 %v4211, %v4499
          %v4503 = vmul.f32 %v4213, %v4499
          %v4504 = vmul.f32 %v4214, %v4499
          %v4505 = vmul.f32 %v4215, %v4499
          %v4506 = vmul.f32 %v4217, %v4499
          %v4507 = vmul.f32 %v4218, %v4499
          %v4508 = vmul.f32 %v4219, %v4499
          %v4509 = vmul.f32 %v4221, %v4499
          %v4510 = vmul.f32 %v4222, %v4499
          %v4511 = vmul.f32 %v4223, %v4499
          %v4524 = vrot.slane %v4500, 5
          %v4525 = vrot.slane %v4501, 5
          %v4526 = vsel %vm693, %v4524, %v4525
          %v4527 = vrot.slane %v4502, 5
          %v4528 = vsel %vm693, %v4525, %v4527
          %v4529 = vrot.slane %v4503, 5
          %v4530 = vrot.slane %v4504, 5
          %v4531 = vsel %vm693, %v4529, %v4530
          %v4532 = vrot.slane %v4505, 5
          %v4533 = vsel %vm693, %v4530, %v4532
          %v4534 = vrot.slane %v4506, 5
          %v4535 = vrot.slane %v4507, 5
          %v4536 = vsel %vm693, %v4534, %v4535
          %v4537 = vrot.slane %v4508, 5
          %v4538 = vsel %vm693, %v4535, %v4537
          %v4539 = vrot.slane %v4509, 5
          %v4540 = vrot.slane %v4510, 5
          %v4541 = vsel %vm693, %v4539, %v4540
          %v4542 = vrot.slane %v4511, 5
          %v4543 = vsel %vm693, %v4540, %v4542
          %v4552 = vadd.f32 %v4488, %v4526
          %v4553 = vadd.f32 %v4489, %v4528
          %v4554 = vadd.f32 %v4490, %v4531
          %v4555 = vadd.f32 %v4491, %v4533
          %v4556 = vadd.f32 %v4492, %v4536
          %v4557 = vadd.f32 %v4493, %v4538
          %v4558 = vadd.f32 %v4494, %v4541
          %v4559 = vadd.f32 %v4495, %v4543
          %v4560 = vlaneseq
          %v4561 = vshrl.u32 %v4560, 7
          %v4562 = vsub.s32 6, %v4561
          %v4563 = vrot.slane %v4226, %v4562
          %v4564 = vmul.f32 %v4209, %v4563
          %v4565 = vmul.f32 %v4210, %v4563
          %v4566 = vmul.f32 %v4211, %v4563
          %v4567 = vmul.f32 %v4213, %v4563
          %v4568 = vmul.f32 %v4214, %v4563
          %v4569 = vmul.f32 %v4215, %v4563
          %v4570 = vmul.f32 %v4217, %v4563
          %v4571 = vmul.f32 %v4218, %v4563
          %v4572 = vmul.f32 %v4219, %v4563
          %v4573 = vmul.f32 %v4221, %v4563
          %v4574 = vmul.f32 %v4222, %v4563
          %v4575 = vmul.f32 %v4223, %v4563
          %v4588 = vrot.slane %v4564, 6
          %v4589 = vrot.slane %v4565, 6
          %v4590 = vsel %vm758, %v4588, %v4589
          %v4591 = vrot.slane %v4566, 6
          %v4592 = vsel %vm758, %v4589, %v4591
          %v4593 = vrot.slane %v4567, 6
          %v4594 = vrot.slane %v4568, 6
          %v4595 = vsel %vm758, %v4593, %v4594
          %v4596 = vrot.slane %v4569, 6
          %v4597 = vsel %vm758, %v4594, %v4596
          %v4598 = vrot.slane %v4570, 6
          %v4599 = vrot.slane %v4571, 6
          %v4600 = vsel %vm758, %v4598, %v4599
          %v4601 = vrot.slane %v4572, 6
          %v4602 = vsel %vm758, %v4599, %v4601
          %v4603 = vrot.slane %v4573, 6
          %v4604 = vrot.slane %v4574, 6
          %v4605 = vsel %vm758, %v4603, %v4604
          %v4606 = vrot.slane %v4575, 6
          %v4607 = vsel %vm758, %v4604, %v4606
          %v4616 = vadd.f32 %v4552, %v4590
          %v4617 = vadd.f32 %v4553, %v4592
          %v4618 = vadd.f32 %v4554, %v4595
          %v4619 = vadd.f32 %v4555, %v4597
          %v4620 = vadd.f32 %v4556, %v4600
          %v4621 = vadd.f32 %v4557, %v4602
          %v4622 = vadd.f32 %v4558, %v4605
          %v4623 = vadd.f32 %v4559, %v4607
          %v4624 = vlaneseq
          %v4625 = vshrl.u32 %v4624, 7
          %v4626 = vsub.s32 7, %v4625
          %v4627 = vrot.slane %v4226, %v4626
          %v4628 = vmul.f32 %v4209, %v4627
          %v4629 = vmul.f32 %v4210, %v4627
          %v4630 = vmul.f32 %v4211, %v4627
          %v4631 = vmul.f32 %v4213, %v4627
          %v4632 = vmul.f32 %v4214, %v4627
          %v4633 = vmul.f32 %v4215, %v4627
          %v4634 = vmul.f32 %v4217, %v4627
          %v4635 = vmul.f32 %v4218, %v4627
          %v4636 = vmul.f32 %v4219, %v4627
          %v4637 = vmul.f32 %v4221, %v4627
          %v4638 = vmul.f32 %v4222, %v4627
          %v4639 = vmul.f32 %v4223, %v4627
          %v4652 = vrot.slane %v4628, 7
          %v4653 = vrot.slane %v4629, 7
          %v4654 = vsel %vm823, %v4652, %v4653
          %v4655 = vrot.slane %v4630, 7
          %v4656 = vsel %vm823, %v4653, %v4655
          %v4657 = vrot.slane %v4631, 7
          %v4658 = vrot.slane %v4632, 7
          %v4659 = vsel %vm823, %v4657, %v4658
          %v4660 = vrot.slane %v4633, 7
          %v4661 = vsel %vm823, %v4658, %v4660
          %v4662 = vrot.slane %v4634, 7
          %v4663 = vrot.slane %v4635, 7
          %v4664 = vsel %vm823, %v4662, %v4663
          %v4665 = vrot.slane %v4636, 7
          %v4666 = vsel %vm823, %v4663, %v4665
          %v4667 = vrot.slane %v4637, 7
          %v4668 = vrot.slane %v4638, 7
          %v4669 = vsel %vm823, %v4667, %v4668
          %v4670 = vrot.slane %v4639, 7
          %v4671 = vsel %vm823, %v4668, %v4670
          %v4680 = vadd.f32 %v4616, %v4654
          %v4681 = vadd.f32 %v4617, %v4656
          %v4682 = vadd.f32 %v4618, %v4659
          %v4683 = vadd.f32 %v4619, %v4661
          %v4684 = vadd.f32 %v4620, %v4664
          %v4685 = vadd.f32 %v4621, %v4666
          %v4686 = vadd.f32 %v4622, %v4669
          %v4687 = vadd.f32 %v4623, %v4671
          %v4688 = vlaneseq
          %v4689 = vshrl.u32 %v4688, 7
          %v4690 = vsub.s32 0, %v4689
          %v4691 = vrot.slane %v4227, %v4690
          %v4692 = vmul.f32 %v4210, %v4691
          %v4693 = vmul.f32 %v4211, %v4691
          %v4694 = vmul.f32 %v4214, %v4691
          %v4695 = vmul.f32 %v4215, %v4691
          %v4696 = vmul.f32 %v4218, %v4691
          %v4697 = vmul.f32 %v4219, %v4691
          %v4698 = vmul.f32 %v4222, %v4691
          %v4699 = vmul.f32 %v4223, %v4691
          %v4700 = vadd.f32 %v4680, %v4692
          %v4701 = vadd.f32 %v4681, %v4693
          %v4702 = vadd.f32 %v4682, %v4694
          %v4703 = vadd.f32 %v4683, %v4695
          %v4704 = vadd.f32 %v4684, %v4696
          %v4705 = vadd.f32 %v4685, %v4697
          %v4706 = vadd.f32 %v4686, %v4698
          %v4707 = vadd.f32 %v4687, %v4699
          %v4708 = vlaneseq
          %v4709 = vshrl.u32 %v4708, 7
          %v4710 = vsub.s32 1, %v4709
          %v4711 = vrot.slane %v4227, %v4710
          %v4712 = vmul.f32 %v4210, %v4711
          %v4713 = vmul.f32 %v4211, %v4711
          %v4714 = vmul.f32 %v4212, %v4711
          %v4715 = vmul.f32 %v4214, %v4711
          %v4716 = vmul.f32 %v4215, %v4711
          %v4717 = vmul.f32 %v4216, %v4711
          %v4718 = vmul.f32 %v4218, %v4711
          %v4719 = vmul.f32 %v4219, %v4711
          %v4720 = vmul.f32 %v4220, %v4711
          %v4721 = vmul.f32 %v4222, %v4711
          %v4722 = vmul.f32 %v4223, %v4711
          %v4723 = vmul.f32 %v4224, %v4711
          %v4736 = vrot.slane %v4712, 1
          %v4737 = vrot.slane %v4713, 1
          %v4738 = vsel %vm433, %v4736, %v4737
          %v4739 = vrot.slane %v4714, 1
          %v4740 = vsel %vm433, %v4737, %v4739
          %v4741 = vrot.slane %v4715, 1
          %v4742 = vrot.slane %v4716, 1
          %v4743 = vsel %vm433, %v4741, %v4742
          %v4744 = vrot.slane %v4717, 1
          %v4745 = vsel %vm433, %v4742, %v4744
          %v4746 = vrot.slane %v4718, 1
          %v4747 = vrot.slane %v4719, 1
          %v4748 = vsel %vm433, %v4746, %v4747
          %v4749 = vrot.slane %v4720, 1
          %v4750 = vsel %vm433, %v4747, %v4749
          %v4751 = vrot.slane %v4721, 1
          %v4752 = vrot.slane %v4722, 1
          %v4753 = vsel %vm433, %v4751, %v4752
          %v4754 = vrot.slane %v4723, 1
          %v4755 = vsel %vm433, %v4752, %v4754
          %v4764 = vadd.f32 %v4700, %v4738
          %v4765 = vadd.f32 %v4701, %v4740
          %v4766 = vadd.f32 %v4702, %v4743
          %v4767 = vadd.f32 %v4703, %v4745
          %v4768 = vadd.f32 %v4704, %v4748
          %v4769 = vadd.f32 %v4705, %v4750
          %v4770 = vadd.f32 %v4706, %v4753
          %v4771 = vadd.f32 %v4707, %v4755
          %v4772 = vlaneseq
          %v4773 = vshrl.u32 %v4772, 7
          %v4774 = vsub.s32 2, %v4773
          %v4775 = vrot.slane %v4227, %v4774
          %v4776 = vmul.f32 %v4210, %v4775
          %v4777 = vmul.f32 %v4211, %v4775
          %v4778 = vmul.f32 %v4212, %v4775
          %v4779 = vmul.f32 %v4214, %v4775
          %v4780 = vmul.f32 %v4215, %v4775
          %v4781 = vmul.f32 %v4216, %v4775
          %v4782 = vmul.f32 %v4218, %v4775
          %v4783 = vmul.f32 %v4219, %v4775
          %v4784 = vmul.f32 %v4220, %v4775
          %v4785 = vmul.f32 %v4222, %v4775
          %v4786 = vmul.f32 %v4223, %v4775
          %v4787 = vmul.f32 %v4224, %v4775
          %v4800 = vrot.slane %v4776, 2
          %v4801 = vrot.slane %v4777, 2
          %v4802 = vsel %vm498, %v4800, %v4801
          %v4803 = vrot.slane %v4778, 2
          %v4804 = vsel %vm498, %v4801, %v4803
          %v4805 = vrot.slane %v4779, 2
          %v4806 = vrot.slane %v4780, 2
          %v4807 = vsel %vm498, %v4805, %v4806
          %v4808 = vrot.slane %v4781, 2
          %v4809 = vsel %vm498, %v4806, %v4808
          %v4810 = vrot.slane %v4782, 2
          %v4811 = vrot.slane %v4783, 2
          %v4812 = vsel %vm498, %v4810, %v4811
          %v4813 = vrot.slane %v4784, 2
          %v4814 = vsel %vm498, %v4811, %v4813
          %v4815 = vrot.slane %v4785, 2
          %v4816 = vrot.slane %v4786, 2
          %v4817 = vsel %vm498, %v4815, %v4816
          %v4818 = vrot.slane %v4787, 2
          %v4819 = vsel %vm498, %v4816, %v4818
          %v4828 = vadd.f32 %v4764, %v4802
          %v4829 = vadd.f32 %v4765, %v4804
          %v4830 = vadd.f32 %v4766, %v4807
          %v4831 = vadd.f32 %v4767, %v4809
          %v4832 = vadd.f32 %v4768, %v4812
          %v4833 = vadd.f32 %v4769, %v4814
          %v4834 = vadd.f32 %v4770, %v4817
          %v4835 = vadd.f32 %v4771, %v4819
          %v4836 = vadd.f32 %v3560, %v4828
          %v4837 = vadd.f32 %v3561, %v4829
          %v4838 = vadd.f32 %v3562, %v4830
          %v4839 = vadd.f32 %v3563, %v4831
          %v4840 = vadd.f32 %v3564, %v4832
          %v4841 = vadd.f32 %v3565, %v4833
          %v4842 = vadd.f32 %v3566, %v4834
          %v4843 = vadd.f32 %v3567, %v4835
          %s4844 = sadd.s32 %s372, 7
          %s4845 = smul.u32 %s4844, 32
          %s4846 = scalar_lea.vmem %s358, %s4845
          %v4847 = vld [vmem:[%s4846] sm:$0xff]
          %v4848 = vld [vmem:[%s4846 + $0x8] sm:$0xff]
          %v4849 = vld [vmem:[%s4846 + $0x10] sm:$0xff]
          %v4850 = vld [vmem:[%s4846 + $0x18] sm:$0x3]
          %v4851 = vld [vmem:[%s4846 + $0x20] sm:$0xff]
          %v4852 = vld [vmem:[%s4846 + $0x28] sm:$0xff]
          %v4853 = vld [vmem:[%s4846 + $0x30] sm:$0xff]
          %v4854 = vld [vmem:[%s4846 + $0x38] sm:$0x3]
          %v4855 = vld [vmem:[%s4846 + $0x40] sm:$0xff]
          %v4856 = vld [vmem:[%s4846 + $0x48] sm:$0xff]
          %v4857 = vld [vmem:[%s4846 + $0x50] sm:$0xff]
          %v4858 = vld [vmem:[%s4846 + $0x58] sm:$0x3]
          %v4859 = vld [vmem:[%s4846 + $0x60] sm:$0xff]
          %v4860 = vld [vmem:[%s4846 + $0x68] sm:$0xff]
          %v4861 = vld [vmem:[%s4846 + $0x70] sm:$0xff]
          %v4862 = vld [vmem:[%s4846 + $0x78] sm:$0x3]
          %s4863 = scalar_lea.vmem %s1, 112
          %v4864 = vld [vmem:[%s4863] sm:$0xff]
          %v4865 = vld [vmem:[%s4863 + $0x8] sm:$0x7]
          %v4866 = vlaneseq
          %v4867 = vshrl.u32 %v4866, 7
          %v4868 = vsub.s32 0, %v4867
          %v4869 = vrot.slane %v4864, %v4868
          %v4870 = vmul.f32 %v4847, %v4869
          %v4871 = vmul.f32 %v4848, %v4869
          %v4872 = vmul.f32 %v4851, %v4869
          %v4873 = vmul.f32 %v4852, %v4869
          %v4874 = vmul.f32 %v4855, %v4869
          %v4875 = vmul.f32 %v4856, %v4869
          %v4876 = vmul.f32 %v4859, %v4869
          %v4877 = vmul.f32 %v4860, %v4869
          %v4878 = vlaneseq
          %v4879 = vshrl.u32 %v4878, 7
          %v4880 = vsub.s32 1, %v4879
          %v4881 = vrot.slane %v4864, %v4880
          %v4882 = vmul.f32 %v4847, %v4881
          %v4883 = vmul.f32 %v4848, %v4881
          %v4884 = vmul.f32 %v4849, %v4881
          %v4885 = vmul.f32 %v4851, %v4881
          %v4886 = vmul.f32 %v4852, %v4881
          %v4887 = vmul.f32 %v4853, %v4881
          %v4888 = vmul.f32 %v4855, %v4881
          %v4889 = vmul.f32 %v4856, %v4881
          %v4890 = vmul.f32 %v4857, %v4881
          %v4891 = vmul.f32 %v4859, %v4881
          %v4892 = vmul.f32 %v4860, %v4881
          %v4893 = vmul.f32 %v4861, %v4881
          %v4906 = vrot.slane %v4882, 1
          %v4907 = vrot.slane %v4883, 1
          %v4908 = vsel %vm433, %v4906, %v4907
          %v4909 = vrot.slane %v4884, 1
          %v4910 = vsel %vm433, %v4907, %v4909
          %v4911 = vrot.slane %v4885, 1
          %v4912 = vrot.slane %v4886, 1
          %v4913 = vsel %vm433, %v4911, %v4912
          %v4914 = vrot.slane %v4887, 1
          %v4915 = vsel %vm433, %v4912, %v4914
          %v4916 = vrot.slane %v4888, 1
          %v4917 = vrot.slane %v4889, 1
          %v4918 = vsel %vm433, %v4916, %v4917
          %v4919 = vrot.slane %v4890, 1
          %v4920 = vsel %vm433, %v4917, %v4919
          %v4921 = vrot.slane %v4891, 1
          %v4922 = vrot.slane %v4892, 1
          %v4923 = vsel %vm433, %v4921, %v4922
          %v4924 = vrot.slane %v4893, 1
          %v4925 = vsel %vm433, %v4922, %v4924
          %v4934 = vadd.f32 %v4870, %v4908
          %v4935 = vadd.f32 %v4871, %v4910
          %v4936 = vadd.f32 %v4872, %v4913
          %v4937 = vadd.f32 %v4873, %v4915
          %v4938 = vadd.f32 %v4874, %v4918
          %v4939 = vadd.f32 %v4875, %v4920
          %v4940 = vadd.f32 %v4876, %v4923
          %v4941 = vadd.f32 %v4877, %v4925
          %v4942 = vlaneseq
          %v4943 = vshrl.u32 %v4942, 7
          %v4944 = vsub.s32 2, %v4943
          %v4945 = vrot.slane %v4864, %v4944
          %v4946 = vmul.f32 %v4847, %v4945
          %v4947 = vmul.f32 %v4848, %v4945
          %v4948 = vmul.f32 %v4849, %v4945
          %v4949 = vmul.f32 %v4851, %v4945
          %v4950 = vmul.f32 %v4852, %v4945
          %v4951 = vmul.f32 %v4853, %v4945
          %v4952 = vmul.f32 %v4855, %v4945
          %v4953 = vmul.f32 %v4856, %v4945
          %v4954 = vmul.f32 %v4857, %v4945
          %v4955 = vmul.f32 %v4859, %v4945
          %v4956 = vmul.f32 %v4860, %v4945
          %v4957 = vmul.f32 %v4861, %v4945
          %v4970 = vrot.slane %v4946, 2
          %v4971 = vrot.slane %v4947, 2
          %v4972 = vsel %vm498, %v4970, %v4971
          %v4973 = vrot.slane %v4948, 2
          %v4974 = vsel %vm498, %v4971, %v4973
          %v4975 = vrot.slane %v4949, 2
          %v4976 = vrot.slane %v4950, 2
          %v4977 = vsel %vm498, %v4975, %v4976
          %v4978 = vrot.slane %v4951, 2
          %v4979 = vsel %vm498, %v4976, %v4978
          %v4980 = vrot.slane %v4952, 2
          %v4981 = vrot.slane %v4953, 2
          %v4982 = vsel %vm498, %v4980, %v4981
          %v4983 = vrot.slane %v4954, 2
          %v4984 = vsel %vm498, %v4981, %v4983
          %v4985 = vrot.slane %v4955, 2
          %v4986 = vrot.slane %v4956, 2
          %v4987 = vsel %vm498, %v4985, %v4986
          %v4988 = vrot.slane %v4957, 2
          %v4989 = vsel %vm498, %v4986, %v4988
          %v4998 = vadd.f32 %v4934, %v4972
          %v4999 = vadd.f32 %v4935, %v4974
          %v5000 = vadd.f32 %v4936, %v4977
          %v5001 = vadd.f32 %v4937, %v4979
          %v5002 = vadd.f32 %v4938, %v4982
          %v5003 = vadd.f32 %v4939, %v4984
          %v5004 = vadd.f32 %v4940, %v4987
          %v5005 = vadd.f32 %v4941, %v4989
          %v5006 = vlaneseq
          %v5007 = vshrl.u32 %v5006, 7
          %v5008 = vsub.s32 3, %v5007
          %v5009 = vrot.slane %v4864, %v5008
          %v5010 = vmul.f32 %v4847, %v5009
          %v5011 = vmul.f32 %v4848, %v5009
          %v5012 = vmul.f32 %v4849, %v5009
          %v5013 = vmul.f32 %v4851, %v5009
          %v5014 = vmul.f32 %v4852, %v5009
          %v5015 = vmul.f32 %v4853, %v5009
          %v5016 = vmul.f32 %v4855, %v5009
          %v5017 = vmul.f32 %v4856, %v5009
          %v5018 = vmul.f32 %v4857, %v5009
          %v5019 = vmul.f32 %v4859, %v5009
          %v5020 = vmul.f32 %v4860, %v5009
          %v5021 = vmul.f32 %v4861, %v5009
          %v5034 = vrot.slane %v5010, 3
          %v5035 = vrot.slane %v5011, 3
          %v5036 = vsel %vm563, %v5034, %v5035
          %v5037 = vrot.slane %v5012, 3
          %v5038 = vsel %vm563, %v5035, %v5037
          %v5039 = vrot.slane %v5013, 3
          %v5040 = vrot.slane %v5014, 3
          %v5041 = vsel %vm563, %v5039, %v5040
          %v5042 = vrot.slane %v5015, 3
          %v5043 = vsel %vm563, %v5040, %v5042
          %v5044 = vrot.slane %v5016, 3
          %v5045 = vrot.slane %v5017, 3
          %v5046 = vsel %vm563, %v5044, %v5045
          %v5047 = vrot.slane %v5018, 3
          %v5048 = vsel %vm563, %v5045, %v5047
          %v5049 = vrot.slane %v5019, 3
          %v5050 = vrot.slane %v5020, 3
          %v5051 = vsel %vm563, %v5049, %v5050
          %v5052 = vrot.slane %v5021, 3
          %v5053 = vsel %vm563, %v5050, %v5052
          %v5062 = vadd.f32 %v4998, %v5036
          %v5063 = vadd.f32 %v4999, %v5038
          %v5064 = vadd.f32 %v5000, %v5041
          %v5065 = vadd.f32 %v5001, %v5043
          %v5066 = vadd.f32 %v5002, %v5046
          %v5067 = vadd.f32 %v5003, %v5048
          %v5068 = vadd.f32 %v5004, %v5051
          %v5069 = vadd.f32 %v5005, %v5053
          %v5070 = vlaneseq
          %v5071 = vshrl.u32 %v5070, 7
          %v5072 = vsub.s32 4, %v5071
          %v5073 = vrot.slane %v4864, %v5072
          %v5074 = vmul.f32 %v4847, %v5073
          %v5075 = vmul.f32 %v4848, %v5073
          %v5076 = vmul.f32 %v4849, %v5073
          %v5077 = vmul.f32 %v4851, %v5073
          %v5078 = vmul.f32 %v4852, %v5073
          %v5079 = vmul.f32 %v4853, %v5073
          %v5080 = vmul.f32 %v4855, %v5073
          %v5081 = vmul.f32 %v4856, %v5073
          %v5082 = vmul.f32 %v4857, %v5073
          %v5083 = vmul.f32 %v4859, %v5073
          %v5084 = vmul.f32 %v4860, %v5073
          %v5085 = vmul.f32 %v4861, %v5073
          %v5098 = vrot.slane %v5074, 4
          %v5099 = vrot.slane %v5075, 4
          %v5100 = vsel %vm628, %v5098, %v5099
          %v5101 = vrot.slane %v5076, 4
          %v5102 = vsel %vm628, %v5099, %v5101
          %v5103 = vrot.slane %v5077, 4
          %v5104 = vrot.slane %v5078, 4
          %v5105 = vsel %vm628, %v5103, %v5104
          %v5106 = vrot.slane %v5079, 4
          %v5107 = vsel %vm628, %v5104, %v5106
          %v5108 = vrot.slane %v5080, 4
          %v5109 = vrot.slane %v5081, 4
          %v5110 = vsel %vm628, %v5108, %v5109
          %v5111 = vrot.slane %v5082, 4
          %v5112 = vsel %vm628, %v5109, %v5111
          %v5113 = vrot.slane %v5083, 4
          %v5114 = vrot.slane %v5084, 4
          %v5115 = vsel %vm628, %v5113, %v5114
          %v5116 = vrot.slane %v5085, 4
          %v5117 = vsel %vm628, %v5114, %v5116
          %v5126 = vadd.f32 %v5062, %v5100
          %v5127 = vadd.f32 %v5063, %v5102
          %v5128 = vadd.f32 %v5064, %v5105
          %v5129 = vadd.f32 %v5065, %v5107
          %v5130 = vadd.f32 %v5066, %v5110
          %v5131 = vadd.f32 %v5067, %v5112
          %v5132 = vadd.f32 %v5068, %v5115
          %v5133 = vadd.f32 %v5069, %v5117
          %v5134 = vlaneseq
          %v5135 = vshrl.u32 %v5134, 7
          %v5136 = vsub.s32 5, %v5135
          %v5137 = vrot.slane %v4864, %v5136
          %v5138 = vmul.f32 %v4847, %v5137
          %v5139 = vmul.f32 %v4848, %v5137
          %v5140 = vmul.f32 %v4849, %v5137
          %v5141 = vmul.f32 %v4851, %v5137
          %v5142 = vmul.f32 %v4852, %v5137
          %v5143 = vmul.f32 %v4853, %v5137
          %v5144 = vmul.f32 %v4855, %v5137
          %v5145 = vmul.f32 %v4856, %v5137
          %v5146 = vmul.f32 %v4857, %v5137
          %v5147 = vmul.f32 %v4859, %v5137
          %v5148 = vmul.f32 %v4860, %v5137
          %v5149 = vmul.f32 %v4861, %v5137
          %v5162 = vrot.slane %v5138, 5
          %v5163 = vrot.slane %v5139, 5
          %v5164 = vsel %vm693, %v5162, %v5163
          %v5165 = vrot.slane %v5140, 5
          %v5166 = vsel %vm693, %v5163, %v5165
          %v5167 = vrot.slane %v5141, 5
          %v5168 = vrot.slane %v5142, 5
          %v5169 = vsel %vm693, %v5167, %v5168
          %v5170 = vrot.slane %v5143, 5
          %v5171 = vsel %vm693, %v5168, %v5170
          %v5172 = vrot.slane %v5144, 5
          %v5173 = vrot.slane %v5145, 5
          %v5174 = vsel %vm693, %v5172, %v5173
          %v5175 = vrot.slane %v5146, 5
          %v5176 = vsel %vm693, %v5173, %v5175
          %v5177 = vrot.slane %v5147, 5
          %v5178 = vrot.slane %v5148, 5
          %v5179 = vsel %vm693, %v5177, %v5178
          %v5180 = vrot.slane %v5149, 5
          %v5181 = vsel %vm693, %v5178, %v5180
          %v5190 = vadd.f32 %v5126, %v5164
          %v5191 = vadd.f32 %v5127, %v5166
          %v5192 = vadd.f32 %v5128, %v5169
          %v5193 = vadd.f32 %v5129, %v5171
          %v5194 = vadd.f32 %v5130, %v5174
          %v5195 = vadd.f32 %v5131, %v5176
          %v5196 = vadd.f32 %v5132, %v5179
          %v5197 = vadd.f32 %v5133, %v5181
          %v5198 = vlaneseq
          %v5199 = vshrl.u32 %v5198, 7
          %v5200 = vsub.s32 6, %v5199
          %v5201 = vrot.slane %v4864, %v5200
          %v5202 = vmul.f32 %v4847, %v5201
          %v5203 = vmul.f32 %v4848, %v5201
          %v5204 = vmul.f32 %v4849, %v5201
          %v5205 = vmul.f32 %v4851, %v5201
          %v5206 = vmul.f32 %v4852, %v5201
          %v5207 = vmul.f32 %v4853, %v5201
          %v5208 = vmul.f32 %v4855, %v5201
          %v5209 = vmul.f32 %v4856, %v5201
          %v5210 = vmul.f32 %v4857, %v5201
          %v5211 = vmul.f32 %v4859, %v5201
          %v5212 = vmul.f32 %v4860, %v5201
          %v5213 = vmul.f32 %v4861, %v5201
          %v5226 = vrot.slane %v5202, 6
          %v5227 = vrot.slane %v5203, 6
          %v5228 = vsel %vm758, %v5226, %v5227
          %v5229 = vrot.slane %v5204, 6
          %v5230 = vsel %vm758, %v5227, %v5229
          %v5231 = vrot.slane %v5205, 6
          %v5232 = vrot.slane %v5206, 6
          %v5233 = vsel %vm758, %v5231, %v5232
          %v5234 = vrot.slane %v5207, 6
          %v5235 = vsel %vm758, %v5232, %v5234
          %v5236 = vrot.slane %v5208, 6
          %v5237 = vrot.slane %v5209, 6
          %v5238 = vsel %vm758, %v5236, %v5237
          %v5239 = vrot.slane %v5210, 6
          %v5240 = vsel %vm758, %v5237, %v5239
          %v5241 = vrot.slane %v5211, 6
          %v5242 = vrot.slane %v5212, 6
          %v5243 = vsel %vm758, %v5241, %v5242
          %v5244 = vrot.slane %v5213, 6
          %v5245 = vsel %vm758, %v5242, %v5244
          %v5254 = vadd.f32 %v5190, %v5228
          %v5255 = vadd.f32 %v5191, %v5230
          %v5256 = vadd.f32 %v5192, %v5233
          %v5257 = vadd.f32 %v5193, %v5235
          %v5258 = vadd.f32 %v5194, %v5238
          %v5259 = vadd.f32 %v5195, %v5240
          %v5260 = vadd.f32 %v5196, %v5243
          %v5261 = vadd.f32 %v5197, %v5245
          %v5262 = vlaneseq
          %v5263 = vshrl.u32 %v5262, 7
          %v5264 = vsub.s32 7, %v5263
          %v5265 = vrot.slane %v4864, %v5264
          %v5266 = vmul.f32 %v4847, %v5265
          %v5267 = vmul.f32 %v4848, %v5265
          %v5268 = vmul.f32 %v4849, %v5265
          %v5269 = vmul.f32 %v4851, %v5265
          %v5270 = vmul.f32 %v4852, %v5265
          %v5271 = vmul.f32 %v4853, %v5265
          %v5272 = vmul.f32 %v4855, %v5265
          %v5273 = vmul.f32 %v4856, %v5265
          %v5274 = vmul.f32 %v4857, %v5265
          %v5275 = vmul.f32 %v4859, %v5265
          %v5276 = vmul.f32 %v4860, %v5265
          %v5277 = vmul.f32 %v4861, %v5265
          %v5290 = vrot.slane %v5266, 7
          %v5291 = vrot.slane %v5267, 7
          %v5292 = vsel %vm823, %v5290, %v5291
          %v5293 = vrot.slane %v5268, 7
          %v5294 = vsel %vm823, %v5291, %v5293
          %v5295 = vrot.slane %v5269, 7
          %v5296 = vrot.slane %v5270, 7
          %v5297 = vsel %vm823, %v5295, %v5296
          %v5298 = vrot.slane %v5271, 7
          %v5299 = vsel %vm823, %v5296, %v5298
          %v5300 = vrot.slane %v5272, 7
          %v5301 = vrot.slane %v5273, 7
          %v5302 = vsel %vm823, %v5300, %v5301
          %v5303 = vrot.slane %v5274, 7
          %v5304 = vsel %vm823, %v5301, %v5303
          %v5305 = vrot.slane %v5275, 7
          %v5306 = vrot.slane %v5276, 7
          %v5307 = vsel %vm823, %v5305, %v5306
          %v5308 = vrot.slane %v5277, 7
          %v5309 = vsel %vm823, %v5306, %v5308
          %v5318 = vadd.f32 %v5254, %v5292
          %v5319 = vadd.f32 %v5255, %v5294
          %v5320 = vadd.f32 %v5256, %v5297
          %v5321 = vadd.f32 %v5257, %v5299
          %v5322 = vadd.f32 %v5258, %v5302
          %v5323 = vadd.f32 %v5259, %v5304
          %v5324 = vadd.f32 %v5260, %v5307
          %v5325 = vadd.f32 %v5261, %v5309
          %v5326 = vlaneseq
          %v5327 = vshrl.u32 %v5326, 7
          %v5328 = vsub.s32 0, %v5327
          %v5329 = vrot.slane %v4865, %v5328
          %v5330 = vmul.f32 %v4848, %v5329
          %v5331 = vmul.f32 %v4849, %v5329
          %v5332 = vmul.f32 %v4852, %v5329
          %v5333 = vmul.f32 %v4853, %v5329
          %v5334 = vmul.f32 %v4856, %v5329
          %v5335 = vmul.f32 %v4857, %v5329
          %v5336 = vmul.f32 %v4860, %v5329
          %v5337 = vmul.f32 %v4861, %v5329
          %v5338 = vadd.f32 %v5318, %v5330
          %v5339 = vadd.f32 %v5319, %v5331
          %v5340 = vadd.f32 %v5320, %v5332
          %v5341 = vadd.f32 %v5321, %v5333
          %v5342 = vadd.f32 %v5322, %v5334
          %v5343 = vadd.f32 %v5323, %v5335
          %v5344 = vadd.f32 %v5324, %v5336
          %v5345 = vadd.f32 %v5325, %v5337
          %v5346 = vlaneseq
          %v5347 = vshrl.u32 %v5346, 7
          %v5348 = vsub.s32 1, %v5347
          %v5349 = vrot.slane %v4865, %v5348
          %v5350 = vmul.f32 %v4848, %v5349
          %v5351 = vmul.f32 %v4849, %v5349
          %v5352 = vmul.f32 %v4850, %v5349
          %v5353 = vmul.f32 %v4852, %v5349
          %v5354 = vmul.f32 %v4853, %v5349
          %v5355 = vmul.f32 %v4854, %v5349
          %v5356 = vmul.f32 %v4856, %v5349
          %v5357 = vmul.f32 %v4857, %v5349
          %v5358 = vmul.f32 %v4858, %v5349
          %v5359 = vmul.f32 %v4860, %v5349
          %v5360 = vmul.f32 %v4861, %v5349
          %v5361 = vmul.f32 %v4862, %v5349
          %v5374 = vrot.slane %v5350, 1
          %v5375 = vrot.slane %v5351, 1
          %v5376 = vsel %vm433, %v5374, %v5375
          %v5377 = vrot.slane %v5352, 1
          %v5378 = vsel %vm433, %v5375, %v5377
          %v5379 = vrot.slane %v5353, 1
          %v5380 = vrot.slane %v5354, 1
          %v5381 = vsel %vm433, %v5379, %v5380
          %v5382 = vrot.slane %v5355, 1
          %v5383 = vsel %vm433, %v5380, %v5382
          %v5384 = vrot.slane %v5356, 1
          %v5385 = vrot.slane %v5357, 1
          %v5386 = vsel %vm433, %v5384, %v5385
          %v5387 = vrot.slane %v5358, 1
          %v5388 = vsel %vm433, %v5385, %v5387
          %v5389 = vrot.slane %v5359, 1
          %v5390 = vrot.slane %v5360, 1
          %v5391 = vsel %vm433, %v5389, %v5390
          %v5392 = vrot.slane %v5361, 1
          %v5393 = vsel %vm433, %v5390, %v5392
          %v5402 = vadd.f32 %v5338, %v5376
          %v5403 = vadd.f32 %v5339, %v5378
          %v5404 = vadd.f32 %v5340, %v5381
          %v5405 = vadd.f32 %v5341, %v5383
          %v5406 = vadd.f32 %v5342, %v5386
          %v5407 = vadd.f32 %v5343, %v5388
          %v5408 = vadd.f32 %v5344, %v5391
          %v5409 = vadd.f32 %v5345, %v5393
          %v5410 = vlaneseq
          %v5411 = vshrl.u32 %v5410, 7
          %v5412 = vsub.s32 2, %v5411
          %v5413 = vrot.slane %v4865, %v5412
          %v5414 = vmul.f32 %v4848, %v5413
          %v5415 = vmul.f32 %v4849, %v5413
          %v5416 = vmul.f32 %v4850, %v5413
          %v5417 = vmul.f32 %v4852, %v5413
          %v5418 = vmul.f32 %v4853, %v5413
          %v5419 = vmul.f32 %v4854, %v5413
          %v5420 = vmul.f32 %v4856, %v5413
          %v5421 = vmul.f32 %v4857, %v5413
          %v5422 = vmul.f32 %v4858, %v5413
          %v5423 = vmul.f32 %v4860, %v5413
          %v5424 = vmul.f32 %v4861, %v5413
          %v5425 = vmul.f32 %v4862, %v5413
          %v5438 = vrot.slane %v5414, 2
          %v5439 = vrot.slane %v5415, 2
          %v5440 = vsel %vm498, %v5438, %v5439
          %v5441 = vrot.slane %v5416, 2
          %v5442 = vsel %vm498, %v5439, %v5441
          %v5443 = vrot.slane %v5417, 2
          %v5444 = vrot.slane %v5418, 2
          %v5445 = vsel %vm498, %v5443, %v5444
          %v5446 = vrot.slane %v5419, 2
          %v5447 = vsel %vm498, %v5444, %v5446
          %v5448 = vrot.slane %v5420, 2
          %v5449 = vrot.slane %v5421, 2
          %v5450 = vsel %vm498, %v5448, %v5449
          %v5451 = vrot.slane %v5422, 2
          %v5452 = vsel %vm498, %v5449, %v5451
          %v5453 = vrot.slane %v5423, 2
          %v5454 = vrot.slane %v5424, 2
          %v5455 = vsel %vm498, %v5453, %v5454
          %v5456 = vrot.slane %v5425, 2
          %v5457 = vsel %vm498, %v5454, %v5456
          %v5466 = vadd.f32 %v5402, %v5440
          %v5467 = vadd.f32 %v5403, %v5442
          %v5468 = vadd.f32 %v5404, %v5445
          %v5469 = vadd.f32 %v5405, %v5447
          %v5470 = vadd.f32 %v5406, %v5450
          %v5471 = vadd.f32 %v5407, %v5452
          %v5472 = vadd.f32 %v5408, %v5455
          %v5473 = vadd.f32 %v5409, %v5457
          %v5474 = vadd.f32 %v4198, %v5466
          %v5475 = vadd.f32 %v4199, %v5467
          %v5476 = vadd.f32 %v4200, %v5468
          %v5477 = vadd.f32 %v4201, %v5469
          %v5478 = vadd.f32 %v4202, %v5470
          %v5479 = vadd.f32 %v4203, %v5471
          %v5480 = vadd.f32 %v4204, %v5472
          %v5481 = vadd.f32 %v4205, %v5473
          %s5482 = sadd.s32 %s372, 8
          %s5483 = smul.u32 %s5482, 32
          %s5484 = scalar_lea.vmem %s358, %s5483
          %v5485 = vld [vmem:[%s5484] sm:$0xff]
          %v5486 = vld [vmem:[%s5484 + $0x8] sm:$0xff]
          %v5487 = vld [vmem:[%s5484 + $0x10] sm:$0xff]
          %v5488 = vld [vmem:[%s5484 + $0x18] sm:$0x3]
          %v5489 = vld [vmem:[%s5484 + $0x20] sm:$0xff]
          %v5490 = vld [vmem:[%s5484 + $0x28] sm:$0xff]
          %v5491 = vld [vmem:[%s5484 + $0x30] sm:$0xff]
          %v5492 = vld [vmem:[%s5484 + $0x38] sm:$0x3]
          %v5493 = vld [vmem:[%s5484 + $0x40] sm:$0xff]
          %v5494 = vld [vmem:[%s5484 + $0x48] sm:$0xff]
          %v5495 = vld [vmem:[%s5484 + $0x50] sm:$0xff]
          %v5496 = vld [vmem:[%s5484 + $0x58] sm:$0x3]
          %v5497 = vld [vmem:[%s5484 + $0x60] sm:$0xff]
          %v5498 = vld [vmem:[%s5484 + $0x68] sm:$0xff]
          %v5499 = vld [vmem:[%s5484 + $0x70] sm:$0xff]
          %v5500 = vld [vmem:[%s5484 + $0x78] sm:$0x3]
          %s5501 = scalar_lea.vmem %s1, 128
          %v5502 = vld [vmem:[%s5501] sm:$0xff]
          %v5503 = vld [vmem:[%s5501 + $0x8] sm:$0x7]
          %v5504 = vlaneseq
          %v5505 = vshrl.u32 %v5504, 7
          %v5506 = vsub.s32 0, %v5505
          %v5507 = vrot.slane %v5502, %v5506
          %v5508 = vmul.f32 %v5485, %v5507
          %v5509 = vmul.f32 %v5486, %v5507
          %v5510 = vmul.f32 %v5489, %v5507
          %v5511 = vmul.f32 %v5490, %v5507
          %v5512 = vmul.f32 %v5493, %v5507
          %v5513 = vmul.f32 %v5494, %v5507
          %v5514 = vmul.f32 %v5497, %v5507
          %v5515 = vmul.f32 %v5498, %v5507
          %v5516 = vlaneseq
          %v5517 = vshrl.u32 %v5516, 7
          %v5518 = vsub.s32 1, %v5517
          %v5519 = vrot.slane %v5502, %v5518
          %v5520 = vmul.f32 %v5485, %v5519
          %v5521 = vmul.f32 %v5486, %v5519
          %v5522 = vmul.f32 %v5487, %v5519
          %v5523 = vmul.f32 %v5489, %v5519
          %v5524 = vmul.f32 %v5490, %v5519
          %v5525 = vmul.f32 %v5491, %v5519
          %v5526 = vmul.f32 %v5493, %v5519
          %v5527 = vmul.f32 %v5494, %v5519
          %v5528 = vmul.f32 %v5495, %v5519
          %v5529 = vmul.f32 %v5497, %v5519
          %v5530 = vmul.f32 %v5498, %v5519
          %v5531 = vmul.f32 %v5499, %v5519
          %v5544 = vrot.slane %v5520, 1
          %v5545 = vrot.slane %v5521, 1
          %v5546 = vsel %vm433, %v5544, %v5545
          %v5547 = vrot.slane %v5522, 1
          %v5548 = vsel %vm433, %v5545, %v5547
          %v5549 = vrot.slane %v5523, 1
          %v5550 = vrot.slane %v5524, 1
          %v5551 = vsel %vm433, %v5549, %v5550
          %v5552 = vrot.slane %v5525, 1
          %v5553 = vsel %vm433, %v5550, %v5552
          %v5554 = vrot.slane %v5526, 1
          %v5555 = vrot.slane %v5527, 1
          %v5556 = vsel %vm433, %v5554, %v5555
          %v5557 = vrot.slane %v5528, 1
          %v5558 = vsel %vm433, %v5555, %v5557
          %v5559 = vrot.slane %v5529, 1
          %v5560 = vrot.slane %v5530, 1
          %v5561 = vsel %vm433, %v5559, %v5560
          %v5562 = vrot.slane %v5531, 1
          %v5563 = vsel %vm433, %v5560, %v5562
          %v5572 = vadd.f32 %v5508, %v5546
          %v5573 = vadd.f32 %v5509, %v5548
          %v5574 = vadd.f32 %v5510, %v5551
          %v5575 = vadd.f32 %v5511, %v5553
          %v5576 = vadd.f32 %v5512, %v5556
          %v5577 = vadd.f32 %v5513, %v5558
          %v5578 = vadd.f32 %v5514, %v5561
          %v5579 = vadd.f32 %v5515, %v5563
          %v5580 = vlaneseq
          %v5581 = vshrl.u32 %v5580, 7
          %v5582 = vsub.s32 2, %v5581
          %v5583 = vrot.slane %v5502, %v5582
          %v5584 = vmul.f32 %v5485, %v5583
          %v5585 = vmul.f32 %v5486, %v5583
          %v5586 = vmul.f32 %v5487, %v5583
          %v5587 = vmul.f32 %v5489, %v5583
          %v5588 = vmul.f32 %v5490, %v5583
          %v5589 = vmul.f32 %v5491, %v5583
          %v5590 = vmul.f32 %v5493, %v5583
          %v5591 = vmul.f32 %v5494, %v5583
          %v5592 = vmul.f32 %v5495, %v5583
          %v5593 = vmul.f32 %v5497, %v5583
          %v5594 = vmul.f32 %v5498, %v5583
          %v5595 = vmul.f32 %v5499, %v5583
          %v5608 = vrot.slane %v5584, 2
          %v5609 = vrot.slane %v5585, 2
          %v5610 = vsel %vm498, %v5608, %v5609
          %v5611 = vrot.slane %v5586, 2
          %v5612 = vsel %vm498, %v5609, %v5611
          %v5613 = vrot.slane %v5587, 2
          %v5614 = vrot.slane %v5588, 2
          %v5615 = vsel %vm498, %v5613, %v5614
          %v5616 = vrot.slane %v5589, 2
          %v5617 = vsel %vm498, %v5614, %v5616
          %v5618 = vrot.slane %v5590, 2
          %v5619 = vrot.slane %v5591, 2
          %v5620 = vsel %vm498, %v5618, %v5619
          %v5621 = vrot.slane %v5592, 2
          %v5622 = vsel %vm498, %v5619, %v5621
          %v5623 = vrot.slane %v5593, 2
          %v5624 = vrot.slane %v5594, 2
          %v5625 = vsel %vm498, %v5623, %v5624
          %v5626 = vrot.slane %v5595, 2
          %v5627 = vsel %vm498, %v5624, %v5626
          %v5636 = vadd.f32 %v5572, %v5610
          %v5637 = vadd.f32 %v5573, %v5612
          %v5638 = vadd.f32 %v5574, %v5615
          %v5639 = vadd.f32 %v5575, %v5617
          %v5640 = vadd.f32 %v5576, %v5620
          %v5641 = vadd.f32 %v5577, %v5622
          %v5642 = vadd.f32 %v5578, %v5625
          %v5643 = vadd.f32 %v5579, %v5627
          %v5644 = vlaneseq
          %v5645 = vshrl.u32 %v5644, 7
          %v5646 = vsub.s32 3, %v5645
          %v5647 = vrot.slane %v5502, %v5646
          %v5648 = vmul.f32 %v5485, %v5647
          %v5649 = vmul.f32 %v5486, %v5647
          %v5650 = vmul.f32 %v5487, %v5647
          %v5651 = vmul.f32 %v5489, %v5647
          %v5652 = vmul.f32 %v5490, %v5647
          %v5653 = vmul.f32 %v5491, %v5647
          %v5654 = vmul.f32 %v5493, %v5647
          %v5655 = vmul.f32 %v5494, %v5647
          %v5656 = vmul.f32 %v5495, %v5647
          %v5657 = vmul.f32 %v5497, %v5647
          %v5658 = vmul.f32 %v5498, %v5647
          %v5659 = vmul.f32 %v5499, %v5647
          %v5672 = vrot.slane %v5648, 3
          %v5673 = vrot.slane %v5649, 3
          %v5674 = vsel %vm563, %v5672, %v5673
          %v5675 = vrot.slane %v5650, 3
          %v5676 = vsel %vm563, %v5673, %v5675
          %v5677 = vrot.slane %v5651, 3
          %v5678 = vrot.slane %v5652, 3
          %v5679 = vsel %vm563, %v5677, %v5678
          %v5680 = vrot.slane %v5653, 3
          %v5681 = vsel %vm563, %v5678, %v5680
          %v5682 = vrot.slane %v5654, 3
          %v5683 = vrot.slane %v5655, 3
          %v5684 = vsel %vm563, %v5682, %v5683
          %v5685 = vrot.slane %v5656, 3
          %v5686 = vsel %vm563, %v5683, %v5685
          %v5687 = vrot.slane %v5657, 3
          %v5688 = vrot.slane %v5658, 3
          %v5689 = vsel %vm563, %v5687, %v5688
          %v5690 = vrot.slane %v5659, 3
          %v5691 = vsel %vm563, %v5688, %v5690
          %v5700 = vadd.f32 %v5636, %v5674
          %v5701 = vadd.f32 %v5637, %v5676
          %v5702 = vadd.f32 %v5638, %v5679
          %v5703 = vadd.f32 %v5639, %v5681
          %v5704 = vadd.f32 %v5640, %v5684
          %v5705 = vadd.f32 %v5641, %v5686
          %v5706 = vadd.f32 %v5642, %v5689
          %v5707 = vadd.f32 %v5643, %v5691
          %v5708 = vlaneseq
          %v5709 = vshrl.u32 %v5708, 7
          %v5710 = vsub.s32 4, %v5709
          %v5711 = vrot.slane %v5502, %v5710
          %v5712 = vmul.f32 %v5485, %v5711
          %v5713 = vmul.f32 %v5486, %v5711
          %v5714 = vmul.f32 %v5487, %v5711
          %v5715 = vmul.f32 %v5489, %v5711
          %v5716 = vmul.f32 %v5490, %v5711
          %v5717 = vmul.f32 %v5491, %v5711
          %v5718 = vmul.f32 %v5493, %v5711
          %v5719 = vmul.f32 %v5494, %v5711
          %v5720 = vmul.f32 %v5495, %v5711
          %v5721 = vmul.f32 %v5497, %v5711
          %v5722 = vmul.f32 %v5498, %v5711
          %v5723 = vmul.f32 %v5499, %v5711
          %v5736 = vrot.slane %v5712, 4
          %v5737 = vrot.slane %v5713, 4
          %v5738 = vsel %vm628, %v5736, %v5737
          %v5739 = vrot.slane %v5714, 4
          %v5740 = vsel %vm628, %v5737, %v5739
          %v5741 = vrot.slane %v5715, 4
          %v5742 = vrot.slane %v5716, 4
          %v5743 = vsel %vm628, %v5741, %v5742
          %v5744 = vrot.slane %v5717, 4
          %v5745 = vsel %vm628, %v5742, %v5744
          %v5746 = vrot.slane %v5718, 4
          %v5747 = vrot.slane %v5719, 4
          %v5748 = vsel %vm628, %v5746, %v5747
          %v5749 = vrot.slane %v5720, 4
          %v5750 = vsel %vm628, %v5747, %v5749
          %v5751 = vrot.slane %v5721, 4
          %v5752 = vrot.slane %v5722, 4
          %v5753 = vsel %vm628, %v5751, %v5752
          %v5754 = vrot.slane %v5723, 4
          %v5755 = vsel %vm628, %v5752, %v5754
          %v5764 = vadd.f32 %v5700, %v5738
          %v5765 = vadd.f32 %v5701, %v5740
          %v5766 = vadd.f32 %v5702, %v5743
          %v5767 = vadd.f32 %v5703, %v5745
          %v5768 = vadd.f32 %v5704, %v5748
          %v5769 = vadd.f32 %v5705, %v5750
          %v5770 = vadd.f32 %v5706, %v5753
          %v5771 = vadd.f32 %v5707, %v5755
          %v5772 = vlaneseq
          %v5773 = vshrl.u32 %v5772, 7
          %v5774 = vsub.s32 5, %v5773
          %v5775 = vrot.slane %v5502, %v5774
          %v5776 = vmul.f32 %v5485, %v5775
          %v5777 = vmul.f32 %v5486, %v5775
          %v5778 = vmul.f32 %v5487, %v5775
          %v5779 = vmul.f32 %v5489, %v5775
          %v5780 = vmul.f32 %v5490, %v5775
          %v5781 = vmul.f32 %v5491, %v5775
          %v5782 = vmul.f32 %v5493, %v5775
          %v5783 = vmul.f32 %v5494, %v5775
          %v5784 = vmul.f32 %v5495, %v5775
          %v5785 = vmul.f32 %v5497, %v5775
          %v5786 = vmul.f32 %v5498, %v5775
          %v5787 = vmul.f32 %v5499, %v5775
          %v5800 = vrot.slane %v5776, 5
          %v5801 = vrot.slane %v5777, 5
          %v5802 = vsel %vm693, %v5800, %v5801
          %v5803 = vrot.slane %v5778, 5
          %v5804 = vsel %vm693, %v5801, %v5803
          %v5805 = vrot.slane %v5779, 5
          %v5806 = vrot.slane %v5780, 5
          %v5807 = vsel %vm693, %v5805, %v5806
          %v5808 = vrot.slane %v5781, 5
          %v5809 = vsel %vm693, %v5806, %v5808
          %v5810 = vrot.slane %v5782, 5
          %v5811 = vrot.slane %v5783, 5
          %v5812 = vsel %vm693, %v5810, %v5811
          %v5813 = vrot.slane %v5784, 5
          %v5814 = vsel %vm693, %v5811, %v5813
          %v5815 = vrot.slane %v5785, 5
          %v5816 = vrot.slane %v5786, 5
          %v5817 = vsel %vm693, %v5815, %v5816
          %v5818 = vrot.slane %v5787, 5
          %v5819 = vsel %vm693, %v5816, %v5818
          %v5828 = vadd.f32 %v5764, %v5802
          %v5829 = vadd.f32 %v5765, %v5804
          %v5830 = vadd.f32 %v5766, %v5807
          %v5831 = vadd.f32 %v5767, %v5809
          %v5832 = vadd.f32 %v5768, %v5812
          %v5833 = vadd.f32 %v5769, %v5814
          %v5834 = vadd.f32 %v5770, %v5817
          %v5835 = vadd.f32 %v5771, %v5819
          %v5836 = vlaneseq
          %v5837 = vshrl.u32 %v5836, 7
          %v5838 = vsub.s32 6, %v5837
          %v5839 = vrot.slane %v5502, %v5838
          %v5840 = vmul.f32 %v5485, %v5839
          %v5841 = vmul.f32 %v5486, %v5839
          %v5842 = vmul.f32 %v5487, %v5839
          %v5843 = vmul.f32 %v5489, %v5839
          %v5844 = vmul.f32 %v5490, %v5839
          %v5845 = vmul.f32 %v5491, %v5839
          %v5846 = vmul.f32 %v5493, %v5839
          %v5847 = vmul.f32 %v5494, %v5839
          %v5848 = vmul.f32 %v5495, %v5839
          %v5849 = vmul.f32 %v5497, %v5839
          %v5850 = vmul.f32 %v5498, %v5839
          %v5851 = vmul.f32 %v5499, %v5839
          %v5864 = vrot.slane %v5840, 6
          %v5865 = vrot.slane %v5841, 6
          %v5866 = vsel %vm758, %v5864, %v5865
          %v5867 = vrot.slane %v5842, 6
          %v5868 = vsel %vm758, %v5865, %v5867
          %v5869 = vrot.slane %v5843, 6
          %v5870 = vrot.slane %v5844, 6
          %v5871 = vsel %vm758, %v5869, %v5870
          %v5872 = vrot.slane %v5845, 6
          %v5873 = vsel %vm758, %v5870, %v5872
          %v5874 = vrot.slane %v5846, 6
          %v5875 = vrot.slane %v5847, 6
          %v5876 = vsel %vm758, %v5874, %v5875
          %v5877 = vrot.slane %v5848, 6
          %v5878 = vsel %vm758, %v5875, %v5877
          %v5879 = vrot.slane %v5849, 6
          %v5880 = vrot.slane %v5850, 6
          %v5881 = vsel %vm758, %v5879, %v5880
          %v5882 = vrot.slane %v5851, 6
          %v5883 = vsel %vm758, %v5880, %v5882
          %v5892 = vadd.f32 %v5828, %v5866
          %v5893 = vadd.f32 %v5829, %v5868
          %v5894 = vadd.f32 %v5830, %v5871
          %v5895 = vadd.f32 %v5831, %v5873
          %v5896 = vadd.f32 %v5832, %v5876
          %v5897 = vadd.f32 %v5833, %v5878
          %v5898 = vadd.f32 %v5834, %v5881
          %v5899 = vadd.f32 %v5835, %v5883
          %v5900 = vlaneseq
          %v5901 = vshrl.u32 %v5900, 7
          %v5902 = vsub.s32 7, %v5901
          %v5903 = vrot.slane %v5502, %v5902
          %v5904 = vmul.f32 %v5485, %v5903
          %v5905 = vmul.f32 %v5486, %v5903
          %v5906 = vmul.f32 %v5487, %v5903
          %v5907 = vmul.f32 %v5489, %v5903
          %v5908 = vmul.f32 %v5490, %v5903
          %v5909 = vmul.f32 %v5491, %v5903
          %v5910 = vmul.f32 %v5493, %v5903
          %v5911 = vmul.f32 %v5494, %v5903
          %v5912 = vmul.f32 %v5495, %v5903
          %v5913 = vmul.f32 %v5497, %v5903
          %v5914 = vmul.f32 %v5498, %v5903
          %v5915 = vmul.f32 %v5499, %v5903
          %v5928 = vrot.slane %v5904, 7
          %v5929 = vrot.slane %v5905, 7
          %v5930 = vsel %vm823, %v5928, %v5929
          %v5931 = vrot.slane %v5906, 7
          %v5932 = vsel %vm823, %v5929, %v5931
          %v5933 = vrot.slane %v5907, 7
          %v5934 = vrot.slane %v5908, 7
          %v5935 = vsel %vm823, %v5933, %v5934
          %v5936 = vrot.slane %v5909, 7
          %v5937 = vsel %vm823, %v5934, %v5936
          %v5938 = vrot.slane %v5910, 7
          %v5939 = vrot.slane %v5911, 7
          %v5940 = vsel %vm823, %v5938, %v5939
          %v5941 = vrot.slane %v5912, 7
          %v5942 = vsel %vm823, %v5939, %v5941
          %v5943 = vrot.slane %v5913, 7
          %v5944 = vrot.slane %v5914, 7
          %v5945 = vsel %vm823, %v5943, %v5944
          %v5946 = vrot.slane %v5915, 7
          %v5947 = vsel %vm823, %v5944, %v5946
          %v5956 = vadd.f32 %v5892, %v5930
          %v5957 = vadd.f32 %v5893, %v5932
          %v5958 = vadd.f32 %v5894, %v5935
          %v5959 = vadd.f32 %v5895, %v5937
          %v5960 = vadd.f32 %v5896, %v5940
          %v5961 = vadd.f32 %v5897, %v5942
          %v5962 = vadd.f32 %v5898, %v5945
          %v5963 = vadd.f32 %v5899, %v5947
          %v5964 = vlaneseq
          %v5965 = vshrl.u32 %v5964, 7
          %v5966 = vsub.s32 0, %v5965
          %v5967 = vrot.slane %v5503, %v5966
          %v5968 = vmul.f32 %v5486, %v5967
          %v5969 = vmul.f32 %v5487, %v5967
          %v5970 = vmul.f32 %v5490, %v5967
          %v5971 = vmul.f32 %v5491, %v5967
          %v5972 = vmul.f32 %v5494, %v5967
          %v5973 = vmul.f32 %v5495, %v5967
          %v5974 = vmul.f32 %v5498, %v5967
          %v5975 = vmul.f32 %v5499, %v5967
          %v5976 = vadd.f32 %v5956, %v5968
          %v5977 = vadd.f32 %v5957, %v5969
          %v5978 = vadd.f32 %v5958, %v5970
          %v5979 = vadd.f32 %v5959, %v5971
          %v5980 = vadd.f32 %v5960, %v5972
          %v5981 = vadd.f32 %v5961, %v5973
          %v5982 = vadd.f32 %v5962, %v5974
          %v5983 = vadd.f32 %v5963, %v5975
          %v5984 = vlaneseq
          %v5985 = vshrl.u32 %v5984, 7
          %v5986 = vsub.s32 1, %v5985
          %v5987 = vrot.slane %v5503, %v5986
          %v5988 = vmul.f32 %v5486, %v5987
          %v5989 = vmul.f32 %v5487, %v5987
          %v5990 = vmul.f32 %v5488, %v5987
          %v5991 = vmul.f32 %v5490, %v5987
          %v5992 = vmul.f32 %v5491, %v5987
          %v5993 = vmul.f32 %v5492, %v5987
          %v5994 = vmul.f32 %v5494, %v5987
          %v5995 = vmul.f32 %v5495, %v5987
          %v5996 = vmul.f32 %v5496, %v5987
          %v5997 = vmul.f32 %v5498, %v5987
          %v5998 = vmul.f32 %v5499, %v5987
          %v5999 = vmul.f32 %v5500, %v5987
          %v6012 = vrot.slane %v5988, 1
          %v6013 = vrot.slane %v5989, 1
          %v6014 = vsel %vm433, %v6012, %v6013
          %v6015 = vrot.slane %v5990, 1
          %v6016 = vsel %vm433, %v6013, %v6015
          %v6017 = vrot.slane %v5991, 1
          %v6018 = vrot.slane %v5992, 1
          %v6019 = vsel %vm433, %v6017, %v6018
          %v6020 = vrot.slane %v5993, 1
          %v6021 = vsel %vm433, %v6018, %v6020
          %v6022 = vrot.slane %v5994, 1
          %v6023 = vrot.slane %v5995, 1
          %v6024 = vsel %vm433, %v6022, %v6023
          %v6025 = vrot.slane %v5996, 1
          %v6026 = vsel %vm433, %v6023, %v6025
          %v6027 = vrot.slane %v5997, 1
          %v6028 = vrot.slane %v5998, 1
          %v6029 = vsel %vm433, %v6027, %v6028
          %v6030 = vrot.slane %v5999, 1
          %v6031 = vsel %vm433, %v6028, %v6030
          %v6040 = vadd.f32 %v5976, %v6014
          %v6041 = vadd.f32 %v5977, %v6016
          %v6042 = vadd.f32 %v5978, %v6019
          %v6043 = vadd.f32 %v5979, %v6021
          %v6044 = vadd.f32 %v5980, %v6024
          %v6045 = vadd.f32 %v5981, %v6026
          %v6046 = vadd.f32 %v5982, %v6029
          %v6047 = vadd.f32 %v5983, %v6031
          %v6048 = vlaneseq
          %v6049 = vshrl.u32 %v6048, 7
          %v6050 = vsub.s32 2, %v6049
          %v6051 = vrot.slane %v5503, %v6050
          %v6052 = vmul.f32 %v5486, %v6051
          %v6053 = vmul.f32 %v5487, %v6051
          %v6054 = vmul.f32 %v5488, %v6051
          %v6055 = vmul.f32 %v5490, %v6051
          %v6056 = vmul.f32 %v5491, %v6051
          %v6057 = vmul.f32 %v5492, %v6051
          %v6058 = vmul.f32 %v5494, %v6051
          %v6059 = vmul.f32 %v5495, %v6051
          %v6060 = vmul.f32 %v5496, %v6051
          %v6061 = vmul.f32 %v5498, %v6051
          %v6062 = vmul.f32 %v5499, %v6051
          %v6063 = vmul.f32 %v5500, %v6051
          %v6076 = vrot.slane %v6052, 2
          %v6077 = vrot.slane %v6053, 2
          %v6078 = vsel %vm498, %v6076, %v6077
          %v6079 = vrot.slane %v6054, 2
          %v6080 = vsel %vm498, %v6077, %v6079
          %v6081 = vrot.slane %v6055, 2
          %v6082 = vrot.slane %v6056, 2
          %v6083 = vsel %vm498, %v6081, %v6082
          %v6084 = vrot.slane %v6057, 2
          %v6085 = vsel %vm498, %v6082, %v6084
          %v6086 = vrot.slane %v6058, 2
          %v6087 = vrot.slane %v6059, 2
          %v6088 = vsel %vm498, %v6086, %v6087
          %v6089 = vrot.slane %v6060, 2
          %v6090 = vsel %vm498, %v6087, %v6089
          %v6091 = vrot.slane %v6061, 2
          %v6092 = vrot.slane %v6062, 2
          %v6093 = vsel %vm498, %v6091, %v6092
          %v6094 = vrot.slane %v6063, 2
          %v6095 = vsel %vm498, %v6092, %v6094
          %v6104 = vadd.f32 %v6040, %v6078
          %v6105 = vadd.f32 %v6041, %v6080
          %v6106 = vadd.f32 %v6042, %v6083
          %v6107 = vadd.f32 %v6043, %v6085
          %v6108 = vadd.f32 %v6044, %v6088
          %v6109 = vadd.f32 %v6045, %v6090
          %v6110 = vadd.f32 %v6046, %v6093
          %v6111 = vadd.f32 %v6047, %v6095
          %v6112 = vadd.f32 %v4836, %v6104
          %v6113 = vadd.f32 %v4837, %v6105
          %v6114 = vadd.f32 %v4838, %v6106
          %v6115 = vadd.f32 %v4839, %v6107
          %v6116 = vadd.f32 %v4840, %v6108
          %v6117 = vadd.f32 %v4841, %v6109
          %v6118 = vadd.f32 %v4842, %v6110
          %v6119 = vadd.f32 %v4843, %v6111
          %s6120 = sadd.s32 %s372, 9
          %s6121 = smul.u32 %s6120, 32
          %s6122 = scalar_lea.vmem %s358, %s6121
          %v6123 = vld [vmem:[%s6122] sm:$0xff]
          %v6124 = vld [vmem:[%s6122 + $0x8] sm:$0xff]
          %v6125 = vld [vmem:[%s6122 + $0x10] sm:$0xff]
          %v6126 = vld [vmem:[%s6122 + $0x18] sm:$0x3]
          %v6127 = vld [vmem:[%s6122 + $0x20] sm:$0xff]
          %v6128 = vld [vmem:[%s6122 + $0x28] sm:$0xff]
          %v6129 = vld [vmem:[%s6122 + $0x30] sm:$0xff]
          %v6130 = vld [vmem:[%s6122 + $0x38] sm:$0x3]
          %v6131 = vld [vmem:[%s6122 + $0x40] sm:$0xff]
          %v6132 = vld [vmem:[%s6122 + $0x48] sm:$0xff]
          %v6133 = vld [vmem:[%s6122 + $0x50] sm:$0xff]
          %v6134 = vld [vmem:[%s6122 + $0x58] sm:$0x3]
          %v6135 = vld [vmem:[%s6122 + $0x60] sm:$0xff]
          %v6136 = vld [vmem:[%s6122 + $0x68] sm:$0xff]
          %v6137 = vld [vmem:[%s6122 + $0x70] sm:$0xff]
          %v6138 = vld [vmem:[%s6122 + $0x78] sm:$0x3]
          %s6139 = scalar_lea.vmem %s1, 144
          %v6140 = vld [vmem:[%s6139] sm:$0xff]
          %v6141 = vld [vmem:[%s6139 + $0x8] sm:$0x7]
          %v6142 = vlaneseq
          %v6143 = vshrl.u32 %v6142, 7
          %v6144 = vsub.s32 0, %v6143
          %v6145 = vrot.slane %v6140, %v6144
          %v6146 = vmul.f32 %v6123, %v6145
          %v6147 = vmul.f32 %v6124, %v6145
          %v6148 = vmul.f32 %v6127, %v6145
          %v6149 = vmul.f32 %v6128, %v6145
          %v6150 = vmul.f32 %v6131, %v6145
          %v6151 = vmul.f32 %v6132, %v6145
          %v6152 = vmul.f32 %v6135, %v6145
          %v6153 = vmul.f32 %v6136, %v6145
          %v6154 = vlaneseq
          %v6155 = vshrl.u32 %v6154, 7
          %v6156 = vsub.s32 1, %v6155
          %v6157 = vrot.slane %v6140, %v6156
          %v6158 = vmul.f32 %v6123, %v6157
          %v6159 = vmul.f32 %v6124, %v6157
          %v6160 = vmul.f32 %v6125, %v6157
          %v6161 = vmul.f32 %v6127, %v6157
          %v6162 = vmul.f32 %v6128, %v6157
          %v6163 = vmul.f32 %v6129, %v6157
          %v6164 = vmul.f32 %v6131, %v6157
          %v6165 = vmul.f32 %v6132, %v6157
          %v6166 = vmul.f32 %v6133, %v6157
          %v6167 = vmul.f32 %v6135, %v6157
          %v6168 = vmul.f32 %v6136, %v6157
          %v6169 = vmul.f32 %v6137, %v6157
          %v6182 = vrot.slane %v6158, 1
          %v6183 = vrot.slane %v6159, 1
          %v6184 = vsel %vm433, %v6182, %v6183
          %v6185 = vrot.slane %v6160, 1
          %v6186 = vsel %vm433, %v6183, %v6185
          %v6187 = vrot.slane %v6161, 1
          %v6188 = vrot.slane %v6162, 1
          %v6189 = vsel %vm433, %v6187, %v6188
          %v6190 = vrot.slane %v6163, 1
          %v6191 = vsel %vm433, %v6188, %v6190
          %v6192 = vrot.slane %v6164, 1
          %v6193 = vrot.slane %v6165, 1
          %v6194 = vsel %vm433, %v6192, %v6193
          %v6195 = vrot.slane %v6166, 1
          %v6196 = vsel %vm433, %v6193, %v6195
          %v6197 = vrot.slane %v6167, 1
          %v6198 = vrot.slane %v6168, 1
          %v6199 = vsel %vm433, %v6197, %v6198
          %v6200 = vrot.slane %v6169, 1
          %v6201 = vsel %vm433, %v6198, %v6200
          %v6210 = vadd.f32 %v6146, %v6184
          %v6211 = vadd.f32 %v6147, %v6186
          %v6212 = vadd.f32 %v6148, %v6189
          %v6213 = vadd.f32 %v6149, %v6191
          %v6214 = vadd.f32 %v6150, %v6194
          %v6215 = vadd.f32 %v6151, %v6196
          %v6216 = vadd.f32 %v6152, %v6199
          %v6217 = vadd.f32 %v6153, %v6201
          %v6218 = vlaneseq
          %v6219 = vshrl.u32 %v6218, 7
          %v6220 = vsub.s32 2, %v6219
          %v6221 = vrot.slane %v6140, %v6220
          %v6222 = vmul.f32 %v6123, %v6221
          %v6223 = vmul.f32 %v6124, %v6221
          %v6224 = vmul.f32 %v6125, %v6221
          %v6225 = vmul.f32 %v6127, %v6221
          %v6226 = vmul.f32 %v6128, %v6221
          %v6227 = vmul.f32 %v6129, %v6221
          %v6228 = vmul.f32 %v6131, %v6221
          %v6229 = vmul.f32 %v6132, %v6221
          %v6230 = vmul.f32 %v6133, %v6221
          %v6231 = vmul.f32 %v6135, %v6221
          %v6232 = vmul.f32 %v6136, %v6221
          %v6233 = vmul.f32 %v6137, %v6221
          %v6246 = vrot.slane %v6222, 2
          %v6247 = vrot.slane %v6223, 2
          %v6248 = vsel %vm498, %v6246, %v6247
          %v6249 = vrot.slane %v6224, 2
          %v6250 = vsel %vm498, %v6247, %v6249
          %v6251 = vrot.slane %v6225, 2
          %v6252 = vrot.slane %v6226, 2
          %v6253 = vsel %vm498, %v6251, %v6252
          %v6254 = vrot.slane %v6227, 2
          %v6255 = vsel %vm498, %v6252, %v6254
          %v6256 = vrot.slane %v6228, 2
          %v6257 = vrot.slane %v6229, 2
          %v6258 = vsel %vm498, %v6256, %v6257
          %v6259 = vrot.slane %v6230, 2
          %v6260 = vsel %vm498, %v6257, %v6259
          %v6261 = vrot.slane %v6231, 2
          %v6262 = vrot.slane %v6232, 2
          %v6263 = vsel %vm498, %v6261, %v6262
          %v6264 = vrot.slane %v6233, 2
          %v6265 = vsel %vm498, %v6262, %v6264
          %v6274 = vadd.f32 %v6210, %v6248
          %v6275 = vadd.f32 %v6211, %v6250
          %v6276 = vadd.f32 %v6212, %v6253
          %v6277 = vadd.f32 %v6213, %v6255
          %v6278 = vadd.f32 %v6214, %v6258
          %v6279 = vadd.f32 %v6215, %v6260
          %v6280 = vadd.f32 %v6216, %v6263
          %v6281 = vadd.f32 %v6217, %v6265
          %v6282 = vlaneseq
          %v6283 = vshrl.u32 %v6282, 7
          %v6284 = vsub.s32 3, %v6283
          %v6285 = vrot.slane %v6140, %v6284
          %v6286 = vmul.f32 %v6123, %v6285
          %v6287 = vmul.f32 %v6124, %v6285
          %v6288 = vmul.f32 %v6125, %v6285
          %v6289 = vmul.f32 %v6127, %v6285
          %v6290 = vmul.f32 %v6128, %v6285
          %v6291 = vmul.f32 %v6129, %v6285
          %v6292 = vmul.f32 %v6131, %v6285
          %v6293 = vmul.f32 %v6132, %v6285
          %v6294 = vmul.f32 %v6133, %v6285
          %v6295 = vmul.f32 %v6135, %v6285
          %v6296 = vmul.f32 %v6136, %v6285
          %v6297 = vmul.f32 %v6137, %v6285
          %v6310 = vrot.slane %v6286, 3
          %v6311 = vrot.slane %v6287, 3
          %v6312 = vsel %vm563, %v6310, %v6311
          %v6313 = vrot.slane %v6288, 3
          %v6314 = vsel %vm563, %v6311, %v6313
          %v6315 = vrot.slane %v6289, 3
          %v6316 = vrot.slane %v6290, 3
          %v6317 = vsel %vm563, %v6315, %v6316
          %v6318 = vrot.slane %v6291, 3
          %v6319 = vsel %vm563, %v6316, %v6318
          %v6320 = vrot.slane %v6292, 3
          %v6321 = vrot.slane %v6293, 3
          %v6322 = vsel %vm563, %v6320, %v6321
          %v6323 = vrot.slane %v6294, 3
          %v6324 = vsel %vm563, %v6321, %v6323
          %v6325 = vrot.slane %v6295, 3
          %v6326 = vrot.slane %v6296, 3
          %v6327 = vsel %vm563, %v6325, %v6326
          %v6328 = vrot.slane %v6297, 3
          %v6329 = vsel %vm563, %v6326, %v6328
          %v6338 = vadd.f32 %v6274, %v6312
          %v6339 = vadd.f32 %v6275, %v6314
          %v6340 = vadd.f32 %v6276, %v6317
          %v6341 = vadd.f32 %v6277, %v6319
          %v6342 = vadd.f32 %v6278, %v6322
          %v6343 = vadd.f32 %v6279, %v6324
          %v6344 = vadd.f32 %v6280, %v6327
          %v6345 = vadd.f32 %v6281, %v6329
          %v6346 = vlaneseq
          %v6347 = vshrl.u32 %v6346, 7
          %v6348 = vsub.s32 4, %v6347
          %v6349 = vrot.slane %v6140, %v6348
          %v6350 = vmul.f32 %v6123, %v6349
          %v6351 = vmul.f32 %v6124, %v6349
          %v6352 = vmul.f32 %v6125, %v6349
          %v6353 = vmul.f32 %v6127, %v6349
          %v6354 = vmul.f32 %v6128, %v6349
          %v6355 = vmul.f32 %v6129, %v6349
          %v6356 = vmul.f32 %v6131, %v6349
          %v6357 = vmul.f32 %v6132, %v6349
          %v6358 = vmul.f32 %v6133, %v6349
          %v6359 = vmul.f32 %v6135, %v6349
          %v6360 = vmul.f32 %v6136, %v6349
          %v6361 = vmul.f32 %v6137, %v6349
          %v6374 = vrot.slane %v6350, 4
          %v6375 = vrot.slane %v6351, 4
          %v6376 = vsel %vm628, %v6374, %v6375
          %v6377 = vrot.slane %v6352, 4
          %v6378 = vsel %vm628, %v6375, %v6377
          %v6379 = vrot.slane %v6353, 4
          %v6380 = vrot.slane %v6354, 4
          %v6381 = vsel %vm628, %v6379, %v6380
          %v6382 = vrot.slane %v6355, 4
          %v6383 = vsel %vm628, %v6380, %v6382
          %v6384 = vrot.slane %v6356, 4
          %v6385 = vrot.slane %v6357, 4
          %v6386 = vsel %vm628, %v6384, %v6385
          %v6387 = vrot.slane %v6358, 4
          %v6388 = vsel %vm628, %v6385, %v6387
          %v6389 = vrot.slane %v6359, 4
          %v6390 = vrot.slane %v6360, 4
          %v6391 = vsel %vm628, %v6389, %v6390
          %v6392 = vrot.slane %v6361, 4
          %v6393 = vsel %vm628, %v6390, %v6392
          %v6402 = vadd.f32 %v6338, %v6376
          %v6403 = vadd.f32 %v6339, %v6378
          %v6404 = vadd.f32 %v6340, %v6381
          %v6405 = vadd.f32 %v6341, %v6383
          %v6406 = vadd.f32 %v6342, %v6386
          %v6407 = vadd.f32 %v6343, %v6388
          %v6408 = vadd.f32 %v6344, %v6391
          %v6409 = vadd.f32 %v6345, %v6393
          %v6410 = vlaneseq
          %v6411 = vshrl.u32 %v6410, 7
          %v6412 = vsub.s32 5, %v6411
          %v6413 = vrot.slane %v6140, %v6412
          %v6414 = vmul.f32 %v6123, %v6413
          %v6415 = vmul.f32 %v6124, %v6413
          %v6416 = vmul.f32 %v6125, %v6413
          %v6417 = vmul.f32 %v6127, %v6413
          %v6418 = vmul.f32 %v6128, %v6413
          %v6419 = vmul.f32 %v6129, %v6413
          %v6420 = vmul.f32 %v6131, %v6413
          %v6421 = vmul.f32 %v6132, %v6413
          %v6422 = vmul.f32 %v6133, %v6413
          %v6423 = vmul.f32 %v6135, %v6413
          %v6424 = vmul.f32 %v6136, %v6413
          %v6425 = vmul.f32 %v6137, %v6413
          %v6438 = vrot.slane %v6414, 5
          %v6439 = vrot.slane %v6415, 5
          %v6440 = vsel %vm693, %v6438, %v6439
          %v6441 = vrot.slane %v6416, 5
          %v6442 = vsel %vm693, %v6439, %v6441
          %v6443 = vrot.slane %v6417, 5
          %v6444 = vrot.slane %v6418, 5
          %v6445 = vsel %vm693, %v6443, %v6444
          %v6446 = vrot.slane %v6419, 5
          %v6447 = vsel %vm693, %v6444, %v6446
          %v6448 = vrot.slane %v6420, 5
          %v6449 = vrot.slane %v6421, 5
          %v6450 = vsel %vm693, %v6448, %v6449
          %v6451 = vrot.slane %v6422, 5
          %v6452 = vsel %vm693, %v6449, %v6451
          %v6453 = vrot.slane %v6423, 5
          %v6454 = vrot.slane %v6424, 5
          %v6455 = vsel %vm693, %v6453, %v6454
          %v6456 = vrot.slane %v6425, 5
          %v6457 = vsel %vm693, %v6454, %v6456
          %v6466 = vadd.f32 %v6402, %v6440
          %v6467 = vadd.f32 %v6403, %v6442
          %v6468 = vadd.f32 %v6404, %v6445
          %v6469 = vadd.f32 %v6405, %v6447
          %v6470 = vadd.f32 %v6406, %v6450
          %v6471 = vadd.f32 %v6407, %v6452
          %v6472 = vadd.f32 %v6408, %v6455
          %v6473 = vadd.f32 %v6409, %v6457
          %v6474 = vlaneseq
          %v6475 = vshrl.u32 %v6474, 7
          %v6476 = vsub.s32 6, %v6475
          %v6477 = vrot.slane %v6140, %v6476
          %v6478 = vmul.f32 %v6123, %v6477
          %v6479 = vmul.f32 %v6124, %v6477
          %v6480 = vmul.f32 %v6125, %v6477
          %v6481 = vmul.f32 %v6127, %v6477
          %v6482 = vmul.f32 %v6128, %v6477
          %v6483 = vmul.f32 %v6129, %v6477
          %v6484 = vmul.f32 %v6131, %v6477
          %v6485 = vmul.f32 %v6132, %v6477
          %v6486 = vmul.f32 %v6133, %v6477
          %v6487 = vmul.f32 %v6135, %v6477
          %v6488 = vmul.f32 %v6136, %v6477
          %v6489 = vmul.f32 %v6137, %v6477
          %v6502 = vrot.slane %v6478, 6
          %v6503 = vrot.slane %v6479, 6
          %v6504 = vsel %vm758, %v6502, %v6503
          %v6505 = vrot.slane %v6480, 6
          %v6506 = vsel %vm758, %v6503, %v6505
          %v6507 = vrot.slane %v6481, 6
          %v6508 = vrot.slane %v6482, 6
          %v6509 = vsel %vm758, %v6507, %v6508
          %v6510 = vrot.slane %v6483, 6
          %v6511 = vsel %vm758, %v6508, %v6510
          %v6512 = vrot.slane %v6484, 6
          %v6513 = vrot.slane %v6485, 6
          %v6514 = vsel %vm758, %v6512, %v6513
          %v6515 = vrot.slane %v6486, 6
          %v6516 = vsel %vm758, %v6513, %v6515
          %v6517 = vrot.slane %v6487, 6
          %v6518 = vrot.slane %v6488, 6
          %v6519 = vsel %vm758, %v6517, %v6518
          %v6520 = vrot.slane %v6489, 6
          %v6521 = vsel %vm758, %v6518, %v6520
          %v6530 = vadd.f32 %v6466, %v6504
          %v6531 = vadd.f32 %v6467, %v6506
          %v6532 = vadd.f32 %v6468, %v6509
          %v6533 = vadd.f32 %v6469, %v6511
          %v6534 = vadd.f32 %v6470, %v6514
          %v6535 = vadd.f32 %v6471, %v6516
          %v6536 = vadd.f32 %v6472, %v6519
          %v6537 = vadd.f32 %v6473, %v6521
          %v6538 = vlaneseq
          %v6539 = vshrl.u32 %v6538, 7
          %v6540 = vsub.s32 7, %v6539
          %v6541 = vrot.slane %v6140, %v6540
          %v6542 = vmul.f32 %v6123, %v6541
          %v6543 = vmul.f32 %v6124, %v6541
          %v6544 = vmul.f32 %v6125, %v6541
          %v6545 = vmul.f32 %v6127, %v6541
          %v6546 = vmul.f32 %v6128, %v6541
          %v6547 = vmul.f32 %v6129, %v6541
          %v6548 = vmul.f32 %v6131, %v6541
          %v6549 = vmul.f32 %v6132, %v6541
          %v6550 = vmul.f32 %v6133, %v6541
          %v6551 = vmul.f32 %v6135, %v6541
          %v6552 = vmul.f32 %v6136, %v6541
          %v6553 = vmul.f32 %v6137, %v6541
          %v6566 = vrot.slane %v6542, 7
          %v6567 = vrot.slane %v6543, 7
          %v6568 = vsel %vm823, %v6566, %v6567
          %v6569 = vrot.slane %v6544, 7
          %v6570 = vsel %vm823, %v6567, %v6569
          %v6571 = vrot.slane %v6545, 7
          %v6572 = vrot.slane %v6546, 7
          %v6573 = vsel %vm823, %v6571, %v6572
          %v6574 = vrot.slane %v6547, 7
          %v6575 = vsel %vm823, %v6572, %v6574
          %v6576 = vrot.slane %v6548, 7
          %v6577 = vrot.slane %v6549, 7
          %v6578 = vsel %vm823, %v6576, %v6577
          %v6579 = vrot.slane %v6550, 7
          %v6580 = vsel %vm823, %v6577, %v6579
          %v6581 = vrot.slane %v6551, 7
          %v6582 = vrot.slane %v6552, 7
          %v6583 = vsel %vm823, %v6581, %v6582
          %v6584 = vrot.slane %v6553, 7
          %v6585 = vsel %vm823, %v6582, %v6584
          %v6594 = vadd.f32 %v6530, %v6568
          %v6595 = vadd.f32 %v6531, %v6570
          %v6596 = vadd.f32 %v6532, %v6573
          %v6597 = vadd.f32 %v6533, %v6575
          %v6598 = vadd.f32 %v6534, %v6578
          %v6599 = vadd.f32 %v6535, %v6580
          %v6600 = vadd.f32 %v6536, %v6583
          %v6601 = vadd.f32 %v6537, %v6585
          %v6602 = vlaneseq
          %v6603 = vshrl.u32 %v6602, 7
          %v6604 = vsub.s32 0, %v6603
          %v6605 = vrot.slane %v6141, %v6604
          %v6606 = vmul.f32 %v6124, %v6605
          %v6607 = vmul.f32 %v6125, %v6605
          %v6608 = vmul.f32 %v6128, %v6605
          %v6609 = vmul.f32 %v6129, %v6605
          %v6610 = vmul.f32 %v6132, %v6605
          %v6611 = vmul.f32 %v6133, %v6605
          %v6612 = vmul.f32 %v6136, %v6605
          %v6613 = vmul.f32 %v6137, %v6605
          %v6614 = vadd.f32 %v6594, %v6606
          %v6615 = vadd.f32 %v6595, %v6607
          %v6616 = vadd.f32 %v6596, %v6608
          %v6617 = vadd.f32 %v6597, %v6609
          %v6618 = vadd.f32 %v6598, %v6610
          %v6619 = vadd.f32 %v6599, %v6611
          %v6620 = vadd.f32 %v6600, %v6612
          %v6621 = vadd.f32 %v6601, %v6613
          %v6622 = vlaneseq
          %v6623 = vshrl.u32 %v6622, 7
          %v6624 = vsub.s32 1, %v6623
          %v6625 = vrot.slane %v6141, %v6624
          %v6626 = vmul.f32 %v6124, %v6625
          %v6627 = vmul.f32 %v6125, %v6625
          %v6628 = vmul.f32 %v6126, %v6625
          %v6629 = vmul.f32 %v6128, %v6625
          %v6630 = vmul.f32 %v6129, %v6625
          %v6631 = vmul.f32 %v6130, %v6625
          %v6632 = vmul.f32 %v6132, %v6625
          %v6633 = vmul.f32 %v6133, %v6625
          %v6634 = vmul.f32 %v6134, %v6625
          %v6635 = vmul.f32 %v6136, %v6625
          %v6636 = vmul.f32 %v6137, %v6625
          %v6637 = vmul.f32 %v6138, %v6625
          %v6650 = vrot.slane %v6626, 1
          %v6651 = vrot.slane %v6627, 1
          %v6652 = vsel %vm433, %v6650, %v6651
          %v6653 = vrot.slane %v6628, 1
          %v6654 = vsel %vm433, %v6651, %v6653
          %v6655 = vrot.slane %v6629, 1
          %v6656 = vrot.slane %v6630, 1
          %v6657 = vsel %vm433, %v6655, %v6656
          %v6658 = vrot.slane %v6631, 1
          %v6659 = vsel %vm433, %v6656, %v6658
          %v6660 = vrot.slane %v6632, 1
          %v6661 = vrot.slane %v6633, 1
          %v6662 = vsel %vm433, %v6660, %v6661
          %v6663 = vrot.slane %v6634, 1
          %v6664 = vsel %vm433, %v6661, %v6663
          %v6665 = vrot.slane %v6635, 1
          %v6666 = vrot.slane %v6636, 1
          %v6667 = vsel %vm433, %v6665, %v6666
          %v6668 = vrot.slane %v6637, 1
          %v6669 = vsel %vm433, %v6666, %v6668
          %v6678 = vadd.f32 %v6614, %v6652
          %v6679 = vadd.f32 %v6615, %v6654
          %v6680 = vadd.f32 %v6616, %v6657
          %v6681 = vadd.f32 %v6617, %v6659
          %v6682 = vadd.f32 %v6618, %v6662
          %v6683 = vadd.f32 %v6619, %v6664
          %v6684 = vadd.f32 %v6620, %v6667
          %v6685 = vadd.f32 %v6621, %v6669
          %v6686 = vlaneseq
          %v6687 = vshrl.u32 %v6686, 7
          %v6688 = vsub.s32 2, %v6687
          %v6689 = vrot.slane %v6141, %v6688
          %v6690 = vmul.f32 %v6124, %v6689
          %v6691 = vmul.f32 %v6125, %v6689
          %v6692 = vmul.f32 %v6126, %v6689
          %v6693 = vmul.f32 %v6128, %v6689
          %v6694 = vmul.f32 %v6129, %v6689
          %v6695 = vmul.f32 %v6130, %v6689
          %v6696 = vmul.f32 %v6132, %v6689
          %v6697 = vmul.f32 %v6133, %v6689
          %v6698 = vmul.f32 %v6134, %v6689
          %v6699 = vmul.f32 %v6136, %v6689
          %v6700 = vmul.f32 %v6137, %v6689
          %v6701 = vmul.f32 %v6138, %v6689
          %v6714 = vrot.slane %v6690, 2
          %v6715 = vrot.slane %v6691, 2
          %v6716 = vsel %vm498, %v6714, %v6715
          %v6717 = vrot.slane %v6692, 2
          %v6718 = vsel %vm498, %v6715, %v6717
          %v6719 = vrot.slane %v6693, 2
          %v6720 = vrot.slane %v6694, 2
          %v6721 = vsel %vm498, %v6719, %v6720
          %v6722 = vrot.slane %v6695, 2
          %v6723 = vsel %vm498, %v6720, %v6722
          %v6724 = vrot.slane %v6696, 2
          %v6725 = vrot.slane %v6697, 2
          %v6726 = vsel %vm498, %v6724, %v6725
          %v6727 = vrot.slane %v6698, 2
          %v6728 = vsel %vm498, %v6725, %v6727
          %v6729 = vrot.slane %v6699, 2
          %v6730 = vrot.slane %v6700, 2
          %v6731 = vsel %vm498, %v6729, %v6730
          %v6732 = vrot.slane %v6701, 2
          %v6733 = vsel %vm498, %v6730, %v6732
          %v6742 = vadd.f32 %v6678, %v6716
          %v6743 = vadd.f32 %v6679, %v6718
          %v6744 = vadd.f32 %v6680, %v6721
          %v6745 = vadd.f32 %v6681, %v6723
          %v6746 = vadd.f32 %v6682, %v6726
          %v6747 = vadd.f32 %v6683, %v6728
          %v6748 = vadd.f32 %v6684, %v6731
          %v6749 = vadd.f32 %v6685, %v6733
          %v6750 = vadd.f32 %v5474, %v6742
          %v6751 = vadd.f32 %v5475, %v6743
          %v6752 = vadd.f32 %v5476, %v6744
          %v6753 = vadd.f32 %v5477, %v6745
          %v6754 = vadd.f32 %v5478, %v6746
          %v6755 = vadd.f32 %v5479, %v6747
          %v6756 = vadd.f32 %v5480, %v6748
          %v6757 = vadd.f32 %v5481, %v6749
          %s6758 = sadd.s32 %s372, 10
          %s6759 = smul.u32 %s6758, 32
          %s6760 = scalar_lea.vmem %s358, %s6759
          %v6761 = vld [vmem:[%s6760] sm:$0xff]
          %v6762 = vld [vmem:[%s6760 + $0x8] sm:$0xff]
          %v6763 = vld [vmem:[%s6760 + $0x10] sm:$0xff]
          %v6764 = vld [vmem:[%s6760 + $0x18] sm:$0x3]
          %v6765 = vld [vmem:[%s6760 + $0x20] sm:$0xff]
          %v6766 = vld [vmem:[%s6760 + $0x28] sm:$0xff]
          %v6767 = vld [vmem:[%s6760 + $0x30] sm:$0xff]
          %v6768 = vld [vmem:[%s6760 + $0x38] sm:$0x3]
          %v6769 = vld [vmem:[%s6760 + $0x40] sm:$0xff]
          %v6770 = vld [vmem:[%s6760 + $0x48] sm:$0xff]
          %v6771 = vld [vmem:[%s6760 + $0x50] sm:$0xff]
          %v6772 = vld [vmem:[%s6760 + $0x58] sm:$0x3]
          %v6773 = vld [vmem:[%s6760 + $0x60] sm:$0xff]
          %v6774 = vld [vmem:[%s6760 + $0x68] sm:$0xff]
          %v6775 = vld [vmem:[%s6760 + $0x70] sm:$0xff]
          %v6776 = vld [vmem:[%s6760 + $0x78] sm:$0x3]
          %s6777 = scalar_lea.vmem %s1, 160
          %v6778 = vld [vmem:[%s6777] sm:$0xff]
          %v6779 = vld [vmem:[%s6777 + $0x8] sm:$0x7]
          %v6780 = vlaneseq
          %v6781 = vshrl.u32 %v6780, 7
          %v6782 = vsub.s32 0, %v6781
          %v6783 = vrot.slane %v6778, %v6782
          %v6784 = vmul.f32 %v6761, %v6783
          %v6785 = vmul.f32 %v6762, %v6783
          %v6786 = vmul.f32 %v6765, %v6783
          %v6787 = vmul.f32 %v6766, %v6783
          %v6788 = vmul.f32 %v6769, %v6783
          %v6789 = vmul.f32 %v6770, %v6783
          %v6790 = vmul.f32 %v6773, %v6783
          %v6791 = vmul.f32 %v6774, %v6783
          %v6792 = vlaneseq
          %v6793 = vshrl.u32 %v6792, 7
          %v6794 = vsub.s32 1, %v6793
          %v6795 = vrot.slane %v6778, %v6794
          %v6796 = vmul.f32 %v6761, %v6795
          %v6797 = vmul.f32 %v6762, %v6795
          %v6798 = vmul.f32 %v6763, %v6795
          %v6799 = vmul.f32 %v6765, %v6795
          %v6800 = vmul.f32 %v6766, %v6795
          %v6801 = vmul.f32 %v6767, %v6795
          %v6802 = vmul.f32 %v6769, %v6795
          %v6803 = vmul.f32 %v6770, %v6795
          %v6804 = vmul.f32 %v6771, %v6795
          %v6805 = vmul.f32 %v6773, %v6795
          %v6806 = vmul.f32 %v6774, %v6795
          %v6807 = vmul.f32 %v6775, %v6795
          %v6820 = vrot.slane %v6796, 1
          %v6821 = vrot.slane %v6797, 1
          %v6822 = vsel %vm433, %v6820, %v6821
          %v6823 = vrot.slane %v6798, 1
          %v6824 = vsel %vm433, %v6821, %v6823
          %v6825 = vrot.slane %v6799, 1
          %v6826 = vrot.slane %v6800, 1
          %v6827 = vsel %vm433, %v6825, %v6826
          %v6828 = vrot.slane %v6801, 1
          %v6829 = vsel %vm433, %v6826, %v6828
          %v6830 = vrot.slane %v6802, 1
          %v6831 = vrot.slane %v6803, 1
          %v6832 = vsel %vm433, %v6830, %v6831
          %v6833 = vrot.slane %v6804, 1
          %v6834 = vsel %vm433, %v6831, %v6833
          %v6835 = vrot.slane %v6805, 1
          %v6836 = vrot.slane %v6806, 1
          %v6837 = vsel %vm433, %v6835, %v6836
          %v6838 = vrot.slane %v6807, 1
          %v6839 = vsel %vm433, %v6836, %v6838
          %v6848 = vadd.f32 %v6784, %v6822
          %v6849 = vadd.f32 %v6785, %v6824
          %v6850 = vadd.f32 %v6786, %v6827
          %v6851 = vadd.f32 %v6787, %v6829
          %v6852 = vadd.f32 %v6788, %v6832
          %v6853 = vadd.f32 %v6789, %v6834
          %v6854 = vadd.f32 %v6790, %v6837
          %v6855 = vadd.f32 %v6791, %v6839
          %v6856 = vlaneseq
          %v6857 = vshrl.u32 %v6856, 7
          %v6858 = vsub.s32 2, %v6857
          %v6859 = vrot.slane %v6778, %v6858
          %v6860 = vmul.f32 %v6761, %v6859
          %v6861 = vmul.f32 %v6762, %v6859
          %v6862 = vmul.f32 %v6763, %v6859
          %v6863 = vmul.f32 %v6765, %v6859
          %v6864 = vmul.f32 %v6766, %v6859
          %v6865 = vmul.f32 %v6767, %v6859
          %v6866 = vmul.f32 %v6769, %v6859
          %v6867 = vmul.f32 %v6770, %v6859
          %v6868 = vmul.f32 %v6771, %v6859
          %v6869 = vmul.f32 %v6773, %v6859
          %v6870 = vmul.f32 %v6774, %v6859
          %v6871 = vmul.f32 %v6775, %v6859
          %v6884 = vrot.slane %v6860, 2
          %v6885 = vrot.slane %v6861, 2
          %v6886 = vsel %vm498, %v6884, %v6885
          %v6887 = vrot.slane %v6862, 2
          %v6888 = vsel %vm498, %v6885, %v6887
          %v6889 = vrot.slane %v6863, 2
          %v6890 = vrot.slane %v6864, 2
          %v6891 = vsel %vm498, %v6889, %v6890
          %v6892 = vrot.slane %v6865, 2
          %v6893 = vsel %vm498, %v6890, %v6892
          %v6894 = vrot.slane %v6866, 2
          %v6895 = vrot.slane %v6867, 2
          %v6896 = vsel %vm498, %v6894, %v6895
          %v6897 = vrot.slane %v6868, 2
          %v6898 = vsel %vm498, %v6895, %v6897
          %v6899 = vrot.slane %v6869, 2
          %v6900 = vrot.slane %v6870, 2
          %v6901 = vsel %vm498, %v6899, %v6900
          %v6902 = vrot.slane %v6871, 2
          %v6903 = vsel %vm498, %v6900, %v6902
          %v6912 = vadd.f32 %v6848, %v6886
          %v6913 = vadd.f32 %v6849, %v6888
          %v6914 = vadd.f32 %v6850, %v6891
          %v6915 = vadd.f32 %v6851, %v6893
          %v6916 = vadd.f32 %v6852, %v6896
          %v6917 = vadd.f32 %v6853, %v6898
          %v6918 = vadd.f32 %v6854, %v6901
          %v6919 = vadd.f32 %v6855, %v6903
          %v6920 = vlaneseq
          %v6921 = vshrl.u32 %v6920, 7
          %v6922 = vsub.s32 3, %v6921
          %v6923 = vrot.slane %v6778, %v6922
          %v6924 = vmul.f32 %v6761, %v6923
          %v6925 = vmul.f32 %v6762, %v6923
          %v6926 = vmul.f32 %v6763, %v6923
          %v6927 = vmul.f32 %v6765, %v6923
          %v6928 = vmul.f32 %v6766, %v6923
          %v6929 = vmul.f32 %v6767, %v6923
          %v6930 = vmul.f32 %v6769, %v6923
          %v6931 = vmul.f32 %v6770, %v6923
          %v6932 = vmul.f32 %v6771, %v6923
          %v6933 = vmul.f32 %v6773, %v6923
          %v6934 = vmul.f32 %v6774, %v6923
          %v6935 = vmul.f32 %v6775, %v6923
          %v6948 = vrot.slane %v6924, 3
          %v6949 = vrot.slane %v6925, 3
          %v6950 = vsel %vm563, %v6948, %v6949
          %v6951 = vrot.slane %v6926, 3
          %v6952 = vsel %vm563, %v6949, %v6951
          %v6953 = vrot.slane %v6927, 3
          %v6954 = vrot.slane %v6928, 3
          %v6955 = vsel %vm563, %v6953, %v6954
          %v6956 = vrot.slane %v6929, 3
          %v6957 = vsel %vm563, %v6954, %v6956
          %v6958 = vrot.slane %v6930, 3
          %v6959 = vrot.slane %v6931, 3
          %v6960 = vsel %vm563, %v6958, %v6959
          %v6961 = vrot.slane %v6932, 3
          %v6962 = vsel %vm563, %v6959, %v6961
          %v6963 = vrot.slane %v6933, 3
          %v6964 = vrot.slane %v6934, 3
          %v6965 = vsel %vm563, %v6963, %v6964
          %v6966 = vrot.slane %v6935, 3
          %v6967 = vsel %vm563, %v6964, %v6966
          %v6976 = vadd.f32 %v6912, %v6950
          %v6977 = vadd.f32 %v6913, %v6952
          %v6978 = vadd.f32 %v6914, %v6955
          %v6979 = vadd.f32 %v6915, %v6957
          %v6980 = vadd.f32 %v6916, %v6960
          %v6981 = vadd.f32 %v6917, %v6962
          %v6982 = vadd.f32 %v6918, %v6965
          %v6983 = vadd.f32 %v6919, %v6967
          %v6984 = vlaneseq
          %v6985 = vshrl.u32 %v6984, 7
          %v6986 = vsub.s32 4, %v6985
          %v6987 = vrot.slane %v6778, %v6986
          %v6988 = vmul.f32 %v6761, %v6987
          %v6989 = vmul.f32 %v6762, %v6987
          %v6990 = vmul.f32 %v6763, %v6987
          %v6991 = vmul.f32 %v6765, %v6987
          %v6992 = vmul.f32 %v6766, %v6987
          %v6993 = vmul.f32 %v6767, %v6987
          %v6994 = vmul.f32 %v6769, %v6987
          %v6995 = vmul.f32 %v6770, %v6987
          %v6996 = vmul.f32 %v6771, %v6987
          %v6997 = vmul.f32 %v6773, %v6987
          %v6998 = vmul.f32 %v6774, %v6987
          %v6999 = vmul.f32 %v6775, %v6987
          %v7012 = vrot.slane %v6988, 4
          %v7013 = vrot.slane %v6989, 4
          %v7014 = vsel %vm628, %v7012, %v7013
          %v7015 = vrot.slane %v6990, 4
          %v7016 = vsel %vm628, %v7013, %v7015
          %v7017 = vrot.slane %v6991, 4
          %v7018 = vrot.slane %v6992, 4
          %v7019 = vsel %vm628, %v7017, %v7018
          %v7020 = vrot.slane %v6993, 4
          %v7021 = vsel %vm628, %v7018, %v7020
          %v7022 = vrot.slane %v6994, 4
          %v7023 = vrot.slane %v6995, 4
          %v7024 = vsel %vm628, %v7022, %v7023
          %v7025 = vrot.slane %v6996, 4
          %v7026 = vsel %vm628, %v7023, %v7025
          %v7027 = vrot.slane %v6997, 4
          %v7028 = vrot.slane %v6998, 4
          %v7029 = vsel %vm628, %v7027, %v7028
          %v7030 = vrot.slane %v6999, 4
          %v7031 = vsel %vm628, %v7028, %v7030
          %v7040 = vadd.f32 %v6976, %v7014
          %v7041 = vadd.f32 %v6977, %v7016
          %v7042 = vadd.f32 %v6978, %v7019
          %v7043 = vadd.f32 %v6979, %v7021
          %v7044 = vadd.f32 %v6980, %v7024
          %v7045 = vadd.f32 %v6981, %v7026
          %v7046 = vadd.f32 %v6982, %v7029
          %v7047 = vadd.f32 %v6983, %v7031
          %v7048 = vlaneseq
          %v7049 = vshrl.u32 %v7048, 7
          %v7050 = vsub.s32 5, %v7049
          %v7051 = vrot.slane %v6778, %v7050
          %v7052 = vmul.f32 %v6761, %v7051
          %v7053 = vmul.f32 %v6762, %v7051
          %v7054 = vmul.f32 %v6763, %v7051
          %v7055 = vmul.f32 %v6765, %v7051
          %v7056 = vmul.f32 %v6766, %v7051
          %v7057 = vmul.f32 %v6767, %v7051
          %v7058 = vmul.f32 %v6769, %v7051
          %v7059 = vmul.f32 %v6770, %v7051
          %v7060 = vmul.f32 %v6771, %v7051
          %v7061 = vmul.f32 %v6773, %v7051
          %v7062 = vmul.f32 %v6774, %v7051
          %v7063 = vmul.f32 %v6775, %v7051
          %v7076 = vrot.slane %v7052, 5
          %v7077 = vrot.slane %v7053, 5
          %v7078 = vsel %vm693, %v7076, %v7077
          %v7079 = vrot.slane %v7054, 5
          %v7080 = vsel %vm693, %v7077, %v7079
          %v7081 = vrot.slane %v7055, 5
          %v7082 = vrot.slane %v7056, 5
          %v7083 = vsel %vm693, %v7081, %v7082
          %v7084 = vrot.slane %v7057, 5
          %v7085 = vsel %vm693, %v7082, %v7084
          %v7086 = vrot.slane %v7058, 5
          %v7087 = vrot.slane %v7059, 5
          %v7088 = vsel %vm693, %v7086, %v7087
          %v7089 = vrot.slane %v7060, 5
          %v7090 = vsel %vm693, %v7087, %v7089
          %v7091 = vrot.slane %v7061, 5
          %v7092 = vrot.slane %v7062, 5
          %v7093 = vsel %vm693, %v7091, %v7092
          %v7094 = vrot.slane %v7063, 5
          %v7095 = vsel %vm693, %v7092, %v7094
          %v7104 = vadd.f32 %v7040, %v7078
          %v7105 = vadd.f32 %v7041, %v7080
          %v7106 = vadd.f32 %v7042, %v7083
          %v7107 = vadd.f32 %v7043, %v7085
          %v7108 = vadd.f32 %v7044, %v7088
          %v7109 = vadd.f32 %v7045, %v7090
          %v7110 = vadd.f32 %v7046, %v7093
          %v7111 = vadd.f32 %v7047, %v7095
          %v7112 = vlaneseq
          %v7113 = vshrl.u32 %v7112, 7
          %v7114 = vsub.s32 6, %v7113
          %v7115 = vrot.slane %v6778, %v7114
          %v7116 = vmul.f32 %v6761, %v7115
          %v7117 = vmul.f32 %v6762, %v7115
          %v7118 = vmul.f32 %v6763, %v7115
          %v7119 = vmul.f32 %v6765, %v7115
          %v7120 = vmul.f32 %v6766, %v7115
          %v7121 = vmul.f32 %v6767, %v7115
          %v7122 = vmul.f32 %v6769, %v7115
          %v7123 = vmul.f32 %v6770, %v7115
          %v7124 = vmul.f32 %v6771, %v7115
          %v7125 = vmul.f32 %v6773, %v7115
          %v7126 = vmul.f32 %v6774, %v7115
          %v7127 = vmul.f32 %v6775, %v7115
          %v7140 = vrot.slane %v7116, 6
          %v7141 = vrot.slane %v7117, 6
          %v7142 = vsel %vm758, %v7140, %v7141
          %v7143 = vrot.slane %v7118, 6
          %v7144 = vsel %vm758, %v7141, %v7143
          %v7145 = vrot.slane %v7119, 6
          %v7146 = vrot.slane %v7120, 6
          %v7147 = vsel %vm758, %v7145, %v7146
          %v7148 = vrot.slane %v7121, 6
          %v7149 = vsel %vm758, %v7146, %v7148
          %v7150 = vrot.slane %v7122, 6
          %v7151 = vrot.slane %v7123, 6
          %v7152 = vsel %vm758, %v7150, %v7151
          %v7153 = vrot.slane %v7124, 6
          %v7154 = vsel %vm758, %v7151, %v7153
          %v7155 = vrot.slane %v7125, 6
          %v7156 = vrot.slane %v7126, 6
          %v7157 = vsel %vm758, %v7155, %v7156
          %v7158 = vrot.slane %v7127, 6
          %v7159 = vsel %vm758, %v7156, %v7158
          %v7168 = vadd.f32 %v7104, %v7142
          %v7169 = vadd.f32 %v7105, %v7144
          %v7170 = vadd.f32 %v7106, %v7147
          %v7171 = vadd.f32 %v7107, %v7149
          %v7172 = vadd.f32 %v7108, %v7152
          %v7173 = vadd.f32 %v7109, %v7154
          %v7174 = vadd.f32 %v7110, %v7157
          %v7175 = vadd.f32 %v7111, %v7159
          %v7176 = vlaneseq
          %v7177 = vshrl.u32 %v7176, 7
          %v7178 = vsub.s32 7, %v7177
          %v7179 = vrot.slane %v6778, %v7178
          %v7180 = vmul.f32 %v6761, %v7179
          %v7181 = vmul.f32 %v6762, %v7179
          %v7182 = vmul.f32 %v6763, %v7179
          %v7183 = vmul.f32 %v6765, %v7179
          %v7184 = vmul.f32 %v6766, %v7179
          %v7185 = vmul.f32 %v6767, %v7179
          %v7186 = vmul.f32 %v6769, %v7179
          %v7187 = vmul.f32 %v6770, %v7179
          %v7188 = vmul.f32 %v6771, %v7179
          %v7189 = vmul.f32 %v6773, %v7179
          %v7190 = vmul.f32 %v6774, %v7179
          %v7191 = vmul.f32 %v6775, %v7179
          %v7204 = vrot.slane %v7180, 7
          %v7205 = vrot.slane %v7181, 7
          %v7206 = vsel %vm823, %v7204, %v7205
          %v7207 = vrot.slane %v7182, 7
          %v7208 = vsel %vm823, %v7205, %v7207
          %v7209 = vrot.slane %v7183, 7
          %v7210 = vrot.slane %v7184, 7
          %v7211 = vsel %vm823, %v7209, %v7210
          %v7212 = vrot.slane %v7185, 7
          %v7213 = vsel %vm823, %v7210, %v7212
          %v7214 = vrot.slane %v7186, 7
          %v7215 = vrot.slane %v7187, 7
          %v7216 = vsel %vm823, %v7214, %v7215
          %v7217 = vrot.slane %v7188, 7
          %v7218 = vsel %vm823, %v7215, %v7217
          %v7219 = vrot.slane %v7189, 7
          %v7220 = vrot.slane %v7190, 7
          %v7221 = vsel %vm823, %v7219, %v7220
          %v7222 = vrot.slane %v7191, 7
          %v7223 = vsel %vm823, %v7220, %v7222
          %v7232 = vadd.f32 %v7168, %v7206
          %v7233 = vadd.f32 %v7169, %v7208
          %v7234 = vadd.f32 %v7170, %v7211
          %v7235 = vadd.f32 %v7171, %v7213
          %v7236 = vadd.f32 %v7172, %v7216
          %v7237 = vadd.f32 %v7173, %v7218
          %v7238 = vadd.f32 %v7174, %v7221
          %v7239 = vadd.f32 %v7175, %v7223
          %v7240 = vlaneseq
          %v7241 = vshrl.u32 %v7240, 7
          %v7242 = vsub.s32 0, %v7241
          %v7243 = vrot.slane %v6779, %v7242
          %v7244 = vmul.f32 %v6762, %v7243
          %v7245 = vmul.f32 %v6763, %v7243
          %v7246 = vmul.f32 %v6766, %v7243
          %v7247 = vmul.f32 %v6767, %v7243
          %v7248 = vmul.f32 %v6770, %v7243
          %v7249 = vmul.f32 %v6771, %v7243
          %v7250 = vmul.f32 %v6774, %v7243
          %v7251 = vmul.f32 %v6775, %v7243
          %v7252 = vadd.f32 %v7232, %v7244
          %v7253 = vadd.f32 %v7233, %v7245
          %v7254 = vadd.f32 %v7234, %v7246
          %v7255 = vadd.f32 %v7235, %v7247
          %v7256 = vadd.f32 %v7236, %v7248
          %v7257 = vadd.f32 %v7237, %v7249
          %v7258 = vadd.f32 %v7238, %v7250
          %v7259 = vadd.f32 %v7239, %v7251
          %v7260 = vlaneseq
          %v7261 = vshrl.u32 %v7260, 7
          %v7262 = vsub.s32 1, %v7261
          %v7263 = vrot.slane %v6779, %v7262
          %v7264 = vmul.f32 %v6762, %v7263
          %v7265 = vmul.f32 %v6763, %v7263
          %v7266 = vmul.f32 %v6764, %v7263
          %v7267 = vmul.f32 %v6766, %v7263
          %v7268 = vmul.f32 %v6767, %v7263
          %v7269 = vmul.f32 %v6768, %v7263
          %v7270 = vmul.f32 %v6770, %v7263
          %v7271 = vmul.f32 %v6771, %v7263
          %v7272 = vmul.f32 %v6772, %v7263
          %v7273 = vmul.f32 %v6774, %v7263
          %v7274 = vmul.f32 %v6775, %v7263
          %v7275 = vmul.f32 %v6776, %v7263
          %v7288 = vrot.slane %v7264, 1
          %v7289 = vrot.slane %v7265, 1
          %v7290 = vsel %vm433, %v7288, %v7289
          %v7291 = vrot.slane %v7266, 1
          %v7292 = vsel %vm433, %v7289, %v7291
          %v7293 = vrot.slane %v7267, 1
          %v7294 = vrot.slane %v7268, 1
          %v7295 = vsel %vm433, %v7293, %v7294
          %v7296 = vrot.slane %v7269, 1
          %v7297 = vsel %vm433, %v7294, %v7296
          %v7298 = vrot.slane %v7270, 1
          %v7299 = vrot.slane %v7271, 1
          %v7300 = vsel %vm433, %v7298, %v7299
          %v7301 = vrot.slane %v7272, 1
          %v7302 = vsel %vm433, %v7299, %v7301
          %v7303 = vrot.slane %v7273, 1
          %v7304 = vrot.slane %v7274, 1
          %v7305 = vsel %vm433, %v7303, %v7304
          %v7306 = vrot.slane %v7275, 1
          %v7307 = vsel %vm433, %v7304, %v7306
          %v7316 = vadd.f32 %v7252, %v7290
          %v7317 = vadd.f32 %v7253, %v7292
          %v7318 = vadd.f32 %v7254, %v7295
          %v7319 = vadd.f32 %v7255, %v7297
          %v7320 = vadd.f32 %v7256, %v7300
          %v7321 = vadd.f32 %v7257, %v7302
          %v7322 = vadd.f32 %v7258, %v7305
          %v7323 = vadd.f32 %v7259, %v7307
          %v7324 = vlaneseq
          %v7325 = vshrl.u32 %v7324, 7
          %v7326 = vsub.s32 2, %v7325
          %v7327 = vrot.slane %v6779, %v7326
          %v7328 = vmul.f32 %v6762, %v7327
          %v7329 = vmul.f32 %v6763, %v7327
          %v7330 = vmul.f32 %v6764, %v7327
          %v7331 = vmul.f32 %v6766, %v7327
          %v7332 = vmul.f32 %v6767, %v7327
          %v7333 = vmul.f32 %v6768, %v7327
          %v7334 = vmul.f32 %v6770, %v7327
          %v7335 = vmul.f32 %v6771, %v7327
          %v7336 = vmul.f32 %v6772, %v7327
          %v7337 = vmul.f32 %v6774, %v7327
          %v7338 = vmul.f32 %v6775, %v7327
          %v7339 = vmul.f32 %v6776, %v7327
          %v7352 = vrot.slane %v7328, 2
          %v7353 = vrot.slane %v7329, 2
          %v7354 = vsel %vm498, %v7352, %v7353
          %v7355 = vrot.slane %v7330, 2
          %v7356 = vsel %vm498, %v7353, %v7355
          %v7357 = vrot.slane %v7331, 2
          %v7358 = vrot.slane %v7332, 2
          %v7359 = vsel %vm498, %v7357, %v7358
          %v7360 = vrot.slane %v7333, 2
          %v7361 = vsel %vm498, %v7358, %v7360
          %v7362 = vrot.slane %v7334, 2
          %v7363 = vrot.slane %v7335, 2
          %v7364 = vsel %vm498, %v7362, %v7363
          %v7365 = vrot.slane %v7336, 2
          %v7366 = vsel %vm498, %v7363, %v7365
          %v7367 = vrot.slane %v7337, 2
          %v7368 = vrot.slane %v7338, 2
          %v7369 = vsel %vm498, %v7367, %v7368
          %v7370 = vrot.slane %v7339, 2
          %v7371 = vsel %vm498, %v7368, %v7370
          %v7380 = vadd.f32 %v7316, %v7354
          %v7381 = vadd.f32 %v7317, %v7356
          %v7382 = vadd.f32 %v7318, %v7359
          %v7383 = vadd.f32 %v7319, %v7361
          %v7384 = vadd.f32 %v7320, %v7364
          %v7385 = vadd.f32 %v7321, %v7366
          %v7386 = vadd.f32 %v7322, %v7369
          %v7387 = vadd.f32 %v7323, %v7371
          %v7388 = vadd.f32 %v6112, %v7380
          %v7389 = vadd.f32 %v6113, %v7381
          %v7390 = vadd.f32 %v6114, %v7382
          %v7391 = vadd.f32 %v6115, %v7383
          %v7392 = vadd.f32 %v6116, %v7384
          %v7393 = vadd.f32 %v6117, %v7385
          %v7394 = vadd.f32 %v6118, %v7386
          %v7395 = vadd.f32 %v6119, %v7387
          %v7396 = vadd.f32 %v7388, %v6750
          %v7397 = vadd.f32 %v7389, %v6751
          %v7398 = vadd.f32 %v7390, %v6752
          %v7399 = vadd.f32 %v7391, %v6753
          %v7400 = vadd.f32 %v7392, %v6754
          %v7401 = vadd.f32 %v7393, %v6755
          %v7402 = vadd.f32 %v7394, %v6756
          %v7403 = vadd.f32 %v7395, %v6757
          %v7405 = vlaneseq
          %v7406 = vshrl.u32 %v7405, 7
          %v7407 = vsub.s32 0, %v7406
          %v7408 = vrot.slane %v361, %v7407
          %v7410 = vadd.f32 %v7396, %v7408
          %v7411 = vadd.f32 %v7397, %v7408
          %v7412 = vadd.f32 %v7398, %v7408
          %v7413 = vadd.f32 %v7399, %v7408
          %v7414 = vadd.f32 %v7400, %v7408
          %v7415 = vadd.f32 %v7401, %v7408
          %v7416 = vadd.f32 %v7402, %v7408
          %v7417 = vadd.f32 %v7403, %v7408
          %7418 = vadd.xlane.f32.xlu0 %v7410
          %v7419 = vpop.xlane.xlu0 %7418
          %7420 = vadd.xlane.f32.xlu0 %v7411
          %v7421 = vpop.xlane.xlu0 %7420
          %7422 = vadd.xlane.f32.xlu0 %v7412
          %v7423 = vpop.xlane.xlu0 %7422
          %7424 = vadd.xlane.f32.xlu0 %v7413
          %v7425 = vpop.xlane.xlu0 %7424
          %7426 = vadd.xlane.f32.xlu0 %v7414
          %v7427 = vpop.xlane.xlu0 %7426
          %7428 = vadd.xlane.f32.xlu0 %v7415
          %v7429 = vpop.xlane.xlu0 %7428
          %7430 = vadd.xlane.f32.xlu0 %v7416
          %v7431 = vpop.xlane.xlu0 %7430
          %7432 = vadd.xlane.f32.xlu0 %v7417
          %v7433 = vpop.xlane.xlu0 %7432
          %v7434 = vrcp.pop 128.0
          %v7435 = vmul.f32 %v7419, %v7434
          %v7436 = vmul.f32 %v7421, %v7434
          %v7437 = vmul.f32 %v7423, %v7434
          %v7438 = vmul.f32 %v7425, %v7434
          %v7439 = vmul.f32 %v7427, %v7434
          %v7440 = vmul.f32 %v7429, %v7434
          %v7441 = vmul.f32 %v7431, %v7434
          %v7442 = vmul.f32 %v7433, %v7434
          %v7443 = vmul.f32 %v7410, %v7410
          %v7444 = vmul.f32 %v7411, %v7411
          %v7445 = vmul.f32 %v7412, %v7412
          %v7446 = vmul.f32 %v7413, %v7413
          %v7447 = vmul.f32 %v7414, %v7414
          %v7448 = vmul.f32 %v7415, %v7415
          %v7449 = vmul.f32 %v7416, %v7416
          %v7450 = vmul.f32 %v7417, %v7417
          %7451 = vadd.xlane.f32.xlu0 %v7443
          %v7452 = vpop.xlane.xlu0 %7451
          %7453 = vadd.xlane.f32.xlu0 %v7444
          %v7454 = vpop.xlane.xlu0 %7453
          %7455 = vadd.xlane.f32.xlu0 %v7445
          %v7456 = vpop.xlane.xlu0 %7455
          %7457 = vadd.xlane.f32.xlu0 %v7446
          %v7458 = vpop.xlane.xlu0 %7457
          %7459 = vadd.xlane.f32.xlu0 %v7447
          %v7460 = vpop.xlane.xlu0 %7459
          %7461 = vadd.xlane.f32.xlu0 %v7448
          %v7462 = vpop.xlane.xlu0 %7461
          %7463 = vadd.xlane.f32.xlu0 %v7449
          %v7464 = vpop.xlane.xlu0 %7463
          %7465 = vadd.xlane.f32.xlu0 %v7450
          %v7466 = vpop.xlane.xlu0 %7465
          %v7467 = vmul.f32 %v7452, %v7434
          %v7468 = vmul.f32 %v7454, %v7434
          %v7469 = vmul.f32 %v7456, %v7434
          %v7470 = vmul.f32 %v7458, %v7434
          %v7471 = vmul.f32 %v7460, %v7434
          %v7472 = vmul.f32 %v7462, %v7434
          %v7473 = vmul.f32 %v7464, %v7434
          %v7474 = vmul.f32 %v7466, %v7434
          %v7475 = vmul.f32 %v7435, %v7435
          %v7476 = vmul.f32 %v7436, %v7436
          %v7477 = vmul.f32 %v7437, %v7437
          %v7478 = vmul.f32 %v7438, %v7438
          %v7479 = vmul.f32 %v7439, %v7439
          %v7480 = vmul.f32 %v7440, %v7440
          %v7481 = vmul.f32 %v7441, %v7441
          %v7482 = vmul.f32 %v7442, %v7442
          %v7483 = vsub.f32 %v7467, %v7475
          %v7484 = vsub.f32 %v7468, %v7476
          %v7485 = vsub.f32 %v7469, %v7477
          %v7486 = vsub.f32 %v7470, %v7478
          %v7487 = vsub.f32 %v7471, %v7479
          %v7488 = vsub.f32 %v7472, %v7480
          %v7489 = vsub.f32 %v7473, %v7481
          %v7490 = vsub.f32 %v7474, %v7482
          %v7491 = vsub.f32 %v7410, %v7435
          %v7492 = vsub.f32 %v7411, %v7436
          %v7493 = vsub.f32 %v7412, %v7437
          %v7494 = vsub.f32 %v7413, %v7438
          %v7495 = vsub.f32 %v7414, %v7439
          %v7496 = vsub.f32 %v7415, %v7440
          %v7497 = vsub.f32 %v7416, %v7441
          %v7498 = vsub.f32 %v7417, %v7442
          %v7499 = vadd.f32 %v7483, 1e-06
          %v7500 = vadd.f32 %v7484, 1e-06
          %v7501 = vadd.f32 %v7485, 1e-06
          %v7502 = vadd.f32 %v7486, 1e-06
          %v7503 = vadd.f32 %v7487, 1e-06
          %v7504 = vadd.f32 %v7488, 1e-06
          %v7505 = vadd.f32 %v7489, 1e-06
          %v7506 = vadd.f32 %v7490, 1e-06
          %v7507 = vrsqrt.pop %v7499
          %v7508 = vrsqrt.pop %v7500
          %v7509 = vrsqrt.pop %v7501
          %v7510 = vrsqrt.pop %v7502
          %v7511 = vrsqrt.pop %v7503
          %v7512 = vrsqrt.pop %v7504
          %v7513 = vrsqrt.pop %v7505
          %v7514 = vrsqrt.pop %v7506
          %v7515 = vmul.f32 %v7491, %v7507
          %v7516 = vmul.f32 %v7492, %v7508
          %v7517 = vmul.f32 %v7493, %v7509
          %v7518 = vmul.f32 %v7494, %v7510
          %v7519 = vmul.f32 %v7495, %v7511
          %v7520 = vmul.f32 %v7496, %v7512
          %v7521 = vmul.f32 %v7497, %v7513
          %v7522 = vmul.f32 %v7498, %v7514
          %v7524 = vlaneseq
          %v7525 = vshrl.u32 %v7524, 7
          %v7526 = vsub.s32 0, %v7525
          %v7527 = vrot.slane %v362, %v7526
          %v7529 = vmul.f32 %v7515, %v7527
          %v7530 = vmul.f32 %v7516, %v7527
          %v7531 = vmul.f32 %v7517, %v7527
          %v7532 = vmul.f32 %v7518, %v7527
          %v7533 = vmul.f32 %v7519, %v7527
          %v7534 = vmul.f32 %v7520, %v7527
          %v7535 = vmul.f32 %v7521, %v7527
          %v7536 = vmul.f32 %v7522, %v7527
          %v7538 = vlaneseq
          %v7539 = vshrl.u32 %v7538, 7
          %v7540 = vsub.s32 0, %v7539
          %v7541 = vrot.slane %v363, %v7540
          %v7543 = vadd.f32 %v7529, %v7541
          %v7544 = vadd.f32 %v7530, %v7541
          %v7545 = vadd.f32 %v7531, %v7541
          %v7546 = vadd.f32 %v7532, %v7541
          %v7547 = vadd.f32 %v7533, %v7541
          %v7548 = vadd.f32 %v7534, %v7541
          %v7549 = vadd.f32 %v7535, %v7541
          %v7550 = vadd.f32 %v7536, %v7541
          %v7551 = vpack.c.bf16 %v7544, %v7543
          %v7552 = vpack.c.bf16 %v7546, %v7545
          %v7553 = vpack.c.bf16 %v7548, %v7547
          %v7554 = vpack.c.bf16 %v7550, %v7549
          %v7555 = vld [vmem:[%s5] sm:$0xff]
          %v7556 = vld [vmem:[%s5 + $0x8] sm:$0xff]
          %v7557 = vld [vmem:[%s5 + $0x10] sm:$0xff]
          %v7558 = vld [vmem:[%s5 + $0x18] sm:$0xff]
          %v7559 = vld [vmem:[%s5 + $0x20] sm:$0xff]
          %v7560 = vld [vmem:[%s5 + $0x28] sm:$0xff]
          %v7561 = vld [vmem:[%s5 + $0x30] sm:$0xff]
          %v7562 = vld [vmem:[%s5 + $0x38] sm:$0xff]
          %v7563 = vld [vmem:[%s5 + $0x40] sm:$0xff]
          %v7564 = vld [vmem:[%s5 + $0x48] sm:$0xff]
          %v7565 = vld [vmem:[%s5 + $0x50] sm:$0xff]
          %v7566 = vld [vmem:[%s5 + $0x58] sm:$0xff]
          %v7567 = vld [vmem:[%s5 + $0x60] sm:$0xff]
          %v7568 = vld [vmem:[%s5 + $0x68] sm:$0xff]
          %v7569 = vld [vmem:[%s5 + $0x70] sm:$0xff]
          %v7570 = vld [vmem:[%s5 + $0x78] sm:$0xff]
          %v7571 = vld [vmem:[%s5 + $0x80] sm:$0xff]
          %v7572 = vld [vmem:[%s5 + $0x88] sm:$0xff]
          %v7573 = vld [vmem:[%s5 + $0x90] sm:$0xff]
          %v7574 = vld [vmem:[%s5 + $0x98] sm:$0xff]
          %v7575 = vld [vmem:[%s5 + $0xa0] sm:$0xff]
          %v7576 = vld [vmem:[%s5 + $0xa8] sm:$0xff]
          %v7577 = vld [vmem:[%s5 + $0xb0] sm:$0xff]
          %v7578 = vld [vmem:[%s5 + $0xb8] sm:$0xff]
          %v7579 = vld [vmem:[%s5 + $0xc0] sm:$0xff]
          %v7580 = vld [vmem:[%s5 + $0xc8] sm:$0xff]
          %v7581 = vld [vmem:[%s5 + $0xd0] sm:$0xff]
          %v7582 = vld [vmem:[%s5 + $0xd8] sm:$0xff]
          %v7583 = vld [vmem:[%s5 + $0xe0] sm:$0xff]
          %v7584 = vld [vmem:[%s5 + $0xe8] sm:$0xff]
          %v7585 = vld [vmem:[%s5 + $0xf0] sm:$0xff]
          %v7586 = vld [vmem:[%s5 + $0xf8] sm:$0xff]
          %v7588 = vlaneseq
          %v7589 = vshrl.u32 %v7588, 7
          %v7590 = vsub.s32 0, %v7589
          %v7591 = vrot.slane %v364, %v7590
          %v7592 = vlaneseq
          %v7593 = vshrl.u32 %v7592, 7
          %v7594 = vsub.s32 1, %v7593
          %v7595 = vrot.slane %v364, %v7594
          %v7596 = vlaneseq
          %v7597 = vshrl.u32 %v7596, 7
          %v7598 = vsub.s32 2, %v7597
          %v7599 = vrot.slane %v364, %v7598
          %v7600 = vlaneseq
          %v7601 = vshrl.u32 %v7600, 7
          %v7602 = vsub.s32 3, %v7601
          %v7603 = vrot.slane %v364, %v7602
          %v7640 = vunpack.c.l.b16 %v7555
          %v7641 = vunpack.c.h.b16 %v7555
          %v7642 = vunpack.c.l.b16 %v7556
          %v7643 = vunpack.c.h.b16 %v7556
          %v7644 = vunpack.c.l.b16 %v7557
          %v7645 = vunpack.c.h.b16 %v7557
          %v7646 = vunpack.c.l.b16 %v7558
          %v7647 = vunpack.c.h.b16 %v7558
          %v7648 = vunpack.c.l.b16 %v7559
          %v7649 = vunpack.c.h.b16 %v7559
          %v7650 = vunpack.c.l.b16 %v7560
          %v7651 = vunpack.c.h.b16 %v7560
          %v7652 = vunpack.c.l.b16 %v7561
          %v7653 = vunpack.c.h.b16 %v7561
          %v7654 = vunpack.c.l.b16 %v7562
          %v7655 = vunpack.c.h.b16 %v7562
          %v7656 = vunpack.c.l.b16 %v7563
          %v7657 = vunpack.c.h.b16 %v7563
          %v7658 = vunpack.c.l.b16 %v7564
          %v7659 = vunpack.c.h.b16 %v7564
          %v7660 = vunpack.c.l.b16 %v7565
          %v7661 = vunpack.c.h.b16 %v7565
          %v7662 = vunpack.c.l.b16 %v7566
          %v7663 = vunpack.c.h.b16 %v7566
          %v7664 = vunpack.c.l.b16 %v7567
          %v7665 = vunpack.c.h.b16 %v7567
          %v7666 = vunpack.c.l.b16 %v7568
          %v7667 = vunpack.c.h.b16 %v7568
          %v7668 = vunpack.c.l.b16 %v7569
          %v7669 = vunpack.c.h.b16 %v7569
          %v7670 = vunpack.c.l.b16 %v7570
          %v7671 = vunpack.c.h.b16 %v7570
          %v7672 = vunpack.c.l.b16 %v7571
          %v7673 = vunpack.c.h.b16 %v7571
          %v7674 = vunpack.c.l.b16 %v7572
          %v7675 = vunpack.c.h.b16 %v7572
          %v7676 = vunpack.c.l.b16 %v7573
          %v7677 = vunpack.c.h.b16 %v7573
          %v7678 = vunpack.c.l.b16 %v7574
          %v7679 = vunpack.c.h.b16 %v7574
          %v7680 = vunpack.c.l.b16 %v7575
          %v7681 = vunpack.c.h.b16 %v7575
          %v7682 = vunpack.c.l.b16 %v7576
          %v7683 = vunpack.c.h.b16 %v7576
          %v7684 = vunpack.c.l.b16 %v7577
          %v7685 = vunpack.c.h.b16 %v7577
          %v7686 = vunpack.c.l.b16 %v7578
          %v7687 = vunpack.c.h.b16 %v7578
          %v7688 = vunpack.c.l.b16 %v7579
          %v7689 = vunpack.c.h.b16 %v7579
          %v7690 = vunpack.c.l.b16 %v7580
          %v7691 = vunpack.c.h.b16 %v7580
          %v7692 = vunpack.c.l.b16 %v7581
          %v7693 = vunpack.c.h.b16 %v7581
          %v7694 = vunpack.c.l.b16 %v7582
          %v7695 = vunpack.c.h.b16 %v7582
          %v7696 = vunpack.c.l.b16 %v7583
          %v7697 = vunpack.c.h.b16 %v7583
          %v7698 = vunpack.c.l.b16 %v7584
          %v7699 = vunpack.c.h.b16 %v7584
          %v7700 = vunpack.c.l.b16 %v7585
          %v7701 = vunpack.c.h.b16 %v7585
          %v7702 = vunpack.c.l.b16 %v7586
          %v7703 = vunpack.c.h.b16 %v7586
          %v7704 = vpack.c.b16 %v7644, %v7640
          %v7705 = vpack.c.b16 %v7645, %v7641
          %v7706 = vpack.c.b16 %v7646, %v7642
          %v7707 = vpack.c.b16 %v7647, %v7643
          %v7708 = vpack.c.b16 %v7652, %v7648
          %v7709 = vpack.c.b16 %v7653, %v7649
          %v7710 = vpack.c.b16 %v7654, %v7650
          %v7711 = vpack.c.b16 %v7655, %v7651
          %v7712 = vpack.c.b16 %v7660, %v7656
          %v7713 = vpack.c.b16 %v7661, %v7657
          %v7714 = vpack.c.b16 %v7662, %v7658
          %v7715 = vpack.c.b16 %v7663, %v7659
          %v7716 = vpack.c.b16 %v7668, %v7664
          %v7717 = vpack.c.b16 %v7669, %v7665
          %v7718 = vpack.c.b16 %v7670, %v7666
          %v7719 = vpack.c.b16 %v7671, %v7667
          %v7720 = vpack.c.b16 %v7676, %v7672
          %v7721 = vpack.c.b16 %v7677, %v7673
          %v7722 = vpack.c.b16 %v7678, %v7674
          %v7723 = vpack.c.b16 %v7679, %v7675
          %v7724 = vpack.c.b16 %v7684, %v7680
          %v7725 = vpack.c.b16 %v7685, %v7681
          %v7726 = vpack.c.b16 %v7686, %v7682
          %v7727 = vpack.c.b16 %v7687, %v7683
          %v7728 = vpack.c.b16 %v7692, %v7688
          %v7729 = vpack.c.b16 %v7693, %v7689
          %v7730 = vpack.c.b16 %v7694, %v7690
          %v7731 = vpack.c.b16 %v7695, %v7691
          %v7732 = vpack.c.b16 %v7700, %v7696
          %v7733 = vpack.c.b16 %v7701, %v7697
          %v7734 = vpack.c.b16 %v7702, %v7698
          %v7735 = vpack.c.b16 %v7703, %v7699
          %7768 = vmatprep.subr.bf16.mxu0 %v7705
          %7769 = vmatpush1.bf16.msra.mxu0 %v7704
          %7770 = vmatprep.subr.bf16.mxu0 %v7709
          %7771 = vmatpush1.bf16.msra.mxu0 %v7708
          %7772 = vmatprep.subr.bf16.mxu0 %v7713
          %7773 = vmatpush1.bf16.msra.mxu0 %v7712
          %7774 = vmatprep.subr.bf16.mxu0 %v7717
          %7775 = vmatpush1.bf16.msra.mxu0 %v7716
          %7776 = vmatprep.subr.bf16.mxu0 %v7721
          %7777 = vmatpush1.bf16.msra.mxu0 %v7720
          %7778 = vmatprep.subr.bf16.mxu0 %v7725
          %7779 = vmatpush1.bf16.msra.mxu0 %v7724
          %7780 = vmatprep.subr.bf16.mxu0 %v7729
          %7781 = vmatpush1.bf16.msra.mxu0 %v7728
          %7782 = vmatprep.subr.bf16.mxu0 %v7733
          %7783 = vmatpush1.bf16.msra.mxu0 %v7732
          %7784 = vmatprep.subr.bf16.mxu0 0
          %7785 = vmatpush1.bf16.msra.mxu0 0
          %7786 = vmatprep.subr.bf16.mxu0 0
          %7787 = vmatpush1.bf16.msra.mxu0 0
          %7788 = vmatprep.subr.bf16.mxu0 0
          %7789 = vmatpush1.bf16.msra.mxu0 0
          %7790 = vmatprep.subr.bf16.mxu0 0
          %7791 = vmatpush1.bf16.msra.mxu0 0
          %7792 = vmatprep.subr.bf16.mxu0 0
          %7793 = vmatpush1.bf16.msra.mxu0 0
          %7794 = vmatprep.subr.bf16.mxu0 0
          %7795 = vmatpush1.bf16.msra.mxu0 0
          %7796 = vmatprep.subr.bf16.mxu0 0
          %7797 = vmatpush1.bf16.msra.mxu0 0
          %7798 = vmatprep.subr.bf16.mxu0 0
          %7799 = vmatpush1.bf16.msra.mxu0 0
          %7800 = vmatprep.mubr.bf16.mxu0 0
          %7801 = vmatmul.mubr.bf16.gmra.mrb[0].mxu0 %v7551
          %v7802 = vpop.f32.mrb[0].mxu0
          %v7803 = vadd.f32 %v7591, %v7802
          %v7804 = vpop.f32.mrb[0].mxu0
          %v7805 = vadd.f32 %v7595, %v7804
          %v7806 = vpop.f32.mrb[0].mxu0
          %v7807 = vadd.f32 %v7591, %v7806
          %v7808 = vpop.f32.mrb[0].mxu0
          %v7809 = vadd.f32 %v7595, %v7808
          %7810 = vmatprep.mubr.bf16.mxu0 0
          %7811 = vmatmul.mubr.bf16.gmra.mrb[0].mxu0 %v7552
          %v7812 = vpop.f32.mrb[0].mxu0
          %v7813 = vadd.f32 %v7591, %v7812
          %v7814 = vpop.f32.mrb[0].mxu0
          %v7815 = vadd.f32 %v7595, %v7814
          %v7816 = vpop.f32.mrb[0].mxu0
          %v7817 = vadd.f32 %v7591, %v7816
          %v7818 = vpop.f32.mrb[0].mxu0
          %v7819 = vadd.f32 %v7595, %v7818
          %7820 = vmatprep.mubr.bf16.mxu0 0
          %7821 = vmatmul.mubr.bf16.gmra.mrb[0].mxu0 %v7553
          %v7822 = vpop.f32.mrb[0].mxu0
          %v7823 = vadd.f32 %v7591, %v7822
          %v7824 = vpop.f32.mrb[0].mxu0
          %v7825 = vadd.f32 %v7595, %v7824
          %v7826 = vpop.f32.mrb[0].mxu0
          %v7827 = vadd.f32 %v7591, %v7826
          %v7828 = vpop.f32.mrb[0].mxu0
          %v7829 = vadd.f32 %v7595, %v7828
          %7830 = vmatprep.mubr.bf16.mxu0 0
          %7831 = vmatmul.mubr.bf16.gmra.mrb[0].mxu0 %v7554
          %v7832 = vpop.f32.mrb[0].mxu0
          %v7833 = vadd.f32 %v7591, %v7832
          %v7834 = vpop.f32.mrb[0].mxu0
          %v7835 = vadd.f32 %v7595, %v7834
          %v7836 = vpop.f32.mrb[0].mxu0
          %v7837 = vadd.f32 %v7591, %v7836
          %v7838 = vpop.f32.mrb[0].mxu0
          %v7839 = vadd.f32 %v7595, %v7838
          %7840 = vdwg.mxu0
          %7841 = vmatprep.subr.bf16.mxu0 %v7707
          %7842 = vmatpush1.bf16.msra.mxu0 %v7706
          %7843 = vmatprep.subr.bf16.mxu0 %v7711
          %7844 = vmatpush1.bf16.msra.mxu0 %v7710
          %7845 = vmatprep.subr.bf16.mxu0 %v7715
          %7846 = vmatpush1.bf16.msra.mxu0 %v7714
          %7847 = vmatprep.subr.bf16.mxu0 %v7719
          %7848 = vmatpush1.bf16.msra.mxu0 %v7718
          %7849 = vmatprep.subr.bf16.mxu0 %v7723
          %7850 = vmatpush1.bf16.msra.mxu0 %v7722
          %7851 = vmatprep.subr.bf16.mxu0 %v7727
          %7852 = vmatpush1.bf16.msra.mxu0 %v7726
          %7853 = vmatprep.subr.bf16.mxu0 %v7731
          %7854 = vmatpush1.bf16.msra.mxu0 %v7730
          %7855 = vmatprep.subr.bf16.mxu0 %v7735
          %7856 = vmatpush1.bf16.msra.mxu0 %v7734
          %7857 = vmatprep.subr.bf16.mxu0 0
          %7858 = vmatpush1.bf16.msra.mxu0 0
          %7859 = vmatprep.subr.bf16.mxu0 0
          %7860 = vmatpush1.bf16.msra.mxu0 0
          %7861 = vmatprep.subr.bf16.mxu0 0
          %7862 = vmatpush1.bf16.msra.mxu0 0
          %7863 = vmatprep.subr.bf16.mxu0 0
          %7864 = vmatpush1.bf16.msra.mxu0 0
          %7865 = vmatprep.subr.bf16.mxu0 0
          %7866 = vmatpush1.bf16.msra.mxu0 0
          %7867 = vmatprep.subr.bf16.mxu0 0
          %7868 = vmatpush1.bf16.msra.mxu0 0
          %7869 = vmatprep.subr.bf16.mxu0 0
          %7870 = vmatpush1.bf16.msra.mxu0 0
          %7871 = vmatprep.subr.bf16.mxu0 0
          %7872 = vmatpush1.bf16.msra.mxu0 0
          %7873 = vmatprep.mubr.bf16.mxu0 0
          %7874 = vmatmul.mubr.bf16.gmra.mrb[0].mxu0 %v7551
          %v7875 = vpop.f32.mrb[0].mxu0
          %v7876 = vadd.f32 %v7599, %v7875
          %v7877 = vpop.f32.mrb[0].mxu0
          %v7878 = vadd.f32 %v7603, %v7877
          %v7879 = vpop.f32.mrb[0].mxu0
          %v7880 = vadd.f32 %v7599, %v7879
          %v7881 = vpop.f32.mrb[0].mxu0
          %v7882 = vadd.f32 %v7603, %v7881
          %7883 = vmatprep.mubr.bf16.mxu0 0
          %7884 = vmatmul.mubr.bf16.gmra.mrb[0].mxu0 %v7552
          %v7885 = vpop.f32.mrb[0].mxu0
          %v7886 = vadd.f32 %v7599, %v7885
          %v7887 = vpop.f32.mrb[0].mxu0
          %v7888 = vadd.f32 %v7603, %v7887
          %v7889 = vpop.f32.mrb[0].mxu0
          %v7890 = vadd.f32 %v7599, %v7889
          %v7891 = vpop.f32.mrb[0].mxu0
          %v7892 = vadd.f32 %v7603, %v7891
          %7893 = vmatprep.mubr.bf16.mxu0 0
          %7894 = vmatmul.mubr.bf16.gmra.mrb[0].mxu0 %v7553
          %v7895 = vpop.f32.mrb[0].mxu0
          %v7896 = vadd.f32 %v7599, %v7895
          %v7897 = vpop.f32.mrb[0].mxu0
          %v7898 = vadd.f32 %v7603, %v7897
          %v7899 = vpop.f32.mrb[0].mxu0
          %v7900 = vadd.f32 %v7599, %v7899
          %v7901 = vpop.f32.mrb[0].mxu0
          %v7902 = vadd.f32 %v7603, %v7901
          %7903 = vmatprep.mubr.bf16.mxu0 0
          %7904 = vmatmul.mubr.bf16.gmra.mrb[0].mxu0 %v7554
          %v7905 = vpop.f32.mrb[0].mxu0
          %v7906 = vadd.f32 %v7599, %v7905
          %v7907 = vpop.f32.mrb[0].mxu0
          %v7908 = vadd.f32 %v7603, %v7907
          %v7909 = vpop.f32.mrb[0].mxu0
          %v7910 = vadd.f32 %v7599, %v7909
          %v7911 = vpop.f32.mrb[0].mxu0
          %v7912 = vadd.f32 %v7603, %v7911
          %7913 = vdwg.mxu0
          %v7914 = vmul.f32 %v7803, 0.5
          %v7915 = vmul.f32 %v7805, 0.5
          %v7916 = vmul.f32 %v7807, 0.5
          %v7917 = vmul.f32 %v7809, 0.5
          %v7918 = vmul.f32 %v7813, 0.5
          %v7919 = vmul.f32 %v7815, 0.5
          %v7920 = vmul.f32 %v7817, 0.5
          %v7921 = vmul.f32 %v7819, 0.5
          %v7922 = vmul.f32 %v7823, 0.5
          %v7923 = vmul.f32 %v7825, 0.5
          %v7924 = vmul.f32 %v7827, 0.5
          %v7925 = vmul.f32 %v7829, 0.5
          %v7926 = vmul.f32 %v7833, 0.5
          %v7927 = vmul.f32 %v7835, 0.5
          %v7928 = vmul.f32 %v7837, 0.5
          %v7929 = vmul.f32 %v7839, 0.5
          %v7930 = vmul.f32 %v7803, 0.70710677
          %v7931 = vmul.f32 %v7805, 0.70710677
          %v7932 = vmul.f32 %v7807, 0.70710677
          %v7933 = vmul.f32 %v7809, 0.70710677
          %v7934 = vmul.f32 %v7813, 0.70710677
          %v7935 = vmul.f32 %v7815, 0.70710677
          %v7936 = vmul.f32 %v7817, 0.70710677
          %v7937 = vmul.f32 %v7819, 0.70710677
          %v7938 = vmul.f32 %v7823, 0.70710677
          %v7939 = vmul.f32 %v7825, 0.70710677
          %v7940 = vmul.f32 %v7827, 0.70710677
          %v7941 = vmul.f32 %v7829, 0.70710677
          %v7942 = vmul.f32 %v7833, 0.70710677
          %v7943 = vmul.f32 %v7835, 0.70710677
          %v7944 = vmul.f32 %v7837, 0.70710677
          %v7945 = vmul.f32 %v7839, 0.70710677
          %v7946 = verf.f32.pop %v7930
          %v7947 = verf.f32.pop %v7931
          %v7948 = verf.f32.pop %v7932
          %v7949 = verf.f32.pop %v7933
          %v7950 = verf.f32.pop %v7934
          %v7951 = verf.f32.pop %v7935
          %v7952 = verf.f32.pop %v7936
          %v7953 = verf.f32.pop %v7937
          %v7954 = verf.f32.pop %v7938
          %v7955 = verf.f32.pop %v7939
          %v7956 = verf.f32.pop %v7940
          %v7957 = verf.f32.pop %v7941
          %v7958 = verf.f32.pop %v7942
          %v7959 = verf.f32.pop %v7943
          %v7960 = verf.f32.pop %v7944
          %v7961 = verf.f32.pop %v7945
          %v7962 = vadd.f32 %v7946, 1.0
          %v7963 = vadd.f32 %v7947, 1.0
          %v7964 = vadd.f32 %v7948, 1.0
          %v7965 = vadd.f32 %v7949, 1.0
          %v7966 = vadd.f32 %v7950, 1.0
          %v7967 = vadd.f32 %v7951, 1.0
          %v7968 = vadd.f32 %v7952, 1.0
          %v7969 = vadd.f32 %v7953, 1.0
          %v7970 = vadd.f32 %v7954, 1.0
          %v7971 = vadd.f32 %v7955, 1.0
          %v7972 = vadd.f32 %v7956, 1.0
          %v7973 = vadd.f32 %v7957, 1.0
          %v7974 = vadd.f32 %v7958, 1.0
          %v7975 = vadd.f32 %v7959, 1.0
          %v7976 = vadd.f32 %v7960, 1.0
          %v7977 = vadd.f32 %v7961, 1.0
          %v7978 = vmul.f32 %v7914, %v7962
          %v7979 = vmul.f32 %v7915, %v7963
          %v7980 = vmul.f32 %v7916, %v7964
          %v7981 = vmul.f32 %v7917, %v7965
          %v7982 = vmul.f32 %v7918, %v7966
          %v7983 = vmul.f32 %v7919, %v7967
          %v7984 = vmul.f32 %v7920, %v7968
          %v7985 = vmul.f32 %v7921, %v7969
          %v7986 = vmul.f32 %v7922, %v7970
          %v7987 = vmul.f32 %v7923, %v7971
          %v7988 = vmul.f32 %v7924, %v7972
          %v7989 = vmul.f32 %v7925, %v7973
          %v7990 = vmul.f32 %v7926, %v7974
          %v7991 = vmul.f32 %v7927, %v7975
          %v7992 = vmul.f32 %v7928, %v7976
          %v7993 = vmul.f32 %v7929, %v7977
          %v7994 = vmul.f32 %v7978, %v7876
          %v7995 = vmul.f32 %v7979, %v7878
          %v7996 = vmul.f32 %v7980, %v7880
          %v7997 = vmul.f32 %v7981, %v7882
          %v7998 = vmul.f32 %v7982, %v7886
          %v7999 = vmul.f32 %v7983, %v7888
          %v8000 = vmul.f32 %v7984, %v7890
          %v8001 = vmul.f32 %v7985, %v7892
          %v8002 = vmul.f32 %v7986, %v7896
          %v8003 = vmul.f32 %v7987, %v7898
          %v8004 = vmul.f32 %v7988, %v7900
          %v8005 = vmul.f32 %v7989, %v7902
          %v8006 = vmul.f32 %v7990, %v7906
          %v8007 = vmul.f32 %v7991, %v7908
          %v8008 = vmul.f32 %v7992, %v7910
          %v8009 = vmul.f32 %v7993, %v7912
          %v8010 = vpack.c.bf16 %v7996, %v7994
          %v8011 = vpack.c.bf16 %v7997, %v7995
          %v8012 = vpack.c.bf16 %v8000, %v7998
          %v8013 = vpack.c.bf16 %v8001, %v7999
          %v8014 = vpack.c.bf16 %v8004, %v8002
          %v8015 = vpack.c.bf16 %v8005, %v8003
          %v8016 = vpack.c.bf16 %v8008, %v8006
          %v8017 = vpack.c.bf16 %v8009, %v8007
          %v8018 = vld [vmem:[%s7] sm:$0xf]
          %v8019 = vld [vmem:[%s7 + $0x4] sm:$0xf]
          %v8020 = vld [vmem:[%s7 + $0x8] sm:$0xf]
          %v8021 = vld [vmem:[%s7 + $0xc] sm:$0xf]
          %v8022 = vld [vmem:[%s7 + $0x10] sm:$0xf]
          %v8023 = vld [vmem:[%s7 + $0x14] sm:$0xf]
          %v8024 = vld [vmem:[%s7 + $0x18] sm:$0xf]
          %v8025 = vld [vmem:[%s7 + $0x1c] sm:$0xf]
          %v8026 = vld [vmem:[%s7 + $0x20] sm:$0xf]
          %v8027 = vld [vmem:[%s7 + $0x24] sm:$0xf]
          %v8028 = vld [vmem:[%s7 + $0x28] sm:$0xf]
          %v8029 = vld [vmem:[%s7 + $0x2c] sm:$0xf]
          %v8030 = vld [vmem:[%s7 + $0x30] sm:$0xf]
          %v8031 = vld [vmem:[%s7 + $0x34] sm:$0xf]
          %v8032 = vld [vmem:[%s7 + $0x38] sm:$0xf]
          %v8033 = vld [vmem:[%s7 + $0x3c] sm:$0xf]
          %v8034 = vld [vmem:[%s7 + $0x40] sm:$0xf]
          %v8035 = vld [vmem:[%s7 + $0x44] sm:$0xf]
          %v8036 = vld [vmem:[%s7 + $0x48] sm:$0xf]
          %v8037 = vld [vmem:[%s7 + $0x4c] sm:$0xf]
          %v8038 = vld [vmem:[%s7 + $0x50] sm:$0xf]
          %v8039 = vld [vmem:[%s7 + $0x54] sm:$0xf]
          %v8040 = vld [vmem:[%s7 + $0x58] sm:$0xf]
          %v8041 = vld [vmem:[%s7 + $0x5c] sm:$0xf]
          %v8042 = vld [vmem:[%s7 + $0x60] sm:$0xf]
          %v8043 = vld [vmem:[%s7 + $0x64] sm:$0xf]
          %v8044 = vld [vmem:[%s7 + $0x68] sm:$0xf]
          %v8045 = vld [vmem:[%s7 + $0x6c] sm:$0xf]
          %v8046 = vld [vmem:[%s7 + $0x70] sm:$0xf]
          %v8047 = vld [vmem:[%s7 + $0x74] sm:$0xf]
          %v8048 = vld [vmem:[%s7 + $0x78] sm:$0xf]
          %v8049 = vld [vmem:[%s7 + $0x7c] sm:$0xf]
          %v8051 = vlaneseq
          %v8052 = vshrl.u32 %v8051, 7
          %v8053 = vsub.s32 0, %v8052
          %v8054 = vrot.slane %v365, %v8053
          %v8088 = vunpack.c.l.b16 %v8018
          %v8089 = vunpack.c.l.b16 %v8019
          %v8090 = vunpack.c.l.b16 %v8020
          %v8091 = vunpack.c.l.b16 %v8021
          %v8092 = vunpack.c.l.b16 %v8022
          %v8093 = vunpack.c.l.b16 %v8023
          %v8094 = vunpack.c.l.b16 %v8024
          %v8095 = vunpack.c.l.b16 %v8025
          %v8096 = vunpack.c.l.b16 %v8026
          %v8097 = vunpack.c.l.b16 %v8027
          %v8098 = vunpack.c.l.b16 %v8028
          %v8099 = vunpack.c.l.b16 %v8029
          %v8100 = vunpack.c.l.b16 %v8030
          %v8101 = vunpack.c.l.b16 %v8031
          %v8102 = vunpack.c.l.b16 %v8032
          %v8103 = vunpack.c.l.b16 %v8033
          %v8104 = vunpack.c.l.b16 %v8034
          %v8105 = vunpack.c.l.b16 %v8035
          %v8106 = vunpack.c.l.b16 %v8036
          %v8107 = vunpack.c.l.b16 %v8037
          %v8108 = vunpack.c.l.b16 %v8038
          %v8109 = vunpack.c.l.b16 %v8039
          %v8110 = vunpack.c.l.b16 %v8040
          %v8111 = vunpack.c.l.b16 %v8041
          %v8112 = vunpack.c.l.b16 %v8042
          %v8113 = vunpack.c.l.b16 %v8043
          %v8114 = vunpack.c.l.b16 %v8044
          %v8115 = vunpack.c.l.b16 %v8045
          %v8116 = vunpack.c.l.b16 %v8046
          %v8117 = vunpack.c.l.b16 %v8047
          %v8118 = vunpack.c.l.b16 %v8048
          %v8119 = vunpack.c.l.b16 %v8049
          %v8120 = vpack.c.b16 %v8089, %v8088
          %v8121 = vpack.c.b16 %v8091, %v8090
          %v8122 = vpack.c.b16 %v8093, %v8092
          %v8123 = vpack.c.b16 %v8095, %v8094
          %v8124 = vpack.c.b16 %v8097, %v8096
          %v8125 = vpack.c.b16 %v8099, %v8098
          %v8126 = vpack.c.b16 %v8101, %v8100
          %v8127 = vpack.c.b16 %v8103, %v8102
          %v8128 = vpack.c.b16 %v8105, %v8104
          %v8129 = vpack.c.b16 %v8107, %v8106
          %v8130 = vpack.c.b16 %v8109, %v8108
          %v8131 = vpack.c.b16 %v8111, %v8110
          %v8132 = vpack.c.b16 %v8113, %v8112
          %v8133 = vpack.c.b16 %v8115, %v8114
          %v8134 = vpack.c.b16 %v8117, %v8116
          %v8135 = vpack.c.b16 %v8119, %v8118
          %8152 = vmatprep.subr.bf16.mxu0 0
          %8153 = vmatpush1.bf16.msra.mxu0 %v8120
          %8154 = vmatprep.subr.bf16.mxu0 0
          %8155 = vmatpush1.bf16.msra.mxu0 %v8121
          %8156 = vmatprep.subr.bf16.mxu0 0
          %8157 = vmatpush1.bf16.msra.mxu0 %v8122
          %8158 = vmatprep.subr.bf16.mxu0 0
          %8159 = vmatpush1.bf16.msra.mxu0 %v8123
          %8160 = vmatprep.subr.bf16.mxu0 0
          %8161 = vmatpush1.bf16.msra.mxu0 %v8124
          %8162 = vmatprep.subr.bf16.mxu0 0
          %8163 = vmatpush1.bf16.msra.mxu0 %v8125
          %8164 = vmatprep.subr.bf16.mxu0 0
          %8165 = vmatpush1.bf16.msra.mxu0 %v8126
          %8166 = vmatprep.subr.bf16.mxu0 0
          %8167 = vmatpush1.bf16.msra.mxu0 %v8127
          %8168 = vmatprep.subr.bf16.mxu0 0
          %8169 = vmatpush1.bf16.msra.mxu0 %v8128
          %8170 = vmatprep.subr.bf16.mxu0 0
          %8171 = vmatpush1.bf16.msra.mxu0 %v8129
          %8172 = vmatprep.subr.bf16.mxu0 0
          %8173 = vmatpush1.bf16.msra.mxu0 %v8130
          %8174 = vmatprep.subr.bf16.mxu0 0
          %8175 = vmatpush1.bf16.msra.mxu0 %v8131
          %8176 = vmatprep.subr.bf16.mxu0 0
          %8177 = vmatpush1.bf16.msra.mxu0 %v8132
          %8178 = vmatprep.subr.bf16.mxu0 0
          %8179 = vmatpush1.bf16.msra.mxu0 %v8133
          %8180 = vmatprep.subr.bf16.mxu0 0
          %8181 = vmatpush1.bf16.msra.mxu0 %v8134
          %8182 = vmatprep.subr.bf16.mxu0 0
          %8183 = vmatpush1.bf16.msra.mxu0 %v8135
          %8184 = vmatprep.mubr.bf16.mxu0 %v8011
          %8185 = vmatmul.mubr.bf16.gmra.mrb[0].mxu0 %v8010
          %v8186 = vpop.f32.mrb[0].mxu0
          %v8187 = vadd.f32 %v8054, %v8186
          %v8188 = vpop.f32.mrb[0].mxu0
          %v8189 = vpop.f32.mrb[0].mxu0
          %v8190 = vadd.f32 %v8054, %v8189
          %v8191 = vpop.f32.mrb[0].mxu0
          %8192 = vmatprep.mubr.bf16.mxu0 %v8013
          %8193 = vmatmul.mubr.bf16.gmra.mrb[0].mxu0 %v8012
          %v8194 = vpop.f32.mrb[0].mxu0
          %v8195 = vadd.f32 %v8054, %v8194
          %v8196 = vpop.f32.mrb[0].mxu0
          %v8197 = vpop.f32.mrb[0].mxu0
          %v8198 = vadd.f32 %v8054, %v8197
          %v8199 = vpop.f32.mrb[0].mxu0
          %8200 = vmatprep.mubr.bf16.mxu0 %v8015
          %8201 = vmatmul.mubr.bf16.gmra.mrb[0].mxu0 %v8014
          %v8202 = vpop.f32.mrb[0].mxu0
          %v8203 = vadd.f32 %v8054, %v8202
          %v8204 = vpop.f32.mrb[0].mxu0
          %v8205 = vpop.f32.mrb[0].mxu0
          %v8206 = vadd.f32 %v8054, %v8205
          %v8207 = vpop.f32.mrb[0].mxu0
          %8208 = vmatprep.mubr.bf16.mxu0 %v8017
          %8209 = vmatmul.mubr.bf16.gmra.mrb[0].mxu0 %v8016
          %v8210 = vpop.f32.mrb[0].mxu0
          %v8211 = vadd.f32 %v8054, %v8210
          %v8212 = vpop.f32.mrb[0].mxu0
          %v8213 = vpop.f32.mrb[0].mxu0
          %v8214 = vadd.f32 %v8054, %v8213
          %v8215 = vpop.f32.mrb[0].mxu0
          %8216 = vdwg.mxu0
          %v8217 = vld [vmem:[%s3570 + $0x5] sm:$0xff]
          %v8218 = vld [vmem:[%s3570 + $0xd] sm:$0xff]
          %v8219 = vld [vmem:[%s3570 + $0x25] sm:$0xff]
          %v8220 = vld [vmem:[%s3570 + $0x2d] sm:$0xff]
          %v8221 = vld [vmem:[%s3570 + $0x45] sm:$0xff]
          %v8222 = vld [vmem:[%s3570 + $0x4d] sm:$0xff]
          %v8223 = vld [vmem:[%s3570 + $0x65] sm:$0xff]
          %v8224 = vld [vmem:[%s3570 + $0x6d] sm:$0xff]
          %v8225 = vadd.f32 %v8217, %v8187
          %v8226 = vadd.f32 %v8218, %v8190
          %v8227 = vadd.f32 %v8219, %v8195
          %v8228 = vadd.f32 %v8220, %v8198
          %v8229 = vadd.f32 %v8221, %v8203
          %v8230 = vadd.f32 %v8222, %v8206
          %v8231 = vadd.f32 %v8223, %v8211
          %v8232 = vadd.f32 %v8224, %v8214
          %s8233 = smul.u32 %s372, 16
          %s8234 = scalar_lea.vmem %s349, %s8233 [#allocation2]
          %8235 = vst [vmem:[%s8234] sm:$0xff] %v8225
          %8236 = vst [vmem:[%s8234 + $0x8] sm:$0xff] %v8226
          %8237 = vst [vmem:[%s8234 + $0x10] sm:$0xff] %v8227
          %8238 = vst [vmem:[%s8234 + $0x18] sm:$0xff] %v8228
          %8239 = vst [vmem:[%s8234 + $0x20] sm:$0xff] %v8229
          %8240 = vst [vmem:[%s8234 + $0x28] sm:$0xff] %v8230
          %8241 = vst [vmem:[%s8234 + $0x30] sm:$0xff] %v8231
          %8242 = vst [vmem:[%s8234 + $0x38] sm:$0xff] %v8232
        $region61: #{tpu_custom_call.1} parent=55 // loop_footer
          %s371 = sadd.s32 1, %s367
        $region62: #{tpu_custom_call.1} parent=55 // loop_footer_branch
          %366 = sbr.rel target = $region58
        $region63: #{tpu_custom_call.1} parent=55 // loop_exit
          _
        %s8243 = sand.u32 %s241, 1
        %s8244 = scalar_lea.sflag [#allocation3], %s8243
        %s8245 = sand.u32 %s241, 1
        %s8246 = smul.addr %s8245, 256
        %s8247 = scalar_lea.vmem [#allocation2], %s8246
        // Predicated region
        $region64: #{tpu_custom_call.1} parent=55 // pred_check
          %p8248 = pneg %p251
        $region65: #{tpu_custom_call.1} parent=55 // pred_check_branch
          %8250 = sbr.rel (%p8248) target = $region67
        $region66: #{tpu_custom_call.1} parent=55 // pred_region
          %s8251 = smul.u32 16, %s28
          %s8253 = ssub.s32 4096, 4096
          %8254 = vsyncadd %s8244, %s8253
          %s8255 = smul.addr %s8251, 2
          %s8256 = smul.addr %s27, 32
          %s8257 = sadd.s32 %s8255, %s8256
          %s8258 = smul.addr %s8257, 128
          %s8259 = scalar_lea.hbm %s9, %s8258
          %s8260 = sshll.u32 %s8247, 4
          %s8261 = int_to_ptr.vmem [resolvable:$true] %s8260
          %8266 = dma.vmem_to_hbm [thread:$0]  %s8261, 4096, %s8259, %s8244, 128, 128, 8
        $region67: #{tpu_custom_call.1} parent=55 // pred_fallthru
          _
      $region56: #{tpu_custom_call.1} parent=5 // pred_fallthru
        _
      %p8267 = scmp.le.s32.totalorder 2, %s18
      // Predicated region
      $region68: #{tpu_custom_call.1} parent=5 // pred_check
        %p8268 = pneg %p8267
      $region69: #{tpu_custom_call.1} parent=5 // pred_check_branch
        %8270 = sbr.rel (%p8268) target = $region71
      $region70: #{tpu_custom_call.1} parent=5 // pred_region
        %s8271 = ssub.s32 %s18, 2
        // Predicated region
        $region72: #{tpu_custom_call.1} parent=70 // pred_check
          %p8272 = pneg %p257
        $region73: #{tpu_custom_call.1} parent=70 // pred_check_branch
          %8274 = sbr.rel (%p8272) target = $region75
        $region74: #{tpu_custom_call.1} parent=70 // pred_region
          %s8275 = sand.u32 %s242, 1
          %s8276 = scalar_lea.sflag [#allocation3], %s8275
          %s8277 = sand.u32 %s242, 1
          %s8278 = smul.addr %s8277, 256
          %s8279 = scalar_lea.vmem [#allocation2], %s8278
          %8280 = dma.done %s8276, 4096
        $region75: #{tpu_custom_call.1} parent=70 // pred_fallthru
          _
      $region71: #{tpu_custom_call.1} parent=5 // pred_fallthru
        _
    $region6: #{tpu_custom_call.1} parent=1 // loop_footer
      %s22 = sadd.s32 1, %s18
    $region7: #{tpu_custom_call.1} parent=1 // loop_footer_branch
      %17 = sbr.rel target = $region3
    $region8: #{tpu_custom_call.1} parent=1 // loop_exit
      _
    %8281 = vsyncpa [#allocation3], 1
    %s8282 = scalar_lea.sflag [#allocation3], 1
    %8283 = vsyncpa %s8282, 1

</llo_original>
